<compile_context>
chip_gen: v5e
topology: v5e:2x2
jax: 0.10.0
libtpu: 0.0.40
codegen_flags: <defaults>
</compile_context>

<pallas_src>
import functools

import numpy as np
import jax
import jax.numpy as jnp
from jax import lax
from jax.experimental import pallas as pl
from jax.experimental.pallas import tpu as pltpu

_EPS = 1e-5
_NUM_GROUPS = 32                       # nn.GroupNorm(32, C)
_INV_SQRT2 = np.float32(1.0 / np.sqrt(2.0))


def _gelu_exact(y):
    # exact (erf) GELU, matching torch nn.GELU() default
    return 0.5 * y * (1.0 + lax.erf(y * _INV_SQRT2))


def _reflect_pad_into(dst_ref, src, H, W, p):
    """Write src (H, W, C) into dst_ref ((H+2p, W+2p, C) VMEM) with a p-pixel
    reflect halo (PyTorch padding_mode='reflect': edge row/col excluded)."""
    dst_ref[p:H + p, p:W + p, :] = src
    for i in range(p):
        dst_ref[i:i + 1, p:W + p, :] = src[p - i:p - i + 1, :, :]
        dst_ref[H + p + i:H + p + i + 1, p:W + p, :] = src[H - 2 - i:H - 1 - i, :, :]
    # Columns read back the rows written above, so corners come out right.
    for j in range(p):
        dst_ref[:, j:j + 1, :] = dst_ref[:, 2 * p - j:2 * p - j + 1, :]
        dst_ref[:, W + p + j:W + p + j + 1, :] = dst_ref[:, W + p - 2 - j:W + p - 1 - j, :]


def _im2col_into(patch_ref, pad_ref, K, H, W, C):
    """patch_ref[:, t*C:(t+1)*C] = pad_ref[dy:dy+H, dx:dx+W, :], t = dy*K+dx."""
    for dy in range(K):
        for dx in range(K):
            t = dy * K + dx
            patch_ref[:, t * C:(t + 1) * C] = (
                pad_ref[dy:dy + H, dx:dx + W, :].reshape(H * W, C))


def _group_norm_gelu_rows(x, gamma, beta, groups):
    """GroupNorm + exact GELU for x laid out (H*W, C), channels minor."""
    hw, C = x.shape
    cg = C // groups
    denom = np.float32(1.0 / (hw * cg))
    s = jnp.sum(x, axis=0, keepdims=True)                          # (1, C)
    if cg > 1:  # general case: hoisted compile-time block-diag constant
        agg = jnp.asarray(np.kron(np.eye(groups, dtype=np.float32),
                                  np.ones((cg, cg), np.float32)))
        s = jnp.dot(s, agg, preferred_element_type=jnp.float32)
    xc = x - s * denom                                             # centered
    v = jnp.sum(xc * xc, axis=0, keepdims=True)
    if cg > 1:
        v = jnp.dot(v, agg, preferred_element_type=jnp.float32)
    y = xc * lax.rsqrt(v * denom + np.float32(_EPS)) * gamma + beta
    return _gelu_exact(y)


def _group_norm_gelu_cols(x, gamma, beta, groups):
    """GroupNorm + exact GELU for x laid out (C, H*W), channels on sublanes."""
    C, hw = x.shape
    cg = C // groups
    denom = np.float32(1.0 / (hw * cg))
    s = jnp.sum(x, axis=1, keepdims=True)                          # (C, 1)
    if cg > 1:
        agg = jnp.asarray(np.kron(np.eye(groups, dtype=np.float32),
                                  np.ones((cg, cg), np.float32)))
        s = jnp.dot(agg, s, preferred_element_type=jnp.float32)
    xc = x - s * denom
    v = jnp.sum(xc * xc, axis=1, keepdims=True)
    if cg > 1:
        v = jnp.dot(agg, v, preferred_element_type=jnp.float32)
    y = xc * lax.rsqrt(v * denom + np.float32(_EPS)) * gamma + beta
    return _gelu_exact(y)


def _decoder_block_kernel(x_ref, w1_ref, w2t_ref, g1_ref, b1_ref, g2_ref, b2_ref,
                          o_ref, xpad_ref, p1_ref, mpad_ref, p2_ref, *,
                          K, H, W, Cin, Cmid, Cout, groups):
    # x_ref:   (1, H, W, Cin)      one sample, NHWC, unpadded
    # w1_ref:  (K*K*Cin, Cmid)     im2col weight, decode1
    # w2t_ref: (Cout, K*K*Cmid)    transposed im2col weight, decode2
    # g*/b*:   GroupNorm affine    layer1: (1, Cmid), layer2: (Cout, 1)
    # o_ref:   (1, Cout, H*W)      lane-dense output (already NCHW)
    p = K // 2
    HW = H * W

    # ----- decode1: reflect conv (single im2col matmul) -> GroupNorm -> GELU
    _reflect_pad_into(xpad_ref, x_ref[0], H, W, p)
    _im2col_into(p1_ref, xpad_ref, K, H, W, Cin)
    acc1 = jnp.dot(p1_ref[...], w1_ref[...],
                   preferred_element_type=jnp.float32)             # (HW, Cmid)
    y1 = _group_norm_gelu_rows(acc1, g1_ref[...], b1_ref[...], groups)

    # ----- decode2: same, in (Cout, HW) orientation for a lane-dense store.
    _reflect_pad_into(mpad_ref, y1.reshape(H, W, Cmid), H, W, p)
    _im2col_into(p2_ref, mpad_ref, K, H, W, Cmid)
    # (Cout, 9*Cmid) contracted with (HW, 9*Cmid) over the minor dims -> (Cout, HW)
    acc2 = lax.dot_general(w2t_ref[...], p2_ref[...],
                           dimension_numbers=(((1,), (1,)), ((), ())),
                           preferred_element_type=jnp.float32)
    y2 = _group_norm_gelu_cols(acc2, g2_ref[...], b2_ref[...], groups)
    o_ref[...] = y2.reshape(1, Cout, HW).astype(o_ref.dtype)


@jax.jit
def decoder_block_forward(x_nchw, params):
    """Pallas implementation of _DecoderBlock.forward (LayerChoice -> choice 0)."""
    N, Cin, H, W = x_nchw.shape
    w1 = params["w1"]                       # (K, K, Cin, Cmid)  HWIO
    w2 = params["w2"]                       # (K, K, Cmid, Cout) HWIO
    K = w1.shape[0]
    Cmid, Cout = w1.shape[-1], w2.shape[-1]
    assert Cmid % _NUM_GROUPS == 0 and Cout % _NUM_GROUPS == 0
    HW = H * W
    Hp, Wp = H + 2 * (K // 2), W + 2 * (K // 2)

    x_nhwc = jnp.transpose(x_nchw, (0, 2, 3, 1))        # NCHW -> NHWC (channels minor)
    w1i = w1.reshape(K * K * Cin, Cmid)                 # im2col weight (once)
    w2t = w2.reshape(K * K * Cmid, Cout).T              # (Cout, 9*Cmid)
    g1 = params["gamma1"].reshape(1, Cmid)
    b1 = params["beta1"].reshape(1, Cmid)
    g2 = params["gamma2"].reshape(Cout, 1)
    b2 = params["beta2"].reshape(Cout, 1)

    kernel = functools.partial(_decoder_block_kernel, K=K, H=H, W=W,
                               Cin=Cin, Cmid=Cmid, Cout=Cout, groups=_NUM_GROUPS)
    out = pl.pallas_call(
        kernel,
        out_shape=jax.ShapeDtypeStruct((N, Cout, HW), jnp.float32),
        grid_spec=pltpu.PrefetchScalarGridSpec(
            num_scalar_prefetch=0,
            grid=(N,),                                   # batch axis -> v7x megacore
            in_specs=[
                pl.BlockSpec((1, H, W, Cin), lambda n: (n, 0, 0, 0)),
                pl.BlockSpec((K * K * Cin, Cmid), lambda n: (0, 0)),
                pl.BlockSpec((Cout, K * K * Cmid), lambda n: (0, 0)),
                pl.BlockSpec((1, Cmid), lambda n: (0, 0)),
                pl.BlockSpec((1, Cmid), lambda n: (0, 0)),
                pl.BlockSpec((Cout, 1), lambda n: (0, 0)),
                pl.BlockSpec((Cout, 1), lambda n: (0, 0)),
            ],
            out_specs=pl.BlockSpec((1, Cout, HW), lambda n: (n, 0, 0)),
            scratch_shapes=[
                pltpu.VMEM((Hp, Wp, Cin), jnp.float32),        # padded input
                pltpu.VMEM((HW, K * K * Cin), jnp.float32),    # im2col patches L1
                pltpu.VMEM((Hp, Wp, Cmid), jnp.float32),       # padded intermediate
                pltpu.VMEM((HW, K * K * Cmid), jnp.float32),   # im2col patches L2
            ],
        ),
        compiler_params=pltpu.CompilerParams(
            dimension_semantics=("parallel",)),
    )(x_nhwc, w1i, w2t, g1, b1, g2, b2)
    return out.reshape(N, Cout, H, W)                    # already NCHW; free reshape


# ---------------- pure-JAX reference (for correctness check) ----------------
def _ref_forward(x_nchw, params):
    def conv(x, w):
        p = w.shape[0] // 2
        xp = jnp.pad(x, ((0, 0), (p, p), (p, p), (0, 0)), mode="reflect")
        return lax.conv_general_dilated(
            xp, w, (1, 1), "VALID",
            dimension_numbers=("NHWC", "HWIO", "NHWC"))

    def gn(x, gamma, beta, groups=_NUM_GROUPS):
        N, H, W, C = x.shape
        cg = C // groups
        xg = x.reshape(N, H, W, groups, cg)
        mean = xg.mean(axis=(1, 2, 4), keepdims=True)
        var = xg.var(axis=(1, 2, 4), keepdims=True)
        xn = ((xg - mean) / jnp.sqrt(var + _EPS)).reshape(N, H, W, C)
        return xn * gamma + beta

    x = jnp.transpose(x_nchw, (0, 2, 3, 1))
    x = jax.nn.gelu(gn(conv(x, params["w1"]), params["gamma1"], params["beta1"]),
                    approximate=False)
    x = jax.nn.gelu(gn(conv(x, params["w2"]), params["gamma2"], params["beta2"]),
                    approximate=False)
    return jnp.transpose(x, (0, 3, 1, 2))


if __name__ == "__main__":
    # Small shapes consistent with the module: in=4, middle=32, out=32
    # (GroupNorm(32, C) needs C % 32 == 0), batch=2, spatial=16.
    N, Cin, Cmid, Cout, H, W = 2, 4, 32, 32, 16, 16
    key = jax.random.PRNGKey(0)
    kx, k1, k2, k3, k4, k5, k6 = jax.random.split(key, 7)

    x = jax.random.normal(kx, (N, Cin, H, W), jnp.float32)
    params = {
        # decode1 / decode2: LayerChoice choice 0 -> 3x3 reflect conv, bias=False
        "w1": 0.20 * jax.random.normal(k1, (3, 3, Cin, Cmid), jnp.float32),
        "w2": 0.08 * jax.random.normal(k2, (3, 3, Cmid, Cout), jnp.float32),
        # GroupNorm affine params (deterministic synthetic init)
        "gamma1": 1.0 + 0.1 * jax.random.normal(k3, (Cmid,), jnp.float32),
        "beta1": 0.1 * jax.random.normal(k4, (Cmid,), jnp.float32),
        "gamma2": 1.0 + 0.1 * jax.random.normal(k5, (Cout,), jnp.float32),
        "beta2": 0.1 * jax.random.normal(k6, (Cout,), jnp.float32),
    }

    out = jax.block_until_ready(decoder_block_forward(x, params))
    ref = jax.block_until_ready(_ref_forward(x, params))

    assert out.shape == (N, Cout, H, W), out.shape
    np.testing.assert_allclose(np.asarray(out), np.asarray(ref),
                               rtol=1e-4, atol=1e-4)
    print("KERNEL_OK")
</pallas_src>

<mosaic_0001>
module attributes {stable_mosaic.version = 11 : i64} {
  func.func @_decoder_block_kernel(%arg0: i32, %arg1: memref<1x16x16x4xf32, #tpu.memory_space<vmem>>, %arg2: memref<36x32xf32, #tpu.memory_space<vmem>>, %arg3: memref<32x288xf32, #tpu.memory_space<vmem>>, %arg4: memref<1x32xf32, #tpu.memory_space<vmem>>, %arg5: memref<1x32xf32, #tpu.memory_space<vmem>>, %arg6: memref<32x1xf32, #tpu.memory_space<vmem>>, %arg7: memref<32x1xf32, #tpu.memory_space<vmem>>, %arg8: memref<1x32x256xf32, #tpu.memory_space<vmem>>, %arg9: memref<18x18x4xf32, #tpu.memory_space<vmem>>, %arg10: memref<256x36xf32, #tpu.memory_space<vmem>>, %arg11: memref<18x18x32xf32, #tpu.memory_space<vmem>>, %arg12: memref<256x288xf32, #tpu.memory_space<vmem>>) attributes {dimension_semantics = [#tpu.dimension_semantics<parallel>], iteration_bounds = array<i64: 2>, scalar_prefetch = 0 : i64, scratch_operands = 4 : i64, tpu.core_type = #tpu.core_type<tc>, window_params = [{transform_indices = @transform_0, window_bounds = array<i64: 1, 16, 16, 4>}, {pipeline_mode = #tpu.pipeline_mode<synchronous>, transform_indices = @transform_1, window_bounds = array<i64: 36, 32>}, {pipeline_mode = #tpu.pipeline_mode<synchronous>, transform_indices = @transform_2, window_bounds = array<i64: 32, 288>}, {pipeline_mode = #tpu.pipeline_mode<synchronous>, transform_indices = @transform_3, window_bounds = array<i64: 1, 32>}, {pipeline_mode = #tpu.pipeline_mode<synchronous>, transform_indices = @transform_4, window_bounds = array<i64: 1, 32>}, {pipeline_mode = #tpu.pipeline_mode<synchronous>, transform_indices = @transform_5, window_bounds = array<i64: 32, 1>}, {pipeline_mode = #tpu.pipeline_mode<synchronous>, transform_indices = @transform_6, window_bounds = array<i64: 32, 1>}, {transform_indices = @transform_7, window_bounds = array<i64: 1, 32, 256>}]} {
    %c0 = arith.constant 0 : index
    %c0_0 = arith.constant 0 : index
    %c0_1 = arith.constant 0 : index
    %c0_2 = arith.constant 0 : index
    %0 = vector.load %arg1[%c0, %c0_0, %c0_1, %c0_2] : memref<1x16x16x4xf32, #tpu.memory_space<vmem>>, vector<1x16x16x4xf32>
    %1 = vector.shape_cast %0 : vector<1x16x16x4xf32> to vector<16x16x4xf32>
    %c1 = arith.constant 1 : index
    %c1_3 = arith.constant 1 : index
    %c0_4 = arith.constant 0 : index
    %2 = vector.load %arg9[%c1, %c1_3, %c0_4] : memref<18x18x4xf32, #tpu.memory_space<vmem>>, vector<16x16x4xf32>
    tpu.vector_store %arg9[%c1, %c1_3, %c0_4], %1 {strides = array<i32>} : memref<18x18x4xf32, #tpu.memory_space<vmem>>, vector<16x16x4xf32>,
    %3 = vector.extract_strided_slice %1 {offsets = [1, 0, 0], sizes = [1, 16, 4], strides = [1, 1, 1]} : vector<16x16x4xf32> to vector<1x16x4xf32>
    %c0_5 = arith.constant 0 : index
    %c1_6 = arith.constant 1 : index
    %c0_7 = arith.constant 0 : index
    %4 = vector.load %arg9[%c0_5, %c1_6, %c0_7] : memref<18x18x4xf32, #tpu.memory_space<vmem>>, vector<1x16x4xf32>
    tpu.vector_store %arg9[%c0_5, %c1_6, %c0_7], %3 {strides = array<i32>} : memref<18x18x4xf32, #tpu.memory_space<vmem>>, vector<1x16x4xf32>,
    %5 = vector.extract_strided_slice %1 {offsets = [14, 0, 0], sizes = [1, 16, 4], strides = [1, 1, 1]} : vector<16x16x4xf32> to vector<1x16x4xf32>
    %c17 = arith.constant 17 : index
    %c1_8 = arith.constant 1 : index
    %c0_9 = arith.constant 0 : index
    %6 = vector.load %arg9[%c17, %c1_8, %c0_9] : memref<18x18x4xf32, #tpu.memory_space<vmem>>, vector<1x16x4xf32>
    tpu.vector_store %arg9[%c17, %c1_8, %c0_9], %5 {strides = array<i32>} : memref<18x18x4xf32, #tpu.memory_space<vmem>>, vector<1x16x4xf32>,
    %c0_10 = arith.constant 0 : index
    %c2 = arith.constant 2 : index
    %c0_11 = arith.constant 0 : index
    %7 = vector.load %arg9[%c0_10, %c2, %c0_11] : memref<18x18x4xf32, #tpu.memory_space<vmem>>, vector<18x1x4xf32>
    %c0_12 = arith.constant 0 : index
    %c0_13 = arith.constant 0 : index
    %c0_14 = arith.constant 0 : index
    %8 = vector.load %arg9[%c0_12, %c0_13, %c0_14] : memref<18x18x4xf32, #tpu.memory_space<vmem>>, vector<18x1x4xf32>
    tpu.vector_store %arg9[%c0_12, %c0_13, %c0_14], %7 {strides = array<i32>} : memref<18x18x4xf32, #tpu.memory_space<vmem>>, vector<18x1x4xf32>,
    %c0_15 = arith.constant 0 : index
    %c15 = arith.constant 15 : index
    %c0_16 = arith.constant 0 : index
    %9 = vector.load %arg9[%c0_15, %c15, %c0_16] : memref<18x18x4xf32, #tpu.memory_space<vmem>>, vector<18x1x4xf32>
    %c0_17 = arith.constant 0 : index
    %c17_18 = arith.constant 17 : index
    %c0_19 = arith.constant 0 : index
    %10 = vector.load %arg9[%c0_17, %c17_18, %c0_19] : memref<18x18x4xf32, #tpu.memory_space<vmem>>, vector<18x1x4xf32>
    tpu.vector_store %arg9[%c0_17, %c17_18, %c0_19], %9 {strides = array<i32>} : memref<18x18x4xf32, #tpu.memory_space<vmem>>, vector<18x1x4xf32>,
    %c0_20 = arith.constant 0 : index
    %c0_21 = arith.constant 0 : index
    %c0_22 = arith.constant 0 : index
    %11 = vector.load %arg9[%c0_20, %c0_21, %c0_22] : memref<18x18x4xf32, #tpu.memory_space<vmem>>, vector<16x16x4xf32>
    %12 = vector.shape_cast %11 : vector<16x16x4xf32> to vector<256x4xf32>
    %c0_23 = arith.constant 0 : index
    %c0_24 = arith.constant 0 : index
    %13 = vector.load %arg10[%c0_23, %c0_24] : memref<256x36xf32, #tpu.memory_space<vmem>>, vector<256x4xf32>
    tpu.vector_store %arg10[%c0_23, %c0_24], %12 {strides = array<i32>} : memref<256x36xf32, #tpu.memory_space<vmem>>, vector<256x4xf32>,
    %c0_25 = arith.constant 0 : index
    %c1_26 = arith.constant 1 : index
    %c0_27 = arith.constant 0 : index
    %14 = vector.load %arg9[%c0_25, %c1_26, %c0_27] : memref<18x18x4xf32, #tpu.memory_space<vmem>>, vector<16x16x4xf32>
    %15 = vector.shape_cast %14 : vector<16x16x4xf32> to vector<256x4xf32>
    %c0_28 = arith.constant 0 : index
    %c4 = arith.constant 4 : index
    %16 = vector.load %arg10[%c0_28, %c4] : memref<256x36xf32, #tpu.memory_space<vmem>>, vector<256x4xf32>
    tpu.vector_store %arg10[%c0_28, %c4], %15 {strides = array<i32>} : memref<256x36xf32, #tpu.memory_space<vmem>>, vector<256x4xf32>,
    %c0_29 = arith.constant 0 : index
    %c2_30 = arith.constant 2 : index
    %c0_31 = arith.constant 0 : index
    %17 = vector.load %arg9[%c0_29, %c2_30, %c0_31] : memref<18x18x4xf32, #tpu.memory_space<vmem>>, vector<16x16x4xf32>
    %18 = vector.shape_cast %17 : vector<16x16x4xf32> to vector<256x4xf32>
    %c0_32 = arith.constant 0 : index
    %c8 = arith.constant 8 : index
    %19 = vector.load %arg10[%c0_32, %c8] : memref<256x36xf32, #tpu.memory_space<vmem>>, vector<256x4xf32>
    tpu.vector_store %arg10[%c0_32, %c8], %18 {strides = array<i32>} : memref<256x36xf32, #tpu.memory_space<vmem>>, vector<256x4xf32>,
    %c1_33 = arith.constant 1 : index
    %c0_34 = arith.constant 0 : index
    %c0_35 = arith.constant 0 : index
    %20 = vector.load %arg9[%c1_33, %c0_34, %c0_35] : memref<18x18x4xf32, #tpu.memory_space<vmem>>, vector<16x16x4xf32>
    %21 = vector.shape_cast %20 : vector<16x16x4xf32> to vector<256x4xf32>
    %c0_36 = arith.constant 0 : index
    %c12 = arith.constant 12 : index
    %22 = vector.load %arg10[%c0_36, %c12] : memref<256x36xf32, #tpu.memory_space<vmem>>, vector<256x4xf32>
    tpu.vector_store %arg10[%c0_36, %c12], %21 {strides = array<i32>} : memref<256x36xf32, #tpu.memory_space<vmem>>, vector<256x4xf32>,
    %c1_37 = arith.constant 1 : index
    %c1_38 = arith.constant 1 : index
    %c0_39 = arith.constant 0 : index
    %23 = vector.load %arg9[%c1_37, %c1_38, %c0_39] : memref<18x18x4xf32, #tpu.memory_space<vmem>>, vector<16x16x4xf32>
    %24 = vector.shape_cast %23 : vector<16x16x4xf32> to vector<256x4xf32>
    %c0_40 = arith.constant 0 : index
    %c16 = arith.constant 16 : index
    %25 = vector.load %arg10[%c0_40, %c16] : memref<256x36xf32, #tpu.memory_space<vmem>>, vector<256x4xf32>
    tpu.vector_store %arg10[%c0_40, %c16], %24 {strides = array<i32>} : memref<256x36xf32, #tpu.memory_space<vmem>>, vector<256x4xf32>,
    %c1_41 = arith.constant 1 : index
    %c2_42 = arith.constant 2 : index
    %c0_43 = arith.constant 0 : index
    %26 = vector.load %arg9[%c1_41, %c2_42, %c0_43] : memref<18x18x4xf32, #tpu.memory_space<vmem>>, vector<16x16x4xf32>
    %27 = vector.shape_cast %26 : vector<16x16x4xf32> to vector<256x4xf32>
    %c0_44 = arith.constant 0 : index
    %c20 = arith.constant 20 : index
    %28 = vector.load %arg10[%c0_44, %c20] : memref<256x36xf32, #tpu.memory_space<vmem>>, vector<256x4xf32>
    tpu.vector_store %arg10[%c0_44, %c20], %27 {strides = array<i32>} : memref<256x36xf32, #tpu.memory_space<vmem>>, vector<256x4xf32>,
    %c2_45 = arith.constant 2 : index
    %c0_46 = arith.constant 0 : index
    %c0_47 = arith.constant 0 : index
    %29 = vector.load %arg9[%c2_45, %c0_46, %c0_47] : memref<18x18x4xf32, #tpu.memory_space<vmem>>, vector<16x16x4xf32>
    %30 = vector.shape_cast %29 : vector<16x16x4xf32> to vector<256x4xf32>
    %c0_48 = arith.constant 0 : index
    %c24 = arith.constant 24 : index
    %31 = vector.load %arg10[%c0_48, %c24] : memref<256x36xf32, #tpu.memory_space<vmem>>, vector<256x4xf32>
    tpu.vector_store %arg10[%c0_48, %c24], %30 {strides = array<i32>} : memref<256x36xf32, #tpu.memory_space<vmem>>, vector<256x4xf32>,
    %c2_49 = arith.constant 2 : index
    %c1_50 = arith.constant 1 : index
    %c0_51 = arith.constant 0 : index
    %32 = vector.load %arg9[%c2_49, %c1_50, %c0_51] : memref<18x18x4xf32, #tpu.memory_space<vmem>>, vector<16x16x4xf32>
    %33 = vector.shape_cast %32 : vector<16x16x4xf32> to vector<256x4xf32>
    %c0_52 = arith.constant 0 : index
    %c28 = arith.constant 28 : index
    %34 = vector.load %arg10[%c0_52, %c28] : memref<256x36xf32, #tpu.memory_space<vmem>>, vector<256x4xf32>
    tpu.vector_store %arg10[%c0_52, %c28], %33 {strides = array<i32>} : memref<256x36xf32, #tpu.memory_space<vmem>>, vector<256x4xf32>,
    %c2_53 = arith.constant 2 : index
    %c2_54 = arith.constant 2 : index
    %c0_55 = arith.constant 0 : index
    %35 = vector.load %arg9[%c2_53, %c2_54, %c0_55] : memref<18x18x4xf32, #tpu.memory_space<vmem>>, vector<16x16x4xf32>
    %36 = vector.shape_cast %35 : vector<16x16x4xf32> to vector<256x4xf32>
    %c0_56 = arith.constant 0 : index
    %c32 = arith.constant 32 : index
    %37 = vector.load %arg10[%c0_56, %c32] : memref<256x36xf32, #tpu.memory_space<vmem>>, vector<256x4xf32>
    tpu.vector_store %arg10[%c0_56, %c32], %36 {strides = array<i32>} : memref<256x36xf32, #tpu.memory_space<vmem>>, vector<256x4xf32>,
    %c0_57 = arith.constant 0 : index
    %c0_58 = arith.constant 0 : index
    %38 = vector.load %arg10[%c0_57, %c0_58] : memref<256x36xf32, #tpu.memory_space<vmem>>, vector<256x36xf32>
    %c0_59 = arith.constant 0 : index
    %c0_60 = arith.constant 0 : index
    %39 = vector.load %arg2[%c0_59, %c0_60] : memref<36x32xf32, #tpu.memory_space<vmem>>, vector<36x32xf32>
    %cst = arith.constant dense<0.000000e+00> : vector<256x32xf32>
    %40 = tpu.matmul %38, %39, %cst {dimension_numbers = #tpu.dot_dimension_numbers<[1], [0], [0], [1], [0, 0, 1, 1], [], []>} : vector<256x36xf32>, vector<36x32xf32>, vector<256x32xf32> -> vector<256x32xf32>
    %c0_61 = arith.constant 0 : index
    %c0_62 = arith.constant 0 : index
    %41 = vector.load %arg4[%c0_61, %c0_62] : memref<1x32xf32, #tpu.memory_space<vmem>>, vector<1x32xf32>
    %c0_63 = arith.constant 0 : index
    %c0_64 = arith.constant 0 : index
    %42 = vector.load %arg5[%c0_63, %c0_64] : memref<1x32xf32, #tpu.memory_space<vmem>>, vector<1x32xf32>
    %cst_65 = arith.constant dense<0.000000e+00> : vector<32xf32>
    %43 = vector.multi_reduction <add>, %40, %cst_65 [0] : vector<256x32xf32> to vector<32xf32>
    %44 = vector.shape_cast %43 : vector<32xf32> to vector<1x32xf32>
    %cst_66 = arith.constant 3.906250e-03 : f32
    %45 = vector.broadcast %cst_66 : f32 to vector<1x32xf32>
    %46 = arith.mulf %44, %45 : vector<1x32xf32>
    %47 = vector.broadcast %46 : vector<1x32xf32> to vector<256x32xf32>
    %48 = arith.subf %40, %47 : vector<256x32xf32>
    %49 = arith.mulf %48, %48 : vector<256x32xf32>
    %cst_67 = arith.constant dense<0.000000e+00> : vector<32xf32>
    %50 = vector.multi_reduction <add>, %49, %cst_67 [0] : vector<256x32xf32> to vector<32xf32>
    %51 = vector.shape_cast %50 : vector<32xf32> to vector<1x32xf32>
    %cst_68 = arith.constant 3.906250e-03 : f32
    %52 = vector.broadcast %cst_68 : f32 to vector<1x32xf32>
    %53 = arith.mulf %51, %52 : vector<1x32xf32>
    %cst_69 = arith.constant 9.99999974E-6 : f32
    %54 = vector.broadcast %cst_69 : f32 to vector<1x32xf32>
    %55 = arith.addf %53, %54 : vector<1x32xf32>
    %56 = math.rsqrt %55 : vector<1x32xf32>
    %57 = vector.broadcast %56 : vector<1x32xf32> to vector<256x32xf32>
    %58 = arith.mulf %48, %57 : vector<256x32xf32>
    %59 = vector.broadcast %41 : vector<1x32xf32> to vector<256x32xf32>
    %60 = arith.mulf %58, %59 : vector<256x32xf32>
    %61 = vector.broadcast %42 : vector<1x32xf32> to vector<256x32xf32>
    %62 = arith.addf %60, %61 : vector<256x32xf32>
    %cst_70 = arith.constant 5.000000e-01 : f32
    %63 = vector.broadcast %cst_70 : f32 to vector<256x32xf32>
    %64 = arith.mulf %63, %62 : vector<256x32xf32>
    %cst_71 = arith.constant 0.707106769 : f32
    %65 = vector.broadcast %cst_71 : f32 to vector<256x32xf32>
    %66 = arith.mulf %62, %65 : vector<256x32xf32>
    %67 = math.erf %66 : vector<256x32xf32>
    %cst_72 = arith.constant 1.000000e+00 : f32
    %68 = vector.broadcast %cst_72 : f32 to vector<256x32xf32>
    %69 = arith.addf %68, %67 : vector<256x32xf32>
    %70 = arith.mulf %64, %69 : vector<256x32xf32>
    %71 = vector.shape_cast %70 : vector<256x32xf32> to vector<16x16x32xf32>
    %c1_73 = arith.constant 1 : index
    %c1_74 = arith.constant 1 : index
    %c0_75 = arith.constant 0 : index
    %72 = vector.load %arg11[%c1_73, %c1_74, %c0_75] : memref<18x18x32xf32, #tpu.memory_space<vmem>>, vector<16x16x32xf32>
    tpu.vector_store %arg11[%c1_73, %c1_74, %c0_75], %71 {strides = array<i32>} : memref<18x18x32xf32, #tpu.memory_space<vmem>>, vector<16x16x32xf32>,
    %73 = vector.extract_strided_slice %71 {offsets = [1, 0, 0], sizes = [1, 16, 32], strides = [1, 1, 1]} : vector<16x16x32xf32> to vector<1x16x32xf32>
    %c0_76 = arith.constant 0 : index
    %c1_77 = arith.constant 1 : index
    %c0_78 = arith.constant 0 : index
    %74 = vector.load %arg11[%c0_76, %c1_77, %c0_78] : memref<18x18x32xf32, #tpu.memory_space<vmem>>, vector<1x16x32xf32>
    tpu.vector_store %arg11[%c0_76, %c1_77, %c0_78], %73 {strides = array<i32>} : memref<18x18x32xf32, #tpu.memory_space<vmem>>, vector<1x16x32xf32>,
    %75 = vector.extract_strided_slice %71 {offsets = [14, 0, 0], sizes = [1, 16, 32], strides = [1, 1, 1]} : vector<16x16x32xf32> to vector<1x16x32xf32>
    %c17_79 = arith.constant 17 : index
    %c1_80 = arith.constant 1 : index
    %c0_81 = arith.constant 0 : index
    %76 = vector.load %arg11[%c17_79, %c1_80, %c0_81] : memref<18x18x32xf32, #tpu.memory_space<vmem>>, vector<1x16x32xf32>
    tpu.vector_store %arg11[%c17_79, %c1_80, %c0_81], %75 {strides = array<i32>} : memref<18x18x32xf32, #tpu.memory_space<vmem>>, vector<1x16x32xf32>,
    %c0_82 = arith.constant 0 : index
    %c2_83 = arith.constant 2 : index
    %c0_84 = arith.constant 0 : index
    %77 = vector.load %arg11[%c0_82, %c2_83, %c0_84] : memref<18x18x32xf32, #tpu.memory_space<vmem>>, vector<18x1x32xf32>
    %c0_85 = arith.constant 0 : index
    %c0_86 = arith.constant 0 : index
    %c0_87 = arith.constant 0 : index
    %78 = vector.load %arg11[%c0_85, %c0_86, %c0_87] : memref<18x18x32xf32, #tpu.memory_space<vmem>>, vector<18x1x32xf32>
    tpu.vector_store %arg11[%c0_85, %c0_86, %c0_87], %77 {strides = array<i32>} : memref<18x18x32xf32, #tpu.memory_space<vmem>>, vector<18x1x32xf32>,
    %c0_88 = arith.constant 0 : index
    %c15_89 = arith.constant 15 : index
    %c0_90 = arith.constant 0 : index
    %79 = vector.load %arg11[%c0_88, %c15_89, %c0_90] : memref<18x18x32xf32, #tpu.memory_space<vmem>>, vector<18x1x32xf32>
    %c0_91 = arith.constant 0 : index
    %c17_92 = arith.constant 17 : index
    %c0_93 = arith.constant 0 : index
    %80 = vector.load %arg11[%c0_91, %c17_92, %c0_93] : memref<18x18x32xf32, #tpu.memory_space<vmem>>, vector<18x1x32xf32>
    tpu.vector_store %arg11[%c0_91, %c17_92, %c0_93], %79 {strides = array<i32>} : memref<18x18x32xf32, #tpu.memory_space<vmem>>, vector<18x1x32xf32>,
    %c0_94 = arith.constant 0 : index
    %c0_95 = arith.constant 0 : index
    %c0_96 = arith.constant 0 : index
    %81 = vector.load %arg11[%c0_94, %c0_95, %c0_96] : memref<18x18x32xf32, #tpu.memory_space<vmem>>, vector<16x16x32xf32>
    %82 = vector.shape_cast %81 : vector<16x16x32xf32> to vector<256x32xf32>
    %c0_97 = arith.constant 0 : index
    %c0_98 = arith.constant 0 : index
    %83 = vector.load %arg12[%c0_97, %c0_98] : memref<256x288xf32, #tpu.memory_space<vmem>>, vector<256x32xf32>
    tpu.vector_store %arg12[%c0_97, %c0_98], %82 {strides = array<i32>} : memref<256x288xf32, #tpu.memory_space<vmem>>, vector<256x32xf32>,
    %c0_99 = arith.constant 0 : index
    %c1_100 = arith.constant 1 : index
    %c0_101 = arith.constant 0 : index
    %84 = vector.load %arg11[%c0_99, %c1_100, %c0_101] : memref<18x18x32xf32, #tpu.memory_space<vmem>>, vector<16x16x32xf32>
    %85 = vector.shape_cast %84 : vector<16x16x32xf32> to vector<256x32xf32>
    %c0_102 = arith.constant 0 : index
    %c32_103 = arith.constant 32 : index
    %86 = vector.load %arg12[%c0_102, %c32_103] : memref<256x288xf32, #tpu.memory_space<vmem>>, vector<256x32xf32>
    tpu.vector_store %arg12[%c0_102, %c32_103], %85 {strides = array<i32>} : memref<256x288xf32, #tpu.memory_space<vmem>>, vector<256x32xf32>,
    %c0_104 = arith.constant 0 : index
    %c2_105 = arith.constant 2 : index
    %c0_106 = arith.constant 0 : index
    %87 = vector.load %arg11[%c0_104, %c2_105, %c0_106] : memref<18x18x32xf32, #tpu.memory_space<vmem>>, vector<16x16x32xf32>
    %88 = vector.shape_cast %87 : vector<16x16x32xf32> to vector<256x32xf32>
    %c0_107 = arith.constant 0 : index
    %c64 = arith.constant 64 : index
    %89 = vector.load %arg12[%c0_107, %c64] : memref<256x288xf32, #tpu.memory_space<vmem>>, vector<256x32xf32>
    tpu.vector_store %arg12[%c0_107, %c64], %88 {strides = array<i32>} : memref<256x288xf32, #tpu.memory_space<vmem>>, vector<256x32xf32>,
    %c1_108 = arith.constant 1 : index
    %c0_109 = arith.constant 0 : index
    %c0_110 = arith.constant 0 : index
    %90 = vector.load %arg11[%c1_108, %c0_109, %c0_110] : memref<18x18x32xf32, #tpu.memory_space<vmem>>, vector<16x16x32xf32>
    %91 = vector.shape_cast %90 : vector<16x16x32xf32> to vector<256x32xf32>
    %c0_111 = arith.constant 0 : index
    %c96 = arith.constant 96 : index
    %92 = vector.load %arg12[%c0_111, %c96] : memref<256x288xf32, #tpu.memory_space<vmem>>, vector<256x32xf32>
    tpu.vector_store %arg12[%c0_111, %c96], %91 {strides = array<i32>} : memref<256x288xf32, #tpu.memory_space<vmem>>, vector<256x32xf32>,
    %c1_112 = arith.constant 1 : index
    %c1_113 = arith.constant 1 : index
    %c0_114 = arith.constant 0 : index
    %93 = vector.load %arg11[%c1_112, %c1_113, %c0_114] : memref<18x18x32xf32, #tpu.memory_space<vmem>>, vector<16x16x32xf32>
    %94 = vector.shape_cast %93 : vector<16x16x32xf32> to vector<256x32xf32>
    %c0_115 = arith.constant 0 : index
    %c128 = arith.constant 128 : index
    %95 = vector.load %arg12[%c0_115, %c128] : memref<256x288xf32, #tpu.memory_space<vmem>>, vector<256x32xf32>
    tpu.vector_store %arg12[%c0_115, %c128], %94 {strides = array<i32>} : memref<256x288xf32, #tpu.memory_space<vmem>>, vector<256x32xf32>,
    %c1_116 = arith.constant 1 : index
    %c2_117 = arith.constant 2 : index
    %c0_118 = arith.constant 0 : index
    %96 = vector.load %arg11[%c1_116, %c2_117, %c0_118] : memref<18x18x32xf32, #tpu.memory_space<vmem>>, vector<16x16x32xf32>
    %97 = vector.shape_cast %96 : vector<16x16x32xf32> to vector<256x32xf32>
    %c0_119 = arith.constant 0 : index
    %c160 = arith.constant 160 : index
    %98 = vector.load %arg12[%c0_119, %c160] : memref<256x288xf32, #tpu.memory_space<vmem>>, vector<256x32xf32>
    tpu.vector_store %arg12[%c0_119, %c160], %97 {strides = array<i32>} : memref<256x288xf32, #tpu.memory_space<vmem>>, vector<256x32xf32>,
    %c2_120 = arith.constant 2 : index
    %c0_121 = arith.constant 0 : index
    %c0_122 = arith.constant 0 : index
    %99 = vector.load %arg11[%c2_120, %c0_121, %c0_122] : memref<18x18x32xf32, #tpu.memory_space<vmem>>, vector<16x16x32xf32>
    %100 = vector.shape_cast %99 : vector<16x16x32xf32> to vector<256x32xf32>
    %c0_123 = arith.constant 0 : index
    %c192 = arith.constant 192 : index
    %101 = vector.load %arg12[%c0_123, %c192] : memref<256x288xf32, #tpu.memory_space<vmem>>, vector<256x32xf32>
    tpu.vector_store %arg12[%c0_123, %c192], %100 {strides = array<i32>} : memref<256x288xf32, #tpu.memory_space<vmem>>, vector<256x32xf32>,
    %c2_124 = arith.constant 2 : index
    %c1_125 = arith.constant 1 : index
    %c0_126 = arith.constant 0 : index
    %102 = vector.load %arg11[%c2_124, %c1_125, %c0_126] : memref<18x18x32xf32, #tpu.memory_space<vmem>>, vector<16x16x32xf32>
    %103 = vector.shape_cast %102 : vector<16x16x32xf32> to vector<256x32xf32>
    %c0_127 = arith.constant 0 : index
    %c224 = arith.constant 224 : index
    %104 = vector.load %arg12[%c0_127, %c224] : memref<256x288xf32, #tpu.memory_space<vmem>>, vector<256x32xf32>
    tpu.vector_store %arg12[%c0_127, %c224], %103 {strides = array<i32>} : memref<256x288xf32, #tpu.memory_space<vmem>>, vector<256x32xf32>,
    %c2_128 = arith.constant 2 : index
    %c2_129 = arith.constant 2 : index
    %c0_130 = arith.constant 0 : index
    %105 = vector.load %arg11[%c2_128, %c2_129, %c0_130] : memref<18x18x32xf32, #tpu.memory_space<vmem>>, vector<16x16x32xf32>
    %106 = vector.shape_cast %105 : vector<16x16x32xf32> to vector<256x32xf32>
    %c0_131 = arith.constant 0 : index
    %c256 = arith.constant 256 : index
    %107 = vector.load %arg12[%c0_131, %c256] : memref<256x288xf32, #tpu.memory_space<vmem>>, vector<256x32xf32>
    tpu.vector_store %arg12[%c0_131, %c256], %106 {strides = array<i32>} : memref<256x288xf32, #tpu.memory_space<vmem>>, vector<256x32xf32>,
    %c0_132 = arith.constant 0 : index
    %c0_133 = arith.constant 0 : index
    %108 = vector.load %arg3[%c0_132, %c0_133] : memref<32x288xf32, #tpu.memory_space<vmem>>, vector<32x288xf32>
    %c0_134 = arith.constant 0 : index
    %c0_135 = arith.constant 0 : index
    %109 = vector.load %arg12[%c0_134, %c0_135] : memref<256x288xf32, #tpu.memory_space<vmem>>, vector<256x288xf32>
    %cst_136 = arith.constant dense<0.000000e+00> : vector<32x256xf32>
    %110 = tpu.matmul %108, %109, %cst_136 {dimension_numbers = #tpu.dot_dimension_numbers<[1], [1], [0], [0], [0, 0, 1, 0], [], []>} : vector<32x288xf32>, vector<256x288xf32>, vector<32x256xf32> -> vector<32x256xf32>
    %c0_137 = arith.constant 0 : index
    %c0_138 = arith.constant 0 : index
    %111 = vector.load %arg6[%c0_137, %c0_138] : memref<32x1xf32, #tpu.memory_space<vmem>>, vector<32x1xf32>
    %c0_139 = arith.constant 0 : index
    %c0_140 = arith.constant 0 : index
    %112 = vector.load %arg7[%c0_139, %c0_140] : memref<32x1xf32, #tpu.memory_space<vmem>>, vector<32x1xf32>
    %cst_141 = arith.constant dense<0.000000e+00> : vector<32xf32>
    %113 = vector.multi_reduction <add>, %110, %cst_141 [1] : vector<32x256xf32> to vector<32xf32>
    %114 = vector.shape_cast %113 : vector<32xf32> to vector<32x1xf32>
    %cst_142 = arith.constant 3.906250e-03 : f32
    %115 = vector.broadcast %cst_142 : f32 to vector<32x1xf32>
    %116 = arith.mulf %114, %115 : vector<32x1xf32>
    %117 = vector.broadcast %116 : vector<32x1xf32> to vector<32x256xf32>
    %118 = arith.subf %110, %117 : vector<32x256xf32>
    %119 = arith.mulf %118, %118 : vector<32x256xf32>
    %cst_143 = arith.constant dense<0.000000e+00> : vector<32xf32>
    %120 = vector.multi_reduction <add>, %119, %cst_143 [1] : vector<32x256xf32> to vector<32xf32>
    %121 = vector.shape_cast %120 : vector<32xf32> to vector<32x1xf32>
    %cst_144 = arith.constant 3.906250e-03 : f32
    %122 = vector.broadcast %cst_144 : f32 to vector<32x1xf32>
    %123 = arith.mulf %121, %122 : vector<32x1xf32>
    %cst_145 = arith.constant 9.99999974E-6 : f32
    %124 = vector.broadcast %cst_145 : f32 to vector<32x1xf32>
    %125 = arith.addf %123, %124 : vector<32x1xf32>
    %126 = math.rsqrt %125 : vector<32x1xf32>
    %127 = vector.broadcast %126 : vector<32x1xf32> to vector<32x256xf32>
    %128 = arith.mulf %118, %127 : vector<32x256xf32>
    %129 = vector.broadcast %111 : vector<32x1xf32> to vector<32x256xf32>
    %130 = arith.mulf %128, %129 : vector<32x256xf32>
    %131 = vector.broadcast %112 : vector<32x1xf32> to vector<32x256xf32>
    %132 = arith.addf %130, %131 : vector<32x256xf32>
    %cst_146 = arith.constant 5.000000e-01 : f32
    %133 = vector.broadcast %cst_146 : f32 to vector<32x256xf32>
    %134 = arith.mulf %133, %132 : vector<32x256xf32>
    %cst_147 = arith.constant 0.707106769 : f32
    %135 = vector.broadcast %cst_147 : f32 to vector<32x256xf32>
    %136 = arith.mulf %132, %135 : vector<32x256xf32>
    %137 = math.erf %136 : vector<32x256xf32>
    %cst_148 = arith.constant 1.000000e+00 : f32
    %138 = vector.broadcast %cst_148 : f32 to vector<32x256xf32>
    %139 = arith.addf %138, %137 : vector<32x256xf32>
    %140 = arith.mulf %134, %139 : vector<32x256xf32>
    %141 = vector.shape_cast %140 : vector<32x256xf32> to vector<1x32x256xf32>
    %c0_149 = arith.constant 0 : index
    %c0_150 = arith.constant 0 : index
    %c0_151 = arith.constant 0 : index
    %142 = vector.load %arg8[%c0_149, %c0_150, %c0_151] : memref<1x32x256xf32, #tpu.memory_space<vmem>>, vector<1x32x256xf32>
    tpu.vector_store %arg8[%c0_149, %c0_150, %c0_151], %141 {strides = array<i32>} : memref<1x32x256xf32, #tpu.memory_space<vmem>>, vector<1x32x256xf32>,
    return
  }
  func.func @transform_0(%arg0: i32) -> (i32, i32, i32, i32) {
    %c0_i32 = arith.constant 0 : i32
    %c0_i32_0 = arith.constant 0 : i32
    %c0_i32_1 = arith.constant 0 : i32
    %c0_i32_2 = arith.constant 0 : i32
    return %arg0, %c0_i32, %c0_i32_0, %c0_i32_1 : i32, i32, i32, i32
  }
  func.func @transform_1(%arg0: i32) -> (i32, i32) {
    %c0_i32 = arith.constant 0 : i32
    %c0_i32_0 = arith.constant 0 : i32
    %c0_i32_1 = arith.constant 0 : i32
    return %c0_i32, %c0_i32_0 : i32, i32
  }
  func.func @transform_2(%arg0: i32) -> (i32, i32) {
    %c0_i32 = arith.constant 0 : i32
    %c0_i32_0 = arith.constant 0 : i32
    %c0_i32_1 = arith.constant 0 : i32
    return %c0_i32, %c0_i32_0 : i32, i32
  }
  func.func @transform_3(%arg0: i32) -> (i32, i32) {
    %c0_i32 = arith.constant 0 : i32
    %c0_i32_0 = arith.constant 0 : i32
    %c0_i32_1 = arith.constant 0 : i32
    return %c0_i32, %c0_i32_0 : i32, i32
  }
  func.func @transform_4(%arg0: i32) -> (i32, i32) {
    %c0_i32 = arith.constant 0 : i32
    %c0_i32_0 = arith.constant 0 : i32
    %c0_i32_1 = arith.constant 0 : i32
    return %c0_i32, %c0_i32_0 : i32, i32
  }
  func.func @transform_5(%arg0: i32) -> (i32, i32) {
    %c0_i32 = arith.constant 0 : i32
    %c0_i32_0 = arith.constant 0 : i32
    %c0_i32_1 = arith.constant 0 : i32
    return %c0_i32, %c0_i32_0 : i32, i32
  }
  func.func @transform_6(%arg0: i32) -> (i32, i32) {
    %c0_i32 = arith.constant 0 : i32
    %c0_i32_0 = arith.constant 0 : i32
    %c0_i32_1 = arith.constant 0 : i32
    return %c0_i32, %c0_i32_0 : i32, i32
  }
  func.func @transform_7(%arg0: i32) -> (i32, i32, i32) {
    %c0_i32 = arith.constant 0 : i32
    %c0_i32_0 = arith.constant 0 : i32
    %c0_i32_1 = arith.constant 0 : i32
    return %arg0, %c0_i32, %c0_i32_0 : i32, i32, i32
  }
}

</mosaic_0001>

<llo_original>
// kernel: decoder_block_forward.1
$region0: #{decoder_block_forward.1}
  #allocation0 [shape = 'u32[]', space=smem, size = 0x4, offset = 0x4, fixed_abs, tag = 'smem constant byte address 0x4 - core index']
  #allocation1 [shape = 'u32[72,128]{1,0:T(1,128)}', space=vmem, size = 0x9000, scoped, tag = 'internal scratch']
  #allocation2 [shape = 'f32[18,18,4]{2,1,0:T(8,128)}', space=vmem, size = 0x36000, scoped, tag = 'scratch operand']
  #allocation3 [shape = 'f32[256,36]{1,0:T(8,128)}', space=vmem, size = 0x20000, scoped, tag = 'scratch operand']
  #allocation4 [shape = 'f32[18,18,32]{2,1,0:T(8,128)}', space=vmem, size = 0x36000, scoped, tag = 'scratch operand']
  #allocation5 [shape = 'f32[256,288]{1,0:T(8,128)}', space=vmem, size = 0x60000, scoped, tag = 'scratch operand']
  %s0 = inlined_call_operand.vmem [shape: f32[2,16,16,4], index: 0, kind: input, shape index: {}]
  %s1 = inlined_call_operand.vmem [shape: f32[36,32], index: 1, kind: input, shape index: {}]
  %s2 = inlined_call_operand.vmem [shape: f32[32,288], index: 2, kind: input, shape index: {}]
  %s3 = inlined_call_operand.vmem [shape: f32[1,32], index: 3, kind: input, shape index: {}]
  %s4 = inlined_call_operand.vmem [shape: f32[1,32], index: 4, kind: input, shape index: {}]
  %s5 = inlined_call_operand.vmem [shape: f32[32,1], index: 5, kind: input, shape index: {}]
  %s6 = inlined_call_operand.vmem [shape: f32[32,1], index: 6, kind: input, shape index: {}]
  %s7 = inlined_call_operand.vmem [shape: f32[2,32,256], index: 7, kind: output, shape index: {}]
  %s8 = sld [smem:[#allocation0]]
  $region61: #{decoder_block_forward.1} parent=0
    _
  %s10 = ssub.s32 1, %s8
  %s11 = scalar_select 0, %s10, %s8
  loop: start=0, step=1, limit=4
  $region2: #{decoder_block_forward.1} parent=0 // loop_pre_header
    _
  $region3: #{decoder_block_forward.1} parent=0 // loop_header
    %s13 = sphi 0, %s17
    %p14 = scmp.ge.s32.totalorder %s13, 4
    %s23 = sphi 0, %s25
    %s26 = sphi 0, %s23
    %s27 = sphi 0, %s26
    %s43 = sphi 0, %s27
    %s47 = sphi 0, %s47
    %s49 = sphi 0, %s47
    %s50 = sphi 0, %s49
    %s64 = sphi 0, %s50
    %s68 = sphi 0, %s68
    %s70 = sphi 0, %s68
    %s71 = sphi 0, %s70
    %s85 = sphi 0, %s71
    %s89 = sphi 0, %s89
    %s91 = sphi 0, %s89
    %s92 = sphi 0, %s91
    %s106 = sphi 0, %s92
    %s110 = sphi 0, %s110
    %s112 = sphi 0, %s110
    %s113 = sphi 0, %s112
    %s127 = sphi 0, %s113
    %s131 = sphi 0, %s131
    %s133 = sphi 0, %s131
    %s134 = sphi 0, %s133
    %s148 = sphi 0, %s134
    %s152 = sphi 0, %s152
    %s154 = sphi 0, %s152
    %s155 = sphi 0, %s154
    %s169 = sphi 0, %s155
    %s175 = sphi 0, %s177
    %s178 = sphi 0, %s175
    %s179 = sphi 0, %s178
    %s195 = sphi 0, %s179
  $region4: #{decoder_block_forward.1} parent=0 // loop_header_branch
    %16 = sbr.rel (%p14) target = $region8
  $region5: #{decoder_block_forward.1} parent=0 // loop_body
    %s18 = ssub.s32 %s13, 1
    %s19 = ssub.s32 %s13, 2
    %s20 = sadd.s32 %s13, 1
    %s21 = ssub.s32 %s13, %s20
    %p22 = scmp.eq.s32.totalorder %s21, 0
    %s24 = sadd.s32 %s23, 1
    %s25 = scalar_select %p22, %s23, %s24
    %p28 = pneg %p22
    %p29 = scmp.eq.s32.totalorder %s13, 1
    %p30 = por %p28, %p29
    %p31 = scmp.ne.s32.totalorder %s23, %s26
    %p32 = scmp.eq.s32.totalorder %s13, 0
    %p33 = por %p31, %p32
    %p34 = scmp.ne.s32.totalorder %s23, %s26
    %p35 = scmp.eq.s32.totalorder %s18, 1
    %p36 = por %p34, %p35
    %p37 = scmp.ne.s32.totalorder %s26, %s27
    %p38 = scmp.eq.s32.totalorder %s18, 0
    %p39 = por %p37, %p38
    %p40 = scmp.ne.s32.totalorder %s26, %s27
    %p41 = scmp.eq.s32.totalorder %s19, 1
    %p42 = por %p40, %p41
    %p44 = scmp.ne.s32.totalorder %s27, %s43
    %p45 = scmp.eq.s32.totalorder %s19, 0
    %p46 = por %p44, %p45
    %s48 = sadd.s32 %s47, 1
    %p51 = scmp.eq.s32.totalorder %s13, 1
    %p52 = scmp.ne.s32.totalorder %s47, %s49
    %p53 = scmp.eq.s32.totalorder %s13, 0
    %p54 = por %p52, %p53
    %p55 = scmp.ne.s32.totalorder %s47, %s49
    %p56 = scmp.eq.s32.totalorder %s18, 1
    %p57 = por %p55, %p56
    %p58 = scmp.ne.s32.totalorder %s49, %s50
    %p59 = scmp.eq.s32.totalorder %s18, 0
    %p60 = por %p58, %p59
    %p61 = scmp.ne.s32.totalorder %s49, %s50
    %p62 = scmp.eq.s32.totalorder %s19, 1
    %p63 = por %p61, %p62
    %p65 = scmp.ne.s32.totalorder %s50, %s64
    %p66 = scmp.eq.s32.totalorder %s19, 0
    %p67 = por %p65, %p66
    %s69 = sadd.s32 %s68, 1
    %p72 = scmp.eq.s32.totalorder %s13, 1
    %p73 = scmp.ne.s32.totalorder %s68, %s70
    %p74 = scmp.eq.s32.totalorder %s13, 0
    %p75 = por %p73, %p74
    %p76 = scmp.ne.s32.totalorder %s68, %s70
    %p77 = scmp.eq.s32.totalorder %s18, 1
    %p78 = por %p76, %p77
    %p79 = scmp.ne.s32.totalorder %s70, %s71
    %p80 = scmp.eq.s32.totalorder %s18, 0
    %p81 = por %p79, %p80
    %p82 = scmp.ne.s32.totalorder %s70, %s71
    %p83 = scmp.eq.s32.totalorder %s19, 1
    %p84 = por %p82, %p83
    %p86 = scmp.ne.s32.totalorder %s71, %s85
    %p87 = scmp.eq.s32.totalorder %s19, 0
    %p88 = por %p86, %p87
    %s90 = sadd.s32 %s89, 1
    %p93 = scmp.eq.s32.totalorder %s13, 1
    %p94 = scmp.ne.s32.totalorder %s89, %s91
    %p95 = scmp.eq.s32.totalorder %s13, 0
    %p96 = por %p94, %p95
    %p97 = scmp.ne.s32.totalorder %s89, %s91
    %p98 = scmp.eq.s32.totalorder %s18, 1
    %p99 = por %p97, %p98
    %p100 = scmp.ne.s32.totalorder %s91, %s92
    %p101 = scmp.eq.s32.totalorder %s18, 0
    %p102 = por %p100, %p101
    %p103 = scmp.ne.s32.totalorder %s91, %s92
    %p104 = scmp.eq.s32.totalorder %s19, 1
    %p105 = por %p103, %p104
    %p107 = scmp.ne.s32.totalorder %s92, %s106
    %p108 = scmp.eq.s32.totalorder %s19, 0
    %p109 = por %p107, %p108
    %s111 = sadd.s32 %s110, 1
    %p114 = scmp.eq.s32.totalorder %s13, 1
    %p115 = scmp.ne.s32.totalorder %s110, %s112
    %p116 = scmp.eq.s32.totalorder %s13, 0
    %p117 = por %p115, %p116
    %p118 = scmp.ne.s32.totalorder %s110, %s112
    %p119 = scmp.eq.s32.totalorder %s18, 1
    %p120 = por %p118, %p119
    %p121 = scmp.ne.s32.totalorder %s112, %s113
    %p122 = scmp.eq.s32.totalorder %s18, 0
    %p123 = por %p121, %p122
    %p124 = scmp.ne.s32.totalorder %s112, %s113
    %p125 = scmp.eq.s32.totalorder %s19, 1
    %p126 = por %p124, %p125
    %p128 = scmp.ne.s32.totalorder %s113, %s127
    %p129 = scmp.eq.s32.totalorder %s19, 0
    %p130 = por %p128, %p129
    %s132 = sadd.s32 %s131, 1
    %p135 = scmp.eq.s32.totalorder %s13, 1
    %p136 = scmp.ne.s32.totalorder %s131, %s133
    %p137 = scmp.eq.s32.totalorder %s13, 0
    %p138 = por %p136, %p137
    %p139 = scmp.ne.s32.totalorder %s131, %s133
    %p140 = scmp.eq.s32.totalorder %s18, 1
    %p141 = por %p139, %p140
    %p142 = scmp.ne.s32.totalorder %s133, %s134
    %p143 = scmp.eq.s32.totalorder %s18, 0
    %p144 = por %p142, %p143
    %p145 = scmp.ne.s32.totalorder %s133, %s134
    %p146 = scmp.eq.s32.totalorder %s19, 1
    %p147 = por %p145, %p146
    %p149 = scmp.ne.s32.totalorder %s134, %s148
    %p150 = scmp.eq.s32.totalorder %s19, 0
    %p151 = por %p149, %p150
    %s153 = sadd.s32 %s152, 1
    %p156 = scmp.eq.s32.totalorder %s13, 1
    %p157 = scmp.ne.s32.totalorder %s152, %s154
    %p158 = scmp.eq.s32.totalorder %s13, 0
    %p159 = por %p157, %p158
    %p160 = scmp.ne.s32.totalorder %s152, %s154
    %p161 = scmp.eq.s32.totalorder %s18, 1
    %p162 = por %p160, %p161
    %p163 = scmp.ne.s32.totalorder %s154, %s155
    %p164 = scmp.eq.s32.totalorder %s18, 0
    %p165 = por %p163, %p164
    %p166 = scmp.ne.s32.totalorder %s154, %s155
    %p167 = scmp.eq.s32.totalorder %s19, 1
    %p168 = por %p166, %p167
    %p170 = scmp.ne.s32.totalorder %s155, %s169
    %p171 = scmp.eq.s32.totalorder %s19, 0
    %p172 = por %p170, %p171
    %s173 = ssub.s32 %s13, %s20
    %p174 = scmp.eq.s32.totalorder %s173, 0
    %s176 = sadd.s32 %s175, 1
    %s177 = scalar_select %p174, %s175, %s176
    %p180 = pneg %p174
    %p181 = scmp.eq.s32.totalorder %s13, 1
    %p182 = por %p180, %p181
    %p183 = scmp.ne.s32.totalorder %s175, %s178
    %p184 = scmp.eq.s32.totalorder %s13, 0
    %p185 = por %p183, %p184
    %p186 = scmp.ne.s32.totalorder %s175, %s178
    %p187 = scmp.eq.s32.totalorder %s18, 1
    %p188 = por %p186, %p187
    %p189 = scmp.ne.s32.totalorder %s178, %s179
    %p190 = scmp.eq.s32.totalorder %s18, 0
    %p191 = por %p189, %p190
    %p192 = scmp.ne.s32.totalorder %s178, %s179
    %p193 = scmp.eq.s32.totalorder %s19, 1
    %p194 = por %p192, %p193
    %p196 = scmp.ne.s32.totalorder %s179, %s195
    %p197 = scmp.eq.s32.totalorder %s19, 0
    %p198 = por %p196, %p197
    %p199 = scmp.le.s32.totalorder 1, %s13
    %p200 = scmp.lt.s32.totalorder %s13, 3
    %p201 = pnand %p199, %p200
    %p202 = pneg %p201
    // Predicated region
    $region9: #{decoder_block_forward.1} parent=5 // pred_check
      _
    $region10: #{decoder_block_forward.1} parent=5 // pred_check_branch
      %204 = sbr.rel (%p201) target = $region12
    $region11: #{decoder_block_forward.1} parent=5 // pred_region
      %s205 = ssub.s32 %s13, 1
      // Predicated region
      $region13: #{decoder_block_forward.1} parent=11 // pred_check
        %p206 = pneg %p60
      $region14: #{decoder_block_forward.1} parent=11 // pred_check_branch
        %208 = sbr.rel (%p206) target = $region16
      $region15: #{decoder_block_forward.1} parent=11 // pred_region
        _
      $region16: #{decoder_block_forward.1} parent=11 // pred_fallthru
        _
      // Predicated region
      $region17: #{decoder_block_forward.1} parent=11 // pred_check
        %p209 = pneg %p81
      $region18: #{decoder_block_forward.1} parent=11 // pred_check_branch
        %211 = sbr.rel (%p209) target = $region20
      $region19: #{decoder_block_forward.1} parent=11 // pred_region
        _
      $region20: #{decoder_block_forward.1} parent=11 // pred_fallthru
        _
      // Predicated region
      $region21: #{decoder_block_forward.1} parent=11 // pred_check
        %p212 = pneg %p102
      $region22: #{decoder_block_forward.1} parent=11 // pred_check_branch
        %214 = sbr.rel (%p212) target = $region24
      $region23: #{decoder_block_forward.1} parent=11 // pred_region
        _
      $region24: #{decoder_block_forward.1} parent=11 // pred_fallthru
        _
      // Predicated region
      $region25: #{decoder_block_forward.1} parent=11 // pred_check
        %p215 = pneg %p123
      $region26: #{decoder_block_forward.1} parent=11 // pred_check_branch
        %217 = sbr.rel (%p215) target = $region28
      $region27: #{decoder_block_forward.1} parent=11 // pred_region
        _
      $region28: #{decoder_block_forward.1} parent=11 // pred_fallthru
        _
      // Predicated region
      $region29: #{decoder_block_forward.1} parent=11 // pred_check
        %p218 = pneg %p144
      $region30: #{decoder_block_forward.1} parent=11 // pred_check_branch
        %220 = sbr.rel (%p218) target = $region32
      $region31: #{decoder_block_forward.1} parent=11 // pred_region
        _
      $region32: #{decoder_block_forward.1} parent=11 // pred_fallthru
        _
      // Predicated region
      $region33: #{decoder_block_forward.1} parent=11 // pred_check
        %p221 = pneg %p165
      $region34: #{decoder_block_forward.1} parent=11 // pred_check_branch
        %223 = sbr.rel (%p221) target = $region36
      $region35: #{decoder_block_forward.1} parent=11 // pred_region
        _
      $region36: #{decoder_block_forward.1} parent=11 // pred_fallthru
        _
    $region12: #{decoder_block_forward.1} parent=5 // pred_fallthru
      _
    %p224 = scmp.lt.s32.totalorder %s13, 2
    // Predicated region
    $region37: #{decoder_block_forward.1} parent=5 // pred_check
      %p225 = pneg %p224
    $region38: #{decoder_block_forward.1} parent=5 // pred_check_branch
      %227 = sbr.rel (%p225) target = $region40
    $region39: #{decoder_block_forward.1} parent=5 // pred_region
      // Predicated region
      $region41: #{decoder_block_forward.1} parent=39 // pred_check
        %p228 = pneg %p33
      $region42: #{decoder_block_forward.1} parent=39 // pred_check_branch
        %230 = sbr.rel (%p228) target = $region44
      $region43: #{decoder_block_forward.1} parent=39 // pred_region
        %p231 = scmp.lt.s32.totalorder %s13, 1
        %s232 = scalar_select %p231, %s13, 1
        %s233 = smul.addr %s232, 32
        %s234 = smul.addr %s233, 8
        %s235 = scalar_lea.vmem %s0, %s234
      $region44: #{decoder_block_forward.1} parent=39 // pred_fallthru
        _
    $region40: #{decoder_block_forward.1} parent=5 // pred_fallthru
      _
    %p236 = scmp.le.s32.totalorder 1, %s13
    %p237 = scmp.lt.s32.totalorder %s13, 3
    %p238 = pnand %p236, %p237
    %p239 = pneg %p238
    // Predicated region
    $region45: #{decoder_block_forward.1} parent=5 // pred_check
      _
    $region46: #{decoder_block_forward.1} parent=5 // pred_check_branch
      %241 = sbr.rel (%p238) target = $region48
    $region47: #{decoder_block_forward.1} parent=5 // pred_region
      %s242 = ssub.s32 %s13, 1
      %p243 = scmp.lt.s32.totalorder %s18, 1
      %s244 = scalar_select %p243, %s18, 1
      %s245 = smul.addr %s244, 32
      %s246 = smul.addr %s245, 8
      %s247 = scalar_lea.vmem %s0, %s246
      %p248 = pneg %p39
      %p249 = pneg %p36
      %p250 = pneg %p60
      %p251 = pneg %p57
      %p252 = pneg %p81
      %p253 = pneg %p78
      %p254 = pneg %p102
      %p255 = pneg %p99
      %p256 = pneg %p123
      %p257 = pneg %p120
      %p258 = pneg %p144
      %p259 = pneg %p141
      %p260 = pneg %p165
      %p261 = pneg %p162
      %p262 = pneg %p191
      %p263 = pneg %p188
      %p264 = scmp.lt.s32.totalorder %s18, 1
      %s265 = scalar_select %p264, %s18, 1
      %s266 = smul.addr %s265, 8
      %s267 = smul.addr %s266, 8
      %s268 = scalar_lea.vmem %s7, %s267
      %p269 = scmp.lt.s32.totalorder %s18, 1
      %s270 = scalar_select %p269, %s18, 1
      %s271 = smul.addr %s270, 32
      %s272 = smul.addr %s271, 8
      %s273 = scalar_lea.vmem %s0, %s272
      %p274 = scmp.lt.s32.totalorder %s18, 1
      %s275 = scalar_select %p274, %s18, 1
      %s276 = smul.addr %s275, 8
      %s277 = smul.addr %s276, 8
      %s278 = scalar_lea.vmem %s7, %s277
      %v279 = vld [vmem:[%s273] sm:$0xff]
      %v280 = vld [vmem:[%s273 + $0x8] sm:$0xff]
      %v281 = vld [vmem:[%s273 + $0x10] sm:$0xff]
      %v282 = vld [vmem:[%s273 + $0x18] sm:$0xff]
      %v283 = vld [vmem:[%s273 + $0x20] sm:$0xff]
      %v284 = vld [vmem:[%s273 + $0x28] sm:$0xff]
      %v285 = vld [vmem:[%s273 + $0x30] sm:$0xff]
      %v286 = vld [vmem:[%s273 + $0x38] sm:$0xff]
      %v287 = vld [vmem:[%s273 + $0x40] sm:$0xff]
      %v288 = vld [vmem:[%s273 + $0x48] sm:$0xff]
      %v289 = vld [vmem:[%s273 + $0x50] sm:$0xff]
      %v290 = vld [vmem:[%s273 + $0x58] sm:$0xff]
      %v291 = vld [vmem:[%s273 + $0x60] sm:$0xff]
      %v292 = vld [vmem:[%s273 + $0x68] sm:$0xff]
      %v293 = vld [vmem:[%s273 + $0x70] sm:$0xff]
      %v294 = vld [vmem:[%s273 + $0x78] sm:$0xff]
      %v295 = vld [vmem:[%s273 + $0x80] sm:$0xff]
      %v296 = vld [vmem:[%s273 + $0x88] sm:$0xff]
      %v297 = vld [vmem:[%s273 + $0x90] sm:$0xff]
      %v298 = vld [vmem:[%s273 + $0x98] sm:$0xff]
      %v299 = vld [vmem:[%s273 + $0xa0] sm:$0xff]
      %v300 = vld [vmem:[%s273 + $0xa8] sm:$0xff]
      %v301 = vld [vmem:[%s273 + $0xb0] sm:$0xff]
      %v302 = vld [vmem:[%s273 + $0xb8] sm:$0xff]
      %v303 = vld [vmem:[%s273 + $0xc0] sm:$0xff]
      %v304 = vld [vmem:[%s273 + $0xc8] sm:$0xff]
      %v305 = vld [vmem:[%s273 + $0xd0] sm:$0xff]
      %v306 = vld [vmem:[%s273 + $0xd8] sm:$0xff]
      %v307 = vld [vmem:[%s273 + $0xe0] sm:$0xff]
      %v308 = vld [vmem:[%s273 + $0xe8] sm:$0xff]
      %v309 = vld [vmem:[%s273 + $0xf0] sm:$0xff]
      %v310 = vld [vmem:[%s273 + $0xf8] sm:$0xff]
      %s311 = scalar_lea.vmem [#allocation2], 24
      %vm312 = vcmask 31744
      %313 = vst.msk [vmem:[%s311 + $0x1] sm:$0xff] %vm312, %v279
      %314 = vst.msk [vmem:[%s311 + $0x9] sm:$0xff] %vm312, %v280
      %315 = vst.msk [vmem:[%s311 + $0x19] sm:$0xff] %vm312, %v281
      %316 = vst.msk [vmem:[%s311 + $0x21] sm:$0xff] %vm312, %v282
      %317 = vst.msk [vmem:[%s311 + $0x31] sm:$0xff] %vm312, %v283
      %318 = vst.msk [vmem:[%s311 + $0x39] sm:$0xff] %vm312, %v284
      %319 = vst.msk [vmem:[%s311 + $0x49] sm:$0xff] %vm312, %v285
      %320 = vst.msk [vmem:[%s311 + $0x51] sm:$0xff] %vm312, %v286
      %321 = vst.msk [vmem:[%s311 + $0x61] sm:$0xff] %vm312, %v287
      %322 = vst.msk [vmem:[%s311 + $0x69] sm:$0xff] %vm312, %v288
      %323 = vst.msk [vmem:[%s311 + $0x79] sm:$0xff] %vm312, %v289
      %324 = vst.msk [vmem:[%s311 + $0x81] sm:$0xff] %vm312, %v290
      %325 = vst.msk [vmem:[%s311 + $0x91] sm:$0xff] %vm312, %v291
      %326 = vst.msk [vmem:[%s311 + $0x99] sm:$0xff] %vm312, %v292
      %327 = vst.msk [vmem:[%s311 + $0xa9] sm:$0xff] %vm312, %v293
      %328 = vst.msk [vmem:[%s311 + $0xb1] sm:$0xff] %vm312, %v294
      %329 = vst.msk [vmem:[%s311 + $0xc1] sm:$0xff] %vm312, %v295
      %330 = vst.msk [vmem:[%s311 + $0xc9] sm:$0xff] %vm312, %v296
      %331 = vst.msk [vmem:[%s311 + $0xd9] sm:$0xff] %vm312, %v297
      %332 = vst.msk [vmem:[%s311 + $0xe1] sm:$0xff] %vm312, %v298
      %333 = vst.msk [vmem:[%s311 + $0xf1] sm:$0xff] %vm312, %v299
      %334 = vst.msk [vmem:[%s311 + $0xf9] sm:$0xff] %vm312, %v300
      %335 = vst.msk [vmem:[%s311 + $0x109] sm:$0xff] %vm312, %v301
      %336 = vst.msk [vmem:[%s311 + $0x111] sm:$0xff] %vm312, %v302
      %337 = vst.msk [vmem:[%s311 + $0x121] sm:$0xff] %vm312, %v303
      %338 = vst.msk [vmem:[%s311 + $0x129] sm:$0xff] %vm312, %v304
      %339 = vst.msk [vmem:[%s311 + $0x139] sm:$0xff] %vm312, %v305
      %340 = vst.msk [vmem:[%s311 + $0x141] sm:$0xff] %vm312, %v306
      %341 = vst.msk [vmem:[%s311 + $0x151] sm:$0xff] %vm312, %v307
      %342 = vst.msk [vmem:[%s311 + $0x159] sm:$0xff] %vm312, %v308
      %343 = vst.msk [vmem:[%s311 + $0x169] sm:$0xff] %vm312, %v309
      %344 = vst.msk [vmem:[%s311 + $0x171] sm:$0xff] %vm312, %v310
      %345 = vst.msk [vmem:[#allocation2 + $0x1] sm:$0xff] %vm312, %v281
      %346 = vst.msk [vmem:[#allocation2 + $0x9] sm:$0xff] %vm312, %v282
      %s347 = scalar_lea.vmem [#allocation2], 408
      %348 = vst.msk [vmem:[%s347 + $0x1] sm:$0xff] %vm312, %v307
      %349 = vst.msk [vmem:[%s347 + $0x9] sm:$0xff] %vm312, %v308
      %v350 = vld [vmem:[#allocation2 + $0x2] sm:$0x1]
      %v351 = vld [vmem:[#allocation2 + $0x1a] sm:$0x1]
      %v352 = vld [vmem:[#allocation2 + $0x32] sm:$0x1]
      %v353 = vld [vmem:[#allocation2 + $0x4a] sm:$0x1]
      %v354 = vld [vmem:[#allocation2 + $0x62] sm:$0x1]
      %v355 = vld [vmem:[#allocation2 + $0x7a] sm:$0x1]
      %v356 = vld [vmem:[#allocation2 + $0x92] sm:$0x1]
      %v357 = vld [vmem:[#allocation2 + $0xaa] sm:$0x1]
      %v358 = vld [vmem:[#allocation2 + $0xc2] sm:$0x1]
      %v359 = vld [vmem:[#allocation2 + $0xda] sm:$0x1]
      %v360 = vld [vmem:[#allocation2 + $0xf2] sm:$0x1]
      %v361 = vld [vmem:[#allocation2 + $0x10a] sm:$0x1]
      %v362 = vld [vmem:[#allocation2 + $0x122] sm:$0x1]
      %v363 = vld [vmem:[#allocation2 + $0x13a] sm:$0x1]
      %v364 = vld [vmem:[#allocation2 + $0x152] sm:$0x1]
      %v365 = vld [vmem:[#allocation2 + $0x16a] sm:$0x1]
      %v366 = vld [vmem:[#allocation2 + $0x182] sm:$0x1]
      %v367 = vld [vmem:[#allocation2 + $0x19a] sm:$0x1]
      %vm368 = vcmask 24576
      %369 = vst.msk [vmem:[#allocation2] sm:$0x1] %vm368, %v350
      %370 = vst.msk [vmem:[#allocation2 + $0x18] sm:$0x1] %vm368, %v351
      %371 = vst.msk [vmem:[#allocation2 + $0x30] sm:$0x1] %vm368, %v352
      %372 = vst.msk [vmem:[#allocation2 + $0x48] sm:$0x1] %vm368, %v353
      %373 = vst.msk [vmem:[#allocation2 + $0x60] sm:$0x1] %vm368, %v354
      %374 = vst.msk [vmem:[#allocation2 + $0x78] sm:$0x1] %vm368, %v355
      %375 = vst.msk [vmem:[#allocation2 + $0x90] sm:$0x1] %vm368, %v356
      %376 = vst.msk [vmem:[#allocation2 + $0xa8] sm:$0x1] %vm368, %v357
      %377 = vst.msk [vmem:[#allocation2 + $0xc0] sm:$0x1] %vm368, %v358
      %378 = vst.msk [vmem:[#allocation2 + $0xd8] sm:$0x1] %vm368, %v359
      %379 = vst.msk [vmem:[#allocation2 + $0xf0] sm:$0x1] %vm368, %v360
      %380 = vst.msk [vmem:[#allocation2 + $0x108] sm:$0x1] %vm368, %v361
      %381 = vst.msk [vmem:[#allocation2 + $0x120] sm:$0x1] %vm368, %v362
      %382 = vst.msk [vmem:[#allocation2 + $0x138] sm:$0x1] %vm368, %v363
      %383 = vst.msk [vmem:[#allocation2 + $0x150] sm:$0x1] %vm368, %v364
      %384 = vst.msk [vmem:[#allocation2 + $0x168] sm:$0x1] %vm368, %v365
      %385 = vst.msk [vmem:[#allocation2 + $0x180] sm:$0x1] %vm368, %v366
      %386 = vst.msk [vmem:[#allocation2 + $0x198] sm:$0x1] %vm368, %v367
      %v387 = vld [vmem:[#allocation2 + $0xf] sm:$0x1]
      %v388 = vld [vmem:[#allocation2 + $0x27] sm:$0x1]
      %v389 = vld [vmem:[#allocation2 + $0x3f] sm:$0x1]
      %v390 = vld [vmem:[#allocation2 + $0x57] sm:$0x1]
      %v391 = vld [vmem:[#allocation2 + $0x6f] sm:$0x1]
      %v392 = vld [vmem:[#allocation2 + $0x87] sm:$0x1]
      %v393 = vld [vmem:[#allocation2 + $0x9f] sm:$0x1]
      %v394 = vld [vmem:[#allocation2 + $0xb7] sm:$0x1]
      %v395 = vld [vmem:[#allocation2 + $0xcf] sm:$0x1]
      %v396 = vld [vmem:[#allocation2 + $0xe7] sm:$0x1]
      %v397 = vld [vmem:[#allocation2 + $0xff] sm:$0x1]
      %v398 = vld [vmem:[#allocation2 + $0x117] sm:$0x1]
      %v399 = vld [vmem:[#allocation2 + $0x12f] sm:$0x1]
      %v400 = vld [vmem:[#allocation2 + $0x147] sm:$0x1]
      %v401 = vld [vmem:[#allocation2 + $0x15f] sm:$0x1]
      %v402 = vld [vmem:[#allocation2 + $0x177] sm:$0x1]
      %v403 = vld [vmem:[#allocation2 + $0x18f] sm:$0x1]
      %v404 = vld [vmem:[#allocation2 + $0x1a7] sm:$0x1]
      %405 = vst.msk [vmem:[#allocation2 + $0x11] sm:$0x1] %vm368, %v387
      %406 = vst.msk [vmem:[#allocation2 + $0x29] sm:$0x1] %vm368, %v388
      %407 = vst.msk [vmem:[#allocation2 + $0x41] sm:$0x1] %vm368, %v389
      %408 = vst.msk [vmem:[#allocation2 + $0x59] sm:$0x1] %vm368, %v390
      %409 = vst.msk [vmem:[#allocation2 + $0x71] sm:$0x1] %vm368, %v391
      %410 = vst.msk [vmem:[#allocation2 + $0x89] sm:$0x1] %vm368, %v392
      %411 = vst.msk [vmem:[#allocation2 + $0xa1] sm:$0x1] %vm368, %v393
      %412 = vst.msk [vmem:[#allocation2 + $0xb9] sm:$0x1] %vm368, %v394
      %413 = vst.msk [vmem:[#allocation2 + $0xd1] sm:$0x1] %vm368, %v395
      %414 = vst.msk [vmem:[#allocation2 + $0xe9] sm:$0x1] %vm368, %v396
      %415 = vst.msk [vmem:[#allocation2 + $0x101] sm:$0x1] %vm368, %v397
      %416 = vst.msk [vmem:[#allocation2 + $0x119] sm:$0x1] %vm368, %v398
      %417 = vst.msk [vmem:[#allocation2 + $0x131] sm:$0x1] %vm368, %v399
      %418 = vst.msk [vmem:[#allocation2 + $0x149] sm:$0x1] %vm368, %v400
      %419 = vst.msk [vmem:[#allocation2 + $0x161] sm:$0x1] %vm368, %v401
      %420 = vst.msk [vmem:[#allocation2 + $0x179] sm:$0x1] %vm368, %v402
      %421 = vst.msk [vmem:[#allocation2 + $0x191] sm:$0x1] %vm368, %v403
      %422 = vst.msk [vmem:[#allocation2 + $0x1a9] sm:$0x1] %vm368, %v404
      %v423 = vld [vmem:[#allocation2] sm:$0xff]
      %v424 = vld [vmem:[#allocation2 + $0x8] sm:$0xff]
      %v425 = vld [vmem:[#allocation2 + $0x18] sm:$0xff]
      %v426 = vld [vmem:[#allocation2 + $0x20] sm:$0xff]
      %v427 = vld [vmem:[#allocation2 + $0x30] sm:$0xff]
      %v428 = vld [vmem:[#allocation2 + $0x38] sm:$0xff]
      %v429 = vld [vmem:[#allocation2 + $0x48] sm:$0xff]
      %v430 = vld [vmem:[#allocation2 + $0x50] sm:$0xff]
      %v431 = vld [vmem:[#allocation2 + $0x60] sm:$0xff]
      %v432 = vld [vmem:[#allocation2 + $0x68] sm:$0xff]
      %v433 = vld [vmem:[#allocation2 + $0x78] sm:$0xff]
      %v434 = vld [vmem:[#allocation2 + $0x80] sm:$0xff]
      %v435 = vld [vmem:[#allocation2 + $0x90] sm:$0xff]
      %v436 = vld [vmem:[#allocation2 + $0x98] sm:$0xff]
      %v437 = vld [vmem:[#allocation2 + $0xa8] sm:$0xff]
      %v438 = vld [vmem:[#allocation2 + $0xb0] sm:$0xff]
      %v439 = vld [vmem:[#allocation2 + $0xc0] sm:$0xff]
      %v440 = vld [vmem:[#allocation2 + $0xc8] sm:$0xff]
      %v441 = vld [vmem:[#allocation2 + $0xd8] sm:$0xff]
      %v442 = vld [vmem:[#allocation2 + $0xe0] sm:$0xff]
      %v443 = vld [vmem:[#allocation2 + $0xf0] sm:$0xff]
      %v444 = vld [vmem:[#allocation2 + $0xf8] sm:$0xff]
      %v445 = vld [vmem:[#allocation2 + $0x108] sm:$0xff]
      %v446 = vld [vmem:[#allocation2 + $0x110] sm:$0xff]
      %v447 = vld [vmem:[#allocation2 + $0x120] sm:$0xff]
      %v448 = vld [vmem:[#allocation2 + $0x128] sm:$0xff]
      %v449 = vld [vmem:[#allocation2 + $0x138] sm:$0xff]
      %v450 = vld [vmem:[#allocation2 + $0x140] sm:$0xff]
      %v451 = vld [vmem:[#allocation2 + $0x150] sm:$0xff]
      %v452 = vld [vmem:[#allocation2 + $0x158] sm:$0xff]
      %v453 = vld [vmem:[#allocation2 + $0x168] sm:$0xff]
      %v454 = vld [vmem:[#allocation2 + $0x170] sm:$0xff]
      %455 = vst.msk [vmem:[#allocation3] sm:$0xff] %vm312, %v423
      %456 = vst.msk [vmem:[#allocation3 + $0x8] sm:$0xff] %vm312, %v424
      %457 = vst.msk [vmem:[#allocation3 + $0x10] sm:$0xff] %vm312, %v425
      %458 = vst.msk [vmem:[#allocation3 + $0x18] sm:$0xff] %vm312, %v426
      %459 = vst.msk [vmem:[#allocation3 + $0x20] sm:$0xff] %vm312, %v427
      %460 = vst.msk [vmem:[#allocation3 + $0x28] sm:$0xff] %vm312, %v428
      %461 = vst.msk [vmem:[#allocation3 + $0x30] sm:$0xff] %vm312, %v429
      %462 = vst.msk [vmem:[#allocation3 + $0x38] sm:$0xff] %vm312, %v430
      %463 = vst.msk [vmem:[#allocation3 + $0x40] sm:$0xff] %vm312, %v431
      %464 = vst.msk [vmem:[#allocation3 + $0x48] sm:$0xff] %vm312, %v432
      %465 = vst.msk [vmem:[#allocation3 + $0x50] sm:$0xff] %vm312, %v433
      %466 = vst.msk [vmem:[#allocation3 + $0x58] sm:$0xff] %vm312, %v434
      %467 = vst.msk [vmem:[#allocation3 + $0x60] sm:$0xff] %vm312, %v435
      %468 = vst.msk [vmem:[#allocation3 + $0x68] sm:$0xff] %vm312, %v436
      %469 = vst.msk [vmem:[#allocation3 + $0x70] sm:$0xff] %vm312, %v437
      %470 = vst.msk [vmem:[#allocation3 + $0x78] sm:$0xff] %vm312, %v438
      %471 = vst.msk [vmem:[#allocation3 + $0x80] sm:$0xff] %vm312, %v439
      %472 = vst.msk [vmem:[#allocation3 + $0x88] sm:$0xff] %vm312, %v440
      %473 = vst.msk [vmem:[#allocation3 + $0x90] sm:$0xff] %vm312, %v441
      %474 = vst.msk [vmem:[#allocation3 + $0x98] sm:$0xff] %vm312, %v442
      %475 = vst.msk [vmem:[#allocation3 + $0xa0] sm:$0xff] %vm312, %v443
      %476 = vst.msk [vmem:[#allocation3 + $0xa8] sm:$0xff] %vm312, %v444
      %477 = vst.msk [vmem:[#allocation3 + $0xb0] sm:$0xff] %vm312, %v445
      %478 = vst.msk [vmem:[#allocation3 + $0xb8] sm:$0xff] %vm312, %v446
      %479 = vst.msk [vmem:[#allocation3 + $0xc0] sm:$0xff] %vm312, %v447
      %480 = vst.msk [vmem:[#allocation3 + $0xc8] sm:$0xff] %vm312, %v448
      %481 = vst.msk [vmem:[#allocation3 + $0xd0] sm:$0xff] %vm312, %v449
      %482 = vst.msk [vmem:[#allocation3 + $0xd8] sm:$0xff] %vm312, %v450
      %483 = vst.msk [vmem:[#allocation3 + $0xe0] sm:$0xff] %vm312, %v451
      %484 = vst.msk [vmem:[#allocation3 + $0xe8] sm:$0xff] %vm312, %v452
      %485 = vst.msk [vmem:[#allocation3 + $0xf0] sm:$0xff] %vm312, %v453
      %486 = vst.msk [vmem:[#allocation3 + $0xf8] sm:$0xff] %vm312, %v454
      %v487 = vld [vmem:[#allocation2 + $0x1] sm:$0xff]
      %v488 = vld [vmem:[#allocation2 + $0x9] sm:$0xff]
      %v489 = vld [vmem:[#allocation2 + $0x19] sm:$0xff]
      %v490 = vld [vmem:[#allocation2 + $0x21] sm:$0xff]
      %v491 = vld [vmem:[#allocation2 + $0x31] sm:$0xff]
      %v492 = vld [vmem:[#allocation2 + $0x39] sm:$0xff]
      %v493 = vld [vmem:[#allocation2 + $0x49] sm:$0xff]
      %v494 = vld [vmem:[#allocation2 + $0x51] sm:$0xff]
      %v495 = vld [vmem:[#allocation2 + $0x61] sm:$0xff]
      %v496 = vld [vmem:[#allocation2 + $0x69] sm:$0xff]
      %v497 = vld [vmem:[#allocation2 + $0x79] sm:$0xff]
      %v498 = vld [vmem:[#allocation2 + $0x81] sm:$0xff]
      %v499 = vld [vmem:[#allocation2 + $0x91] sm:$0xff]
      %v500 = vld [vmem:[#allocation2 + $0x99] sm:$0xff]
      %v501 = vld [vmem:[#allocation2 + $0xa9] sm:$0xff]
      %v502 = vld [vmem:[#allocation2 + $0xb1] sm:$0xff]
      %v503 = vld [vmem:[#allocation2 + $0xc1] sm:$0xff]
      %v504 = vld [vmem:[#allocation2 + $0xc9] sm:$0xff]
      %v505 = vld [vmem:[#allocation2 + $0xd9] sm:$0xff]
      %v506 = vld [vmem:[#allocation2 + $0xe1] sm:$0xff]
      %v507 = vld [vmem:[#allocation2 + $0xf1] sm:$0xff]
      %v508 = vld [vmem:[#allocation2 + $0xf9] sm:$0xff]
      %v509 = vld [vmem:[#allocation2 + $0x109] sm:$0xff]
      %v510 = vld [vmem:[#allocation2 + $0x111] sm:$0xff]
      %v511 = vld [vmem:[#allocation2 + $0x121] sm:$0xff]
      %v512 = vld [vmem:[#allocation2 + $0x129] sm:$0xff]
      %v513 = vld [vmem:[#allocation2 + $0x139] sm:$0xff]
      %v514 = vld [vmem:[#allocation2 + $0x141] sm:$0xff]
      %v515 = vld [vmem:[#allocation2 + $0x151] sm:$0xff]
      %v516 = vld [vmem:[#allocation2 + $0x159] sm:$0xff]
      %v517 = vld [vmem:[#allocation2 + $0x169] sm:$0xff]
      %v518 = vld [vmem:[#allocation2 + $0x171] sm:$0xff]
      %551 = vrot.lane.b32.xlu0 %v487, 4
      %v552 = vpop.permute.xlu0 %551
      %553 = vrot.lane.b32.xlu0 %v488, 4
      %v554 = vpop.permute.xlu0 %553
      %555 = vrot.lane.b32.xlu0 %v489, 4
      %v556 = vpop.permute.xlu0 %555
      %557 = vrot.lane.b32.xlu0 %v490, 4
      %v558 = vpop.permute.xlu0 %557
      %559 = vrot.lane.b32.xlu0 %v491, 4
      %v560 = vpop.permute.xlu0 %559
      %561 = vrot.lane.b32.xlu0 %v492, 4
      %v562 = vpop.permute.xlu0 %561
      %563 = vrot.lane.b32.xlu0 %v493, 4
      %v564 = vpop.permute.xlu0 %563
      %565 = vrot.lane.b32.xlu0 %v494, 4
      %v566 = vpop.permute.xlu0 %565
      %567 = vrot.lane.b32.xlu0 %v495, 4
      %v568 = vpop.permute.xlu0 %567
      %569 = vrot.lane.b32.xlu0 %v496, 4
      %v570 = vpop.permute.xlu0 %569
      %571 = vrot.lane.b32.xlu0 %v497, 4
      %v572 = vpop.permute.xlu0 %571
      %573 = vrot.lane.b32.xlu0 %v498, 4
      %v574 = vpop.permute.xlu0 %573
      %575 = vrot.lane.b32.xlu0 %v499, 4
      %v576 = vpop.permute.xlu0 %575
      %577 = vrot.lane.b32.xlu0 %v500, 4
      %v578 = vpop.permute.xlu0 %577
      %579 = vrot.lane.b32.xlu0 %v501, 4
      %v580 = vpop.permute.xlu0 %579
      %581 = vrot.lane.b32.xlu0 %v502, 4
      %v582 = vpop.permute.xlu0 %581
      %583 = vrot.lane.b32.xlu0 %v503, 4
      %v584 = vpop.permute.xlu0 %583
      %585 = vrot.lane.b32.xlu0 %v504, 4
      %v586 = vpop.permute.xlu0 %585
      %587 = vrot.lane.b32.xlu0 %v505, 4
      %v588 = vpop.permute.xlu0 %587
      %589 = vrot.lane.b32.xlu0 %v506, 4
      %v590 = vpop.permute.xlu0 %589
      %591 = vrot.lane.b32.xlu0 %v507, 4
      %v592 = vpop.permute.xlu0 %591
      %593 = vrot.lane.b32.xlu0 %v508, 4
      %v594 = vpop.permute.xlu0 %593
      %595 = vrot.lane.b32.xlu0 %v509, 4
      %v596 = vpop.permute.xlu0 %595
      %597 = vrot.lane.b32.xlu0 %v510, 4
      %v598 = vpop.permute.xlu0 %597
      %599 = vrot.lane.b32.xlu0 %v511, 4
      %v600 = vpop.permute.xlu0 %599
      %601 = vrot.lane.b32.xlu0 %v512, 4
      %v602 = vpop.permute.xlu0 %601
      %603 = vrot.lane.b32.xlu0 %v513, 4
      %v604 = vpop.permute.xlu0 %603
      %605 = vrot.lane.b32.xlu0 %v514, 4
      %v606 = vpop.permute.xlu0 %605
      %607 = vrot.lane.b32.xlu0 %v515, 4
      %v608 = vpop.permute.xlu0 %607
      %609 = vrot.lane.b32.xlu0 %v516, 4
      %v610 = vpop.permute.xlu0 %609
      %611 = vrot.lane.b32.xlu0 %v517, 4
      %v612 = vpop.permute.xlu0 %611
      %613 = vrot.lane.b32.xlu0 %v518, 4
      %v614 = vpop.permute.xlu0 %613
      %vm647 = vcmask 64544
      %648 = vst.msk [vmem:[#allocation3] sm:$0xff] %vm647, %v552
      %649 = vst.msk [vmem:[#allocation3 + $0x8] sm:$0xff] %vm647, %v554
      %650 = vst.msk [vmem:[#allocation3 + $0x10] sm:$0xff] %vm647, %v556
      %651 = vst.msk [vmem:[#allocation3 + $0x18] sm:$0xff] %vm647, %v558
      %652 = vst.msk [vmem:[#allocation3 + $0x20] sm:$0xff] %vm647, %v560
      %653 = vst.msk [vmem:[#allocation3 + $0x28] sm:$0xff] %vm647, %v562
      %654 = vst.msk [vmem:[#allocation3 + $0x30] sm:$0xff] %vm647, %v564
      %655 = vst.msk [vmem:[#allocation3 + $0x38] sm:$0xff] %vm647, %v566
      %656 = vst.msk [vmem:[#allocation3 + $0x40] sm:$0xff] %vm647, %v568
      %657 = vst.msk [vmem:[#allocation3 + $0x48] sm:$0xff] %vm647, %v570
      %658 = vst.msk [vmem:[#allocation3 + $0x50] sm:$0xff] %vm647, %v572
      %659 = vst.msk [vmem:[#allocation3 + $0x58] sm:$0xff] %vm647, %v574
      %660 = vst.msk [vmem:[#allocation3 + $0x60] sm:$0xff] %vm647, %v576
      %661 = vst.msk [vmem:[#allocation3 + $0x68] sm:$0xff] %vm647, %v578
      %662 = vst.msk [vmem:[#allocation3 + $0x70] sm:$0xff] %vm647, %v580
      %663 = vst.msk [vmem:[#allocation3 + $0x78] sm:$0xff] %vm647, %v582
      %664 = vst.msk [vmem:[#allocation3 + $0x80] sm:$0xff] %vm647, %v584
      %665 = vst.msk [vmem:[#allocation3 + $0x88] sm:$0xff] %vm647, %v586
      %666 = vst.msk [vmem:[#allocation3 + $0x90] sm:$0xff] %vm647, %v588
      %667 = vst.msk [vmem:[#allocation3 + $0x98] sm:$0xff] %vm647, %v590
      %668 = vst.msk [vmem:[#allocation3 + $0xa0] sm:$0xff] %vm647, %v592
      %669 = vst.msk [vmem:[#allocation3 + $0xa8] sm:$0xff] %vm647, %v594
      %670 = vst.msk [vmem:[#allocation3 + $0xb0] sm:$0xff] %vm647, %v596
      %671 = vst.msk [vmem:[#allocation3 + $0xb8] sm:$0xff] %vm647, %v598
      %672 = vst.msk [vmem:[#allocation3 + $0xc0] sm:$0xff] %vm647, %v600
      %673 = vst.msk [vmem:[#allocation3 + $0xc8] sm:$0xff] %vm647, %v602
      %674 = vst.msk [vmem:[#allocation3 + $0xd0] sm:$0xff] %vm647, %v604
      %675 = vst.msk [vmem:[#allocation3 + $0xd8] sm:$0xff] %vm647, %v606
      %676 = vst.msk [vmem:[#allocation3 + $0xe0] sm:$0xff] %vm647, %v608
      %677 = vst.msk [vmem:[#allocation3 + $0xe8] sm:$0xff] %vm647, %v610
      %678 = vst.msk [vmem:[#allocation3 + $0xf0] sm:$0xff] %vm647, %v612
      %679 = vst.msk [vmem:[#allocation3 + $0xf8] sm:$0xff] %vm647, %v614
      %v680 = vld [vmem:[#allocation2 + $0x2] sm:$0xff]
      %v681 = vld [vmem:[#allocation2 + $0xa] sm:$0xff]
      %v682 = vld [vmem:[#allocation2 + $0x1a] sm:$0xff]
      %v683 = vld [vmem:[#allocation2 + $0x22] sm:$0xff]
      %v684 = vld [vmem:[#allocation2 + $0x32] sm:$0xff]
      %v685 = vld [vmem:[#allocation2 + $0x3a] sm:$0xff]
      %v686 = vld [vmem:[#allocation2 + $0x4a] sm:$0xff]
      %v687 = vld [vmem:[#allocation2 + $0x52] sm:$0xff]
      %v688 = vld [vmem:[#allocation2 + $0x62] sm:$0xff]
      %v689 = vld [vmem:[#allocation2 + $0x6a] sm:$0xff]
      %v690 = vld [vmem:[#allocation2 + $0x7a] sm:$0xff]
      %v691 = vld [vmem:[#allocation2 + $0x82] sm:$0xff]
      %v692 = vld [vmem:[#allocation2 + $0x92] sm:$0xff]
      %v693 = vld [vmem:[#allocation2 + $0x9a] sm:$0xff]
      %v694 = vld [vmem:[#allocation2 + $0xaa] sm:$0xff]
      %v695 = vld [vmem:[#allocation2 + $0xb2] sm:$0xff]
      %v696 = vld [vmem:[#allocation2 + $0xc2] sm:$0xff]
      %v697 = vld [vmem:[#allocation2 + $0xca] sm:$0xff]
      %v698 = vld [vmem:[#allocation2 + $0xda] sm:$0xff]
      %v699 = vld [vmem:[#allocation2 + $0xe2] sm:$0xff]
      %v700 = vld [vmem:[#allocation2 + $0xf2] sm:$0xff]
      %v701 = vld [vmem:[#allocation2 + $0xfa] sm:$0xff]
      %v702 = vld [vmem:[#allocation2 + $0x10a] sm:$0xff]
      %v703 = vld [vmem:[#allocation2 + $0x112] sm:$0xff]
      %v704 = vld [vmem:[#allocation2 + $0x122] sm:$0xff]
      %v705 = vld [vmem:[#allocation2 + $0x12a] sm:$0xff]
      %v706 = vld [vmem:[#allocation2 + $0x13a] sm:$0xff]
      %v707 = vld [vmem:[#allocation2 + $0x142] sm:$0xff]
      %v708 = vld [vmem:[#allocation2 + $0x152] sm:$0xff]
      %v709 = vld [vmem:[#allocation2 + $0x15a] sm:$0xff]
      %v710 = vld [vmem:[#allocation2 + $0x16a] sm:$0xff]
      %v711 = vld [vmem:[#allocation2 + $0x172] sm:$0xff]
      %744 = vrot.lane.b32.xlu0 %v680, 8
      %v745 = vpop.permute.xlu0 %744
      %746 = vrot.lane.b32.xlu0 %v681, 8
      %v747 = vpop.permute.xlu0 %746
      %748 = vrot.lane.b32.xlu0 %v682, 8
      %v749 = vpop.permute.xlu0 %748
      %750 = vrot.lane.b32.xlu0 %v683, 8
      %v751 = vpop.permute.xlu0 %750
      %752 = vrot.lane.b32.xlu0 %v684, 8
      %v753 = vpop.permute.xlu0 %752
      %754 = vrot.lane.b32.xlu0 %v685, 8
      %v755 = vpop.permute.xlu0 %754
      %756 = vrot.lane.b32.xlu0 %v686, 8
      %v757 = vpop.permute.xlu0 %756
      %758 = vrot.lane.b32.xlu0 %v687, 8
      %v759 = vpop.permute.xlu0 %758
      %760 = vrot.lane.b32.xlu0 %v688, 8
      %v761 = vpop.permute.xlu0 %760
      %762 = vrot.lane.b32.xlu0 %v689, 8
      %v763 = vpop.permute.xlu0 %762
      %764 = vrot.lane.b32.xlu0 %v690, 8
      %v765 = vpop.permute.xlu0 %764
      %766 = vrot.lane.b32.xlu0 %v691, 8
      %v767 = vpop.permute.xlu0 %766
      %768 = vrot.lane.b32.xlu0 %v692, 8
      %v769 = vpop.permute.xlu0 %768
      %770 = vrot.lane.b32.xlu0 %v693, 8
      %v771 = vpop.permute.xlu0 %770
      %772 = vrot.lane.b32.xlu0 %v694, 8
      %v773 = vpop.permute.xlu0 %772
      %774 = vrot.lane.b32.xlu0 %v695, 8
      %v775 = vpop.permute.xlu0 %774
      %776 = vrot.lane.b32.xlu0 %v696, 8
      %v777 = vpop.permute.xlu0 %776
      %778 = vrot.lane.b32.xlu0 %v697, 8
      %v779 = vpop.permute.xlu0 %778
      %780 = vrot.lane.b32.xlu0 %v698, 8
      %v781 = vpop.permute.xlu0 %780
      %782 = vrot.lane.b32.xlu0 %v699, 8
      %v783 = vpop.permute.xlu0 %782
      %784 = vrot.lane.b32.xlu0 %v700, 8
      %v785 = vpop.permute.xlu0 %784
      %786 = vrot.lane.b32.xlu0 %v701, 8
      %v787 = vpop.permute.xlu0 %786
      %788 = vrot.lane.b32.xlu0 %v702, 8
      %v789 = vpop.permute.xlu0 %788
      %790 = vrot.lane.b32.xlu0 %v703, 8
      %v791 = vpop.permute.xlu0 %790
      %792 = vrot.lane.b32.xlu0 %v704, 8
      %v793 = vpop.permute.xlu0 %792
      %794 = vrot.lane.b32.xlu0 %v705, 8
      %v795 = vpop.permute.xlu0 %794
      %796 = vrot.lane.b32.xlu0 %v706, 8
      %v797 = vpop.permute.xlu0 %796
      %798 = vrot.lane.b32.xlu0 %v707, 8
      %v799 = vpop.permute.xlu0 %798
      %800 = vrot.lane.b32.xlu0 %v708, 8
      %v801 = vpop.permute.xlu0 %800
      %802 = vrot.lane.b32.xlu0 %v709, 8
      %v803 = vpop.permute.xlu0 %802
      %804 = vrot.lane.b32.xlu0 %v710, 8
      %v805 = vpop.permute.xlu0 %804
      %806 = vrot.lane.b32.xlu0 %v711, 8
      %v807 = vpop.permute.xlu0 %806
      %vm840 = vcmask 97344
      %841 = vst.msk [vmem:[#allocation3] sm:$0xff] %vm840, %v745
      %842 = vst.msk [vmem:[#allocation3 + $0x8] sm:$0xff] %vm840, %v747
      %843 = vst.msk [vmem:[#allocation3 + $0x10] sm:$0xff] %vm840, %v749
      %844 = vst.msk [vmem:[#allocation3 + $0x18] sm:$0xff] %vm840, %v751
      %845 = vst.msk [vmem:[#allocation3 + $0x20] sm:$0xff] %vm840, %v753
      %846 = vst.msk [vmem:[#allocation3 + $0x28] sm:$0xff] %vm840, %v755
      %847 = vst.msk [vmem:[#allocation3 + $0x30] sm:$0xff] %vm840, %v757
      %848 = vst.msk [vmem:[#allocation3 + $0x38] sm:$0xff] %vm840, %v759
      %849 = vst.msk [vmem:[#allocation3 + $0x40] sm:$0xff] %vm840, %v761
      %850 = vst.msk [vmem:[#allocation3 + $0x48] sm:$0xff] %vm840, %v763
      %851 = vst.msk [vmem:[#allocation3 + $0x50] sm:$0xff] %vm840, %v765
      %852 = vst.msk [vmem:[#allocation3 + $0x58] sm:$0xff] %vm840, %v767
      %853 = vst.msk [vmem:[#allocation3 + $0x60] sm:$0xff] %vm840, %v769
      %854 = vst.msk [vmem:[#allocation3 + $0x68] sm:$0xff] %vm840, %v771
      %855 = vst.msk [vmem:[#allocation3 + $0x70] sm:$0xff] %vm840, %v773
      %856 = vst.msk [vmem:[#allocation3 + $0x78] sm:$0xff] %vm840, %v775
      %857 = vst.msk [vmem:[#allocation3 + $0x80] sm:$0xff] %vm840, %v777
      %858 = vst.msk [vmem:[#allocation3 + $0x88] sm:$0xff] %vm840, %v779
      %859 = vst.msk [vmem:[#allocation3 + $0x90] sm:$0xff] %vm840, %v781
      %860 = vst.msk [vmem:[#allocation3 + $0x98] sm:$0xff] %vm840, %v783
      %861 = vst.msk [vmem:[#allocation3 + $0xa0] sm:$0xff] %vm840, %v785
      %862 = vst.msk [vmem:[#allocation3 + $0xa8] sm:$0xff] %vm840, %v787
      %863 = vst.msk [vmem:[#allocation3 + $0xb0] sm:$0xff] %vm840, %v789
      %864 = vst.msk [vmem:[#allocation3 + $0xb8] sm:$0xff] %vm840, %v791
      %865 = vst.msk [vmem:[#allocation3 + $0xc0] sm:$0xff] %vm840, %v793
      %866 = vst.msk [vmem:[#allocation3 + $0xc8] sm:$0xff] %vm840, %v795
      %867 = vst.msk [vmem:[#allocation3 + $0xd0] sm:$0xff] %vm840, %v797
      %868 = vst.msk [vmem:[#allocation3 + $0xd8] sm:$0xff] %vm840, %v799
      %869 = vst.msk [vmem:[#allocation3 + $0xe0] sm:$0xff] %vm840, %v801
      %870 = vst.msk [vmem:[#allocation3 + $0xe8] sm:$0xff] %vm840, %v803
      %871 = vst.msk [vmem:[#allocation3 + $0xf0] sm:$0xff] %vm840, %v805
      %872 = vst.msk [vmem:[#allocation3 + $0xf8] sm:$0xff] %vm840, %v807
      %v873 = vld [vmem:[%s311] sm:$0xff]
      %v874 = vld [vmem:[%s311 + $0x8] sm:$0xff]
      %v875 = vld [vmem:[%s311 + $0x18] sm:$0xff]
      %v876 = vld [vmem:[%s311 + $0x20] sm:$0xff]
      %v877 = vld [vmem:[%s311 + $0x30] sm:$0xff]
      %v878 = vld [vmem:[%s311 + $0x38] sm:$0xff]
      %v879 = vld [vmem:[%s311 + $0x48] sm:$0xff]
      %v880 = vld [vmem:[%s311 + $0x50] sm:$0xff]
      %v881 = vld [vmem:[%s311 + $0x60] sm:$0xff]
      %v882 = vld [vmem:[%s311 + $0x68] sm:$0xff]
      %v883 = vld [vmem:[%s311 + $0x78] sm:$0xff]
      %v884 = vld [vmem:[%s311 + $0x80] sm:$0xff]
      %v885 = vld [vmem:[%s311 + $0x90] sm:$0xff]
      %v886 = vld [vmem:[%s311 + $0x98] sm:$0xff]
      %v887 = vld [vmem:[%s311 + $0xa8] sm:$0xff]
      %v888 = vld [vmem:[%s311 + $0xb0] sm:$0xff]
      %v889 = vld [vmem:[%s311 + $0xc0] sm:$0xff]
      %v890 = vld [vmem:[%s311 + $0xc8] sm:$0xff]
      %v891 = vld [vmem:[%s311 + $0xd8] sm:$0xff]
      %v892 = vld [vmem:[%s311 + $0xe0] sm:$0xff]
      %v893 = vld [vmem:[%s311 + $0xf0] sm:$0xff]
      %v894 = vld [vmem:[%s311 + $0xf8] sm:$0xff]
      %v895 = vld [vmem:[%s311 + $0x108] sm:$0xff]
      %v896 = vld [vmem:[%s311 + $0x110] sm:$0xff]
      %v897 = vld [vmem:[%s311 + $0x120] sm:$0xff]
      %v898 = vld [vmem:[%s311 + $0x128] sm:$0xff]
      %v899 = vld [vmem:[%s311 + $0x138] sm:$0xff]
      %v900 = vld [vmem:[%s311 + $0x140] sm:$0xff]
      %v901 = vld [vmem:[%s311 + $0x150] sm:$0xff]
      %v902 = vld [vmem:[%s311 + $0x158] sm:$0xff]
      %v903 = vld [vmem:[%s311 + $0x168] sm:$0xff]
      %v904 = vld [vmem:[%s311 + $0x170] sm:$0xff]
      %937 = vrot.lane.b32.xlu0 %v873, 12
      %v938 = vpop.permute.xlu0 %937
      %939 = vrot.lane.b32.xlu0 %v874, 12
      %v940 = vpop.permute.xlu0 %939
      %941 = vrot.lane.b32.xlu0 %v875, 12
      %v942 = vpop.permute.xlu0 %941
      %943 = vrot.lane.b32.xlu0 %v876, 12
      %v944 = vpop.permute.xlu0 %943
      %945 = vrot.lane.b32.xlu0 %v877, 12
      %v946 = vpop.permute.xlu0 %945
      %947 = vrot.lane.b32.xlu0 %v878, 12
      %v948 = vpop.permute.xlu0 %947
      %949 = vrot.lane.b32.xlu0 %v879, 12
      %v950 = vpop.permute.xlu0 %949
      %951 = vrot.lane.b32.xlu0 %v880, 12
      %v952 = vpop.permute.xlu0 %951
      %953 = vrot.lane.b32.xlu0 %v881, 12
      %v954 = vpop.permute.xlu0 %953
      %955 = vrot.lane.b32.xlu0 %v882, 12
      %v956 = vpop.permute.xlu0 %955
      %957 = vrot.lane.b32.xlu0 %v883, 12
      %v958 = vpop.permute.xlu0 %957
      %959 = vrot.lane.b32.xlu0 %v884, 12
      %v960 = vpop.permute.xlu0 %959
      %961 = vrot.lane.b32.xlu0 %v885, 12
      %v962 = vpop.permute.xlu0 %961
      %963 = vrot.lane.b32.xlu0 %v886, 12
      %v964 = vpop.permute.xlu0 %963
      %965 = vrot.lane.b32.xlu0 %v887, 12
      %v966 = vpop.permute.xlu0 %965
      %967 = vrot.lane.b32.xlu0 %v888, 12
      %v968 = vpop.permute.xlu0 %967
      %969 = vrot.lane.b32.xlu0 %v889, 12
      %v970 = vpop.permute.xlu0 %969
      %971 = vrot.lane.b32.xlu0 %v890, 12
      %v972 = vpop.permute.xlu0 %971
      %973 = vrot.lane.b32.xlu0 %v891, 12
      %v974 = vpop.permute.xlu0 %973
      %975 = vrot.lane.b32.xlu0 %v892, 12
      %v976 = vpop.permute.xlu0 %975
      %977 = vrot.lane.b32.xlu0 %v893, 12
      %v978 = vpop.permute.xlu0 %977
      %979 = vrot.lane.b32.xlu0 %v894, 12
      %v980 = vpop.permute.xlu0 %979
      %981 = vrot.lane.b32.xlu0 %v895, 12
      %v982 = vpop.permute.xlu0 %981
      %983 = vrot.lane.b32.xlu0 %v896, 12
      %v984 = vpop.permute.xlu0 %983
      %985 = vrot.lane.b32.xlu0 %v897, 12
      %v986 = vpop.permute.xlu0 %985
      %987 = vrot.lane.b32.xlu0 %v898, 12
      %v988 = vpop.permute.xlu0 %987
      %989 = vrot.lane.b32.xlu0 %v899, 12
      %v990 = vpop.permute.xlu0 %989
      %991 = vrot.lane.b32.xlu0 %v900, 12
      %v992 = vpop.permute.xlu0 %991
      %993 = vrot.lane.b32.xlu0 %v901, 12
      %v994 = vpop.permute.xlu0 %993
      %995 = vrot.lane.b32.xlu0 %v902, 12
      %v996 = vpop.permute.xlu0 %995
      %997 = vrot.lane.b32.xlu0 %v903, 12
      %v998 = vpop.permute.xlu0 %997
      %999 = vrot.lane.b32.xlu0 %v904, 12
      %v1000 = vpop.permute.xlu0 %999
      %vm1033 = vcmask 130144
      %1034 = vst.msk [vmem:[#allocation3] sm:$0xff] %vm1033, %v938
      %1035 = vst.msk [vmem:[#allocation3 + $0x8] sm:$0xff] %vm1033, %v940
      %1036 = vst.msk [vmem:[#allocation3 + $0x10] sm:$0xff] %vm1033, %v942
      %1037 = vst.msk [vmem:[#allocation3 + $0x18] sm:$0xff] %vm1033, %v944
      %1038 = vst.msk [vmem:[#allocation3 + $0x20] sm:$0xff] %vm1033, %v946
      %1039 = vst.msk [vmem:[#allocation3 + $0x28] sm:$0xff] %vm1033, %v948
      %1040 = vst.msk [vmem:[#allocation3 + $0x30] sm:$0xff] %vm1033, %v950
      %1041 = vst.msk [vmem:[#allocation3 + $0x38] sm:$0xff] %vm1033, %v952
      %1042 = vst.msk [vmem:[#allocation3 + $0x40] sm:$0xff] %vm1033, %v954
      %1043 = vst.msk [vmem:[#allocation3 + $0x48] sm:$0xff] %vm1033, %v956
      %1044 = vst.msk [vmem:[#allocation3 + $0x50] sm:$0xff] %vm1033, %v958
      %1045 = vst.msk [vmem:[#allocation3 + $0x58] sm:$0xff] %vm1033, %v960
      %1046 = vst.msk [vmem:[#allocation3 + $0x60] sm:$0xff] %vm1033, %v962
      %1047 = vst.msk [vmem:[#allocation3 + $0x68] sm:$0xff] %vm1033, %v964
      %1048 = vst.msk [vmem:[#allocation3 + $0x70] sm:$0xff] %vm1033, %v966
      %1049 = vst.msk [vmem:[#allocation3 + $0x78] sm:$0xff] %vm1033, %v968
      %1050 = vst.msk [vmem:[#allocation3 + $0x80] sm:$0xff] %vm1033, %v970
      %1051 = vst.msk [vmem:[#allocation3 + $0x88] sm:$0xff] %vm1033, %v972
      %1052 = vst.msk [vmem:[#allocation3 + $0x90] sm:$0xff] %vm1033, %v974
      %1053 = vst.msk [vmem:[#allocation3 + $0x98] sm:$0xff] %vm1033, %v976
      %1054 = vst.msk [vmem:[#allocation3 + $0xa0] sm:$0xff] %vm1033, %v978
      %1055 = vst.msk [vmem:[#allocation3 + $0xa8] sm:$0xff] %vm1033, %v980
      %1056 = vst.msk [vmem:[#allocation3 + $0xb0] sm:$0xff] %vm1033, %v982
      %1057 = vst.msk [vmem:[#allocation3 + $0xb8] sm:$0xff] %vm1033, %v984
      %1058 = vst.msk [vmem:[#allocation3 + $0xc0] sm:$0xff] %vm1033, %v986
      %1059 = vst.msk [vmem:[#allocation3 + $0xc8] sm:$0xff] %vm1033, %v988
      %1060 = vst.msk [vmem:[#allocation3 + $0xd0] sm:$0xff] %vm1033, %v990
      %1061 = vst.msk [vmem:[#allocation3 + $0xd8] sm:$0xff] %vm1033, %v992
      %1062 = vst.msk [vmem:[#allocation3 + $0xe0] sm:$0xff] %vm1033, %v994
      %1063 = vst.msk [vmem:[#allocation3 + $0xe8] sm:$0xff] %vm1033, %v996
      %1064 = vst.msk [vmem:[#allocation3 + $0xf0] sm:$0xff] %vm1033, %v998
      %1065 = vst.msk [vmem:[#allocation3 + $0xf8] sm:$0xff] %vm1033, %v1000
      %v1066 = vld [vmem:[%s311 + $0x1] sm:$0xff]
      %v1067 = vld [vmem:[%s311 + $0x9] sm:$0xff]
      %v1068 = vld [vmem:[%s311 + $0x19] sm:$0xff]
      %v1069 = vld [vmem:[%s311 + $0x21] sm:$0xff]
      %v1070 = vld [vmem:[%s311 + $0x31] sm:$0xff]
      %v1071 = vld [vmem:[%s311 + $0x39] sm:$0xff]
      %v1072 = vld [vmem:[%s311 + $0x49] sm:$0xff]
      %v1073 = vld [vmem:[%s311 + $0x51] sm:$0xff]
      %v1074 = vld [vmem:[%s311 + $0x61] sm:$0xff]
      %v1075 = vld [vmem:[%s311 + $0x69] sm:$0xff]
      %v1076 = vld [vmem:[%s311 + $0x79] sm:$0xff]
      %v1077 = vld [vmem:[%s311 + $0x81] sm:$0xff]
      %v1078 = vld [vmem:[%s311 + $0x91] sm:$0xff]
      %v1079 = vld [vmem:[%s311 + $0x99] sm:$0xff]
      %v1080 = vld [vmem:[%s311 + $0xa9] sm:$0xff]
      %v1081 = vld [vmem:[%s311 + $0xb1] sm:$0xff]
      %v1082 = vld [vmem:[%s311 + $0xc1] sm:$0xff]
      %v1083 = vld [vmem:[%s311 + $0xc9] sm:$0xff]
      %v1084 = vld [vmem:[%s311 + $0xd9] sm:$0xff]
      %v1085 = vld [vmem:[%s311 + $0xe1] sm:$0xff]
      %v1086 = vld [vmem:[%s311 + $0xf1] sm:$0xff]
      %v1087 = vld [vmem:[%s311 + $0xf9] sm:$0xff]
      %v1088 = vld [vmem:[%s311 + $0x109] sm:$0xff]
      %v1089 = vld [vmem:[%s311 + $0x111] sm:$0xff]
      %v1090 = vld [vmem:[%s311 + $0x121] sm:$0xff]
      %v1091 = vld [vmem:[%s311 + $0x129] sm:$0xff]
      %v1092 = vld [vmem:[%s311 + $0x139] sm:$0xff]
      %v1093 = vld [vmem:[%s311 + $0x141] sm:$0xff]
      %v1094 = vld [vmem:[%s311 + $0x151] sm:$0xff]
      %v1095 = vld [vmem:[%s311 + $0x159] sm:$0xff]
      %v1096 = vld [vmem:[%s311 + $0x169] sm:$0xff]
      %v1097 = vld [vmem:[%s311 + $0x171] sm:$0xff]
      %1130 = vrot.lane.b32.xlu0 %v1066, 16
      %v1131 = vpop.permute.xlu0 %1130
      %1132 = vrot.lane.b32.xlu0 %v1067, 16
      %v1133 = vpop.permute.xlu0 %1132
      %1134 = vrot.lane.b32.xlu0 %v1068, 16
      %v1135 = vpop.permute.xlu0 %1134
      %1136 = vrot.lane.b32.xlu0 %v1069, 16
      %v1137 = vpop.permute.xlu0 %1136
      %1138 = vrot.lane.b32.xlu0 %v1070, 16
      %v1139 = vpop.permute.xlu0 %1138
      %1140 = vrot.lane.b32.xlu0 %v1071, 16
      %v1141 = vpop.permute.xlu0 %1140
      %1142 = vrot.lane.b32.xlu0 %v1072, 16
      %v1143 = vpop.permute.xlu0 %1142
      %1144 = vrot.lane.b32.xlu0 %v1073, 16
      %v1145 = vpop.permute.xlu0 %1144
      %1146 = vrot.lane.b32.xlu0 %v1074, 16
      %v1147 = vpop.permute.xlu0 %1146
      %1148 = vrot.lane.b32.xlu0 %v1075, 16
      %v1149 = vpop.permute.xlu0 %1148
      %1150 = vrot.lane.b32.xlu0 %v1076, 16
      %v1151 = vpop.permute.xlu0 %1150
      %1152 = vrot.lane.b32.xlu0 %v1077, 16
      %v1153 = vpop.permute.xlu0 %1152
      %1154 = vrot.lane.b32.xlu0 %v1078, 16
      %v1155 = vpop.permute.xlu0 %1154
      %1156 = vrot.lane.b32.xlu0 %v1079, 16
      %v1157 = vpop.permute.xlu0 %1156
      %1158 = vrot.lane.b32.xlu0 %v1080, 16
      %v1159 = vpop.permute.xlu0 %1158
      %1160 = vrot.lane.b32.xlu0 %v1081, 16
      %v1161 = vpop.permute.xlu0 %1160
      %1162 = vrot.lane.b32.xlu0 %v1082, 16
      %v1163 = vpop.permute.xlu0 %1162
      %1164 = vrot.lane.b32.xlu0 %v1083, 16
      %v1165 = vpop.permute.xlu0 %1164
      %1166 = vrot.lane.b32.xlu0 %v1084, 16
      %v1167 = vpop.permute.xlu0 %1166
      %1168 = vrot.lane.b32.xlu0 %v1085, 16
      %v1169 = vpop.permute.xlu0 %1168
      %1170 = vrot.lane.b32.xlu0 %v1086, 16
      %v1171 = vpop.permute.xlu0 %1170
      %1172 = vrot.lane.b32.xlu0 %v1087, 16
      %v1173 = vpop.permute.xlu0 %1172
      %1174 = vrot.lane.b32.xlu0 %v1088, 16
      %v1175 = vpop.permute.xlu0 %1174
      %1176 = vrot.lane.b32.xlu0 %v1089, 16
      %v1177 = vpop.permute.xlu0 %1176
      %1178 = vrot.lane.b32.xlu0 %v1090, 16
      %v1179 = vpop.permute.xlu0 %1178
      %1180 = vrot.lane.b32.xlu0 %v1091, 16
      %v1181 = vpop.permute.xlu0 %1180
      %1182 = vrot.lane.b32.xlu0 %v1092, 16
      %v1183 = vpop.permute.xlu0 %1182
      %1184 = vrot.lane.b32.xlu0 %v1093, 16
      %v1185 = vpop.permute.xlu0 %1184
      %1186 = vrot.lane.b32.xlu0 %v1094, 16
      %v1187 = vpop.permute.xlu0 %1186
      %1188 = vrot.lane.b32.xlu0 %v1095, 16
      %v1189 = vpop.permute.xlu0 %1188
      %1190 = vrot.lane.b32.xlu0 %v1096, 16
      %v1191 = vpop.permute.xlu0 %1190
      %1192 = vrot.lane.b32.xlu0 %v1097, 16
      %v1193 = vpop.permute.xlu0 %1192
      %vm1226 = vcmask 162944
      %1227 = vst.msk [vmem:[#allocation3] sm:$0xff] %vm1226, %v1131
      %1228 = vst.msk [vmem:[#allocation3 + $0x8] sm:$0xff] %vm1226, %v1133
      %1229 = vst.msk [vmem:[#allocation3 + $0x10] sm:$0xff] %vm1226, %v1135
      %1230 = vst.msk [vmem:[#allocation3 + $0x18] sm:$0xff] %vm1226, %v1137
      %1231 = vst.msk [vmem:[#allocation3 + $0x20] sm:$0xff] %vm1226, %v1139
      %1232 = vst.msk [vmem:[#allocation3 + $0x28] sm:$0xff] %vm1226, %v1141
      %1233 = vst.msk [vmem:[#allocation3 + $0x30] sm:$0xff] %vm1226, %v1143
      %1234 = vst.msk [vmem:[#allocation3 + $0x38] sm:$0xff] %vm1226, %v1145
      %1235 = vst.msk [vmem:[#allocation3 + $0x40] sm:$0xff] %vm1226, %v1147
      %1236 = vst.msk [vmem:[#allocation3 + $0x48] sm:$0xff] %vm1226, %v1149
      %1237 = vst.msk [vmem:[#allocation3 + $0x50] sm:$0xff] %vm1226, %v1151
      %1238 = vst.msk [vmem:[#allocation3 + $0x58] sm:$0xff] %vm1226, %v1153
      %1239 = vst.msk [vmem:[#allocation3 + $0x60] sm:$0xff] %vm1226, %v1155
      %1240 = vst.msk [vmem:[#allocation3 + $0x68] sm:$0xff] %vm1226, %v1157
      %1241 = vst.msk [vmem:[#allocation3 + $0x70] sm:$0xff] %vm1226, %v1159
      %1242 = vst.msk [vmem:[#allocation3 + $0x78] sm:$0xff] %vm1226, %v1161
      %1243 = vst.msk [vmem:[#allocation3 + $0x80] sm:$0xff] %vm1226, %v1163
      %1244 = vst.msk [vmem:[#allocation3 + $0x88] sm:$0xff] %vm1226, %v1165
      %1245 = vst.msk [vmem:[#allocation3 + $0x90] sm:$0xff] %vm1226, %v1167
      %1246 = vst.msk [vmem:[#allocation3 + $0x98] sm:$0xff] %vm1226, %v1169
      %1247 = vst.msk [vmem:[#allocation3 + $0xa0] sm:$0xff] %vm1226, %v1171
      %1248 = vst.msk [vmem:[#allocation3 + $0xa8] sm:$0xff] %vm1226, %v1173
      %1249 = vst.msk [vmem:[#allocation3 + $0xb0] sm:$0xff] %vm1226, %v1175
      %1250 = vst.msk [vmem:[#allocation3 + $0xb8] sm:$0xff] %vm1226, %v1177
      %1251 = vst.msk [vmem:[#allocation3 + $0xc0] sm:$0xff] %vm1226, %v1179
      %1252 = vst.msk [vmem:[#allocation3 + $0xc8] sm:$0xff] %vm1226, %v1181
      %1253 = vst.msk [vmem:[#allocation3 + $0xd0] sm:$0xff] %vm1226, %v1183
      %1254 = vst.msk [vmem:[#allocation3 + $0xd8] sm:$0xff] %vm1226, %v1185
      %1255 = vst.msk [vmem:[#allocation3 + $0xe0] sm:$0xff] %vm1226, %v1187
      %1256 = vst.msk [vmem:[#allocation3 + $0xe8] sm:$0xff] %vm1226, %v1189
      %1257 = vst.msk [vmem:[#allocation3 + $0xf0] sm:$0xff] %vm1226, %v1191
      %1258 = vst.msk [vmem:[#allocation3 + $0xf8] sm:$0xff] %vm1226, %v1193
      %v1259 = vld [vmem:[%s311 + $0x2] sm:$0xff]
      %v1260 = vld [vmem:[%s311 + $0xa] sm:$0xff]
      %v1261 = vld [vmem:[%s311 + $0x1a] sm:$0xff]
      %v1262 = vld [vmem:[%s311 + $0x22] sm:$0xff]
      %v1263 = vld [vmem:[%s311 + $0x32] sm:$0xff]
      %v1264 = vld [vmem:[%s311 + $0x3a] sm:$0xff]
      %v1265 = vld [vmem:[%s311 + $0x4a] sm:$0xff]
      %v1266 = vld [vmem:[%s311 + $0x52] sm:$0xff]
      %v1267 = vld [vmem:[%s311 + $0x62] sm:$0xff]
      %v1268 = vld [vmem:[%s311 + $0x6a] sm:$0xff]
      %v1269 = vld [vmem:[%s311 + $0x7a] sm:$0xff]
      %v1270 = vld [vmem:[%s311 + $0x82] sm:$0xff]
      %v1271 = vld [vmem:[%s311 + $0x92] sm:$0xff]
      %v1272 = vld [vmem:[%s311 + $0x9a] sm:$0xff]
      %v1273 = vld [vmem:[%s311 + $0xaa] sm:$0xff]
      %v1274 = vld [vmem:[%s311 + $0xb2] sm:$0xff]
      %v1275 = vld [vmem:[%s311 + $0xc2] sm:$0xff]
      %v1276 = vld [vmem:[%s311 + $0xca] sm:$0xff]
      %v1277 = vld [vmem:[%s311 + $0xda] sm:$0xff]
      %v1278 = vld [vmem:[%s311 + $0xe2] sm:$0xff]
      %v1279 = vld [vmem:[%s311 + $0xf2] sm:$0xff]
      %v1280 = vld [vmem:[%s311 + $0xfa] sm:$0xff]
      %v1281 = vld [vmem:[%s311 + $0x10a] sm:$0xff]
      %v1282 = vld [vmem:[%s311 + $0x112] sm:$0xff]
      %v1283 = vld [vmem:[%s311 + $0x122] sm:$0xff]
      %v1284 = vld [vmem:[%s311 + $0x12a] sm:$0xff]
      %v1285 = vld [vmem:[%s311 + $0x13a] sm:$0xff]
      %v1286 = vld [vmem:[%s311 + $0x142] sm:$0xff]
      %v1287 = vld [vmem:[%s311 + $0x152] sm:$0xff]
      %v1288 = vld [vmem:[%s311 + $0x15a] sm:$0xff]
      %v1289 = vld [vmem:[%s311 + $0x16a] sm:$0xff]
      %v1290 = vld [vmem:[%s311 + $0x172] sm:$0xff]
      %1323 = vrot.lane.b32.xlu0 %v1259, 20
      %v1324 = vpop.permute.xlu0 %1323
      %1325 = vrot.lane.b32.xlu0 %v1260, 20
      %v1326 = vpop.permute.xlu0 %1325
      %1327 = vrot.lane.b32.xlu0 %v1261, 20
      %v1328 = vpop.permute.xlu0 %1327
      %1329 = vrot.lane.b32.xlu0 %v1262, 20
      %v1330 = vpop.permute.xlu0 %1329
      %1331 = vrot.lane.b32.xlu0 %v1263, 20
      %v1332 = vpop.permute.xlu0 %1331
      %1333 = vrot.lane.b32.xlu0 %v1264, 20
      %v1334 = vpop.permute.xlu0 %1333
      %1335 = vrot.lane.b32.xlu0 %v1265, 20
      %v1336 = vpop.permute.xlu0 %1335
      %1337 = vrot.lane.b32.xlu0 %v1266, 20
      %v1338 = vpop.permute.xlu0 %1337
      %1339 = vrot.lane.b32.xlu0 %v1267, 20
      %v1340 = vpop.permute.xlu0 %1339
      %1341 = vrot.lane.b32.xlu0 %v1268, 20
      %v1342 = vpop.permute.xlu0 %1341
      %1343 = vrot.lane.b32.xlu0 %v1269, 20
      %v1344 = vpop.permute.xlu0 %1343
      %1345 = vrot.lane.b32.xlu0 %v1270, 20
      %v1346 = vpop.permute.xlu0 %1345
      %1347 = vrot.lane.b32.xlu0 %v1271, 20
      %v1348 = vpop.permute.xlu0 %1347
      %1349 = vrot.lane.b32.xlu0 %v1272, 20
      %v1350 = vpop.permute.xlu0 %1349
      %1351 = vrot.lane.b32.xlu0 %v1273, 20
      %v1352 = vpop.permute.xlu0 %1351
      %1353 = vrot.lane.b32.xlu0 %v1274, 20
      %v1354 = vpop.permute.xlu0 %1353
      %1355 = vrot.lane.b32.xlu0 %v1275, 20
      %v1356 = vpop.permute.xlu0 %1355
      %1357 = vrot.lane.b32.xlu0 %v1276, 20
      %v1358 = vpop.permute.xlu0 %1357
      %1359 = vrot.lane.b32.xlu0 %v1277, 20
      %v1360 = vpop.permute.xlu0 %1359
      %1361 = vrot.lane.b32.xlu0 %v1278, 20
      %v1362 = vpop.permute.xlu0 %1361
      %1363 = vrot.lane.b32.xlu0 %v1279, 20
      %v1364 = vpop.permute.xlu0 %1363
      %1365 = vrot.lane.b32.xlu0 %v1280, 20
      %v1366 = vpop.permute.xlu0 %1365
      %1367 = vrot.lane.b32.xlu0 %v1281, 20
      %v1368 = vpop.permute.xlu0 %1367
      %1369 = vrot.lane.b32.xlu0 %v1282, 20
      %v1370 = vpop.permute.xlu0 %1369
      %1371 = vrot.lane.b32.xlu0 %v1283, 20
      %v1372 = vpop.permute.xlu0 %1371
      %1373 = vrot.lane.b32.xlu0 %v1284, 20
      %v1374 = vpop.permute.xlu0 %1373
      %1375 = vrot.lane.b32.xlu0 %v1285, 20
      %v1376 = vpop.permute.xlu0 %1375
      %1377 = vrot.lane.b32.xlu0 %v1286, 20
      %v1378 = vpop.permute.xlu0 %1377
      %1379 = vrot.lane.b32.xlu0 %v1287, 20
      %v1380 = vpop.permute.xlu0 %1379
      %1381 = vrot.lane.b32.xlu0 %v1288, 20
      %v1382 = vpop.permute.xlu0 %1381
      %1383 = vrot.lane.b32.xlu0 %v1289, 20
      %v1384 = vpop.permute.xlu0 %1383
      %1385 = vrot.lane.b32.xlu0 %v1290, 20
      %v1386 = vpop.permute.xlu0 %1385
      %vm1419 = vcmask 195744
      %1420 = vst.msk [vmem:[#allocation3] sm:$0xff] %vm1419, %v1324
      %1421 = vst.msk [vmem:[#allocation3 + $0x8] sm:$0xff] %vm1419, %v1326
      %1422 = vst.msk [vmem:[#allocation3 + $0x10] sm:$0xff] %vm1419, %v1328
      %1423 = vst.msk [vmem:[#allocation3 + $0x18] sm:$0xff] %vm1419, %v1330
      %1424 = vst.msk [vmem:[#allocation3 + $0x20] sm:$0xff] %vm1419, %v1332
      %1425 = vst.msk [vmem:[#allocation3 + $0x28] sm:$0xff] %vm1419, %v1334
      %1426 = vst.msk [vmem:[#allocation3 + $0x30] sm:$0xff] %vm1419, %v1336
      %1427 = vst.msk [vmem:[#allocation3 + $0x38] sm:$0xff] %vm1419, %v1338
      %1428 = vst.msk [vmem:[#allocation3 + $0x40] sm:$0xff] %vm1419, %v1340
      %1429 = vst.msk [vmem:[#allocation3 + $0x48] sm:$0xff] %vm1419, %v1342
      %1430 = vst.msk [vmem:[#allocation3 + $0x50] sm:$0xff] %vm1419, %v1344
      %1431 = vst.msk [vmem:[#allocation3 + $0x58] sm:$0xff] %vm1419, %v1346
      %1432 = vst.msk [vmem:[#allocation3 + $0x60] sm:$0xff] %vm1419, %v1348
      %1433 = vst.msk [vmem:[#allocation3 + $0x68] sm:$0xff] %vm1419, %v1350
      %1434 = vst.msk [vmem:[#allocation3 + $0x70] sm:$0xff] %vm1419, %v1352
      %1435 = vst.msk [vmem:[#allocation3 + $0x78] sm:$0xff] %vm1419, %v1354
      %1436 = vst.msk [vmem:[#allocation3 + $0x80] sm:$0xff] %vm1419, %v1356
      %1437 = vst.msk [vmem:[#allocation3 + $0x88] sm:$0xff] %vm1419, %v1358
      %1438 = vst.msk [vmem:[#allocation3 + $0x90] sm:$0xff] %vm1419, %v1360
      %1439 = vst.msk [vmem:[#allocation3 + $0x98] sm:$0xff] %vm1419, %v1362
      %1440 = vst.msk [vmem:[#allocation3 + $0xa0] sm:$0xff] %vm1419, %v1364
      %1441 = vst.msk [vmem:[#allocation3 + $0xa8] sm:$0xff] %vm1419, %v1366
      %1442 = vst.msk [vmem:[#allocation3 + $0xb0] sm:$0xff] %vm1419, %v1368
      %1443 = vst.msk [vmem:[#allocation3 + $0xb8] sm:$0xff] %vm1419, %v1370
      %1444 = vst.msk [vmem:[#allocation3 + $0xc0] sm:$0xff] %vm1419, %v1372
      %1445 = vst.msk [vmem:[#allocation3 + $0xc8] sm:$0xff] %vm1419, %v1374
      %1446 = vst.msk [vmem:[#allocation3 + $0xd0] sm:$0xff] %vm1419, %v1376
      %1447 = vst.msk [vmem:[#allocation3 + $0xd8] sm:$0xff] %vm1419, %v1378
      %1448 = vst.msk [vmem:[#allocation3 + $0xe0] sm:$0xff] %vm1419, %v1380
      %1449 = vst.msk [vmem:[#allocation3 + $0xe8] sm:$0xff] %vm1419, %v1382
      %1450 = vst.msk [vmem:[#allocation3 + $0xf0] sm:$0xff] %vm1419, %v1384
      %1451 = vst.msk [vmem:[#allocation3 + $0xf8] sm:$0xff] %vm1419, %v1386
      %s1452 = scalar_lea.vmem [#allocation2], 48
      %v1453 = vld [vmem:[%s1452] sm:$0xff]
      %v1454 = vld [vmem:[%s1452 + $0x8] sm:$0xff]
      %v1455 = vld [vmem:[%s1452 + $0x18] sm:$0xff]
      %v1456 = vld [vmem:[%s1452 + $0x20] sm:$0xff]
      %v1457 = vld [vmem:[%s1452 + $0x30] sm:$0xff]
      %v1458 = vld [vmem:[%s1452 + $0x38] sm:$0xff]
      %v1459 = vld [vmem:[%s1452 + $0x48] sm:$0xff]
      %v1460 = vld [vmem:[%s1452 + $0x50] sm:$0xff]
      %v1461 = vld [vmem:[%s1452 + $0x60] sm:$0xff]
      %v1462 = vld [vmem:[%s1452 + $0x68] sm:$0xff]
      %v1463 = vld [vmem:[%s1452 + $0x78] sm:$0xff]
      %v1464 = vld [vmem:[%s1452 + $0x80] sm:$0xff]
      %v1465 = vld [vmem:[%s1452 + $0x90] sm:$0xff]
      %v1466 = vld [vmem:[%s1452 + $0x98] sm:$0xff]
      %v1467 = vld [vmem:[%s1452 + $0xa8] sm:$0xff]
      %v1468 = vld [vmem:[%s1452 + $0xb0] sm:$0xff]
      %v1469 = vld [vmem:[%s1452 + $0xc0] sm:$0xff]
      %v1470 = vld [vmem:[%s1452 + $0xc8] sm:$0xff]
      %v1471 = vld [vmem:[%s1452 + $0xd8] sm:$0xff]
      %v1472 = vld [vmem:[%s1452 + $0xe0] sm:$0xff]
      %v1473 = vld [vmem:[%s1452 + $0xf0] sm:$0xff]
      %v1474 = vld [vmem:[%s1452 + $0xf8] sm:$0xff]
      %v1475 = vld [vmem:[%s1452 + $0x108] sm:$0xff]
      %v1476 = vld [vmem:[%s1452 + $0x110] sm:$0xff]
      %v1477 = vld [vmem:[%s1452 + $0x120] sm:$0xff]
      %v1478 = vld [vmem:[%s1452 + $0x128] sm:$0xff]
      %v1479 = vld [vmem:[%s1452 + $0x138] sm:$0xff]
      %v1480 = vld [vmem:[%s1452 + $0x140] sm:$0xff]
      %v1481 = vld [vmem:[%s1452 + $0x150] sm:$0xff]
      %v1482 = vld [vmem:[%s1452 + $0x158] sm:$0xff]
      %v1483 = vld [vmem:[%s1452 + $0x168] sm:$0xff]
      %v1484 = vld [vmem:[%s1452 + $0x170] sm:$0xff]
      %1517 = vrot.lane.b32.xlu0 %v1453, 24
      %v1518 = vpop.permute.xlu0 %1517
      %1519 = vrot.lane.b32.xlu0 %v1454, 24
      %v1520 = vpop.permute.xlu0 %1519
      %1521 = vrot.lane.b32.xlu0 %v1455, 24
      %v1522 = vpop.permute.xlu0 %1521
      %1523 = vrot.lane.b32.xlu0 %v1456, 24
      %v1524 = vpop.permute.xlu0 %1523
      %1525 = vrot.lane.b32.xlu0 %v1457, 24
      %v1526 = vpop.permute.xlu0 %1525
      %1527 = vrot.lane.b32.xlu0 %v1458, 24
      %v1528 = vpop.permute.xlu0 %1527
      %1529 = vrot.lane.b32.xlu0 %v1459, 24
      %v1530 = vpop.permute.xlu0 %1529
      %1531 = vrot.lane.b32.xlu0 %v1460, 24
      %v1532 = vpop.permute.xlu0 %1531
      %1533 = vrot.lane.b32.xlu0 %v1461, 24
      %v1534 = vpop.permute.xlu0 %1533
      %1535 = vrot.lane.b32.xlu0 %v1462, 24
      %v1536 = vpop.permute.xlu0 %1535
      %1537 = vrot.lane.b32.xlu0 %v1463, 24
      %v1538 = vpop.permute.xlu0 %1537
      %1539 = vrot.lane.b32.xlu0 %v1464, 24
      %v1540 = vpop.permute.xlu0 %1539
      %1541 = vrot.lane.b32.xlu0 %v1465, 24
      %v1542 = vpop.permute.xlu0 %1541
      %1543 = vrot.lane.b32.xlu0 %v1466, 24
      %v1544 = vpop.permute.xlu0 %1543
      %1545 = vrot.lane.b32.xlu0 %v1467, 24
      %v1546 = vpop.permute.xlu0 %1545
      %1547 = vrot.lane.b32.xlu0 %v1468, 24
      %v1548 = vpop.permute.xlu0 %1547
      %1549 = vrot.lane.b32.xlu0 %v1469, 24
      %v1550 = vpop.permute.xlu0 %1549
      %1551 = vrot.lane.b32.xlu0 %v1470, 24
      %v1552 = vpop.permute.xlu0 %1551
      %1553 = vrot.lane.b32.xlu0 %v1471, 24
      %v1554 = vpop.permute.xlu0 %1553
      %1555 = vrot.lane.b32.xlu0 %v1472, 24
      %v1556 = vpop.permute.xlu0 %1555
      %1557 = vrot.lane.b32.xlu0 %v1473, 24
      %v1558 = vpop.permute.xlu0 %1557
      %1559 = vrot.lane.b32.xlu0 %v1474, 24
      %v1560 = vpop.permute.xlu0 %1559
      %1561 = vrot.lane.b32.xlu0 %v1475, 24
      %v1562 = vpop.permute.xlu0 %1561
      %1563 = vrot.lane.b32.xlu0 %v1476, 24
      %v1564 = vpop.permute.xlu0 %1563
      %1565 = vrot.lane.b32.xlu0 %v1477, 24
      %v1566 = vpop.permute.xlu0 %1565
      %1567 = vrot.lane.b32.xlu0 %v1478, 24
      %v1568 = vpop.permute.xlu0 %1567
      %1569 = vrot.lane.b32.xlu0 %v1479, 24
      %v1570 = vpop.permute.xlu0 %1569
      %1571 = vrot.lane.b32.xlu0 %v1480, 24
      %v1572 = vpop.permute.xlu0 %1571
      %1573 = vrot.lane.b32.xlu0 %v1481, 24
      %v1574 = vpop.permute.xlu0 %1573
      %1575 = vrot.lane.b32.xlu0 %v1482, 24
      %v1576 = vpop.permute.xlu0 %1575
      %1577 = vrot.lane.b32.xlu0 %v1483, 24
      %v1578 = vpop.permute.xlu0 %1577
      %1579 = vrot.lane.b32.xlu0 %v1484, 24
      %v1580 = vpop.permute.xlu0 %1579
      %vm1613 = vcmask 228544
      %1614 = vst.msk [vmem:[#allocation3] sm:$0xff] %vm1613, %v1518
      %1615 = vst.msk [vmem:[#allocation3 + $0x8] sm:$0xff] %vm1613, %v1520
      %1616 = vst.msk [vmem:[#allocation3 + $0x10] sm:$0xff] %vm1613, %v1522
      %1617 = vst.msk [vmem:[#allocation3 + $0x18] sm:$0xff] %vm1613, %v1524
      %1618 = vst.msk [vmem:[#allocation3 + $0x20] sm:$0xff] %vm1613, %v1526
      %1619 = vst.msk [vmem:[#allocation3 + $0x28] sm:$0xff] %vm1613, %v1528
      %1620 = vst.msk [vmem:[#allocation3 + $0x30] sm:$0xff] %vm1613, %v1530
      %1621 = vst.msk [vmem:[#allocation3 + $0x38] sm:$0xff] %vm1613, %v1532
      %1622 = vst.msk [vmem:[#allocation3 + $0x40] sm:$0xff] %vm1613, %v1534
      %1623 = vst.msk [vmem:[#allocation3 + $0x48] sm:$0xff] %vm1613, %v1536
      %1624 = vst.msk [vmem:[#allocation3 + $0x50] sm:$0xff] %vm1613, %v1538
      %1625 = vst.msk [vmem:[#allocation3 + $0x58] sm:$0xff] %vm1613, %v1540
      %1626 = vst.msk [vmem:[#allocation3 + $0x60] sm:$0xff] %vm1613, %v1542
      %1627 = vst.msk [vmem:[#allocation3 + $0x68] sm:$0xff] %vm1613, %v1544
      %1628 = vst.msk [vmem:[#allocation3 + $0x70] sm:$0xff] %vm1613, %v1546
      %1629 = vst.msk [vmem:[#allocation3 + $0x78] sm:$0xff] %vm1613, %v1548
      %1630 = vst.msk [vmem:[#allocation3 + $0x80] sm:$0xff] %vm1613, %v1550
      %1631 = vst.msk [vmem:[#allocation3 + $0x88] sm:$0xff] %vm1613, %v1552
      %1632 = vst.msk [vmem:[#allocation3 + $0x90] sm:$0xff] %vm1613, %v1554
      %1633 = vst.msk [vmem:[#allocation3 + $0x98] sm:$0xff] %vm1613, %v1556
      %1634 = vst.msk [vmem:[#allocation3 + $0xa0] sm:$0xff] %vm1613, %v1558
      %1635 = vst.msk [vmem:[#allocation3 + $0xa8] sm:$0xff] %vm1613, %v1560
      %1636 = vst.msk [vmem:[#allocation3 + $0xb0] sm:$0xff] %vm1613, %v1562
      %1637 = vst.msk [vmem:[#allocation3 + $0xb8] sm:$0xff] %vm1613, %v1564
      %1638 = vst.msk [vmem:[#allocation3 + $0xc0] sm:$0xff] %vm1613, %v1566
      %1639 = vst.msk [vmem:[#allocation3 + $0xc8] sm:$0xff] %vm1613, %v1568
      %1640 = vst.msk [vmem:[#allocation3 + $0xd0] sm:$0xff] %vm1613, %v1570
      %1641 = vst.msk [vmem:[#allocation3 + $0xd8] sm:$0xff] %vm1613, %v1572
      %1642 = vst.msk [vmem:[#allocation3 + $0xe0] sm:$0xff] %vm1613, %v1574
      %1643 = vst.msk [vmem:[#allocation3 + $0xe8] sm:$0xff] %vm1613, %v1576
      %1644 = vst.msk [vmem:[#allocation3 + $0xf0] sm:$0xff] %vm1613, %v1578
      %1645 = vst.msk [vmem:[#allocation3 + $0xf8] sm:$0xff] %vm1613, %v1580
      %v1646 = vld [vmem:[%s1452 + $0x1] sm:$0xff]
      %v1647 = vld [vmem:[%s1452 + $0x9] sm:$0xff]
      %v1648 = vld [vmem:[%s1452 + $0x19] sm:$0xff]
      %v1649 = vld [vmem:[%s1452 + $0x21] sm:$0xff]
      %v1650 = vld [vmem:[%s1452 + $0x31] sm:$0xff]
      %v1651 = vld [vmem:[%s1452 + $0x39] sm:$0xff]
      %v1652 = vld [vmem:[%s1452 + $0x49] sm:$0xff]
      %v1653 = vld [vmem:[%s1452 + $0x51] sm:$0xff]
      %v1654 = vld [vmem:[%s1452 + $0x61] sm:$0xff]
      %v1655 = vld [vmem:[%s1452 + $0x69] sm:$0xff]
      %v1656 = vld [vmem:[%s1452 + $0x79] sm:$0xff]
      %v1657 = vld [vmem:[%s1452 + $0x81] sm:$0xff]
      %v1658 = vld [vmem:[%s1452 + $0x91] sm:$0xff]
      %v1659 = vld [vmem:[%s1452 + $0x99] sm:$0xff]
      %v1660 = vld [vmem:[%s1452 + $0xa9] sm:$0xff]
      %v1661 = vld [vmem:[%s1452 + $0xb1] sm:$0xff]
      %v1662 = vld [vmem:[%s1452 + $0xc1] sm:$0xff]
      %v1663 = vld [vmem:[%s1452 + $0xc9] sm:$0xff]
      %v1664 = vld [vmem:[%s1452 + $0xd9] sm:$0xff]
      %v1665 = vld [vmem:[%s1452 + $0xe1] sm:$0xff]
      %v1666 = vld [vmem:[%s1452 + $0xf1] sm:$0xff]
      %v1667 = vld [vmem:[%s1452 + $0xf9] sm:$0xff]
      %v1668 = vld [vmem:[%s1452 + $0x109] sm:$0xff]
      %v1669 = vld [vmem:[%s1452 + $0x111] sm:$0xff]
      %v1670 = vld [vmem:[%s1452 + $0x121] sm:$0xff]
      %v1671 = vld [vmem:[%s1452 + $0x129] sm:$0xff]
      %v1672 = vld [vmem:[%s1452 + $0x139] sm:$0xff]
      %v1673 = vld [vmem:[%s1452 + $0x141] sm:$0xff]
      %v1674 = vld [vmem:[%s1452 + $0x151] sm:$0xff]
      %v1675 = vld [vmem:[%s1452 + $0x159] sm:$0xff]
      %v1676 = vld [vmem:[%s1452 + $0x169] sm:$0xff]
      %v1677 = vld [vmem:[%s1452 + $0x171] sm:$0xff]
      %1710 = vrot.lane.b32.xlu0 %v1646, 28
      %v1711 = vpop.permute.xlu0 %1710
      %1712 = vrot.lane.b32.xlu0 %v1647, 28
      %v1713 = vpop.permute.xlu0 %1712
      %1714 = vrot.lane.b32.xlu0 %v1648, 28
      %v1715 = vpop.permute.xlu0 %1714
      %1716 = vrot.lane.b32.xlu0 %v1649, 28
      %v1717 = vpop.permute.xlu0 %1716
      %1718 = vrot.lane.b32.xlu0 %v1650, 28
      %v1719 = vpop.permute.xlu0 %1718
      %1720 = vrot.lane.b32.xlu0 %v1651, 28
      %v1721 = vpop.permute.xlu0 %1720
      %1722 = vrot.lane.b32.xlu0 %v1652, 28
      %v1723 = vpop.permute.xlu0 %1722
      %1724 = vrot.lane.b32.xlu0 %v1653, 28
      %v1725 = vpop.permute.xlu0 %1724
      %1726 = vrot.lane.b32.xlu0 %v1654, 28
      %v1727 = vpop.permute.xlu0 %1726
      %1728 = vrot.lane.b32.xlu0 %v1655, 28
      %v1729 = vpop.permute.xlu0 %1728
      %1730 = vrot.lane.b32.xlu0 %v1656, 28
      %v1731 = vpop.permute.xlu0 %1730
      %1732 = vrot.lane.b32.xlu0 %v1657, 28
      %v1733 = vpop.permute.xlu0 %1732
      %1734 = vrot.lane.b32.xlu0 %v1658, 28
      %v1735 = vpop.permute.xlu0 %1734
      %1736 = vrot.lane.b32.xlu0 %v1659, 28
      %v1737 = vpop.permute.xlu0 %1736
      %1738 = vrot.lane.b32.xlu0 %v1660, 28
      %v1739 = vpop.permute.xlu0 %1738
      %1740 = vrot.lane.b32.xlu0 %v1661, 28
      %v1741 = vpop.permute.xlu0 %1740
      %1742 = vrot.lane.b32.xlu0 %v1662, 28
      %v1743 = vpop.permute.xlu0 %1742
      %1744 = vrot.lane.b32.xlu0 %v1663, 28
      %v1745 = vpop.permute.xlu0 %1744
      %1746 = vrot.lane.b32.xlu0 %v1664, 28
      %v1747 = vpop.permute.xlu0 %1746
      %1748 = vrot.lane.b32.xlu0 %v1665, 28
      %v1749 = vpop.permute.xlu0 %1748
      %1750 = vrot.lane.b32.xlu0 %v1666, 28
      %v1751 = vpop.permute.xlu0 %1750
      %1752 = vrot.lane.b32.xlu0 %v1667, 28
      %v1753 = vpop.permute.xlu0 %1752
      %1754 = vrot.lane.b32.xlu0 %v1668, 28
      %v1755 = vpop.permute.xlu0 %1754
      %1756 = vrot.lane.b32.xlu0 %v1669, 28
      %v1757 = vpop.permute.xlu0 %1756
      %1758 = vrot.lane.b32.xlu0 %v1670, 28
      %v1759 = vpop.permute.xlu0 %1758
      %1760 = vrot.lane.b32.xlu0 %v1671, 28
      %v1761 = vpop.permute.xlu0 %1760
      %1762 = vrot.lane.b32.xlu0 %v1672, 28
      %v1763 = vpop.permute.xlu0 %1762
      %1764 = vrot.lane.b32.xlu0 %v1673, 28
      %v1765 = vpop.permute.xlu0 %1764
      %1766 = vrot.lane.b32.xlu0 %v1674, 28
      %v1767 = vpop.permute.xlu0 %1766
      %1768 = vrot.lane.b32.xlu0 %v1675, 28
      %v1769 = vpop.permute.xlu0 %1768
      %1770 = vrot.lane.b32.xlu0 %v1676, 28
      %v1771 = vpop.permute.xlu0 %1770
      %1772 = vrot.lane.b32.xlu0 %v1677, 28
      %v1773 = vpop.permute.xlu0 %1772
      %vm1806 = vcmask 261344
      %1807 = vst.msk [vmem:[#allocation3] sm:$0xff] %vm1806, %v1711
      %1808 = vst.msk [vmem:[#allocation3 + $0x8] sm:$0xff] %vm1806, %v1713
      %1809 = vst.msk [vmem:[#allocation3 + $0x10] sm:$0xff] %vm1806, %v1715
      %1810 = vst.msk [vmem:[#allocation3 + $0x18] sm:$0xff] %vm1806, %v1717
      %1811 = vst.msk [vmem:[#allocation3 + $0x20] sm:$0xff] %vm1806, %v1719
      %1812 = vst.msk [vmem:[#allocation3 + $0x28] sm:$0xff] %vm1806, %v1721
      %1813 = vst.msk [vmem:[#allocation3 + $0x30] sm:$0xff] %vm1806, %v1723
      %1814 = vst.msk [vmem:[#allocation3 + $0x38] sm:$0xff] %vm1806, %v1725
      %1815 = vst.msk [vmem:[#allocation3 + $0x40] sm:$0xff] %vm1806, %v1727
      %1816 = vst.msk [vmem:[#allocation3 + $0x48] sm:$0xff] %vm1806, %v1729
      %1817 = vst.msk [vmem:[#allocation3 + $0x50] sm:$0xff] %vm1806, %v1731
      %1818 = vst.msk [vmem:[#allocation3 + $0x58] sm:$0xff] %vm1806, %v1733
      %1819 = vst.msk [vmem:[#allocation3 + $0x60] sm:$0xff] %vm1806, %v1735
      %1820 = vst.msk [vmem:[#allocation3 + $0x68] sm:$0xff] %vm1806, %v1737
      %1821 = vst.msk [vmem:[#allocation3 + $0x70] sm:$0xff] %vm1806, %v1739
      %1822 = vst.msk [vmem:[#allocation3 + $0x78] sm:$0xff] %vm1806, %v1741
      %1823 = vst.msk [vmem:[#allocation3 + $0x80] sm:$0xff] %vm1806, %v1743
      %1824 = vst.msk [vmem:[#allocation3 + $0x88] sm:$0xff] %vm1806, %v1745
      %1825 = vst.msk [vmem:[#allocation3 + $0x90] sm:$0xff] %vm1806, %v1747
      %1826 = vst.msk [vmem:[#allocation3 + $0x98] sm:$0xff] %vm1806, %v1749
      %1827 = vst.msk [vmem:[#allocation3 + $0xa0] sm:$0xff] %vm1806, %v1751
      %1828 = vst.msk [vmem:[#allocation3 + $0xa8] sm:$0xff] %vm1806, %v1753
      %1829 = vst.msk [vmem:[#allocation3 + $0xb0] sm:$0xff] %vm1806, %v1755
      %1830 = vst.msk [vmem:[#allocation3 + $0xb8] sm:$0xff] %vm1806, %v1757
      %1831 = vst.msk [vmem:[#allocation3 + $0xc0] sm:$0xff] %vm1806, %v1759
      %1832 = vst.msk [vmem:[#allocation3 + $0xc8] sm:$0xff] %vm1806, %v1761
      %1833 = vst.msk [vmem:[#allocation3 + $0xd0] sm:$0xff] %vm1806, %v1763
      %1834 = vst.msk [vmem:[#allocation3 + $0xd8] sm:$0xff] %vm1806, %v1765
      %1835 = vst.msk [vmem:[#allocation3 + $0xe0] sm:$0xff] %vm1806, %v1767
      %1836 = vst.msk [vmem:[#allocation3 + $0xe8] sm:$0xff] %vm1806, %v1769
      %1837 = vst.msk [vmem:[#allocation3 + $0xf0] sm:$0xff] %vm1806, %v1771
      %1838 = vst.msk [vmem:[#allocation3 + $0xf8] sm:$0xff] %vm1806, %v1773
      %v1839 = vld [vmem:[%s1452 + $0x2] sm:$0xff]
      %v1840 = vld [vmem:[%s1452 + $0xa] sm:$0xff]
      %v1841 = vld [vmem:[%s1452 + $0x1a] sm:$0xff]
      %v1842 = vld [vmem:[%s1452 + $0x22] sm:$0xff]
      %v1843 = vld [vmem:[%s1452 + $0x32] sm:$0xff]
      %v1844 = vld [vmem:[%s1452 + $0x3a] sm:$0xff]
      %v1845 = vld [vmem:[%s1452 + $0x4a] sm:$0xff]
      %v1846 = vld [vmem:[%s1452 + $0x52] sm:$0xff]
      %v1847 = vld [vmem:[%s1452 + $0x62] sm:$0xff]
      %v1848 = vld [vmem:[%s1452 + $0x6a] sm:$0xff]
      %v1849 = vld [vmem:[%s1452 + $0x7a] sm:$0xff]
      %v1850 = vld [vmem:[%s1452 + $0x82] sm:$0xff]
      %v1851 = vld [vmem:[%s1452 + $0x92] sm:$0xff]
      %v1852 = vld [vmem:[%s1452 + $0x9a] sm:$0xff]
      %v1853 = vld [vmem:[%s1452 + $0xaa] sm:$0xff]
      %v1854 = vld [vmem:[%s1452 + $0xb2] sm:$0xff]
      %v1855 = vld [vmem:[%s1452 + $0xc2] sm:$0xff]
      %v1856 = vld [vmem:[%s1452 + $0xca] sm:$0xff]
      %v1857 = vld [vmem:[%s1452 + $0xda] sm:$0xff]
      %v1858 = vld [vmem:[%s1452 + $0xe2] sm:$0xff]
      %v1859 = vld [vmem:[%s1452 + $0xf2] sm:$0xff]
      %v1860 = vld [vmem:[%s1452 + $0xfa] sm:$0xff]
      %v1861 = vld [vmem:[%s1452 + $0x10a] sm:$0xff]
      %v1862 = vld [vmem:[%s1452 + $0x112] sm:$0xff]
      %v1863 = vld [vmem:[%s1452 + $0x122] sm:$0xff]
      %v1864 = vld [vmem:[%s1452 + $0x12a] sm:$0xff]
      %v1865 = vld [vmem:[%s1452 + $0x13a] sm:$0xff]
      %v1866 = vld [vmem:[%s1452 + $0x142] sm:$0xff]
      %v1867 = vld [vmem:[%s1452 + $0x152] sm:$0xff]
      %v1868 = vld [vmem:[%s1452 + $0x15a] sm:$0xff]
      %v1869 = vld [vmem:[%s1452 + $0x16a] sm:$0xff]
      %v1870 = vld [vmem:[%s1452 + $0x172] sm:$0xff]
      %1903 = vrot.lane.b32.xlu0 %v1839, 32
      %v1904 = vpop.permute.xlu0 %1903
      %1905 = vrot.lane.b32.xlu0 %v1840, 32
      %v1906 = vpop.permute.xlu0 %1905
      %1907 = vrot.lane.b32.xlu0 %v1841, 32
      %v1908 = vpop.permute.xlu0 %1907
      %1909 = vrot.lane.b32.xlu0 %v1842, 32
      %v1910 = vpop.permute.xlu0 %1909
      %1911 = vrot.lane.b32.xlu0 %v1843, 32
      %v1912 = vpop.permute.xlu0 %1911
      %1913 = vrot.lane.b32.xlu0 %v1844, 32
      %v1914 = vpop.permute.xlu0 %1913
      %1915 = vrot.lane.b32.xlu0 %v1845, 32
      %v1916 = vpop.permute.xlu0 %1915
      %1917 = vrot.lane.b32.xlu0 %v1846, 32
      %v1918 = vpop.permute.xlu0 %1917
      %1919 = vrot.lane.b32.xlu0 %v1847, 32
      %v1920 = vpop.permute.xlu0 %1919
      %1921 = vrot.lane.b32.xlu0 %v1848, 32
      %v1922 = vpop.permute.xlu0 %1921
      %1923 = vrot.lane.b32.xlu0 %v1849, 32
      %v1924 = vpop.permute.xlu0 %1923
      %1925 = vrot.lane.b32.xlu0 %v1850, 32
      %v1926 = vpop.permute.xlu0 %1925
      %1927 = vrot.lane.b32.xlu0 %v1851, 32
      %v1928 = vpop.permute.xlu0 %1927
      %1929 = vrot.lane.b32.xlu0 %v1852, 32
      %v1930 = vpop.permute.xlu0 %1929
      %1931 = vrot.lane.b32.xlu0 %v1853, 32
      %v1932 = vpop.permute.xlu0 %1931
      %1933 = vrot.lane.b32.xlu0 %v1854, 32
      %v1934 = vpop.permute.xlu0 %1933
      %1935 = vrot.lane.b32.xlu0 %v1855, 32
      %v1936 = vpop.permute.xlu0 %1935
      %1937 = vrot.lane.b32.xlu0 %v1856, 32
      %v1938 = vpop.permute.xlu0 %1937
      %1939 = vrot.lane.b32.xlu0 %v1857, 32
      %v1940 = vpop.permute.xlu0 %1939
      %1941 = vrot.lane.b32.xlu0 %v1858, 32
      %v1942 = vpop.permute.xlu0 %1941
      %1943 = vrot.lane.b32.xlu0 %v1859, 32
      %v1944 = vpop.permute.xlu0 %1943
      %1945 = vrot.lane.b32.xlu0 %v1860, 32
      %v1946 = vpop.permute.xlu0 %1945
      %1947 = vrot.lane.b32.xlu0 %v1861, 32
      %v1948 = vpop.permute.xlu0 %1947
      %1949 = vrot.lane.b32.xlu0 %v1862, 32
      %v1950 = vpop.permute.xlu0 %1949
      %1951 = vrot.lane.b32.xlu0 %v1863, 32
      %v1952 = vpop.permute.xlu0 %1951
      %1953 = vrot.lane.b32.xlu0 %v1864, 32
      %v1954 = vpop.permute.xlu0 %1953
      %1955 = vrot.lane.b32.xlu0 %v1865, 32
      %v1956 = vpop.permute.xlu0 %1955
      %1957 = vrot.lane.b32.xlu0 %v1866, 32
      %v1958 = vpop.permute.xlu0 %1957
      %1959 = vrot.lane.b32.xlu0 %v1867, 32
      %v1960 = vpop.permute.xlu0 %1959
      %1961 = vrot.lane.b32.xlu0 %v1868, 32
      %v1962 = vpop.permute.xlu0 %1961
      %1963 = vrot.lane.b32.xlu0 %v1869, 32
      %v1964 = vpop.permute.xlu0 %1963
      %1965 = vrot.lane.b32.xlu0 %v1870, 32
      %v1966 = vpop.permute.xlu0 %1965
      %vm1999 = vcmask 294144
      %2000 = vst.msk [vmem:[#allocation3] sm:$0xff] %vm1999, %v1904
      %2001 = vst.msk [vmem:[#allocation3 + $0x8] sm:$0xff] %vm1999, %v1906
      %2002 = vst.msk [vmem:[#allocation3 + $0x10] sm:$0xff] %vm1999, %v1908
      %2003 = vst.msk [vmem:[#allocation3 + $0x18] sm:$0xff] %vm1999, %v1910
      %2004 = vst.msk [vmem:[#allocation3 + $0x20] sm:$0xff] %vm1999, %v1912
      %2005 = vst.msk [vmem:[#allocation3 + $0x28] sm:$0xff] %vm1999, %v1914
      %2006 = vst.msk [vmem:[#allocation3 + $0x30] sm:$0xff] %vm1999, %v1916
      %2007 = vst.msk [vmem:[#allocation3 + $0x38] sm:$0xff] %vm1999, %v1918
      %2008 = vst.msk [vmem:[#allocation3 + $0x40] sm:$0xff] %vm1999, %v1920
      %2009 = vst.msk [vmem:[#allocation3 + $0x48] sm:$0xff] %vm1999, %v1922
      %2010 = vst.msk [vmem:[#allocation3 + $0x50] sm:$0xff] %vm1999, %v1924
      %2011 = vst.msk [vmem:[#allocation3 + $0x58] sm:$0xff] %vm1999, %v1926
      %2012 = vst.msk [vmem:[#allocation3 + $0x60] sm:$0xff] %vm1999, %v1928
      %2013 = vst.msk [vmem:[#allocation3 + $0x68] sm:$0xff] %vm1999, %v1930
      %2014 = vst.msk [vmem:[#allocation3 + $0x70] sm:$0xff] %vm1999, %v1932
      %2015 = vst.msk [vmem:[#allocation3 + $0x78] sm:$0xff] %vm1999, %v1934
      %2016 = vst.msk [vmem:[#allocation3 + $0x80] sm:$0xff] %vm1999, %v1936
      %2017 = vst.msk [vmem:[#allocation3 + $0x88] sm:$0xff] %vm1999, %v1938
      %2018 = vst.msk [vmem:[#allocation3 + $0x90] sm:$0xff] %vm1999, %v1940
      %2019 = vst.msk [vmem:[#allocation3 + $0x98] sm:$0xff] %vm1999, %v1942
      %2020 = vst.msk [vmem:[#allocation3 + $0xa0] sm:$0xff] %vm1999, %v1944
      %2021 = vst.msk [vmem:[#allocation3 + $0xa8] sm:$0xff] %vm1999, %v1946
      %2022 = vst.msk [vmem:[#allocation3 + $0xb0] sm:$0xff] %vm1999, %v1948
      %2023 = vst.msk [vmem:[#allocation3 + $0xb8] sm:$0xff] %vm1999, %v1950
      %2024 = vst.msk [vmem:[#allocation3 + $0xc0] sm:$0xff] %vm1999, %v1952
      %2025 = vst.msk [vmem:[#allocation3 + $0xc8] sm:$0xff] %vm1999, %v1954
      %2026 = vst.msk [vmem:[#allocation3 + $0xd0] sm:$0xff] %vm1999, %v1956
      %2027 = vst.msk [vmem:[#allocation3 + $0xd8] sm:$0xff] %vm1999, %v1958
      %2028 = vst.msk [vmem:[#allocation3 + $0xe0] sm:$0xff] %vm1999, %v1960
      %2029 = vst.msk [vmem:[#allocation3 + $0xe8] sm:$0xff] %vm1999, %v1962
      %2030 = vst.msk [vmem:[#allocation3 + $0xf0] sm:$0xff] %vm1999, %v1964
      %2031 = vst.msk [vmem:[#allocation3 + $0xf8] sm:$0xff] %vm1999, %v1966
      %v2032 = vld [vmem:[#allocation3] sm:$0xff]
      %v2033 = vld [vmem:[#allocation3 + $0x8] sm:$0xff]
      %v2034 = vld [vmem:[#allocation3 + $0x10] sm:$0xff]
      %v2035 = vld [vmem:[#allocation3 + $0x18] sm:$0xff]
      %v2036 = vld [vmem:[#allocation3 + $0x20] sm:$0xff]
      %v2037 = vld [vmem:[#allocation3 + $0x28] sm:$0xff]
      %v2038 = vld [vmem:[#allocation3 + $0x30] sm:$0xff]
      %v2039 = vld [vmem:[#allocation3 + $0x38] sm:$0xff]
      %v2040 = vld [vmem:[#allocation3 + $0x40] sm:$0xff]
      %v2041 = vld [vmem:[#allocation3 + $0x48] sm:$0xff]
      %v2042 = vld [vmem:[#allocation3 + $0x50] sm:$0xff]
      %v2043 = vld [vmem:[#allocation3 + $0x58] sm:$0xff]
      %v2044 = vld [vmem:[#allocation3 + $0x60] sm:$0xff]
      %v2045 = vld [vmem:[#allocation3 + $0x68] sm:$0xff]
      %v2046 = vld [vmem:[#allocation3 + $0x70] sm:$0xff]
      %v2047 = vld [vmem:[#allocation3 + $0x78] sm:$0xff]
      %v2048 = vld [vmem:[#allocation3 + $0x80] sm:$0xff]
      %v2049 = vld [vmem:[#allocation3 + $0x88] sm:$0xff]
      %v2050 = vld [vmem:[#allocation3 + $0x90] sm:$0xff]
      %v2051 = vld [vmem:[#allocation3 + $0x98] sm:$0xff]
      %v2052 = vld [vmem:[#allocation3 + $0xa0] sm:$0xff]
      %v2053 = vld [vmem:[#allocation3 + $0xa8] sm:$0xff]
      %v2054 = vld [vmem:[#allocation3 + $0xb0] sm:$0xff]
      %v2055 = vld [vmem:[#allocation3 + $0xb8] sm:$0xff]
      %v2056 = vld [vmem:[#allocation3 + $0xc0] sm:$0xff]
      %v2057 = vld [vmem:[#allocation3 + $0xc8] sm:$0xff]
      %v2058 = vld [vmem:[#allocation3 + $0xd0] sm:$0xff]
      %v2059 = vld [vmem:[#allocation3 + $0xd8] sm:$0xff]
      %v2060 = vld [vmem:[#allocation3 + $0xe0] sm:$0xff]
      %v2061 = vld [vmem:[#allocation3 + $0xe8] sm:$0xff]
      %v2062 = vld [vmem:[#allocation3 + $0xf0] sm:$0xff]
      %v2063 = vld [vmem:[#allocation3 + $0xf8] sm:$0xff]
      %v2064 = vld [vmem:[%s1] sm:$0xff]
      %v2065 = vld [vmem:[%s1 + $0x8] sm:$0xff]
      %v2066 = vld [vmem:[%s1 + $0x10] sm:$0xff]
      %v2067 = vld [vmem:[%s1 + $0x18] sm:$0xff]
      %v2068 = vld [vmem:[%s1 + $0x20] sm:$0xf]
      %vm2069 = vcmask 293888
      %v2071 = vsel %vm2069, %v2032, 0
      %v2074 = vsel %vm2069, %v2033, 0
      %v2077 = vsel %vm2069, %v2034, 0
      %v2080 = vsel %vm2069, %v2035, 0
      %v2083 = vsel %vm2069, %v2036, 0
      %v2086 = vsel %vm2069, %v2037, 0
      %v2089 = vsel %vm2069, %v2038, 0
      %v2092 = vsel %vm2069, %v2039, 0
      %v2095 = vsel %vm2069, %v2040, 0
      %v2098 = vsel %vm2069, %v2041, 0
      %v2101 = vsel %vm2069, %v2042, 0
      %v2104 = vsel %vm2069, %v2043, 0
      %v2107 = vsel %vm2069, %v2044, 0
      %v2110 = vsel %vm2069, %v2045, 0
      %v2113 = vsel %vm2069, %v2046, 0
      %v2116 = vsel %vm2069, %v2047, 0
      %v2119 = vsel %vm2069, %v2048, 0
      %v2122 = vsel %vm2069, %v2049, 0
      %v2125 = vsel %vm2069, %v2050, 0
      %v2128 = vsel %vm2069, %v2051, 0
      %v2131 = vsel %vm2069, %v2052, 0
      %v2134 = vsel %vm2069, %v2053, 0
      %v2137 = vsel %vm2069, %v2054, 0
      %v2140 = vsel %vm2069, %v2055, 0
      %v2143 = vsel %vm2069, %v2056, 0
      %v2146 = vsel %vm2069, %v2057, 0
      %v2149 = vsel %vm2069, %v2058, 0
      %v2152 = vsel %vm2069, %v2059, 0
      %v2155 = vsel %vm2069, %v2060, 0
      %v2158 = vsel %vm2069, %v2061, 0
      %v2161 = vsel %vm2069, %v2062, 0
      %v2164 = vsel %vm2069, %v2063, 0
      %vm2166 = vcmask 1043456
      %v2168 = vsel %vm2166, %v2068, 0
      %2170 = vmatpush.msra.mxu0 0.0
      %2171 = vmatpush.msra.mxu0 0.0
      %2172 = vmatpush.msra.mxu0 0.0
      %2173 = vmatpush.msra.mxu0 0.0
      %2174 = vmatpush.msra.mxu0 0.0
      %2175 = vmatpush.msra.mxu0 0.0
      %2176 = vmatpush.msra.mxu0 0.0
      %2177 = vmatpush.msra.mxu0 0.0
      %2178 = vmatpush.msra.mxu0 0.0
      %2179 = vmatpush.msra.mxu0 0.0
      %2180 = vmatpush.msra.mxu0 0.0
      %2181 = vmatpush.msra.mxu0 %v2168
      %2182 = vmatpush.msra.mxu0 %v2067
      %2183 = vmatpush.msra.mxu0 %v2066
      %2184 = vmatpush.msra.mxu0 %v2065
      %2185 = vmatpush.msra.mxu0 %v2064
      %2186 = vmatmul.f32.gmra.mxu0 %v2071
      %v2187 = vpop.f32.mrf.mxu0
      %v2188 = vadd.f32 0.0, %v2187
      %2189 = vmatmul.f32.gmra.mxu0 %v2074
      %v2190 = vpop.f32.mrf.mxu0
      %v2191 = vadd.f32 0.0, %v2190
      %2192 = vmatmul.f32.gmra.mxu0 %v2077
      %v2193 = vpop.f32.mrf.mxu0
      %v2194 = vadd.f32 0.0, %v2193
      %2195 = vmatmul.f32.gmra.mxu0 %v2080
      %v2196 = vpop.f32.mrf.mxu0
      %v2197 = vadd.f32 0.0, %v2196
      %2198 = vmatmul.f32.gmra.mxu0 %v2083
      %v2199 = vpop.f32.mrf.mxu0
      %v2200 = vadd.f32 0.0, %v2199
      %2201 = vmatmul.f32.gmra.mxu0 %v2086
      %v2202 = vpop.f32.mrf.mxu0
      %v2203 = vadd.f32 0.0, %v2202
      %2204 = vmatmul.f32.gmra.mxu0 %v2089
      %v2205 = vpop.f32.mrf.mxu0
      %v2206 = vadd.f32 0.0, %v2205
      %2207 = vmatmul.f32.gmra.mxu0 %v2092
      %v2208 = vpop.f32.mrf.mxu0
      %v2209 = vadd.f32 0.0, %v2208
      %2210 = vmatmul.f32.gmra.mxu0 %v2095
      %v2211 = vpop.f32.mrf.mxu0
      %v2212 = vadd.f32 0.0, %v2211
      %2213 = vmatmul.f32.gmra.mxu0 %v2098
      %v2214 = vpop.f32.mrf.mxu0
      %v2215 = vadd.f32 0.0, %v2214
      %2216 = vmatmul.f32.gmra.mxu0 %v2101
      %v2217 = vpop.f32.mrf.mxu0
      %v2218 = vadd.f32 0.0, %v2217
      %2219 = vmatmul.f32.gmra.mxu0 %v2104
      %v2220 = vpop.f32.mrf.mxu0
      %v2221 = vadd.f32 0.0, %v2220
      %2222 = vmatmul.f32.gmra.mxu0 %v2107
      %v2223 = vpop.f32.mrf.mxu0
      %v2224 = vadd.f32 0.0, %v2223
      %2225 = vmatmul.f32.gmra.mxu0 %v2110
      %v2226 = vpop.f32.mrf.mxu0
      %v2227 = vadd.f32 0.0, %v2226
      %2228 = vmatmul.f32.gmra.mxu0 %v2113
      %v2229 = vpop.f32.mrf.mxu0
      %v2230 = vadd.f32 0.0, %v2229
      %2231 = vmatmul.f32.gmra.mxu0 %v2116
      %v2232 = vpop.f32.mrf.mxu0
      %v2233 = vadd.f32 0.0, %v2232
      %2234 = vmatmul.f32.gmra.mxu0 %v2119
      %v2235 = vpop.f32.mrf.mxu0
      %v2236 = vadd.f32 0.0, %v2235
      %2237 = vmatmul.f32.gmra.mxu0 %v2122
      %v2238 = vpop.f32.mrf.mxu0
      %v2239 = vadd.f32 0.0, %v2238
      %2240 = vmatmul.f32.gmra.mxu0 %v2125
      %v2241 = vpop.f32.mrf.mxu0
      %v2242 = vadd.f32 0.0, %v2241
      %2243 = vmatmul.f32.gmra.mxu0 %v2128
      %v2244 = vpop.f32.mrf.mxu0
      %v2245 = vadd.f32 0.0, %v2244
      %2246 = vmatmul.f32.gmra.mxu0 %v2131
      %v2247 = vpop.f32.mrf.mxu0
      %v2248 = vadd.f32 0.0, %v2247
      %2249 = vmatmul.f32.gmra.mxu0 %v2134
      %v2250 = vpop.f32.mrf.mxu0
      %v2251 = vadd.f32 0.0, %v2250
      %2252 = vmatmul.f32.gmra.mxu0 %v2137
      %v2253 = vpop.f32.mrf.mxu0
      %v2254 = vadd.f32 0.0, %v2253
      %2255 = vmatmul.f32.gmra.mxu0 %v2140
      %v2256 = vpop.f32.mrf.mxu0
      %v2257 = vadd.f32 0.0, %v2256
      %2258 = vmatmul.f32.gmra.mxu0 %v2143
      %v2259 = vpop.f32.mrf.mxu0
      %v2260 = vadd.f32 0.0, %v2259
      %2261 = vmatmul.f32.gmra.mxu0 %v2146
      %v2262 = vpop.f32.mrf.mxu0
      %v2263 = vadd.f32 0.0, %v2262
      %2264 = vmatmul.f32.gmra.mxu0 %v2149
      %v2265 = vpop.f32.mrf.mxu0
      %v2266 = vadd.f32 0.0, %v2265
      %2267 = vmatmul.f32.gmra.mxu0 %v2152
      %v2268 = vpop.f32.mrf.mxu0
      %v2269 = vadd.f32 0.0, %v2268
      %2270 = vmatmul.f32.gmra.mxu0 %v2155
      %v2271 = vpop.f32.mrf.mxu0
      %v2272 = vadd.f32 0.0, %v2271
      %2273 = vmatmul.f32.gmra.mxu0 %v2158
      %v2274 = vpop.f32.mrf.mxu0
      %v2275 = vadd.f32 0.0, %v2274
      %2276 = vmatmul.f32.gmra.mxu0 %v2161
      %v2277 = vpop.f32.mrf.mxu0
      %v2278 = vadd.f32 0.0, %v2277
      %2279 = vmatmul.f32.gmra.mxu0 %v2164
      %v2280 = vpop.f32.mrf.mxu0
      %v2281 = vadd.f32 0.0, %v2280
      %2282 = vdwg.mxu0
      %v2283 = vld [vmem:[%s3] sm:$0x1]
      %v2284 = vld [vmem:[%s4] sm:$0x1]
      %vm2285 = vcmask 261120
      %v2286 = vsel %vm2285, %v2188, 0.0
      %v2287 = vsel %vm2285, %v2191, 0.0
      %v2288 = vadd.f32 %v2286, %v2287
      %v2289 = vsel %vm2285, %v2194, 0.0
      %v2290 = vadd.f32 %v2288, %v2289
      %v2291 = vsel %vm2285, %v2197, 0.0
      %v2292 = vadd.f32 %v2290, %v2291
      %v2293 = vsel %vm2285, %v2200, 0.0
      %v2294 = vadd.f32 %v2292, %v2293
      %v2295 = vsel %vm2285, %v2203, 0.0
      %v2296 = vadd.f32 %v2294, %v2295
      %v2297 = vsel %vm2285, %v2206, 0.0
      %v2298 = vadd.f32 %v2296, %v2297
      %v2299 = vsel %vm2285, %v2209, 0.0
      %v2300 = vadd.f32 %v2298, %v2299
      %v2301 = vsel %vm2285, %v2212, 0.0
      %v2302 = vadd.f32 %v2300, %v2301
      %v2303 = vsel %vm2285, %v2215, 0.0
      %v2304 = vadd.f32 %v2302, %v2303
      %v2305 = vsel %vm2285, %v2218, 0.0
      %v2306 = vadd.f32 %v2304, %v2305
      %v2307 = vsel %vm2285, %v2221, 0.0
      %v2308 = vadd.f32 %v2306, %v2307
      %v2309 = vsel %vm2285, %v2224, 0.0
      %v2310 = vadd.f32 %v2308, %v2309
      %v2311 = vsel %vm2285, %v2227, 0.0
      %v2312 = vadd.f32 %v2310, %v2311
      %v2313 = vsel %vm2285, %v2230, 0.0
      %v2314 = vadd.f32 %v2312, %v2313
      %v2315 = vsel %vm2285, %v2233, 0.0
      %v2316 = vadd.f32 %v2314, %v2315
      %v2317 = vsel %vm2285, %v2236, 0.0
      %v2318 = vadd.f32 %v2316, %v2317
      %v2319 = vsel %vm2285, %v2239, 0.0
      %v2320 = vadd.f32 %v2318, %v2319
      %v2321 = vsel %vm2285, %v2242, 0.0
      %v2322 = vadd.f32 %v2320, %v2321
      %v2323 = vsel %vm2285, %v2245, 0.0
      %v2324 = vadd.f32 %v2322, %v2323
      %v2325 = vsel %vm2285, %v2248, 0.0
      %v2326 = vadd.f32 %v2324, %v2325
      %v2327 = vsel %vm2285, %v2251, 0.0
      %v2328 = vadd.f32 %v2326, %v2327
      %v2329 = vsel %vm2285, %v2254, 0.0
      %v2330 = vadd.f32 %v2328, %v2329
      %v2331 = vsel %vm2285, %v2257, 0.0
      %v2332 = vadd.f32 %v2330, %v2331
      %v2333 = vsel %vm2285, %v2260, 0.0
      %v2334 = vadd.f32 %v2332, %v2333
      %v2335 = vsel %vm2285, %v2263, 0.0
      %v2336 = vadd.f32 %v2334, %v2335
      %v2337 = vsel %vm2285, %v2266, 0.0
      %v2338 = vadd.f32 %v2336, %v2337
      %v2339 = vsel %vm2285, %v2269, 0.0
      %v2340 = vadd.f32 %v2338, %v2339
      %v2341 = vsel %vm2285, %v2272, 0.0
      %v2342 = vadd.f32 %v2340, %v2341
      %v2343 = vsel %vm2285, %v2275, 0.0
      %v2344 = vadd.f32 %v2342, %v2343
      %v2345 = vsel %vm2285, %v2278, 0.0
      %v2346 = vadd.f32 %v2344, %v2345
      %v2347 = vsel %vm2285, %v2281, 0.0
      %v2348 = vadd.f32 %v2346, %v2347
      %v2349 = vrot.slane %v2348, 4
      %v2350 = vadd.f32 %v2348, %v2349
      %v2351 = vrot.slane %v2350, 2
      %v2352 = vadd.f32 %v2350, %v2351
      %v2353 = vrot.slane %v2352, 1
      %v2354 = vadd.f32 %v2352, %v2353
      %v2355 = vmul.f32 %v2354, 0.00390625
      %v2356 = vsub.f32 %v2188, %v2355
      %v2357 = vsub.f32 %v2191, %v2355
      %v2358 = vsub.f32 %v2194, %v2355
      %v2359 = vsub.f32 %v2197, %v2355
      %v2360 = vsub.f32 %v2200, %v2355
      %v2361 = vsub.f32 %v2203, %v2355
      %v2362 = vsub.f32 %v2206, %v2355
      %v2363 = vsub.f32 %v2209, %v2355
      %v2364 = vsub.f32 %v2212, %v2355
      %v2365 = vsub.f32 %v2215, %v2355
      %v2366 = vsub.f32 %v2218, %v2355
      %v2367 = vsub.f32 %v2221, %v2355
      %v2368 = vsub.f32 %v2224, %v2355
      %v2369 = vsub.f32 %v2227, %v2355
      %v2370 = vsub.f32 %v2230, %v2355
      %v2371 = vsub.f32 %v2233, %v2355
      %v2372 = vsub.f32 %v2236, %v2355
      %v2373 = vsub.f32 %v2239, %v2355
      %v2374 = vsub.f32 %v2242, %v2355
      %v2375 = vsub.f32 %v2245, %v2355
      %v2376 = vsub.f32 %v2248, %v2355
      %v2377 = vsub.f32 %v2251, %v2355
      %v2378 = vsub.f32 %v2254, %v2355
      %v2379 = vsub.f32 %v2257, %v2355
      %v2380 = vsub.f32 %v2260, %v2355
      %v2381 = vsub.f32 %v2263, %v2355
      %v2382 = vsub.f32 %v2266, %v2355
      %v2383 = vsub.f32 %v2269, %v2355
      %v2384 = vsub.f32 %v2272, %v2355
      %v2385 = vsub.f32 %v2275, %v2355
      %v2386 = vsub.f32 %v2278, %v2355
      %v2387 = vsub.f32 %v2281, %v2355
      %v2388 = vmul.f32 %v2356, %v2356
      %v2389 = vmul.f32 %v2357, %v2357
      %v2390 = vmul.f32 %v2358, %v2358
      %v2391 = vmul.f32 %v2359, %v2359
      %v2392 = vmul.f32 %v2360, %v2360
      %v2393 = vmul.f32 %v2361, %v2361
      %v2394 = vmul.f32 %v2362, %v2362
      %v2395 = vmul.f32 %v2363, %v2363
      %v2396 = vmul.f32 %v2364, %v2364
      %v2397 = vmul.f32 %v2365, %v2365
      %v2398 = vmul.f32 %v2366, %v2366
      %v2399 = vmul.f32 %v2367, %v2367
      %v2400 = vmul.f32 %v2368, %v2368
      %v2401 = vmul.f32 %v2369, %v2369
      %v2402 = vmul.f32 %v2370, %v2370
      %v2403 = vmul.f32 %v2371, %v2371
      %v2404 = vmul.f32 %v2372, %v2372
      %v2405 = vmul.f32 %v2373, %v2373
      %v2406 = vmul.f32 %v2374, %v2374
      %v2407 = vmul.f32 %v2375, %v2375
      %v2408 = vmul.f32 %v2376, %v2376
      %v2409 = vmul.f32 %v2377, %v2377
      %v2410 = vmul.f32 %v2378, %v2378
      %v2411 = vmul.f32 %v2379, %v2379
      %v2412 = vmul.f32 %v2380, %v2380
      %v2413 = vmul.f32 %v2381, %v2381
      %v2414 = vmul.f32 %v2382, %v2382
      %v2415 = vmul.f32 %v2383, %v2383
      %v2416 = vmul.f32 %v2384, %v2384
      %v2417 = vmul.f32 %v2385, %v2385
      %v2418 = vmul.f32 %v2386, %v2386
      %v2419 = vmul.f32 %v2387, %v2387
      %v2420 = vsel %vm2285, %v2388, 0.0
      %v2421 = vsel %vm2285, %v2389, 0.0
      %v2422 = vadd.f32 %v2420, %v2421
      %v2423 = vsel %vm2285, %v2390, 0.0
      %v2424 = vadd.f32 %v2422, %v2423
      %v2425 = vsel %vm2285, %v2391, 0.0
      %v2426 = vadd.f32 %v2424, %v2425
      %v2427 = vsel %vm2285, %v2392, 0.0
      %v2428 = vadd.f32 %v2426, %v2427
      %v2429 = vsel %vm2285, %v2393, 0.0
      %v2430 = vadd.f32 %v2428, %v2429
      %v2431 = vsel %vm2285, %v2394, 0.0
      %v2432 = vadd.f32 %v2430, %v2431
      %v2433 = vsel %vm2285, %v2395, 0.0
      %v2434 = vadd.f32 %v2432, %v2433
      %v2435 = vsel %vm2285, %v2396, 0.0
      %v2436 = vadd.f32 %v2434, %v2435
      %v2437 = vsel %vm2285, %v2397, 0.0
      %v2438 = vadd.f32 %v2436, %v2437
      %v2439 = vsel %vm2285, %v2398, 0.0
      %v2440 = vadd.f32 %v2438, %v2439
      %v2441 = vsel %vm2285, %v2399, 0.0
      %v2442 = vadd.f32 %v2440, %v2441
      %v2443 = vsel %vm2285, %v2400, 0.0
      %v2444 = vadd.f32 %v2442, %v2443
      %v2445 = vsel %vm2285, %v2401, 0.0
      %v2446 = vadd.f32 %v2444, %v2445
      %v2447 = vsel %vm2285, %v2402, 0.0
      %v2448 = vadd.f32 %v2446, %v2447
      %v2449 = vsel %vm2285, %v2403, 0.0
      %v2450 = vadd.f32 %v2448, %v2449
      %v2451 = vsel %vm2285, %v2404, 0.0
      %v2452 = vadd.f32 %v2450, %v2451
      %v2453 = vsel %vm2285, %v2405, 0.0
      %v2454 = vadd.f32 %v2452, %v2453
      %v2455 = vsel %vm2285, %v2406, 0.0
      %v2456 = vadd.f32 %v2454, %v2455
      %v2457 = vsel %vm2285, %v2407, 0.0
      %v2458 = vadd.f32 %v2456, %v2457
      %v2459 = vsel %vm2285, %v2408, 0.0
      %v2460 = vadd.f32 %v2458, %v2459
      %v2461 = vsel %vm2285, %v2409, 0.0
      %v2462 = vadd.f32 %v2460, %v2461
      %v2463 = vsel %vm2285, %v2410, 0.0
      %v2464 = vadd.f32 %v2462, %v2463
      %v2465 = vsel %vm2285, %v2411, 0.0
      %v2466 = vadd.f32 %v2464, %v2465
      %v2467 = vsel %vm2285, %v2412, 0.0
      %v2468 = vadd.f32 %v2466, %v2467
      %v2469 = vsel %vm2285, %v2413, 0.0
      %v2470 = vadd.f32 %v2468, %v2469
      %v2471 = vsel %vm2285, %v2414, 0.0
      %v2472 = vadd.f32 %v2470, %v2471
      %v2473 = vsel %vm2285, %v2415, 0.0
      %v2474 = vadd.f32 %v2472, %v2473
      %v2475 = vsel %vm2285, %v2416, 0.0
      %v2476 = vadd.f32 %v2474, %v2475
      %v2477 = vsel %vm2285, %v2417, 0.0
      %v2478 = vadd.f32 %v2476, %v2477
      %v2479 = vsel %vm2285, %v2418, 0.0
      %v2480 = vadd.f32 %v2478, %v2479
      %v2481 = vsel %vm2285, %v2419, 0.0
      %v2482 = vadd.f32 %v2480, %v2481
      %v2483 = vrot.slane %v2482, 4
      %v2484 = vadd.f32 %v2482, %v2483
      %v2485 = vrot.slane %v2484, 2
      %v2486 = vadd.f32 %v2484, %v2485
      %v2487 = vrot.slane %v2486, 1
      %v2488 = vadd.f32 %v2486, %v2487
      %v2489 = vmul.f32 %v2488, 0.00390625
      %v2490 = vadd.f32 %v2489, 1e-05
      %v2491 = vrsqrt.pop %v2490
      %v2492 = vmul.f32 %v2491, %v2490
      %v2493 = vmul.f32 %v2492, %v2491
      %v2494 = vmul.f32 0.5, %v2493
      %v2495 = vsub.f32 1.5, %v2494
      %v2496 = vmul.f32 %v2491, %v2495
      %vm2497 = vweird.f32 %v2490
      %vm2498 = vweird.f32 %v2491
      %vm2499 = vmor %vm2497, %vm2498
      %v2500 = vsel %vm2499, %v2491, %v2496
      %v2501 = vmul.f32 %v2356, %v2500
      %v2502 = vmul.f32 %v2357, %v2500
      %v2503 = vmul.f32 %v2358, %v2500
      %v2504 = vmul.f32 %v2359, %v2500
      %v2505 = vmul.f32 %v2360, %v2500
      %v2506 = vmul.f32 %v2361, %v2500
      %v2507 = vmul.f32 %v2362, %v2500
      %v2508 = vmul.f32 %v2363, %v2500
      %v2509 = vmul.f32 %v2364, %v2500
      %v2510 = vmul.f32 %v2365, %v2500
      %v2511 = vmul.f32 %v2366, %v2500
      %v2512 = vmul.f32 %v2367, %v2500
      %v2513 = vmul.f32 %v2368, %v2500
      %v2514 = vmul.f32 %v2369, %v2500
      %v2515 = vmul.f32 %v2370, %v2500
      %v2516 = vmul.f32 %v2371, %v2500
      %v2517 = vmul.f32 %v2372, %v2500
      %v2518 = vmul.f32 %v2373, %v2500
      %v2519 = vmul.f32 %v2374, %v2500
      %v2520 = vmul.f32 %v2375, %v2500
      %v2521 = vmul.f32 %v2376, %v2500
      %v2522 = vmul.f32 %v2377, %v2500
      %v2523 = vmul.f32 %v2378, %v2500
      %v2524 = vmul.f32 %v2379, %v2500
      %v2525 = vmul.f32 %v2380, %v2500
      %v2526 = vmul.f32 %v2381, %v2500
      %v2527 = vmul.f32 %v2382, %v2500
      %v2528 = vmul.f32 %v2383, %v2500
      %v2529 = vmul.f32 %v2384, %v2500
      %v2530 = vmul.f32 %v2385, %v2500
      %v2531 = vmul.f32 %v2386, %v2500
      %v2532 = vmul.f32 %v2387, %v2500
      %v2534 = vperm.slane %v2283, 0
      %v2536 = vmul.f32 %v2501, %v2534
      %v2537 = vmul.f32 %v2502, %v2534
      %v2538 = vmul.f32 %v2503, %v2534
      %v2539 = vmul.f32 %v2504, %v2534
      %v2540 = vmul.f32 %v2505, %v2534
      %v2541 = vmul.f32 %v2506, %v2534
      %v2542 = vmul.f32 %v2507, %v2534
      %v2543 = vmul.f32 %v2508, %v2534
      %v2544 = vmul.f32 %v2509, %v2534
      %v2545 = vmul.f32 %v2510, %v2534
      %v2546 = vmul.f32 %v2511, %v2534
      %v2547 = vmul.f32 %v2512, %v2534
      %v2548 = vmul.f32 %v2513, %v2534
      %v2549 = vmul.f32 %v2514, %v2534
      %v2550 = vmul.f32 %v2515, %v2534
      %v2551 = vmul.f32 %v2516, %v2534
      %v2552 = vmul.f32 %v2517, %v2534
      %v2553 = vmul.f32 %v2518, %v2534
      %v2554 = vmul.f32 %v2519, %v2534
      %v2555 = vmul.f32 %v2520, %v2534
      %v2556 = vmul.f32 %v2521, %v2534
      %v2557 = vmul.f32 %v2522, %v2534
      %v2558 = vmul.f32 %v2523, %v2534
      %v2559 = vmul.f32 %v2524, %v2534
      %v2560 = vmul.f32 %v2525, %v2534
      %v2561 = vmul.f32 %v2526, %v2534
      %v2562 = vmul.f32 %v2527, %v2534
      %v2563 = vmul.f32 %v2528, %v2534
      %v2564 = vmul.f32 %v2529, %v2534
      %v2565 = vmul.f32 %v2530, %v2534
      %v2566 = vmul.f32 %v2531, %v2534
      %v2567 = vmul.f32 %v2532, %v2534
      %v2569 = vperm.slane %v2284, 0
      %v2571 = vadd.f32 %v2536, %v2569
      %v2572 = vadd.f32 %v2537, %v2569
      %v2573 = vadd.f32 %v2538, %v2569
      %v2574 = vadd.f32 %v2539, %v2569
      %v2575 = vadd.f32 %v2540, %v2569
      %v2576 = vadd.f32 %v2541, %v2569
      %v2577 = vadd.f32 %v2542, %v2569
      %v2578 = vadd.f32 %v2543, %v2569
      %v2579 = vadd.f32 %v2544, %v2569
      %v2580 = vadd.f32 %v2545, %v2569
      %v2581 = vadd.f32 %v2546, %v2569
      %v2582 = vadd.f32 %v2547, %v2569
      %v2583 = vadd.f32 %v2548, %v2569
      %v2584 = vadd.f32 %v2549, %v2569
      %v2585 = vadd.f32 %v2550, %v2569
      %v2586 = vadd.f32 %v2551, %v2569
      %v2587 = vadd.f32 %v2552, %v2569
      %v2588 = vadd.f32 %v2553, %v2569
      %v2589 = vadd.f32 %v2554, %v2569
      %v2590 = vadd.f32 %v2555, %v2569
      %v2591 = vadd.f32 %v2556, %v2569
      %v2592 = vadd.f32 %v2557, %v2569
      %v2593 = vadd.f32 %v2558, %v2569
      %v2594 = vadd.f32 %v2559, %v2569
      %v2595 = vadd.f32 %v2560, %v2569
      %v2596 = vadd.f32 %v2561, %v2569
      %v2597 = vadd.f32 %v2562, %v2569
      %v2598 = vadd.f32 %v2563, %v2569
      %v2599 = vadd.f32 %v2564, %v2569
      %v2600 = vadd.f32 %v2565, %v2569
      %v2601 = vadd.f32 %v2566, %v2569
      %v2602 = vadd.f32 %v2567, %v2569
      %v2603 = vmul.f32 %v2571, 0.5
      %v2604 = vmul.f32 %v2572, 0.5
      %v2605 = vmul.f32 %v2573, 0.5
      %v2606 = vmul.f32 %v2574, 0.5
      %v2607 = vmul.f32 %v2575, 0.5
      %v2608 = vmul.f32 %v2576, 0.5
      %v2609 = vmul.f32 %v2577, 0.5
      %v2610 = vmul.f32 %v2578, 0.5
      %v2611 = vmul.f32 %v2579, 0.5
      %v2612 = vmul.f32 %v2580, 0.5
      %v2613 = vmul.f32 %v2581, 0.5
      %v2614 = vmul.f32 %v2582, 0.5
      %v2615 = vmul.f32 %v2583, 0.5
      %v2616 = vmul.f32 %v2584, 0.5
      %v2617 = vmul.f32 %v2585, 0.5
      %v2618 = vmul.f32 %v2586, 0.5
      %v2619 = vmul.f32 %v2587, 0.5
      %v2620 = vmul.f32 %v2588, 0.5
      %v2621 = vmul.f32 %v2589, 0.5
      %v2622 = vmul.f32 %v2590, 0.5
      %v2623 = vmul.f32 %v2591, 0.5
      %v2624 = vmul.f32 %v2592, 0.5
      %v2625 = vmul.f32 %v2593, 0.5
      %v2626 = vmul.f32 %v2594, 0.5
      %v2627 = vmul.f32 %v2595, 0.5
      %v2628 = vmul.f32 %v2596, 0.5
      %v2629 = vmul.f32 %v2597, 0.5
      %v2630 = vmul.f32 %v2598, 0.5
      %v2631 = vmul.f32 %v2599, 0.5
      %v2632 = vmul.f32 %v2600, 0.5
      %v2633 = vmul.f32 %v2601, 0.5
      %v2634 = vmul.f32 %v2602, 0.5
      %v2635 = vmul.f32 %v2571, 0.70710677
      %v2636 = vmul.f32 %v2572, 0.70710677
      %v2637 = vmul.f32 %v2573, 0.70710677
      %v2638 = vmul.f32 %v2574, 0.70710677
      %v2639 = vmul.f32 %v2575, 0.70710677
      %v2640 = vmul.f32 %v2576, 0.70710677
      %v2641 = vmul.f32 %v2577, 0.70710677
      %v2642 = vmul.f32 %v2578, 0.70710677
      %v2643 = vmul.f32 %v2579, 0.70710677
      %v2644 = vmul.f32 %v2580, 0.70710677
      %v2645 = vmul.f32 %v2581, 0.70710677
      %v2646 = vmul.f32 %v2582, 0.70710677
      %v2647 = vmul.f32 %v2583, 0.70710677
      %v2648 = vmul.f32 %v2584, 0.70710677
      %v2649 = vmul.f32 %v2585, 0.70710677
      %v2650 = vmul.f32 %v2586, 0.70710677
      %v2651 = vmul.f32 %v2587, 0.70710677
      %v2652 = vmul.f32 %v2588, 0.70710677
      %v2653 = vmul.f32 %v2589, 0.70710677
      %v2654 = vmul.f32 %v2590, 0.70710677
      %v2655 = vmul.f32 %v2591, 0.70710677
      %v2656 = vmul.f32 %v2592, 0.70710677
      %v2657 = vmul.f32 %v2593, 0.70710677
      %v2658 = vmul.f32 %v2594, 0.70710677
      %v2659 = vmul.f32 %v2595, 0.70710677
      %v2660 = vmul.f32 %v2596, 0.70710677
      %v2661 = vmul.f32 %v2597, 0.70710677
      %v2662 = vmul.f32 %v2598, 0.70710677
      %v2663 = vmul.f32 %v2599, 0.70710677
      %v2664 = vmul.f32 %v2600, 0.70710677
      %v2665 = vmul.f32 %v2601, 0.70710677
      %v2666 = vmul.f32 %v2602, 0.70710677
      %v2667 = vmul.f32 %v2635, %v2635
      %v2668 = vmin.f32 16.0, %v2667
      %v2669 = vmul.f32 %v2668, 2.1237322e-06
      %v2670 = vadd.f32 %v2669, 0.00028619796
      %v2671 = vmul.f32 %v2668, %v2670
      %v2672 = vadd.f32 %v2671, 0.0036580483
      %v2673 = vmul.f32 %v2668, %v2672
      %v2674 = vadd.f32 %v2673, 0.05243302
      %v2675 = vmul.f32 %v2668, %v2674
      %v2676 = vadd.f32 %v2675, 0.18741608
      %v2677 = vmul.f32 %v2668, %v2676
      %v2678 = vadd.f32 %v2677, 1.1283791
      %v2679 = vmul.f32 %v2635, %v2678
      %v2680 = vmul.f32 %v2668, 3.8918573e-05
      %v2681 = vadd.f32 %v2680, 0.001143296
      %v2682 = vmul.f32 %v2668, %v2681
      %v2683 = vadd.f32 %v2682, 0.014752088
      %v2684 = vmul.f32 %v2668, %v2683
      %v2685 = vadd.f32 %v2684, 0.112945676
      %v2686 = vmul.f32 %v2668, %v2685
      %v2687 = vadd.f32 %v2686, 0.4994258
      %v2688 = vmul.f32 %v2668, %v2687
      %v2689 = vadd.f32 %v2688, 1.0
      %v2690 = vrcp.pop %v2689
      %v2691 = vmul.f32 %v2689, %v2690
      %v2692 = vsub.f32 1.0, %v2691
      %v2693 = vmul.f32 %v2690, %v2692
      %v2694 = vadd.f32 %v2690, %v2693
      %vm2695 = vweird.f32 %v2689
      %vm2696 = vweird.f32 %v2690
      %vm2697 = vmor %vm2695, %vm2696
      %v2698 = vsel %vm2697, %v2690, %v2694
      %v2699 = vand.u32 2147483647, %v2689
      %vm2700 = vcmp.eq.f32.partialorder %v2699, 8.507059e+37
      %v2701 = vand.u32 %v2689, 2147483648
      %v2702 = vor.u32 1.1754944e-38, %v2701
      %v2703 = vsel %vm2700, %v2702, %v2698
      %v2704 = vmul.f32 %v2679, %v2703
      %v2705 = vmin.f32 %v2704, 1.0
      %v2706 = vmax.f32 %v2705, -1.0
      %v2707 = vmul.f32 %v2636, %v2636
      %v2708 = vmin.f32 16.0, %v2707
      %v2709 = vmul.f32 %v2708, 2.1237322e-06
      %v2710 = vadd.f32 %v2709, 0.00028619796
      %v2711 = vmul.f32 %v2708, %v2710
      %v2712 = vadd.f32 %v2711, 0.0036580483
      %v2713 = vmul.f32 %v2708, %v2712
      %v2714 = vadd.f32 %v2713, 0.05243302
      %v2715 = vmul.f32 %v2708, %v2714
      %v2716 = vadd.f32 %v2715, 0.18741608
      %v2717 = vmul.f32 %v2708, %v2716
      %v2718 = vadd.f32 %v2717, 1.1283791
      %v2719 = vmul.f32 %v2636, %v2718
      %v2720 = vmul.f32 %v2708, 3.8918573e-05
      %v2721 = vadd.f32 %v2720, 0.001143296
      %v2722 = vmul.f32 %v2708, %v2721
      %v2723 = vadd.f32 %v2722, 0.014752088
      %v2724 = vmul.f32 %v2708, %v2723
      %v2725 = vadd.f32 %v2724, 0.112945676
      %v2726 = vmul.f32 %v2708, %v2725
      %v2727 = vadd.f32 %v2726, 0.4994258
      %v2728 = vmul.f32 %v2708, %v2727
      %v2729 = vadd.f32 %v2728, 1.0
      %v2730 = vrcp.pop %v2729
      %v2731 = vmul.f32 %v2729, %v2730
      %v2732 = vsub.f32 1.0, %v2731
      %v2733 = vmul.f32 %v2730, %v2732
      %v2734 = vadd.f32 %v2730, %v2733
      %vm2735 = vweird.f32 %v2729
      %vm2736 = vweird.f32 %v2730
      %vm2737 = vmor %vm2735, %vm2736
      %v2738 = vsel %vm2737, %v2730, %v2734
      %v2739 = vand.u32 2147483647, %v2729
      %vm2740 = vcmp.eq.f32.partialorder %v2739, 8.507059e+37
      %v2741 = vand.u32 %v2729, 2147483648
      %v2742 = vor.u32 1.1754944e-38, %v2741
      %v2743 = vsel %vm2740, %v2742, %v2738
      %v2744 = vmul.f32 %v2719, %v2743
      %v2745 = vmin.f32 %v2744, 1.0
      %v2746 = vmax.f32 %v2745, -1.0
      %v2747 = vmul.f32 %v2637, %v2637
      %v2748 = vmin.f32 16.0, %v2747
      %v2749 = vmul.f32 %v2748, 2.1237322e-06
      %v2750 = vadd.f32 %v2749, 0.00028619796
      %v2751 = vmul.f32 %v2748, %v2750
      %v2752 = vadd.f32 %v2751, 0.0036580483
      %v2753 = vmul.f32 %v2748, %v2752
      %v2754 = vadd.f32 %v2753, 0.05243302
      %v2755 = vmul.f32 %v2748, %v2754
      %v2756 = vadd.f32 %v2755, 0.18741608
      %v2757 = vmul.f32 %v2748, %v2756
      %v2758 = vadd.f32 %v2757, 1.1283791
      %v2759 = vmul.f32 %v2637, %v2758
      %v2760 = vmul.f32 %v2748, 3.8918573e-05
      %v2761 = vadd.f32 %v2760, 0.001143296
      %v2762 = vmul.f32 %v2748, %v2761
      %v2763 = vadd.f32 %v2762, 0.014752088
      %v2764 = vmul.f32 %v2748, %v2763
      %v2765 = vadd.f32 %v2764, 0.112945676
      %v2766 = vmul.f32 %v2748, %v2765
      %v2767 = vadd.f32 %v2766, 0.4994258
      %v2768 = vmul.f32 %v2748, %v2767
      %v2769 = vadd.f32 %v2768, 1.0
      %v2770 = vrcp.pop %v2769
      %v2771 = vmul.f32 %v2769, %v2770
      %v2772 = vsub.f32 1.0, %v2771
      %v2773 = vmul.f32 %v2770, %v2772
      %v2774 = vadd.f32 %v2770, %v2773
      %vm2775 = vweird.f32 %v2769
      %vm2776 = vweird.f32 %v2770
      %vm2777 = vmor %vm2775, %vm2776
      %v2778 = vsel %vm2777, %v2770, %v2774
      %v2779 = vand.u32 2147483647, %v2769
      %vm2780 = vcmp.eq.f32.partialorder %v2779, 8.507059e+37
      %v2781 = vand.u32 %v2769, 2147483648
      %v2782 = vor.u32 1.1754944e-38, %v2781
      %v2783 = vsel %vm2780, %v2782, %v2778
      %v2784 = vmul.f32 %v2759, %v2783
      %v2785 = vmin.f32 %v2784, 1.0
      %v2786 = vmax.f32 %v2785, -1.0
      %v2787 = vmul.f32 %v2638, %v2638
      %v2788 = vmin.f32 16.0, %v2787
      %v2789 = vmul.f32 %v2788, 2.1237322e-06
      %v2790 = vadd.f32 %v2789, 0.00028619796
      %v2791 = vmul.f32 %v2788, %v2790
      %v2792 = vadd.f32 %v2791, 0.0036580483
      %v2793 = vmul.f32 %v2788, %v2792
      %v2794 = vadd.f32 %v2793, 0.05243302
      %v2795 = vmul.f32 %v2788, %v2794
      %v2796 = vadd.f32 %v2795, 0.18741608
      %v2797 = vmul.f32 %v2788, %v2796
      %v2798 = vadd.f32 %v2797, 1.1283791
      %v2799 = vmul.f32 %v2638, %v2798
      %v2800 = vmul.f32 %v2788, 3.8918573e-05
      %v2801 = vadd.f32 %v2800, 0.001143296
      %v2802 = vmul.f32 %v2788, %v2801
      %v2803 = vadd.f32 %v2802, 0.014752088
      %v2804 = vmul.f32 %v2788, %v2803
      %v2805 = vadd.f32 %v2804, 0.112945676
      %v2806 = vmul.f32 %v2788, %v2805
      %v2807 = vadd.f32 %v2806, 0.4994258
      %v2808 = vmul.f32 %v2788, %v2807
      %v2809 = vadd.f32 %v2808, 1.0
      %v2810 = vrcp.pop %v2809
      %v2811 = vmul.f32 %v2809, %v2810
      %v2812 = vsub.f32 1.0, %v2811
      %v2813 = vmul.f32 %v2810, %v2812
      %v2814 = vadd.f32 %v2810, %v2813
      %vm2815 = vweird.f32 %v2809
      %vm2816 = vweird.f32 %v2810
      %vm2817 = vmor %vm2815, %vm2816
      %v2818 = vsel %vm2817, %v2810, %v2814
      %v2819 = vand.u32 2147483647, %v2809
      %vm2820 = vcmp.eq.f32.partialorder %v2819, 8.507059e+37
      %v2821 = vand.u32 %v2809, 2147483648
      %v2822 = vor.u32 1.1754944e-38, %v2821
      %v2823 = vsel %vm2820, %v2822, %v2818
      %v2824 = vmul.f32 %v2799, %v2823
      %v2825 = vmin.f32 %v2824, 1.0
      %v2826 = vmax.f32 %v2825, -1.0
      %v2827 = vmul.f32 %v2639, %v2639
      %v2828 = vmin.f32 16.0, %v2827
      %v2829 = vmul.f32 %v2828, 2.1237322e-06
      %v2830 = vadd.f32 %v2829, 0.00028619796
      %v2831 = vmul.f32 %v2828, %v2830
      %v2832 = vadd.f32 %v2831, 0.0036580483
      %v2833 = vmul.f32 %v2828, %v2832
      %v2834 = vadd.f32 %v2833, 0.05243302
      %v2835 = vmul.f32 %v2828, %v2834
      %v2836 = vadd.f32 %v2835, 0.18741608
      %v2837 = vmul.f32 %v2828, %v2836
      %v2838 = vadd.f32 %v2837, 1.1283791
      %v2839 = vmul.f32 %v2639, %v2838
      %v2840 = vmul.f32 %v2828, 3.8918573e-05
      %v2841 = vadd.f32 %v2840, 0.001143296
      %v2842 = vmul.f32 %v2828, %v2841
      %v2843 = vadd.f32 %v2842, 0.014752088
      %v2844 = vmul.f32 %v2828, %v2843
      %v2845 = vadd.f32 %v2844, 0.112945676
      %v2846 = vmul.f32 %v2828, %v2845
      %v2847 = vadd.f32 %v2846, 0.4994258
      %v2848 = vmul.f32 %v2828, %v2847
      %v2849 = vadd.f32 %v2848, 1.0
      %v2850 = vrcp.pop %v2849
      %v2851 = vmul.f32 %v2849, %v2850
      %v2852 = vsub.f32 1.0, %v2851
      %v2853 = vmul.f32 %v2850, %v2852
      %v2854 = vadd.f32 %v2850, %v2853
      %vm2855 = vweird.f32 %v2849
      %vm2856 = vweird.f32 %v2850
      %vm2857 = vmor %vm2855, %vm2856
      %v2858 = vsel %vm2857, %v2850, %v2854
      %v2859 = vand.u32 2147483647, %v2849
      %vm2860 = vcmp.eq.f32.partialorder %v2859, 8.507059e+37
      %v2861 = vand.u32 %v2849, 2147483648
      %v2862 = vor.u32 1.1754944e-38, %v2861
      %v2863 = vsel %vm2860, %v2862, %v2858
      %v2864 = vmul.f32 %v2839, %v2863
      %v2865 = vmin.f32 %v2864, 1.0
      %v2866 = vmax.f32 %v2865, -1.0
      %v2867 = vmul.f32 %v2640, %v2640
      %v2868 = vmin.f32 16.0, %v2867
      %v2869 = vmul.f32 %v2868, 2.1237322e-06
      %v2870 = vadd.f32 %v2869, 0.00028619796
      %v2871 = vmul.f32 %v2868, %v2870
      %v2872 = vadd.f32 %v2871, 0.0036580483
      %v2873 = vmul.f32 %v2868, %v2872
      %v2874 = vadd.f32 %v2873, 0.05243302
      %v2875 = vmul.f32 %v2868, %v2874
      %v2876 = vadd.f32 %v2875, 0.18741608
      %v2877 = vmul.f32 %v2868, %v2876
      %v2878 = vadd.f32 %v2877, 1.1283791
      %v2879 = vmul.f32 %v2640, %v2878
      %v2880 = vmul.f32 %v2868, 3.8918573e-05
      %v2881 = vadd.f32 %v2880, 0.001143296
      %v2882 = vmul.f32 %v2868, %v2881
      %v2883 = vadd.f32 %v2882, 0.014752088
      %v2884 = vmul.f32 %v2868, %v2883
      %v2885 = vadd.f32 %v2884, 0.112945676
      %v2886 = vmul.f32 %v2868, %v2885
      %v2887 = vadd.f32 %v2886, 0.4994258
      %v2888 = vmul.f32 %v2868, %v2887
      %v2889 = vadd.f32 %v2888, 1.0
      %v2890 = vrcp.pop %v2889
      %v2891 = vmul.f32 %v2889, %v2890
      %v2892 = vsub.f32 1.0, %v2891
      %v2893 = vmul.f32 %v2890, %v2892
      %v2894 = vadd.f32 %v2890, %v2893
      %vm2895 = vweird.f32 %v2889
      %vm2896 = vweird.f32 %v2890
      %vm2897 = vmor %vm2895, %vm2896
      %v2898 = vsel %vm2897, %v2890, %v2894
      %v2899 = vand.u32 2147483647, %v2889
      %vm2900 = vcmp.eq.f32.partialorder %v2899, 8.507059e+37
      %v2901 = vand.u32 %v2889, 2147483648
      %v2902 = vor.u32 1.1754944e-38, %v2901
      %v2903 = vsel %vm2900, %v2902, %v2898
      %v2904 = vmul.f32 %v2879, %v2903
      %v2905 = vmin.f32 %v2904, 1.0
      %v2906 = vmax.f32 %v2905, -1.0
      %v2907 = vmul.f32 %v2641, %v2641
      %v2908 = vmin.f32 16.0, %v2907
      %v2909 = vmul.f32 %v2908, 2.1237322e-06
      %v2910 = vadd.f32 %v2909, 0.00028619796
      %v2911 = vmul.f32 %v2908, %v2910
      %v2912 = vadd.f32 %v2911, 0.0036580483
      %v2913 = vmul.f32 %v2908, %v2912
      %v2914 = vadd.f32 %v2913, 0.05243302
      %v2915 = vmul.f32 %v2908, %v2914
      %v2916 = vadd.f32 %v2915, 0.18741608
      %v2917 = vmul.f32 %v2908, %v2916
      %v2918 = vadd.f32 %v2917, 1.1283791
      %v2919 = vmul.f32 %v2641, %v2918
      %v2920 = vmul.f32 %v2908, 3.8918573e-05
      %v2921 = vadd.f32 %v2920, 0.001143296
      %v2922 = vmul.f32 %v2908, %v2921
      %v2923 = vadd.f32 %v2922, 0.014752088
      %v2924 = vmul.f32 %v2908, %v2923
      %v2925 = vadd.f32 %v2924, 0.112945676
      %v2926 = vmul.f32 %v2908, %v2925
      %v2927 = vadd.f32 %v2926, 0.4994258
      %v2928 = vmul.f32 %v2908, %v2927
      %v2929 = vadd.f32 %v2928, 1.0
      %v2930 = vrcp.pop %v2929
      %v2931 = vmul.f32 %v2929, %v2930
      %v2932 = vsub.f32 1.0, %v2931
      %v2933 = vmul.f32 %v2930, %v2932
      %v2934 = vadd.f32 %v2930, %v2933
      %vm2935 = vweird.f32 %v2929
      %vm2936 = vweird.f32 %v2930
      %vm2937 = vmor %vm2935, %vm2936
      %v2938 = vsel %vm2937, %v2930, %v2934
      %v2939 = vand.u32 2147483647, %v2929
      %vm2940 = vcmp.eq.f32.partialorder %v2939, 8.507059e+37
      %v2941 = vand.u32 %v2929, 2147483648
      %v2942 = vor.u32 1.1754944e-38, %v2941
      %v2943 = vsel %vm2940, %v2942, %v2938
      %v2944 = vmul.f32 %v2919, %v2943
      %v2945 = vmin.f32 %v2944, 1.0
      %v2946 = vmax.f32 %v2945, -1.0
      %v2947 = vmul.f32 %v2642, %v2642
      %v2948 = vmin.f32 16.0, %v2947
      %v2949 = vmul.f32 %v2948, 2.1237322e-06
      %v2950 = vadd.f32 %v2949, 0.00028619796
      %v2951 = vmul.f32 %v2948, %v2950
      %v2952 = vadd.f32 %v2951, 0.0036580483
      %v2953 = vmul.f32 %v2948, %v2952
      %v2954 = vadd.f32 %v2953, 0.05243302
      %v2955 = vmul.f32 %v2948, %v2954
      %v2956 = vadd.f32 %v2955, 0.18741608
      %v2957 = vmul.f32 %v2948, %v2956
      %v2958 = vadd.f32 %v2957, 1.1283791
      %v2959 = vmul.f32 %v2642, %v2958
      %v2960 = vmul.f32 %v2948, 3.8918573e-05
      %v2961 = vadd.f32 %v2960, 0.001143296
      %v2962 = vmul.f32 %v2948, %v2961
      %v2963 = vadd.f32 %v2962, 0.014752088
      %v2964 = vmul.f32 %v2948, %v2963
      %v2965 = vadd.f32 %v2964, 0.112945676
      %v2966 = vmul.f32 %v2948, %v2965
      %v2967 = vadd.f32 %v2966, 0.4994258
      %v2968 = vmul.f32 %v2948, %v2967
      %v2969 = vadd.f32 %v2968, 1.0
      %v2970 = vrcp.pop %v2969
      %v2971 = vmul.f32 %v2969, %v2970
      %v2972 = vsub.f32 1.0, %v2971
      %v2973 = vmul.f32 %v2970, %v2972
      %v2974 = vadd.f32 %v2970, %v2973
      %vm2975 = vweird.f32 %v2969
      %vm2976 = vweird.f32 %v2970
      %vm2977 = vmor %vm2975, %vm2976
      %v2978 = vsel %vm2977, %v2970, %v2974
      %v2979 = vand.u32 2147483647, %v2969
      %vm2980 = vcmp.eq.f32.partialorder %v2979, 8.507059e+37
      %v2981 = vand.u32 %v2969, 2147483648
      %v2982 = vor.u32 1.1754944e-38, %v2981
      %v2983 = vsel %vm2980, %v2982, %v2978
      %v2984 = vmul.f32 %v2959, %v2983
      %v2985 = vmin.f32 %v2984, 1.0
      %v2986 = vmax.f32 %v2985, -1.0
      %v2987 = vmul.f32 %v2643, %v2643
      %v2988 = vmin.f32 16.0, %v2987
      %v2989 = vmul.f32 %v2988, 2.1237322e-06
      %v2990 = vadd.f32 %v2989, 0.00028619796
      %v2991 = vmul.f32 %v2988, %v2990
      %v2992 = vadd.f32 %v2991, 0.0036580483
      %v2993 = vmul.f32 %v2988, %v2992
      %v2994 = vadd.f32 %v2993, 0.05243302
      %v2995 = vmul.f32 %v2988, %v2994
      %v2996 = vadd.f32 %v2995, 0.18741608
      %v2997 = vmul.f32 %v2988, %v2996
      %v2998 = vadd.f32 %v2997, 1.1283791
      %v2999 = vmul.f32 %v2643, %v2998
      %v3000 = vmul.f32 %v2988, 3.8918573e-05
      %v3001 = vadd.f32 %v3000, 0.001143296
      %v3002 = vmul.f32 %v2988, %v3001
      %v3003 = vadd.f32 %v3002, 0.014752088
      %v3004 = vmul.f32 %v2988, %v3003
      %v3005 = vadd.f32 %v3004, 0.112945676
      %v3006 = vmul.f32 %v2988, %v3005
      %v3007 = vadd.f32 %v3006, 0.4994258
      %v3008 = vmul.f32 %v2988, %v3007
      %v3009 = vadd.f32 %v3008, 1.0
      %v3010 = vrcp.pop %v3009
      %v3011 = vmul.f32 %v3009, %v3010
      %v3012 = vsub.f32 1.0, %v3011
      %v3013 = vmul.f32 %v3010, %v3012
      %v3014 = vadd.f32 %v3010, %v3013
      %vm3015 = vweird.f32 %v3009
      %vm3016 = vweird.f32 %v3010
      %vm3017 = vmor %vm3015, %vm3016
      %v3018 = vsel %vm3017, %v3010, %v3014
      %v3019 = vand.u32 2147483647, %v3009
      %vm3020 = vcmp.eq.f32.partialorder %v3019, 8.507059e+37
      %v3021 = vand.u32 %v3009, 2147483648
      %v3022 = vor.u32 1.1754944e-38, %v3021
      %v3023 = vsel %vm3020, %v3022, %v3018
      %v3024 = vmul.f32 %v2999, %v3023
      %v3025 = vmin.f32 %v3024, 1.0
      %v3026 = vmax.f32 %v3025, -1.0
      %v3027 = vmul.f32 %v2644, %v2644
      %v3028 = vmin.f32 16.0, %v3027
      %v3029 = vmul.f32 %v3028, 2.1237322e-06
      %v3030 = vadd.f32 %v3029, 0.00028619796
      %v3031 = vmul.f32 %v3028, %v3030
      %v3032 = vadd.f32 %v3031, 0.0036580483
      %v3033 = vmul.f32 %v3028, %v3032
      %v3034 = vadd.f32 %v3033, 0.05243302
      %v3035 = vmul.f32 %v3028, %v3034
      %v3036 = vadd.f32 %v3035, 0.18741608
      %v3037 = vmul.f32 %v3028, %v3036
      %v3038 = vadd.f32 %v3037, 1.1283791
      %v3039 = vmul.f32 %v2644, %v3038
      %v3040 = vmul.f32 %v3028, 3.8918573e-05
      %v3041 = vadd.f32 %v3040, 0.001143296
      %v3042 = vmul.f32 %v3028, %v3041
      %v3043 = vadd.f32 %v3042, 0.014752088
      %v3044 = vmul.f32 %v3028, %v3043
      %v3045 = vadd.f32 %v3044, 0.112945676
      %v3046 = vmul.f32 %v3028, %v3045
      %v3047 = vadd.f32 %v3046, 0.4994258
      %v3048 = vmul.f32 %v3028, %v3047
      %v3049 = vadd.f32 %v3048, 1.0
      %v3050 = vrcp.pop %v3049
      %v3051 = vmul.f32 %v3049, %v3050
      %v3052 = vsub.f32 1.0, %v3051
      %v3053 = vmul.f32 %v3050, %v3052
      %v3054 = vadd.f32 %v3050, %v3053
      %vm3055 = vweird.f32 %v3049
      %vm3056 = vweird.f32 %v3050
      %vm3057 = vmor %vm3055, %vm3056
      %v3058 = vsel %vm3057, %v3050, %v3054
      %v3059 = vand.u32 2147483647, %v3049
      %vm3060 = vcmp.eq.f32.partialorder %v3059, 8.507059e+37
      %v3061 = vand.u32 %v3049, 2147483648
      %v3062 = vor.u32 1.1754944e-38, %v3061
      %v3063 = vsel %vm3060, %v3062, %v3058
      %v3064 = vmul.f32 %v3039, %v3063
      %v3065 = vmin.f32 %v3064, 1.0
      %v3066 = vmax.f32 %v3065, -1.0
      %v3067 = vmul.f32 %v2645, %v2645
      %v3068 = vmin.f32 16.0, %v3067
      %v3069 = vmul.f32 %v3068, 2.1237322e-06
      %v3070 = vadd.f32 %v3069, 0.00028619796
      %v3071 = vmul.f32 %v3068, %v3070
      %v3072 = vadd.f32 %v3071, 0.0036580483
      %v3073 = vmul.f32 %v3068, %v3072
      %v3074 = vadd.f32 %v3073, 0.05243302
      %v3075 = vmul.f32 %v3068, %v3074
      %v3076 = vadd.f32 %v3075, 0.18741608
      %v3077 = vmul.f32 %v3068, %v3076
      %v3078 = vadd.f32 %v3077, 1.1283791
      %v3079 = vmul.f32 %v2645, %v3078
      %v3080 = vmul.f32 %v3068, 3.8918573e-05
      %v3081 = vadd.f32 %v3080, 0.001143296
      %v3082 = vmul.f32 %v3068, %v3081
      %v3083 = vadd.f32 %v3082, 0.014752088
      %v3084 = vmul.f32 %v3068, %v3083
      %v3085 = vadd.f32 %v3084, 0.112945676
      %v3086 = vmul.f32 %v3068, %v3085
      %v3087 = vadd.f32 %v3086, 0.4994258
      %v3088 = vmul.f32 %v3068, %v3087
      %v3089 = vadd.f32 %v3088, 1.0
      %v3090 = vrcp.pop %v3089
      %v3091 = vmul.f32 %v3089, %v3090
      %v3092 = vsub.f32 1.0, %v3091
      %v3093 = vmul.f32 %v3090, %v3092
      %v3094 = vadd.f32 %v3090, %v3093
      %vm3095 = vweird.f32 %v3089
      %vm3096 = vweird.f32 %v3090
      %vm3097 = vmor %vm3095, %vm3096
      %v3098 = vsel %vm3097, %v3090, %v3094
      %v3099 = vand.u32 2147483647, %v3089
      %vm3100 = vcmp.eq.f32.partialorder %v3099, 8.507059e+37
      %v3101 = vand.u32 %v3089, 2147483648
      %v3102 = vor.u32 1.1754944e-38, %v3101
      %v3103 = vsel %vm3100, %v3102, %v3098
      %v3104 = vmul.f32 %v3079, %v3103
      %v3105 = vmin.f32 %v3104, 1.0
      %v3106 = vmax.f32 %v3105, -1.0
      %v3107 = vmul.f32 %v2646, %v2646
      %v3108 = vmin.f32 16.0, %v3107
      %v3109 = vmul.f32 %v3108, 2.1237322e-06
      %v3110 = vadd.f32 %v3109, 0.00028619796
      %v3111 = vmul.f32 %v3108, %v3110
      %v3112 = vadd.f32 %v3111, 0.0036580483
      %v3113 = vmul.f32 %v3108, %v3112
      %v3114 = vadd.f32 %v3113, 0.05243302
      %v3115 = vmul.f32 %v3108, %v3114
      %v3116 = vadd.f32 %v3115, 0.18741608
      %v3117 = vmul.f32 %v3108, %v3116
      %v3118 = vadd.f32 %v3117, 1.1283791
      %v3119 = vmul.f32 %v2646, %v3118
      %v3120 = vmul.f32 %v3108, 3.8918573e-05
      %v3121 = vadd.f32 %v3120, 0.001143296
      %v3122 = vmul.f32 %v3108, %v3121
      %v3123 = vadd.f32 %v3122, 0.014752088
      %v3124 = vmul.f32 %v3108, %v3123
      %v3125 = vadd.f32 %v3124, 0.112945676
      %v3126 = vmul.f32 %v3108, %v3125
      %v3127 = vadd.f32 %v3126, 0.4994258
      %v3128 = vmul.f32 %v3108, %v3127
      %v3129 = vadd.f32 %v3128, 1.0
      %v3130 = vrcp.pop %v3129
      %v3131 = vmul.f32 %v3129, %v3130
      %v3132 = vsub.f32 1.0, %v3131
      %v3133 = vmul.f32 %v3130, %v3132
      %v3134 = vadd.f32 %v3130, %v3133
      %vm3135 = vweird.f32 %v3129
      %vm3136 = vweird.f32 %v3130
      %vm3137 = vmor %vm3135, %vm3136
      %v3138 = vsel %vm3137, %v3130, %v3134
      %v3139 = vand.u32 2147483647, %v3129
      %vm3140 = vcmp.eq.f32.partialorder %v3139, 8.507059e+37
      %v3141 = vand.u32 %v3129, 2147483648
      %v3142 = vor.u32 1.1754944e-38, %v3141
      %v3143 = vsel %vm3140, %v3142, %v3138
      %v3144 = vmul.f32 %v3119, %v3143
      %v3145 = vmin.f32 %v3144, 1.0
      %v3146 = vmax.f32 %v3145, -1.0
      %v3147 = vmul.f32 %v2647, %v2647
      %v3148 = vmin.f32 16.0, %v3147
      %v3149 = vmul.f32 %v3148, 2.1237322e-06
      %v3150 = vadd.f32 %v3149, 0.00028619796
      %v3151 = vmul.f32 %v3148, %v3150
      %v3152 = vadd.f32 %v3151, 0.0036580483
      %v3153 = vmul.f32 %v3148, %v3152
      %v3154 = vadd.f32 %v3153, 0.05243302
      %v3155 = vmul.f32 %v3148, %v3154
      %v3156 = vadd.f32 %v3155, 0.18741608
      %v3157 = vmul.f32 %v3148, %v3156
      %v3158 = vadd.f32 %v3157, 1.1283791
      %v3159 = vmul.f32 %v2647, %v3158
      %v3160 = vmul.f32 %v3148, 3.8918573e-05
      %v3161 = vadd.f32 %v3160, 0.001143296
      %v3162 = vmul.f32 %v3148, %v3161
      %v3163 = vadd.f32 %v3162, 0.014752088
      %v3164 = vmul.f32 %v3148, %v3163
      %v3165 = vadd.f32 %v3164, 0.112945676
      %v3166 = vmul.f32 %v3148, %v3165
      %v3167 = vadd.f32 %v3166, 0.4994258
      %v3168 = vmul.f32 %v3148, %v3167
      %v3169 = vadd.f32 %v3168, 1.0
      %v3170 = vrcp.pop %v3169
      %v3171 = vmul.f32 %v3169, %v3170
      %v3172 = vsub.f32 1.0, %v3171
      %v3173 = vmul.f32 %v3170, %v3172
      %v3174 = vadd.f32 %v3170, %v3173
      %vm3175 = vweird.f32 %v3169
      %vm3176 = vweird.f32 %v3170
      %vm3177 = vmor %vm3175, %vm3176
      %v3178 = vsel %vm3177, %v3170, %v3174
      %v3179 = vand.u32 2147483647, %v3169
      %vm3180 = vcmp.eq.f32.partialorder %v3179, 8.507059e+37
      %v3181 = vand.u32 %v3169, 2147483648
      %v3182 = vor.u32 1.1754944e-38, %v3181
      %v3183 = vsel %vm3180, %v3182, %v3178
      %v3184 = vmul.f32 %v3159, %v3183
      %v3185 = vmin.f32 %v3184, 1.0
      %v3186 = vmax.f32 %v3185, -1.0
      %v3187 = vmul.f32 %v2648, %v2648
      %v3188 = vmin.f32 16.0, %v3187
      %v3189 = vmul.f32 %v3188, 2.1237322e-06
      %v3190 = vadd.f32 %v3189, 0.00028619796
      %v3191 = vmul.f32 %v3188, %v3190
      %v3192 = vadd.f32 %v3191, 0.0036580483
      %v3193 = vmul.f32 %v3188, %v3192
      %v3194 = vadd.f32 %v3193, 0.05243302
      %v3195 = vmul.f32 %v3188, %v3194
      %v3196 = vadd.f32 %v3195, 0.18741608
      %v3197 = vmul.f32 %v3188, %v3196
      %v3198 = vadd.f32 %v3197, 1.1283791
      %v3199 = vmul.f32 %v2648, %v3198
      %v3200 = vmul.f32 %v3188, 3.8918573e-05
      %v3201 = vadd.f32 %v3200, 0.001143296
      %v3202 = vmul.f32 %v3188, %v3201
      %v3203 = vadd.f32 %v3202, 0.014752088
      %v3204 = vmul.f32 %v3188, %v3203
      %v3205 = vadd.f32 %v3204, 0.112945676
      %v3206 = vmul.f32 %v3188, %v3205
      %v3207 = vadd.f32 %v3206, 0.4994258
      %v3208 = vmul.f32 %v3188, %v3207
      %v3209 = vadd.f32 %v3208, 1.0
      %v3210 = vrcp.pop %v3209
      %v3211 = vmul.f32 %v3209, %v3210
      %v3212 = vsub.f32 1.0, %v3211
      %v3213 = vmul.f32 %v3210, %v3212
      %v3214 = vadd.f32 %v3210, %v3213
      %vm3215 = vweird.f32 %v3209
      %vm3216 = vweird.f32 %v3210
      %vm3217 = vmor %vm3215, %vm3216
      %v3218 = vsel %vm3217, %v3210, %v3214
      %v3219 = vand.u32 2147483647, %v3209
      %vm3220 = vcmp.eq.f32.partialorder %v3219, 8.507059e+37
      %v3221 = vand.u32 %v3209, 2147483648
      %v3222 = vor.u32 1.1754944e-38, %v3221
      %v3223 = vsel %vm3220, %v3222, %v3218
      %v3224 = vmul.f32 %v3199, %v3223
      %v3225 = vmin.f32 %v3224, 1.0
      %v3226 = vmax.f32 %v3225, -1.0
      %v3227 = vmul.f32 %v2649, %v2649
      %v3228 = vmin.f32 16.0, %v3227
      %v3229 = vmul.f32 %v3228, 2.1237322e-06
      %v3230 = vadd.f32 %v3229, 0.00028619796
      %v3231 = vmul.f32 %v3228, %v3230
      %v3232 = vadd.f32 %v3231, 0.0036580483
      %v3233 = vmul.f32 %v3228, %v3232
      %v3234 = vadd.f32 %v3233, 0.05243302
      %v3235 = vmul.f32 %v3228, %v3234
      %v3236 = vadd.f32 %v3235, 0.18741608
      %v3237 = vmul.f32 %v3228, %v3236
      %v3238 = vadd.f32 %v3237, 1.1283791
      %v3239 = vmul.f32 %v2649, %v3238
      %v3240 = vmul.f32 %v3228, 3.8918573e-05
      %v3241 = vadd.f32 %v3240, 0.001143296
      %v3242 = vmul.f32 %v3228, %v3241
      %v3243 = vadd.f32 %v3242, 0.014752088
      %v3244 = vmul.f32 %v3228, %v3243
      %v3245 = vadd.f32 %v3244, 0.112945676
      %v3246 = vmul.f32 %v3228, %v3245
      %v3247 = vadd.f32 %v3246, 0.4994258
      %v3248 = vmul.f32 %v3228, %v3247
      %v3249 = vadd.f32 %v3248, 1.0
      %v3250 = vrcp.pop %v3249
      %v3251 = vmul.f32 %v3249, %v3250
      %v3252 = vsub.f32 1.0, %v3251
      %v3253 = vmul.f32 %v3250, %v3252
      %v3254 = vadd.f32 %v3250, %v3253
      %vm3255 = vweird.f32 %v3249
      %vm3256 = vweird.f32 %v3250
      %vm3257 = vmor %vm3255, %vm3256
      %v3258 = vsel %vm3257, %v3250, %v3254
      %v3259 = vand.u32 2147483647, %v3249
      %vm3260 = vcmp.eq.f32.partialorder %v3259, 8.507059e+37
      %v3261 = vand.u32 %v3249, 2147483648
      %v3262 = vor.u32 1.1754944e-38, %v3261
      %v3263 = vsel %vm3260, %v3262, %v3258
      %v3264 = vmul.f32 %v3239, %v3263
      %v3265 = vmin.f32 %v3264, 1.0
      %v3266 = vmax.f32 %v3265, -1.0
      %v3267 = vmul.f32 %v2650, %v2650
      %v3268 = vmin.f32 16.0, %v3267
      %v3269 = vmul.f32 %v3268, 2.1237322e-06
      %v3270 = vadd.f32 %v3269, 0.00028619796
      %v3271 = vmul.f32 %v3268, %v3270
      %v3272 = vadd.f32 %v3271, 0.0036580483
      %v3273 = vmul.f32 %v3268, %v3272
      %v3274 = vadd.f32 %v3273, 0.05243302
      %v3275 = vmul.f32 %v3268, %v3274
      %v3276 = vadd.f32 %v3275, 0.18741608
      %v3277 = vmul.f32 %v3268, %v3276
      %v3278 = vadd.f32 %v3277, 1.1283791
      %v3279 = vmul.f32 %v2650, %v3278
      %v3280 = vmul.f32 %v3268, 3.8918573e-05
      %v3281 = vadd.f32 %v3280, 0.001143296
      %v3282 = vmul.f32 %v3268, %v3281
      %v3283 = vadd.f32 %v3282, 0.014752088
      %v3284 = vmul.f32 %v3268, %v3283
      %v3285 = vadd.f32 %v3284, 0.112945676
      %v3286 = vmul.f32 %v3268, %v3285
      %v3287 = vadd.f32 %v3286, 0.4994258
      %v3288 = vmul.f32 %v3268, %v3287
      %v3289 = vadd.f32 %v3288, 1.0
      %v3290 = vrcp.pop %v3289
      %v3291 = vmul.f32 %v3289, %v3290
      %v3292 = vsub.f32 1.0, %v3291
      %v3293 = vmul.f32 %v3290, %v3292
      %v3294 = vadd.f32 %v3290, %v3293
      %vm3295 = vweird.f32 %v3289
      %vm3296 = vweird.f32 %v3290
      %vm3297 = vmor %vm3295, %vm3296
      %v3298 = vsel %vm3297, %v3290, %v3294
      %v3299 = vand.u32 2147483647, %v3289
      %vm3300 = vcmp.eq.f32.partialorder %v3299, 8.507059e+37
      %v3301 = vand.u32 %v3289, 2147483648
      %v3302 = vor.u32 1.1754944e-38, %v3301
      %v3303 = vsel %vm3300, %v3302, %v3298
      %v3304 = vmul.f32 %v3279, %v3303
      %v3305 = vmin.f32 %v3304, 1.0
      %v3306 = vmax.f32 %v3305, -1.0
      %v3307 = vmul.f32 %v2651, %v2651
      %v3308 = vmin.f32 16.0, %v3307
      %v3309 = vmul.f32 %v3308, 2.1237322e-06
      %v3310 = vadd.f32 %v3309, 0.00028619796
      %v3311 = vmul.f32 %v3308, %v3310
      %v3312 = vadd.f32 %v3311, 0.0036580483
      %v3313 = vmul.f32 %v3308, %v3312
      %v3314 = vadd.f32 %v3313, 0.05243302
      %v3315 = vmul.f32 %v3308, %v3314
      %v3316 = vadd.f32 %v3315, 0.18741608
      %v3317 = vmul.f32 %v3308, %v3316
      %v3318 = vadd.f32 %v3317, 1.1283791
      %v3319 = vmul.f32 %v2651, %v3318
      %v3320 = vmul.f32 %v3308, 3.8918573e-05
      %v3321 = vadd.f32 %v3320, 0.001143296
      %v3322 = vmul.f32 %v3308, %v3321
      %v3323 = vadd.f32 %v3322, 0.014752088
      %v3324 = vmul.f32 %v3308, %v3323
      %v3325 = vadd.f32 %v3324, 0.112945676
      %v3326 = vmul.f32 %v3308, %v3325
      %v3327 = vadd.f32 %v3326, 0.4994258
      %v3328 = vmul.f32 %v3308, %v3327
      %v3329 = vadd.f32 %v3328, 1.0
      %v3330 = vrcp.pop %v3329
      %v3331 = vmul.f32 %v3329, %v3330
      %v3332 = vsub.f32 1.0, %v3331
      %v3333 = vmul.f32 %v3330, %v3332
      %v3334 = vadd.f32 %v3330, %v3333
      %vm3335 = vweird.f32 %v3329
      %vm3336 = vweird.f32 %v3330
      %vm3337 = vmor %vm3335, %vm3336
      %v3338 = vsel %vm3337, %v3330, %v3334
      %v3339 = vand.u32 2147483647, %v3329
      %vm3340 = vcmp.eq.f32.partialorder %v3339, 8.507059e+37
      %v3341 = vand.u32 %v3329, 2147483648
      %v3342 = vor.u32 1.1754944e-38, %v3341
      %v3343 = vsel %vm3340, %v3342, %v3338
      %v3344 = vmul.f32 %v3319, %v3343
      %v3345 = vmin.f32 %v3344, 1.0
      %v3346 = vmax.f32 %v3345, -1.0
      %v3347 = vmul.f32 %v2652, %v2652
      %v3348 = vmin.f32 16.0, %v3347
      %v3349 = vmul.f32 %v3348, 2.1237322e-06
      %v3350 = vadd.f32 %v3349, 0.00028619796
      %v3351 = vmul.f32 %v3348, %v3350
      %v3352 = vadd.f32 %v3351, 0.0036580483
      %v3353 = vmul.f32 %v3348, %v3352
      %v3354 = vadd.f32 %v3353, 0.05243302
      %v3355 = vmul.f32 %v3348, %v3354
      %v3356 = vadd.f32 %v3355, 0.18741608
      %v3357 = vmul.f32 %v3348, %v3356
      %v3358 = vadd.f32 %v3357, 1.1283791
      %v3359 = vmul.f32 %v2652, %v3358
      %v3360 = vmul.f32 %v3348, 3.8918573e-05
      %v3361 = vadd.f32 %v3360, 0.001143296
      %v3362 = vmul.f32 %v3348, %v3361
      %v3363 = vadd.f32 %v3362, 0.014752088
      %v3364 = vmul.f32 %v3348, %v3363
      %v3365 = vadd.f32 %v3364, 0.112945676
      %v3366 = vmul.f32 %v3348, %v3365
      %v3367 = vadd.f32 %v3366, 0.4994258
      %v3368 = vmul.f32 %v3348, %v3367
      %v3369 = vadd.f32 %v3368, 1.0
      %v3370 = vrcp.pop %v3369
      %v3371 = vmul.f32 %v3369, %v3370
      %v3372 = vsub.f32 1.0, %v3371
      %v3373 = vmul.f32 %v3370, %v3372
      %v3374 = vadd.f32 %v3370, %v3373
      %vm3375 = vweird.f32 %v3369
      %vm3376 = vweird.f32 %v3370
      %vm3377 = vmor %vm3375, %vm3376
      %v3378 = vsel %vm3377, %v3370, %v3374
      %v3379 = vand.u32 2147483647, %v3369
      %vm3380 = vcmp.eq.f32.partialorder %v3379, 8.507059e+37
      %v3381 = vand.u32 %v3369, 2147483648
      %v3382 = vor.u32 1.1754944e-38, %v3381
      %v3383 = vsel %vm3380, %v3382, %v3378
      %v3384 = vmul.f32 %v3359, %v3383
      %v3385 = vmin.f32 %v3384, 1.0
      %v3386 = vmax.f32 %v3385, -1.0
      %v3387 = vmul.f32 %v2653, %v2653
      %v3388 = vmin.f32 16.0, %v3387
      %v3389 = vmul.f32 %v3388, 2.1237322e-06
      %v3390 = vadd.f32 %v3389, 0.00028619796
      %v3391 = vmul.f32 %v3388, %v3390
      %v3392 = vadd.f32 %v3391, 0.0036580483
      %v3393 = vmul.f32 %v3388, %v3392
      %v3394 = vadd.f32 %v3393, 0.05243302
      %v3395 = vmul.f32 %v3388, %v3394
      %v3396 = vadd.f32 %v3395, 0.18741608
      %v3397 = vmul.f32 %v3388, %v3396
      %v3398 = vadd.f32 %v3397, 1.1283791
      %v3399 = vmul.f32 %v2653, %v3398
      %v3400 = vmul.f32 %v3388, 3.8918573e-05
      %v3401 = vadd.f32 %v3400, 0.001143296
      %v3402 = vmul.f32 %v3388, %v3401
      %v3403 = vadd.f32 %v3402, 0.014752088
      %v3404 = vmul.f32 %v3388, %v3403
      %v3405 = vadd.f32 %v3404, 0.112945676
      %v3406 = vmul.f32 %v3388, %v3405
      %v3407 = vadd.f32 %v3406, 0.4994258
      %v3408 = vmul.f32 %v3388, %v3407
      %v3409 = vadd.f32 %v3408, 1.0
      %v3410 = vrcp.pop %v3409
      %v3411 = vmul.f32 %v3409, %v3410
      %v3412 = vsub.f32 1.0, %v3411
      %v3413 = vmul.f32 %v3410, %v3412
      %v3414 = vadd.f32 %v3410, %v3413
      %vm3415 = vweird.f32 %v3409
      %vm3416 = vweird.f32 %v3410
      %vm3417 = vmor %vm3415, %vm3416
      %v3418 = vsel %vm3417, %v3410, %v3414
      %v3419 = vand.u32 2147483647, %v3409
      %vm3420 = vcmp.eq.f32.partialorder %v3419, 8.507059e+37
      %v3421 = vand.u32 %v3409, 2147483648
      %v3422 = vor.u32 1.1754944e-38, %v3421
      %v3423 = vsel %vm3420, %v3422, %v3418
      %v3424 = vmul.f32 %v3399, %v3423
      %v3425 = vmin.f32 %v3424, 1.0
      %v3426 = vmax.f32 %v3425, -1.0
      %v3427 = vmul.f32 %v2654, %v2654
      %v3428 = vmin.f32 16.0, %v3427
      %v3429 = vmul.f32 %v3428, 2.1237322e-06
      %v3430 = vadd.f32 %v3429, 0.00028619796
      %v3431 = vmul.f32 %v3428, %v3430
      %v3432 = vadd.f32 %v3431, 0.0036580483
      %v3433 = vmul.f32 %v3428, %v3432
      %v3434 = vadd.f32 %v3433, 0.05243302
      %v3435 = vmul.f32 %v3428, %v3434
      %v3436 = vadd.f32 %v3435, 0.18741608
      %v3437 = vmul.f32 %v3428, %v3436
      %v3438 = vadd.f32 %v3437, 1.1283791
      %v3439 = vmul.f32 %v2654, %v3438
      %v3440 = vmul.f32 %v3428, 3.8918573e-05
      %v3441 = vadd.f32 %v3440, 0.001143296
      %v3442 = vmul.f32 %v3428, %v3441
      %v3443 = vadd.f32 %v3442, 0.014752088
      %v3444 = vmul.f32 %v3428, %v3443
      %v3445 = vadd.f32 %v3444, 0.112945676
      %v3446 = vmul.f32 %v3428, %v3445
      %v3447 = vadd.f32 %v3446, 0.4994258
      %v3448 = vmul.f32 %v3428, %v3447
      %v3449 = vadd.f32 %v3448, 1.0
      %v3450 = vrcp.pop %v3449
      %v3451 = vmul.f32 %v3449, %v3450
      %v3452 = vsub.f32 1.0, %v3451
      %v3453 = vmul.f32 %v3450, %v3452
      %v3454 = vadd.f32 %v3450, %v3453
      %vm3455 = vweird.f32 %v3449
      %vm3456 = vweird.f32 %v3450
      %vm3457 = vmor %vm3455, %vm3456
      %v3458 = vsel %vm3457, %v3450, %v3454
      %v3459 = vand.u32 2147483647, %v3449
      %vm3460 = vcmp.eq.f32.partialorder %v3459, 8.507059e+37
      %v3461 = vand.u32 %v3449, 2147483648
      %v3462 = vor.u32 1.1754944e-38, %v3461
      %v3463 = vsel %vm3460, %v3462, %v3458
      %v3464 = vmul.f32 %v3439, %v3463
      %v3465 = vmin.f32 %v3464, 1.0
      %v3466 = vmax.f32 %v3465, -1.0
      %v3467 = vmul.f32 %v2655, %v2655
      %v3468 = vmin.f32 16.0, %v3467
      %v3469 = vmul.f32 %v3468, 2.1237322e-06
      %v3470 = vadd.f32 %v3469, 0.00028619796
      %v3471 = vmul.f32 %v3468, %v3470
      %v3472 = vadd.f32 %v3471, 0.0036580483
      %v3473 = vmul.f32 %v3468, %v3472
      %v3474 = vadd.f32 %v3473, 0.05243302
      %v3475 = vmul.f32 %v3468, %v3474
      %v3476 = vadd.f32 %v3475, 0.18741608
      %v3477 = vmul.f32 %v3468, %v3476
      %v3478 = vadd.f32 %v3477, 1.1283791
      %v3479 = vmul.f32 %v2655, %v3478
      %v3480 = vmul.f32 %v3468, 3.8918573e-05
      %v3481 = vadd.f32 %v3480, 0.001143296
      %v3482 = vmul.f32 %v3468, %v3481
      %v3483 = vadd.f32 %v3482, 0.014752088
      %v3484 = vmul.f32 %v3468, %v3483
      %v3485 = vadd.f32 %v3484, 0.112945676
      %v3486 = vmul.f32 %v3468, %v3485
      %v3487 = vadd.f32 %v3486, 0.4994258
      %v3488 = vmul.f32 %v3468, %v3487
      %v3489 = vadd.f32 %v3488, 1.0
      %v3490 = vrcp.pop %v3489
      %v3491 = vmul.f32 %v3489, %v3490
      %v3492 = vsub.f32 1.0, %v3491
      %v3493 = vmul.f32 %v3490, %v3492
      %v3494 = vadd.f32 %v3490, %v3493
      %vm3495 = vweird.f32 %v3489
      %vm3496 = vweird.f32 %v3490
      %vm3497 = vmor %vm3495, %vm3496
      %v3498 = vsel %vm3497, %v3490, %v3494
      %v3499 = vand.u32 2147483647, %v3489
      %vm3500 = vcmp.eq.f32.partialorder %v3499, 8.507059e+37
      %v3501 = vand.u32 %v3489, 2147483648
      %v3502 = vor.u32 1.1754944e-38, %v3501
      %v3503 = vsel %vm3500, %v3502, %v3498
      %v3504 = vmul.f32 %v3479, %v3503
      %v3505 = vmin.f32 %v3504, 1.0
      %v3506 = vmax.f32 %v3505, -1.0
      %v3507 = vmul.f32 %v2656, %v2656
      %v3508 = vmin.f32 16.0, %v3507
      %v3509 = vmul.f32 %v3508, 2.1237322e-06
      %v3510 = vadd.f32 %v3509, 0.00028619796
      %v3511 = vmul.f32 %v3508, %v3510
      %v3512 = vadd.f32 %v3511, 0.0036580483
      %v3513 = vmul.f32 %v3508, %v3512
      %v3514 = vadd.f32 %v3513, 0.05243302
      %v3515 = vmul.f32 %v3508, %v3514
      %v3516 = vadd.f32 %v3515, 0.18741608
      %v3517 = vmul.f32 %v3508, %v3516
      %v3518 = vadd.f32 %v3517, 1.1283791
      %v3519 = vmul.f32 %v2656, %v3518
      %v3520 = vmul.f32 %v3508, 3.8918573e-05
      %v3521 = vadd.f32 %v3520, 0.001143296
      %v3522 = vmul.f32 %v3508, %v3521
      %v3523 = vadd.f32 %v3522, 0.014752088
      %v3524 = vmul.f32 %v3508, %v3523
      %v3525 = vadd.f32 %v3524, 0.112945676
      %v3526 = vmul.f32 %v3508, %v3525
      %v3527 = vadd.f32 %v3526, 0.4994258
      %v3528 = vmul.f32 %v3508, %v3527
      %v3529 = vadd.f32 %v3528, 1.0
      %v3530 = vrcp.pop %v3529
      %v3531 = vmul.f32 %v3529, %v3530
      %v3532 = vsub.f32 1.0, %v3531
      %v3533 = vmul.f32 %v3530, %v3532
      %v3534 = vadd.f32 %v3530, %v3533
      %vm3535 = vweird.f32 %v3529
      %vm3536 = vweird.f32 %v3530
      %vm3537 = vmor %vm3535, %vm3536
      %v3538 = vsel %vm3537, %v3530, %v3534
      %v3539 = vand.u32 2147483647, %v3529
      %vm3540 = vcmp.eq.f32.partialorder %v3539, 8.507059e+37
      %v3541 = vand.u32 %v3529, 2147483648
      %v3542 = vor.u32 1.1754944e-38, %v3541
      %v3543 = vsel %vm3540, %v3542, %v3538
      %v3544 = vmul.f32 %v3519, %v3543
      %v3545 = vmin.f32 %v3544, 1.0
      %v3546 = vmax.f32 %v3545, -1.0
      %v3547 = vmul.f32 %v2657, %v2657
      %v3548 = vmin.f32 16.0, %v3547
      %v3549 = vmul.f32 %v3548, 2.1237322e-06
      %v3550 = vadd.f32 %v3549, 0.00028619796
      %v3551 = vmul.f32 %v3548, %v3550
      %v3552 = vadd.f32 %v3551, 0.0036580483
      %v3553 = vmul.f32 %v3548, %v3552
      %v3554 = vadd.f32 %v3553, 0.05243302
      %v3555 = vmul.f32 %v3548, %v3554
      %v3556 = vadd.f32 %v3555, 0.18741608
      %v3557 = vmul.f32 %v3548, %v3556
      %v3558 = vadd.f32 %v3557, 1.1283791
      %v3559 = vmul.f32 %v2657, %v3558
      %v3560 = vmul.f32 %v3548, 3.8918573e-05
      %v3561 = vadd.f32 %v3560, 0.001143296
      %v3562 = vmul.f32 %v3548, %v3561
      %v3563 = vadd.f32 %v3562, 0.014752088
      %v3564 = vmul.f32 %v3548, %v3563
      %v3565 = vadd.f32 %v3564, 0.112945676
      %v3566 = vmul.f32 %v3548, %v3565
      %v3567 = vadd.f32 %v3566, 0.4994258
      %v3568 = vmul.f32 %v3548, %v3567
      %v3569 = vadd.f32 %v3568, 1.0
      %v3570 = vrcp.pop %v3569
      %v3571 = vmul.f32 %v3569, %v3570
      %v3572 = vsub.f32 1.0, %v3571
      %v3573 = vmul.f32 %v3570, %v3572
      %v3574 = vadd.f32 %v3570, %v3573
      %vm3575 = vweird.f32 %v3569
      %vm3576 = vweird.f32 %v3570
      %vm3577 = vmor %vm3575, %vm3576
      %v3578 = vsel %vm3577, %v3570, %v3574
      %v3579 = vand.u32 2147483647, %v3569
      %vm3580 = vcmp.eq.f32.partialorder %v3579, 8.507059e+37
      %v3581 = vand.u32 %v3569, 2147483648
      %v3582 = vor.u32 1.1754944e-38, %v3581
      %v3583 = vsel %vm3580, %v3582, %v3578
      %v3584 = vmul.f32 %v3559, %v3583
      %v3585 = vmin.f32 %v3584, 1.0
      %v3586 = vmax.f32 %v3585, -1.0
      %v3587 = vmul.f32 %v2658, %v2658
      %v3588 = vmin.f32 16.0, %v3587
      %v3589 = vmul.f32 %v3588, 2.1237322e-06
      %v3590 = vadd.f32 %v3589, 0.00028619796
      %v3591 = vmul.f32 %v3588, %v3590
      %v3592 = vadd.f32 %v3591, 0.0036580483
      %v3593 = vmul.f32 %v3588, %v3592
      %v3594 = vadd.f32 %v3593, 0.05243302
      %v3595 = vmul.f32 %v3588, %v3594
      %v3596 = vadd.f32 %v3595, 0.18741608
      %v3597 = vmul.f32 %v3588, %v3596
      %v3598 = vadd.f32 %v3597, 1.1283791
      %v3599 = vmul.f32 %v2658, %v3598
      %v3600 = vmul.f32 %v3588, 3.8918573e-05
      %v3601 = vadd.f32 %v3600, 0.001143296
      %v3602 = vmul.f32 %v3588, %v3601
      %v3603 = vadd.f32 %v3602, 0.014752088
      %v3604 = vmul.f32 %v3588, %v3603
      %v3605 = vadd.f32 %v3604, 0.112945676
      %v3606 = vmul.f32 %v3588, %v3605
      %v3607 = vadd.f32 %v3606, 0.4994258
      %v3608 = vmul.f32 %v3588, %v3607
      %v3609 = vadd.f32 %v3608, 1.0
      %v3610 = vrcp.pop %v3609
      %v3611 = vmul.f32 %v3609, %v3610
      %v3612 = vsub.f32 1.0, %v3611
      %v3613 = vmul.f32 %v3610, %v3612
      %v3614 = vadd.f32 %v3610, %v3613
      %vm3615 = vweird.f32 %v3609
      %vm3616 = vweird.f32 %v3610
      %vm3617 = vmor %vm3615, %vm3616
      %v3618 = vsel %vm3617, %v3610, %v3614
      %v3619 = vand.u32 2147483647, %v3609
      %vm3620 = vcmp.eq.f32.partialorder %v3619, 8.507059e+37
      %v3621 = vand.u32 %v3609, 2147483648
      %v3622 = vor.u32 1.1754944e-38, %v3621
      %v3623 = vsel %vm3620, %v3622, %v3618
      %v3624 = vmul.f32 %v3599, %v3623
      %v3625 = vmin.f32 %v3624, 1.0
      %v3626 = vmax.f32 %v3625, -1.0
      %v3627 = vmul.f32 %v2659, %v2659
      %v3628 = vmin.f32 16.0, %v3627
      %v3629 = vmul.f32 %v3628, 2.1237322e-06
      %v3630 = vadd.f32 %v3629, 0.00028619796
      %v3631 = vmul.f32 %v3628, %v3630
      %v3632 = vadd.f32 %v3631, 0.0036580483
      %v3633 = vmul.f32 %v3628, %v3632
      %v3634 = vadd.f32 %v3633, 0.05243302
      %v3635 = vmul.f32 %v3628, %v3634
      %v3636 = vadd.f32 %v3635, 0.18741608
      %v3637 = vmul.f32 %v3628, %v3636
      %v3638 = vadd.f32 %v3637, 1.1283791
      %v3639 = vmul.f32 %v2659, %v3638
      %v3640 = vmul.f32 %v3628, 3.8918573e-05
      %v3641 = vadd.f32 %v3640, 0.001143296
      %v3642 = vmul.f32 %v3628, %v3641
      %v3643 = vadd.f32 %v3642, 0.014752088
      %v3644 = vmul.f32 %v3628, %v3643
      %v3645 = vadd.f32 %v3644, 0.112945676
      %v3646 = vmul.f32 %v3628, %v3645
      %v3647 = vadd.f32 %v3646, 0.4994258
      %v3648 = vmul.f32 %v3628, %v3647
      %v3649 = vadd.f32 %v3648, 1.0
      %v3650 = vrcp.pop %v3649
      %v3651 = vmul.f32 %v3649, %v3650
      %v3652 = vsub.f32 1.0, %v3651
      %v3653 = vmul.f32 %v3650, %v3652
      %v3654 = vadd.f32 %v3650, %v3653
      %vm3655 = vweird.f32 %v3649
      %vm3656 = vweird.f32 %v3650
      %vm3657 = vmor %vm3655, %vm3656
      %v3658 = vsel %vm3657, %v3650, %v3654
      %v3659 = vand.u32 2147483647, %v3649
      %vm3660 = vcmp.eq.f32.partialorder %v3659, 8.507059e+37
      %v3661 = vand.u32 %v3649, 2147483648
      %v3662 = vor.u32 1.1754944e-38, %v3661
      %v3663 = vsel %vm3660, %v3662, %v3658
      %v3664 = vmul.f32 %v3639, %v3663
      %v3665 = vmin.f32 %v3664, 1.0
      %v3666 = vmax.f32 %v3665, -1.0
      %v3667 = vmul.f32 %v2660, %v2660
      %v3668 = vmin.f32 16.0, %v3667
      %v3669 = vmul.f32 %v3668, 2.1237322e-06
      %v3670 = vadd.f32 %v3669, 0.00028619796
      %v3671 = vmul.f32 %v3668, %v3670
      %v3672 = vadd.f32 %v3671, 0.0036580483
      %v3673 = vmul.f32 %v3668, %v3672
      %v3674 = vadd.f32 %v3673, 0.05243302
      %v3675 = vmul.f32 %v3668, %v3674
      %v3676 = vadd.f32 %v3675, 0.18741608
      %v3677 = vmul.f32 %v3668, %v3676
      %v3678 = vadd.f32 %v3677, 1.1283791
      %v3679 = vmul.f32 %v2660, %v3678
      %v3680 = vmul.f32 %v3668, 3.8918573e-05
      %v3681 = vadd.f32 %v3680, 0.001143296
      %v3682 = vmul.f32 %v3668, %v3681
      %v3683 = vadd.f32 %v3682, 0.014752088
      %v3684 = vmul.f32 %v3668, %v3683
      %v3685 = vadd.f32 %v3684, 0.112945676
      %v3686 = vmul.f32 %v3668, %v3685
      %v3687 = vadd.f32 %v3686, 0.4994258
      %v3688 = vmul.f32 %v3668, %v3687
      %v3689 = vadd.f32 %v3688, 1.0
      %v3690 = vrcp.pop %v3689
      %v3691 = vmul.f32 %v3689, %v3690
      %v3692 = vsub.f32 1.0, %v3691
      %v3693 = vmul.f32 %v3690, %v3692
      %v3694 = vadd.f32 %v3690, %v3693
      %vm3695 = vweird.f32 %v3689
      %vm3696 = vweird.f32 %v3690
      %vm3697 = vmor %vm3695, %vm3696
      %v3698 = vsel %vm3697, %v3690, %v3694
      %v3699 = vand.u32 2147483647, %v3689
      %vm3700 = vcmp.eq.f32.partialorder %v3699, 8.507059e+37
      %v3701 = vand.u32 %v3689, 2147483648
      %v3702 = vor.u32 1.1754944e-38, %v3701
      %v3703 = vsel %vm3700, %v3702, %v3698
      %v3704 = vmul.f32 %v3679, %v3703
      %v3705 = vmin.f32 %v3704, 1.0
      %v3706 = vmax.f32 %v3705, -1.0
      %v3707 = vmul.f32 %v2661, %v2661
      %v3708 = vmin.f32 16.0, %v3707
      %v3709 = vmul.f32 %v3708, 2.1237322e-06
      %v3710 = vadd.f32 %v3709, 0.00028619796
      %v3711 = vmul.f32 %v3708, %v3710
      %v3712 = vadd.f32 %v3711, 0.0036580483
      %v3713 = vmul.f32 %v3708, %v3712
      %v3714 = vadd.f32 %v3713, 0.05243302
      %v3715 = vmul.f32 %v3708, %v3714
      %v3716 = vadd.f32 %v3715, 0.18741608
      %v3717 = vmul.f32 %v3708, %v3716
      %v3718 = vadd.f32 %v3717, 1.1283791
      %v3719 = vmul.f32 %v2661, %v3718
      %v3720 = vmul.f32 %v3708, 3.8918573e-05
      %v3721 = vadd.f32 %v3720, 0.001143296
      %v3722 = vmul.f32 %v3708, %v3721
      %v3723 = vadd.f32 %v3722, 0.014752088
      %v3724 = vmul.f32 %v3708, %v3723
      %v3725 = vadd.f32 %v3724, 0.112945676
      %v3726 = vmul.f32 %v3708, %v3725
      %v3727 = vadd.f32 %v3726, 0.4994258
      %v3728 = vmul.f32 %v3708, %v3727
      %v3729 = vadd.f32 %v3728, 1.0
      %v3730 = vrcp.pop %v3729
      %v3731 = vmul.f32 %v3729, %v3730
      %v3732 = vsub.f32 1.0, %v3731
      %v3733 = vmul.f32 %v3730, %v3732
      %v3734 = vadd.f32 %v3730, %v3733
      %vm3735 = vweird.f32 %v3729
      %vm3736 = vweird.f32 %v3730
      %vm3737 = vmor %vm3735, %vm3736
      %v3738 = vsel %vm3737, %v3730, %v3734
      %v3739 = vand.u32 2147483647, %v3729
      %vm3740 = vcmp.eq.f32.partialorder %v3739, 8.507059e+37
      %v3741 = vand.u32 %v3729, 2147483648
      %v3742 = vor.u32 1.1754944e-38, %v3741
      %v3743 = vsel %vm3740, %v3742, %v3738
      %v3744 = vmul.f32 %v3719, %v3743
      %v3745 = vmin.f32 %v3744, 1.0
      %v3746 = vmax.f32 %v3745, -1.0
      %v3747 = vmul.f32 %v2662, %v2662
      %v3748 = vmin.f32 16.0, %v3747
      %v3749 = vmul.f32 %v3748, 2.1237322e-06
      %v3750 = vadd.f32 %v3749, 0.00028619796
      %v3751 = vmul.f32 %v3748, %v3750
      %v3752 = vadd.f32 %v3751, 0.0036580483
      %v3753 = vmul.f32 %v3748, %v3752
      %v3754 = vadd.f32 %v3753, 0.05243302
      %v3755 = vmul.f32 %v3748, %v3754
      %v3756 = vadd.f32 %v3755, 0.18741608
      %v3757 = vmul.f32 %v3748, %v3756
      %v3758 = vadd.f32 %v3757, 1.1283791
      %v3759 = vmul.f32 %v2662, %v3758
      %v3760 = vmul.f32 %v3748, 3.8918573e-05
      %v3761 = vadd.f32 %v3760, 0.001143296
      %v3762 = vmul.f32 %v3748, %v3761
      %v3763 = vadd.f32 %v3762, 0.014752088
      %v3764 = vmul.f32 %v3748, %v3763
      %v3765 = vadd.f32 %v3764, 0.112945676
      %v3766 = vmul.f32 %v3748, %v3765
      %v3767 = vadd.f32 %v3766, 0.4994258
      %v3768 = vmul.f32 %v3748, %v3767
      %v3769 = vadd.f32 %v3768, 1.0
      %v3770 = vrcp.pop %v3769
      %v3771 = vmul.f32 %v3769, %v3770
      %v3772 = vsub.f32 1.0, %v3771
      %v3773 = vmul.f32 %v3770, %v3772
      %v3774 = vadd.f32 %v3770, %v3773
      %vm3775 = vweird.f32 %v3769
      %vm3776 = vweird.f32 %v3770
      %vm3777 = vmor %vm3775, %vm3776
      %v3778 = vsel %vm3777, %v3770, %v3774
      %v3779 = vand.u32 2147483647, %v3769
      %vm3780 = vcmp.eq.f32.partialorder %v3779, 8.507059e+37
      %v3781 = vand.u32 %v3769, 2147483648
      %v3782 = vor.u32 1.1754944e-38, %v3781
      %v3783 = vsel %vm3780, %v3782, %v3778
      %v3784 = vmul.f32 %v3759, %v3783
      %v3785 = vmin.f32 %v3784, 1.0
      %v3786 = vmax.f32 %v3785, -1.0
      %v3787 = vmul.f32 %v2663, %v2663
      %v3788 = vmin.f32 16.0, %v3787
      %v3789 = vmul.f32 %v3788, 2.1237322e-06
      %v3790 = vadd.f32 %v3789, 0.00028619796
      %v3791 = vmul.f32 %v3788, %v3790
      %v3792 = vadd.f32 %v3791, 0.0036580483
      %v3793 = vmul.f32 %v3788, %v3792
      %v3794 = vadd.f32 %v3793, 0.05243302
      %v3795 = vmul.f32 %v3788, %v3794
      %v3796 = vadd.f32 %v3795, 0.18741608
      %v3797 = vmul.f32 %v3788, %v3796
      %v3798 = vadd.f32 %v3797, 1.1283791
      %v3799 = vmul.f32 %v2663, %v3798
      %v3800 = vmul.f32 %v3788, 3.8918573e-05
      %v3801 = vadd.f32 %v3800, 0.001143296
      %v3802 = vmul.f32 %v3788, %v3801
      %v3803 = vadd.f32 %v3802, 0.014752088
      %v3804 = vmul.f32 %v3788, %v3803
      %v3805 = vadd.f32 %v3804, 0.112945676
      %v3806 = vmul.f32 %v3788, %v3805
      %v3807 = vadd.f32 %v3806, 0.4994258
      %v3808 = vmul.f32 %v3788, %v3807
      %v3809 = vadd.f32 %v3808, 1.0
      %v3810 = vrcp.pop %v3809
      %v3811 = vmul.f32 %v3809, %v3810
      %v3812 = vsub.f32 1.0, %v3811
      %v3813 = vmul.f32 %v3810, %v3812
      %v3814 = vadd.f32 %v3810, %v3813
      %vm3815 = vweird.f32 %v3809
      %vm3816 = vweird.f32 %v3810
      %vm3817 = vmor %vm3815, %vm3816
      %v3818 = vsel %vm3817, %v3810, %v3814
      %v3819 = vand.u32 2147483647, %v3809
      %vm3820 = vcmp.eq.f32.partialorder %v3819, 8.507059e+37
      %v3821 = vand.u32 %v3809, 2147483648
      %v3822 = vor.u32 1.1754944e-38, %v3821
      %v3823 = vsel %vm3820, %v3822, %v3818
      %v3824 = vmul.f32 %v3799, %v3823
      %v3825 = vmin.f32 %v3824, 1.0
      %v3826 = vmax.f32 %v3825, -1.0
      %v3827 = vmul.f32 %v2664, %v2664
      %v3828 = vmin.f32 16.0, %v3827
      %v3829 = vmul.f32 %v3828, 2.1237322e-06
      %v3830 = vadd.f32 %v3829, 0.00028619796
      %v3831 = vmul.f32 %v3828, %v3830
      %v3832 = vadd.f32 %v3831, 0.0036580483
      %v3833 = vmul.f32 %v3828, %v3832
      %v3834 = vadd.f32 %v3833, 0.05243302
      %v3835 = vmul.f32 %v3828, %v3834
      %v3836 = vadd.f32 %v3835, 0.18741608
      %v3837 = vmul.f32 %v3828, %v3836
      %v3838 = vadd.f32 %v3837, 1.1283791
      %v3839 = vmul.f32 %v2664, %v3838
      %v3840 = vmul.f32 %v3828, 3.8918573e-05
      %v3841 = vadd.f32 %v3840, 0.001143296
      %v3842 = vmul.f32 %v3828, %v3841
      %v3843 = vadd.f32 %v3842, 0.014752088
      %v3844 = vmul.f32 %v3828, %v3843
      %v3845 = vadd.f32 %v3844, 0.112945676
      %v3846 = vmul.f32 %v3828, %v3845
      %v3847 = vadd.f32 %v3846, 0.4994258
      %v3848 = vmul.f32 %v3828, %v3847
      %v3849 = vadd.f32 %v3848, 1.0
      %v3850 = vrcp.pop %v3849
      %v3851 = vmul.f32 %v3849, %v3850
      %v3852 = vsub.f32 1.0, %v3851
      %v3853 = vmul.f32 %v3850, %v3852
      %v3854 = vadd.f32 %v3850, %v3853
      %vm3855 = vweird.f32 %v3849
      %vm3856 = vweird.f32 %v3850
      %vm3857 = vmor %vm3855, %vm3856
      %v3858 = vsel %vm3857, %v3850, %v3854
      %v3859 = vand.u32 2147483647, %v3849
      %vm3860 = vcmp.eq.f32.partialorder %v3859, 8.507059e+37
      %v3861 = vand.u32 %v3849, 2147483648
      %v3862 = vor.u32 1.1754944e-38, %v3861
      %v3863 = vsel %vm3860, %v3862, %v3858
      %v3864 = vmul.f32 %v3839, %v3863
      %v3865 = vmin.f32 %v3864, 1.0
      %v3866 = vmax.f32 %v3865, -1.0
      %v3867 = vmul.f32 %v2665, %v2665
      %v3868 = vmin.f32 16.0, %v3867
      %v3869 = vmul.f32 %v3868, 2.1237322e-06
      %v3870 = vadd.f32 %v3869, 0.00028619796
      %v3871 = vmul.f32 %v3868, %v3870
      %v3872 = vadd.f32 %v3871, 0.0036580483
      %v3873 = vmul.f32 %v3868, %v3872
      %v3874 = vadd.f32 %v3873, 0.05243302
      %v3875 = vmul.f32 %v3868, %v3874
      %v3876 = vadd.f32 %v3875, 0.18741608
      %v3877 = vmul.f32 %v3868, %v3876
      %v3878 = vadd.f32 %v3877, 1.1283791
      %v3879 = vmul.f32 %v2665, %v3878
      %v3880 = vmul.f32 %v3868, 3.8918573e-05
      %v3881 = vadd.f32 %v3880, 0.001143296
      %v3882 = vmul.f32 %v3868, %v3881
      %v3883 = vadd.f32 %v3882, 0.014752088
      %v3884 = vmul.f32 %v3868, %v3883
      %v3885 = vadd.f32 %v3884, 0.112945676
      %v3886 = vmul.f32 %v3868, %v3885
      %v3887 = vadd.f32 %v3886, 0.4994258
      %v3888 = vmul.f32 %v3868, %v3887
      %v3889 = vadd.f32 %v3888, 1.0
      %v3890 = vrcp.pop %v3889
      %v3891 = vmul.f32 %v3889, %v3890
      %v3892 = vsub.f32 1.0, %v3891
      %v3893 = vmul.f32 %v3890, %v3892
      %v3894 = vadd.f32 %v3890, %v3893
      %vm3895 = vweird.f32 %v3889
      %vm3896 = vweird.f32 %v3890
      %vm3897 = vmor %vm3895, %vm3896
      %v3898 = vsel %vm3897, %v3890, %v3894
      %v3899 = vand.u32 2147483647, %v3889
      %vm3900 = vcmp.eq.f32.partialorder %v3899, 8.507059e+37
      %v3901 = vand.u32 %v3889, 2147483648
      %v3902 = vor.u32 1.1754944e-38, %v3901
      %v3903 = vsel %vm3900, %v3902, %v3898
      %v3904 = vmul.f32 %v3879, %v3903
      %v3905 = vmin.f32 %v3904, 1.0
      %v3906 = vmax.f32 %v3905, -1.0
      %v3907 = vmul.f32 %v2666, %v2666
      %v3908 = vmin.f32 16.0, %v3907
      %v3909 = vmul.f32 %v3908, 2.1237322e-06
      %v3910 = vadd.f32 %v3909, 0.00028619796
      %v3911 = vmul.f32 %v3908, %v3910
      %v3912 = vadd.f32 %v3911, 0.0036580483
      %v3913 = vmul.f32 %v3908, %v3912
      %v3914 = vadd.f32 %v3913, 0.05243302
      %v3915 = vmul.f32 %v3908, %v3914
      %v3916 = vadd.f32 %v3915, 0.18741608
      %v3917 = vmul.f32 %v3908, %v3916
      %v3918 = vadd.f32 %v3917, 1.1283791
      %v3919 = vmul.f32 %v2666, %v3918
      %v3920 = vmul.f32 %v3908, 3.8918573e-05
      %v3921 = vadd.f32 %v3920, 0.001143296
      %v3922 = vmul.f32 %v3908, %v3921
      %v3923 = vadd.f32 %v3922, 0.014752088
      %v3924 = vmul.f32 %v3908, %v3923
      %v3925 = vadd.f32 %v3924, 0.112945676
      %v3926 = vmul.f32 %v3908, %v3925
      %v3927 = vadd.f32 %v3926, 0.4994258
      %v3928 = vmul.f32 %v3908, %v3927
      %v3929 = vadd.f32 %v3928, 1.0
      %v3930 = vrcp.pop %v3929
      %v3931 = vmul.f32 %v3929, %v3930
      %v3932 = vsub.f32 1.0, %v3931
      %v3933 = vmul.f32 %v3930, %v3932
      %v3934 = vadd.f32 %v3930, %v3933
      %vm3935 = vweird.f32 %v3929
      %vm3936 = vweird.f32 %v3930
      %vm3937 = vmor %vm3935, %vm3936
      %v3938 = vsel %vm3937, %v3930, %v3934
      %v3939 = vand.u32 2147483647, %v3929
      %vm3940 = vcmp.eq.f32.partialorder %v3939, 8.507059e+37
      %v3941 = vand.u32 %v3929, 2147483648
      %v3942 = vor.u32 1.1754944e-38, %v3941
      %v3943 = vsel %vm3940, %v3942, %v3938
      %v3944 = vmul.f32 %v3919, %v3943
      %v3945 = vmin.f32 %v3944, 1.0
      %v3946 = vmax.f32 %v3945, -1.0
      %v3947 = vadd.f32 %v2706, 1.0
      %v3948 = vadd.f32 %v2746, 1.0
      %v3949 = vadd.f32 %v2786, 1.0
      %v3950 = vadd.f32 %v2826, 1.0
      %v3951 = vadd.f32 %v2866, 1.0
      %v3952 = vadd.f32 %v2906, 1.0
      %v3953 = vadd.f32 %v2946, 1.0
      %v3954 = vadd.f32 %v2986, 1.0
      %v3955 = vadd.f32 %v3026, 1.0
      %v3956 = vadd.f32 %v3066, 1.0
      %v3957 = vadd.f32 %v3106, 1.0
      %v3958 = vadd.f32 %v3146, 1.0
      %v3959 = vadd.f32 %v3186, 1.0
      %v3960 = vadd.f32 %v3226, 1.0
      %v3961 = vadd.f32 %v3266, 1.0
      %v3962 = vadd.f32 %v3306, 1.0
      %v3963 = vadd.f32 %v3346, 1.0
      %v3964 = vadd.f32 %v3386, 1.0
      %v3965 = vadd.f32 %v3426, 1.0
      %v3966 = vadd.f32 %v3466, 1.0
      %v3967 = vadd.f32 %v3506, 1.0
      %v3968 = vadd.f32 %v3546, 1.0
      %v3969 = vadd.f32 %v3586, 1.0
      %v3970 = vadd.f32 %v3626, 1.0
      %v3971 = vadd.f32 %v3666, 1.0
      %v3972 = vadd.f32 %v3706, 1.0
      %v3973 = vadd.f32 %v3746, 1.0
      %v3974 = vadd.f32 %v3786, 1.0
      %v3975 = vadd.f32 %v3826, 1.0
      %v3976 = vadd.f32 %v3866, 1.0
      %v3977 = vadd.f32 %v3906, 1.0
      %v3978 = vadd.f32 %v3946, 1.0
      %v3979 = vmul.f32 %v2603, %v3947
      %v3980 = vmul.f32 %v2604, %v3948
      %v3981 = vmul.f32 %v2605, %v3949
      %v3982 = vmul.f32 %v2606, %v3950
      %v3983 = vmul.f32 %v2607, %v3951
      %v3984 = vmul.f32 %v2608, %v3952
      %v3985 = vmul.f32 %v2609, %v3953
      %v3986 = vmul.f32 %v2610, %v3954
      %v3987 = vmul.f32 %v2611, %v3955
      %v3988 = vmul.f32 %v2612, %v3956
      %v3989 = vmul.f32 %v2613, %v3957
      %v3990 = vmul.f32 %v2614, %v3958
      %v3991 = vmul.f32 %v2615, %v3959
      %v3992 = vmul.f32 %v2616, %v3960
      %v3993 = vmul.f32 %v2617, %v3961
      %v3994 = vmul.f32 %v2618, %v3962
      %v3995 = vmul.f32 %v2619, %v3963
      %v3996 = vmul.f32 %v2620, %v3964
      %v3997 = vmul.f32 %v2621, %v3965
      %v3998 = vmul.f32 %v2622, %v3966
      %v3999 = vmul.f32 %v2623, %v3967
      %v4000 = vmul.f32 %v2624, %v3968
      %v4001 = vmul.f32 %v2625, %v3969
      %v4002 = vmul.f32 %v2626, %v3970
      %v4003 = vmul.f32 %v2627, %v3971
      %v4004 = vmul.f32 %v2628, %v3972
      %v4005 = vmul.f32 %v2629, %v3973
      %v4006 = vmul.f32 %v2630, %v3974
      %v4007 = vmul.f32 %v2631, %v3975
      %v4008 = vmul.f32 %v2632, %v3976
      %v4009 = vmul.f32 %v2633, %v3977
      %v4010 = vmul.f32 %v2634, %v3978
      %s4011 = scalar_lea.vmem [#allocation4], 24
      %4012 = vst.msk [vmem:[%s4011 + $0x1] sm:$0xff] %vm2285, %v3979
      %4013 = vst.msk [vmem:[%s4011 + $0x9] sm:$0xff] %vm2285, %v3980
      %4014 = vst.msk [vmem:[%s4011 + $0x19] sm:$0xff] %vm2285, %v3981
      %4015 = vst.msk [vmem:[%s4011 + $0x21] sm:$0xff] %vm2285, %v3982
      %4016 = vst.msk [vmem:[%s4011 + $0x31] sm:$0xff] %vm2285, %v3983
      %4017 = vst.msk [vmem:[%s4011 + $0x39] sm:$0xff] %vm2285, %v3984
      %4018 = vst.msk [vmem:[%s4011 + $0x49] sm:$0xff] %vm2285, %v3985
      %4019 = vst.msk [vmem:[%s4011 + $0x51] sm:$0xff] %vm2285, %v3986
      %4020 = vst.msk [vmem:[%s4011 + $0x61] sm:$0xff] %vm2285, %v3987
      %4021 = vst.msk [vmem:[%s4011 + $0x69] sm:$0xff] %vm2285, %v3988
      %4022 = vst.msk [vmem:[%s4011 + $0x79] sm:$0xff] %vm2285, %v3989
      %4023 = vst.msk [vmem:[%s4011 + $0x81] sm:$0xff] %vm2285, %v3990
      %4024 = vst.msk [vmem:[%s4011 + $0x91] sm:$0xff] %vm2285, %v3991
      %4025 = vst.msk [vmem:[%s4011 + $0x99] sm:$0xff] %vm2285, %v3992
      %4026 = vst.msk [vmem:[%s4011 + $0xa9] sm:$0xff] %vm2285, %v3993
      %4027 = vst.msk [vmem:[%s4011 + $0xb1] sm:$0xff] %vm2285, %v3994
      %4028 = vst.msk [vmem:[%s4011 + $0xc1] sm:$0xff] %vm2285, %v3995
      %4029 = vst.msk [vmem:[%s4011 + $0xc9] sm:$0xff] %vm2285, %v3996
      %4030 = vst.msk [vmem:[%s4011 + $0xd9] sm:$0xff] %vm2285, %v3997
      %4031 = vst.msk [vmem:[%s4011 + $0xe1] sm:$0xff] %vm2285, %v3998
      %4032 = vst.msk [vmem:[%s4011 + $0xf1] sm:$0xff] %vm2285, %v3999
      %4033 = vst.msk [vmem:[%s4011 + $0xf9] sm:$0xff] %vm2285, %v4000
      %4034 = vst.msk [vmem:[%s4011 + $0x109] sm:$0xff] %vm2285, %v4001
      %4035 = vst.msk [vmem:[%s4011 + $0x111] sm:$0xff] %vm2285, %v4002
      %4036 = vst.msk [vmem:[%s4011 + $0x121] sm:$0xff] %vm2285, %v4003
      %4037 = vst.msk [vmem:[%s4011 + $0x129] sm:$0xff] %vm2285, %v4004
      %4038 = vst.msk [vmem:[%s4011 + $0x139] sm:$0xff] %vm2285, %v4005
      %4039 = vst.msk [vmem:[%s4011 + $0x141] sm:$0xff] %vm2285, %v4006
      %4040 = vst.msk [vmem:[%s4011 + $0x151] sm:$0xff] %vm2285, %v4007
      %4041 = vst.msk [vmem:[%s4011 + $0x159] sm:$0xff] %vm2285, %v4008
      %4042 = vst.msk [vmem:[%s4011 + $0x169] sm:$0xff] %vm2285, %v4009
      %4043 = vst.msk [vmem:[%s4011 + $0x171] sm:$0xff] %vm2285, %v4010
      %4044 = vst.msk [vmem:[#allocation4 + $0x1] sm:$0xff] %vm2285, %v3981
      %4045 = vst.msk [vmem:[#allocation4 + $0x9] sm:$0xff] %vm2285, %v3982
      %s4046 = scalar_lea.vmem [#allocation4], 408
      %4047 = vst.msk [vmem:[%s4046 + $0x1] sm:$0xff] %vm2285, %v4007
      %4048 = vst.msk [vmem:[%s4046 + $0x9] sm:$0xff] %vm2285, %v4008
      %v4049 = vld [vmem:[#allocation4 + $0x2] sm:$0x1]
      %v4050 = vld [vmem:[#allocation4 + $0x1a] sm:$0x1]
      %v4051 = vld [vmem:[#allocation4 + $0x32] sm:$0x1]
      %v4052 = vld [vmem:[#allocation4 + $0x4a] sm:$0x1]
      %v4053 = vld [vmem:[#allocation4 + $0x62] sm:$0x1]
      %v4054 = vld [vmem:[#allocation4 + $0x7a] sm:$0x1]
      %v4055 = vld [vmem:[#allocation4 + $0x92] sm:$0x1]
      %v4056 = vld [vmem:[#allocation4 + $0xaa] sm:$0x1]
      %v4057 = vld [vmem:[#allocation4 + $0xc2] sm:$0x1]
      %v4058 = vld [vmem:[#allocation4 + $0xda] sm:$0x1]
      %v4059 = vld [vmem:[#allocation4 + $0xf2] sm:$0x1]
      %v4060 = vld [vmem:[#allocation4 + $0x10a] sm:$0x1]
      %v4061 = vld [vmem:[#allocation4 + $0x122] sm:$0x1]
      %v4062 = vld [vmem:[#allocation4 + $0x13a] sm:$0x1]
      %v4063 = vld [vmem:[#allocation4 + $0x152] sm:$0x1]
      %v4064 = vld [vmem:[#allocation4 + $0x16a] sm:$0x1]
      %v4065 = vld [vmem:[#allocation4 + $0x182] sm:$0x1]
      %v4066 = vld [vmem:[#allocation4 + $0x19a] sm:$0x1]
      %vm4067 = vcmask 253952
      %4068 = vst.msk [vmem:[#allocation4] sm:$0x1] %vm4067, %v4049
      %4069 = vst.msk [vmem:[#allocation4 + $0x18] sm:$0x1] %vm4067, %v4050
      %4070 = vst.msk [vmem:[#allocation4 + $0x30] sm:$0x1] %vm4067, %v4051
      %4071 = vst.msk [vmem:[#allocation4 + $0x48] sm:$0x1] %vm4067, %v4052
      %4072 = vst.msk [vmem:[#allocation4 + $0x60] sm:$0x1] %vm4067, %v4053
      %4073 = vst.msk [vmem:[#allocation4 + $0x78] sm:$0x1] %vm4067, %v4054
      %4074 = vst.msk [vmem:[#allocation4 + $0x90] sm:$0x1] %vm4067, %v4055
      %4075 = vst.msk [vmem:[#allocation4 + $0xa8] sm:$0x1] %vm4067, %v4056
      %4076 = vst.msk [vmem:[#allocation4 + $0xc0] sm:$0x1] %vm4067, %v4057
      %4077 = vst.msk [vmem:[#allocation4 + $0xd8] sm:$0x1] %vm4067, %v4058
      %4078 = vst.msk [vmem:[#allocation4 + $0xf0] sm:$0x1] %vm4067, %v4059
      %4079 = vst.msk [vmem:[#allocation4 + $0x108] sm:$0x1] %vm4067, %v4060
      %4080 = vst.msk [vmem:[#allocation4 + $0x120] sm:$0x1] %vm4067, %v4061
      %4081 = vst.msk [vmem:[#allocation4 + $0x138] sm:$0x1] %vm4067, %v4062
      %4082 = vst.msk [vmem:[#allocation4 + $0x150] sm:$0x1] %vm4067, %v4063
      %4083 = vst.msk [vmem:[#allocation4 + $0x168] sm:$0x1] %vm4067, %v4064
      %4084 = vst.msk [vmem:[#allocation4 + $0x180] sm:$0x1] %vm4067, %v4065
      %4085 = vst.msk [vmem:[#allocation4 + $0x198] sm:$0x1] %vm4067, %v4066
      %v4086 = vld [vmem:[#allocation4 + $0xf] sm:$0x1]
      %v4087 = vld [vmem:[#allocation4 + $0x27] sm:$0x1]
      %v4088 = vld [vmem:[#allocation4 + $0x3f] sm:$0x1]
      %v4089 = vld [vmem:[#allocation4 + $0x57] sm:$0x1]
      %v4090 = vld [vmem:[#allocation4 + $0x6f] sm:$0x1]
      %v4091 = vld [vmem:[#allocation4 + $0x87] sm:$0x1]
      %v4092 = vld [vmem:[#allocation4 + $0x9f] sm:$0x1]
      %v4093 = vld [vmem:[#allocation4 + $0xb7] sm:$0x1]
      %v4094 = vld [vmem:[#allocation4 + $0xcf] sm:$0x1]
      %v4095 = vld [vmem:[#allocation4 + $0xe7] sm:$0x1]
      %v4096 = vld [vmem:[#allocation4 + $0xff] sm:$0x1]
      %v4097 = vld [vmem:[#allocation4 + $0x117] sm:$0x1]
      %v4098 = vld [vmem:[#allocation4 + $0x12f] sm:$0x1]
      %v4099 = vld [vmem:[#allocation4 + $0x147] sm:$0x1]
      %v4100 = vld [vmem:[#allocation4 + $0x15f] sm:$0x1]
      %v4101 = vld [vmem:[#allocation4 + $0x177] sm:$0x1]
      %v4102 = vld [vmem:[#allocation4 + $0x18f] sm:$0x1]
      %v4103 = vld [vmem:[#allocation4 + $0x1a7] sm:$0x1]
      %4104 = vst.msk [vmem:[#allocation4 + $0x11] sm:$0x1] %vm4067, %v4086
      %4105 = vst.msk [vmem:[#allocation4 + $0x29] sm:$0x1] %vm4067, %v4087
      %4106 = vst.msk [vmem:[#allocation4 + $0x41] sm:$0x1] %vm4067, %v4088
      %4107 = vst.msk [vmem:[#allocation4 + $0x59] sm:$0x1] %vm4067, %v4089
      %4108 = vst.msk [vmem:[#allocation4 + $0x71] sm:$0x1] %vm4067, %v4090
      %4109 = vst.msk [vmem:[#allocation4 + $0x89] sm:$0x1] %vm4067, %v4091
      %4110 = vst.msk [vmem:[#allocation4 + $0xa1] sm:$0x1] %vm4067, %v4092
      %4111 = vst.msk [vmem:[#allocation4 + $0xb9] sm:$0x1] %vm4067, %v4093
      %4112 = vst.msk [vmem:[#allocation4 + $0xd1] sm:$0x1] %vm4067, %v4094
      %4113 = vst.msk [vmem:[#allocation4 + $0xe9] sm:$0x1] %vm4067, %v4095
      %4114 = vst.msk [vmem:[#allocation4 + $0x101] sm:$0x1] %vm4067, %v4096
      %4115 = vst.msk [vmem:[#allocation4 + $0x119] sm:$0x1] %vm4067, %v4097
      %4116 = vst.msk [vmem:[#allocation4 + $0x131] sm:$0x1] %vm4067, %v4098
      %4117 = vst.msk [vmem:[#allocation4 + $0x149] sm:$0x1] %vm4067, %v4099
      %4118 = vst.msk [vmem:[#allocation4 + $0x161] sm:$0x1] %vm4067, %v4100
      %4119 = vst.msk [vmem:[#allocation4 + $0x179] sm:$0x1] %vm4067, %v4101
      %4120 = vst.msk [vmem:[#allocation4 + $0x191] sm:$0x1] %vm4067, %v4102
      %4121 = vst.msk [vmem:[#allocation4 + $0x1a9] sm:$0x1] %vm4067, %v4103
      %v4122 = vld [vmem:[#allocation4] sm:$0xff]
      %v4123 = vld [vmem:[#allocation4 + $0x8] sm:$0xff]
      %v4124 = vld [vmem:[#allocation4 + $0x18] sm:$0xff]
      %v4125 = vld [vmem:[#allocation4 + $0x20] sm:$0xff]
      %v4126 = vld [vmem:[#allocation4 + $0x30] sm:$0xff]
      %v4127 = vld [vmem:[#allocation4 + $0x38] sm:$0xff]
      %v4128 = vld [vmem:[#allocation4 + $0x48] sm:$0xff]
      %v4129 = vld [vmem:[#allocation4 + $0x50] sm:$0xff]
      %v4130 = vld [vmem:[#allocation4 + $0x60] sm:$0xff]
      %v4131 = vld [vmem:[#allocation4 + $0x68] sm:$0xff]
      %v4132 = vld [vmem:[#allocation4 + $0x78] sm:$0xff]
      %v4133 = vld [vmem:[#allocation4 + $0x80] sm:$0xff]
      %v4134 = vld [vmem:[#allocation4 + $0x90] sm:$0xff]
      %v4135 = vld [vmem:[#allocation4 + $0x98] sm:$0xff]
      %v4136 = vld [vmem:[#allocation4 + $0xa8] sm:$0xff]
      %v4137 = vld [vmem:[#allocation4 + $0xb0] sm:$0xff]
      %v4138 = vld [vmem:[#allocation4 + $0xc0] sm:$0xff]
      %v4139 = vld [vmem:[#allocation4 + $0xc8] sm:$0xff]
      %v4140 = vld [vmem:[#allocation4 + $0xd8] sm:$0xff]
      %v4141 = vld [vmem:[#allocation4 + $0xe0] sm:$0xff]
      %v4142 = vld [vmem:[#allocation4 + $0xf0] sm:$0xff]
      %v4143 = vld [vmem:[#allocation4 + $0xf8] sm:$0xff]
      %v4144 = vld [vmem:[#allocation4 + $0x108] sm:$0xff]
      %v4145 = vld [vmem:[#allocation4 + $0x110] sm:$0xff]
      %v4146 = vld [vmem:[#allocation4 + $0x120] sm:$0xff]
      %v4147 = vld [vmem:[#allocation4 + $0x128] sm:$0xff]
      %v4148 = vld [vmem:[#allocation4 + $0x138] sm:$0xff]
      %v4149 = vld [vmem:[#allocation4 + $0x140] sm:$0xff]
      %v4150 = vld [vmem:[#allocation4 + $0x150] sm:$0xff]
      %v4151 = vld [vmem:[#allocation4 + $0x158] sm:$0xff]
      %v4152 = vld [vmem:[#allocation4 + $0x168] sm:$0xff]
      %v4153 = vld [vmem:[#allocation4 + $0x170] sm:$0xff]
      %4154 = vst.msk [vmem:[#allocation5] sm:$0xff] %vm2285, %v4122
      %4155 = vst.msk [vmem:[#allocation5 + $0x18] sm:$0xff] %vm2285, %v4123
      %4156 = vst.msk [vmem:[#allocation5 + $0x30] sm:$0xff] %vm2285, %v4124
      %4157 = vst.msk [vmem:[#allocation5 + $0x48] sm:$0xff] %vm2285, %v4125
      %4158 = vst.msk [vmem:[#allocation5 + $0x60] sm:$0xff] %vm2285, %v4126
      %4159 = vst.msk [vmem:[#allocation5 + $0x78] sm:$0xff] %vm2285, %v4127
      %4160 = vst.msk [vmem:[#allocation5 + $0x90] sm:$0xff] %vm2285, %v4128
      %4161 = vst.msk [vmem:[#allocation5 + $0xa8] sm:$0xff] %vm2285, %v4129
      %4162 = vst.msk [vmem:[#allocation5 + $0xc0] sm:$0xff] %vm2285, %v4130
      %4163 = vst.msk [vmem:[#allocation5 + $0xd8] sm:$0xff] %vm2285, %v4131
      %4164 = vst.msk [vmem:[#allocation5 + $0xf0] sm:$0xff] %vm2285, %v4132
      %4165 = vst.msk [vmem:[#allocation5 + $0x108] sm:$0xff] %vm2285, %v4133
      %4166 = vst.msk [vmem:[#allocation5 + $0x120] sm:$0xff] %vm2285, %v4134
      %4167 = vst.msk [vmem:[#allocation5 + $0x138] sm:$0xff] %vm2285, %v4135
      %4168 = vst.msk [vmem:[#allocation5 + $0x150] sm:$0xff] %vm2285, %v4136
      %4169 = vst.msk [vmem:[#allocation5 + $0x168] sm:$0xff] %vm2285, %v4137
      %4170 = vst.msk [vmem:[#allocation5 + $0x180] sm:$0xff] %vm2285, %v4138
      %4171 = vst.msk [vmem:[#allocation5 + $0x198] sm:$0xff] %vm2285, %v4139
      %4172 = vst.msk [vmem:[#allocation5 + $0x1b0] sm:$0xff] %vm2285, %v4140
      %4173 = vst.msk [vmem:[#allocation5 + $0x1c8] sm:$0xff] %vm2285, %v4141
      %4174 = vst.msk [vmem:[#allocation5 + $0x1e0] sm:$0xff] %vm2285, %v4142
      %4175 = vst.msk [vmem:[#allocation5 + $0x1f8] sm:$0xff] %vm2285, %v4143
      %4176 = vst.msk [vmem:[#allocation5 + $0x210] sm:$0xff] %vm2285, %v4144
      %4177 = vst.msk [vmem:[#allocation5 + $0x228] sm:$0xff] %vm2285, %v4145
      %4178 = vst.msk [vmem:[#allocation5 + $0x240] sm:$0xff] %vm2285, %v4146
      %4179 = vst.msk [vmem:[#allocation5 + $0x258] sm:$0xff] %vm2285, %v4147
      %4180 = vst.msk [vmem:[#allocation5 + $0x270] sm:$0xff] %vm2285, %v4148
      %4181 = vst.msk [vmem:[#allocation5 + $0x288] sm:$0xff] %vm2285, %v4149
      %4182 = vst.msk [vmem:[#allocation5 + $0x2a0] sm:$0xff] %vm2285, %v4150
      %4183 = vst.msk [vmem:[#allocation5 + $0x2b8] sm:$0xff] %vm2285, %v4151
      %4184 = vst.msk [vmem:[#allocation5 + $0x2d0] sm:$0xff] %vm2285, %v4152
      %4185 = vst.msk [vmem:[#allocation5 + $0x2e8] sm:$0xff] %vm2285, %v4153
      %v4186 = vld [vmem:[#allocation4 + $0x1] sm:$0xff]
      %v4187 = vld [vmem:[#allocation4 + $0x9] sm:$0xff]
      %v4188 = vld [vmem:[#allocation4 + $0x19] sm:$0xff]
      %v4189 = vld [vmem:[#allocation4 + $0x21] sm:$0xff]
      %v4190 = vld [vmem:[#allocation4 + $0x31] sm:$0xff]
      %v4191 = vld [vmem:[#allocation4 + $0x39] sm:$0xff]
      %v4192 = vld [vmem:[#allocation4 + $0x49] sm:$0xff]
      %v4193 = vld [vmem:[#allocation4 + $0x51] sm:$0xff]
      %v4194 = vld [vmem:[#allocation4 + $0x61] sm:$0xff]
      %v4195 = vld [vmem:[#allocation4 + $0x69] sm:$0xff]
      %v4196 = vld [vmem:[#allocation4 + $0x79] sm:$0xff]
      %v4197 = vld [vmem:[#allocation4 + $0x81] sm:$0xff]
      %v4198 = vld [vmem:[#allocation4 + $0x91] sm:$0xff]
      %v4199 = vld [vmem:[#allocation4 + $0x99] sm:$0xff]
      %v4200 = vld [vmem:[#allocation4 + $0xa9] sm:$0xff]
      %v4201 = vld [vmem:[#allocation4 + $0xb1] sm:$0xff]
      %v4202 = vld [vmem:[#allocation4 + $0xc1] sm:$0xff]
      %v4203 = vld [vmem:[#allocation4 + $0xc9] sm:$0xff]
      %v4204 = vld [vmem:[#allocation4 + $0xd9] sm:$0xff]
      %v4205 = vld [vmem:[#allocation4 + $0xe1] sm:$0xff]
      %v4206 = vld [vmem:[#allocation4 + $0xf1] sm:$0xff]
      %v4207 = vld [vmem:[#allocation4 + $0xf9] sm:$0xff]
      %v4208 = vld [vmem:[#allocation4 + $0x109] sm:$0xff]
      %v4209 = vld [vmem:[#allocation4 + $0x111] sm:$0xff]
      %v4210 = vld [vmem:[#allocation4 + $0x121] sm:$0xff]
      %v4211 = vld [vmem:[#allocation4 + $0x129] sm:$0xff]
      %v4212 = vld [vmem:[#allocation4 + $0x139] sm:$0xff]
      %v4213 = vld [vmem:[#allocation4 + $0x141] sm:$0xff]
      %v4214 = vld [vmem:[#allocation4 + $0x151] sm:$0xff]
      %v4215 = vld [vmem:[#allocation4 + $0x159] sm:$0xff]
      %v4216 = vld [vmem:[#allocation4 + $0x169] sm:$0xff]
      %v4217 = vld [vmem:[#allocation4 + $0x171] sm:$0xff]
      %4250 = vrot.lane.b32.xlu0 %v4186, 32
      %v4251 = vpop.permute.xlu0 %4250
      %4252 = vrot.lane.b32.xlu0 %v4187, 32
      %v4253 = vpop.permute.xlu0 %4252
      %4254 = vrot.lane.b32.xlu0 %v4188, 32
      %v4255 = vpop.permute.xlu0 %4254
      %4256 = vrot.lane.b32.xlu0 %v4189, 32
      %v4257 = vpop.permute.xlu0 %4256
      %4258 = vrot.lane.b32.xlu0 %v4190, 32
      %v4259 = vpop.permute.xlu0 %4258
      %4260 = vrot.lane.b32.xlu0 %v4191, 32
      %v4261 = vpop.permute.xlu0 %4260
      %4262 = vrot.lane.b32.xlu0 %v4192, 32
      %v4263 = vpop.permute.xlu0 %4262
      %4264 = vrot.lane.b32.xlu0 %v4193, 32
      %v4265 = vpop.permute.xlu0 %4264
      %4266 = vrot.lane.b32.xlu0 %v4194, 32
      %v4267 = vpop.permute.xlu0 %4266
      %4268 = vrot.lane.b32.xlu0 %v4195, 32
      %v4269 = vpop.permute.xlu0 %4268
      %4270 = vrot.lane.b32.xlu0 %v4196, 32
      %v4271 = vpop.permute.xlu0 %4270
      %4272 = vrot.lane.b32.xlu0 %v4197, 32
      %v4273 = vpop.permute.xlu0 %4272
      %4274 = vrot.lane.b32.xlu0 %v4198, 32
      %v4275 = vpop.permute.xlu0 %4274
      %4276 = vrot.lane.b32.xlu0 %v4199, 32
      %v4277 = vpop.permute.xlu0 %4276
      %4278 = vrot.lane.b32.xlu0 %v4200, 32
      %v4279 = vpop.permute.xlu0 %4278
      %4280 = vrot.lane.b32.xlu0 %v4201, 32
      %v4281 = vpop.permute.xlu0 %4280
      %4282 = vrot.lane.b32.xlu0 %v4202, 32
      %v4283 = vpop.permute.xlu0 %4282
      %4284 = vrot.lane.b32.xlu0 %v4203, 32
      %v4285 = vpop.permute.xlu0 %4284
      %4286 = vrot.lane.b32.xlu0 %v4204, 32
      %v4287 = vpop.permute.xlu0 %4286
      %4288 = vrot.lane.b32.xlu0 %v4205, 32
      %v4289 = vpop.permute.xlu0 %4288
      %4290 = vrot.lane.b32.xlu0 %v4206, 32
      %v4291 = vpop.permute.xlu0 %4290
      %4292 = vrot.lane.b32.xlu0 %v4207, 32
      %v4293 = vpop.permute.xlu0 %4292
      %4294 = vrot.lane.b32.xlu0 %v4208, 32
      %v4295 = vpop.permute.xlu0 %4294
      %4296 = vrot.lane.b32.xlu0 %v4209, 32
      %v4297 = vpop.permute.xlu0 %4296
      %4298 = vrot.lane.b32.xlu0 %v4210, 32
      %v4299 = vpop.permute.xlu0 %4298
      %4300 = vrot.lane.b32.xlu0 %v4211, 32
      %v4301 = vpop.permute.xlu0 %4300
      %4302 = vrot.lane.b32.xlu0 %v4212, 32
      %v4303 = vpop.permute.xlu0 %4302
      %4304 = vrot.lane.b32.xlu0 %v4213, 32
      %v4305 = vpop.permute.xlu0 %4304
      %4306 = vrot.lane.b32.xlu0 %v4214, 32
      %v4307 = vpop.permute.xlu0 %4306
      %4308 = vrot.lane.b32.xlu0 %v4215, 32
      %v4309 = vpop.permute.xlu0 %4308
      %4310 = vrot.lane.b32.xlu0 %v4216, 32
      %v4311 = vpop.permute.xlu0 %4310
      %4312 = vrot.lane.b32.xlu0 %v4217, 32
      %v4313 = vpop.permute.xlu0 %4312
      %vm4346 = vcmask 523520
      %4347 = vst.msk [vmem:[#allocation5] sm:$0xff] %vm4346, %v4251
      %4348 = vst.msk [vmem:[#allocation5 + $0x18] sm:$0xff] %vm4346, %v4253
      %4349 = vst.msk [vmem:[#allocation5 + $0x30] sm:$0xff] %vm4346, %v4255
      %4350 = vst.msk [vmem:[#allocation5 + $0x48] sm:$0xff] %vm4346, %v4257
      %4351 = vst.msk [vmem:[#allocation5 + $0x60] sm:$0xff] %vm4346, %v4259
      %4352 = vst.msk [vmem:[#allocation5 + $0x78] sm:$0xff] %vm4346, %v4261
      %4353 = vst.msk [vmem:[#allocation5 + $0x90] sm:$0xff] %vm4346, %v4263
      %4354 = vst.msk [vmem:[#allocation5 + $0xa8] sm:$0xff] %vm4346, %v4265
      %4355 = vst.msk [vmem:[#allocation5 + $0xc0] sm:$0xff] %vm4346, %v4267
      %4356 = vst.msk [vmem:[#allocation5 + $0xd8] sm:$0xff] %vm4346, %v4269
      %4357 = vst.msk [vmem:[#allocation5 + $0xf0] sm:$0xff] %vm4346, %v4271
      %4358 = vst.msk [vmem:[#allocation5 + $0x108] sm:$0xff] %vm4346, %v4273
      %4359 = vst.msk [vmem:[#allocation5 + $0x120] sm:$0xff] %vm4346, %v4275
      %4360 = vst.msk [vmem:[#allocation5 + $0x138] sm:$0xff] %vm4346, %v4277
      %4361 = vst.msk [vmem:[#allocation5 + $0x150] sm:$0xff] %vm4346, %v4279
      %4362 = vst.msk [vmem:[#allocation5 + $0x168] sm:$0xff] %vm4346, %v4281
      %4363 = vst.msk [vmem:[#allocation5 + $0x180] sm:$0xff] %vm4346, %v4283
      %4364 = vst.msk [vmem:[#allocation5 + $0x198] sm:$0xff] %vm4346, %v4285
      %4365 = vst.msk [vmem:[#allocation5 + $0x1b0] sm:$0xff] %vm4346, %v4287
      %4366 = vst.msk [vmem:[#allocation5 + $0x1c8] sm:$0xff] %vm4346, %v4289
      %4367 = vst.msk [vmem:[#allocation5 + $0x1e0] sm:$0xff] %vm4346, %v4291
      %4368 = vst.msk [vmem:[#allocation5 + $0x1f8] sm:$0xff] %vm4346, %v4293
      %4369 = vst.msk [vmem:[#allocation5 + $0x210] sm:$0xff] %vm4346, %v4295
      %4370 = vst.msk [vmem:[#allocation5 + $0x228] sm:$0xff] %vm4346, %v4297
      %4371 = vst.msk [vmem:[#allocation5 + $0x240] sm:$0xff] %vm4346, %v4299
      %4372 = vst.msk [vmem:[#allocation5 + $0x258] sm:$0xff] %vm4346, %v4301
      %4373 = vst.msk [vmem:[#allocation5 + $0x270] sm:$0xff] %vm4346, %v4303
      %4374 = vst.msk [vmem:[#allocation5 + $0x288] sm:$0xff] %vm4346, %v4305
      %4375 = vst.msk [vmem:[#allocation5 + $0x2a0] sm:$0xff] %vm4346, %v4307
      %4376 = vst.msk [vmem:[#allocation5 + $0x2b8] sm:$0xff] %vm4346, %v4309
      %4377 = vst.msk [vmem:[#allocation5 + $0x2d0] sm:$0xff] %vm4346, %v4311
      %4378 = vst.msk [vmem:[#allocation5 + $0x2e8] sm:$0xff] %vm4346, %v4313
      %v4379 = vld [vmem:[#allocation4 + $0x2] sm:$0xff]
      %v4380 = vld [vmem:[#allocation4 + $0xa] sm:$0xff]
      %v4381 = vld [vmem:[#allocation4 + $0x1a] sm:$0xff]
      %v4382 = vld [vmem:[#allocation4 + $0x22] sm:$0xff]
      %v4383 = vld [vmem:[#allocation4 + $0x32] sm:$0xff]
      %v4384 = vld [vmem:[#allocation4 + $0x3a] sm:$0xff]
      %v4385 = vld [vmem:[#allocation4 + $0x4a] sm:$0xff]
      %v4386 = vld [vmem:[#allocation4 + $0x52] sm:$0xff]
      %v4387 = vld [vmem:[#allocation4 + $0x62] sm:$0xff]
      %v4388 = vld [vmem:[#allocation4 + $0x6a] sm:$0xff]
      %v4389 = vld [vmem:[#allocation4 + $0x7a] sm:$0xff]
      %v4390 = vld [vmem:[#allocation4 + $0x82] sm:$0xff]
      %v4391 = vld [vmem:[#allocation4 + $0x92] sm:$0xff]
      %v4392 = vld [vmem:[#allocation4 + $0x9a] sm:$0xff]
      %v4393 = vld [vmem:[#allocation4 + $0xaa] sm:$0xff]
      %v4394 = vld [vmem:[#allocation4 + $0xb2] sm:$0xff]
      %v4395 = vld [vmem:[#allocation4 + $0xc2] sm:$0xff]
      %v4396 = vld [vmem:[#allocation4 + $0xca] sm:$0xff]
      %v4397 = vld [vmem:[#allocation4 + $0xda] sm:$0xff]
      %v4398 = vld [vmem:[#allocation4 + $0xe2] sm:$0xff]
      %v4399 = vld [vmem:[#allocation4 + $0xf2] sm:$0xff]
      %v4400 = vld [vmem:[#allocation4 + $0xfa] sm:$0xff]
      %v4401 = vld [vmem:[#allocation4 + $0x10a] sm:$0xff]
      %v4402 = vld [vmem:[#allocation4 + $0x112] sm:$0xff]
      %v4403 = vld [vmem:[#allocation4 + $0x122] sm:$0xff]
      %v4404 = vld [vmem:[#allocation4 + $0x12a] sm:$0xff]
      %v4405 = vld [vmem:[#allocation4 + $0x13a] sm:$0xff]
      %v4406 = vld [vmem:[#allocation4 + $0x142] sm:$0xff]
      %v4407 = vld [vmem:[#allocation4 + $0x152] sm:$0xff]
      %v4408 = vld [vmem:[#allocation4 + $0x15a] sm:$0xff]
      %v4409 = vld [vmem:[#allocation4 + $0x16a] sm:$0xff]
      %v4410 = vld [vmem:[#allocation4 + $0x172] sm:$0xff]
      %4443 = vrot.lane.b32.xlu0 %v4379, 64
      %v4444 = vpop.permute.xlu0 %4443
      %4445 = vrot.lane.b32.xlu0 %v4380, 64
      %v4446 = vpop.permute.xlu0 %4445
      %4447 = vrot.lane.b32.xlu0 %v4381, 64
      %v4448 = vpop.permute.xlu0 %4447
      %4449 = vrot.lane.b32.xlu0 %v4382, 64
      %v4450 = vpop.permute.xlu0 %4449
      %4451 = vrot.lane.b32.xlu0 %v4383, 64
      %v4452 = vpop.permute.xlu0 %4451
      %4453 = vrot.lane.b32.xlu0 %v4384, 64
      %v4454 = vpop.permute.xlu0 %4453
      %4455 = vrot.lane.b32.xlu0 %v4385, 64
      %v4456 = vpop.permute.xlu0 %4455
      %4457 = vrot.lane.b32.xlu0 %v4386, 64
      %v4458 = vpop.permute.xlu0 %4457
      %4459 = vrot.lane.b32.xlu0 %v4387, 64
      %v4460 = vpop.permute.xlu0 %4459
      %4461 = vrot.lane.b32.xlu0 %v4388, 64
      %v4462 = vpop.permute.xlu0 %4461
      %4463 = vrot.lane.b32.xlu0 %v4389, 64
      %v4464 = vpop.permute.xlu0 %4463
      %4465 = vrot.lane.b32.xlu0 %v4390, 64
      %v4466 = vpop.permute.xlu0 %4465
      %4467 = vrot.lane.b32.xlu0 %v4391, 64
      %v4468 = vpop.permute.xlu0 %4467
      %4469 = vrot.lane.b32.xlu0 %v4392, 64
      %v4470 = vpop.permute.xlu0 %4469
      %4471 = vrot.lane.b32.xlu0 %v4393, 64
      %v4472 = vpop.permute.xlu0 %4471
      %4473 = vrot.lane.b32.xlu0 %v4394, 64
      %v4474 = vpop.permute.xlu0 %4473
      %4475 = vrot.lane.b32.xlu0 %v4395, 64
      %v4476 = vpop.permute.xlu0 %4475
      %4477 = vrot.lane.b32.xlu0 %v4396, 64
      %v4478 = vpop.permute.xlu0 %4477
      %4479 = vrot.lane.b32.xlu0 %v4397, 64
      %v4480 = vpop.permute.xlu0 %4479
      %4481 = vrot.lane.b32.xlu0 %v4398, 64
      %v4482 = vpop.permute.xlu0 %4481
      %4483 = vrot.lane.b32.xlu0 %v4399, 64
      %v4484 = vpop.permute.xlu0 %4483
      %4485 = vrot.lane.b32.xlu0 %v4400, 64
      %v4486 = vpop.permute.xlu0 %4485
      %4487 = vrot.lane.b32.xlu0 %v4401, 64
      %v4488 = vpop.permute.xlu0 %4487
      %4489 = vrot.lane.b32.xlu0 %v4402, 64
      %v4490 = vpop.permute.xlu0 %4489
      %4491 = vrot.lane.b32.xlu0 %v4403, 64
      %v4492 = vpop.permute.xlu0 %4491
      %4493 = vrot.lane.b32.xlu0 %v4404, 64
      %v4494 = vpop.permute.xlu0 %4493
      %4495 = vrot.lane.b32.xlu0 %v4405, 64
      %v4496 = vpop.permute.xlu0 %4495
      %4497 = vrot.lane.b32.xlu0 %v4406, 64
      %v4498 = vpop.permute.xlu0 %4497
      %4499 = vrot.lane.b32.xlu0 %v4407, 64
      %v4500 = vpop.permute.xlu0 %4499
      %4501 = vrot.lane.b32.xlu0 %v4408, 64
      %v4502 = vpop.permute.xlu0 %4501
      %4503 = vrot.lane.b32.xlu0 %v4409, 64
      %v4504 = vpop.permute.xlu0 %4503
      %4505 = vrot.lane.b32.xlu0 %v4410, 64
      %v4506 = vpop.permute.xlu0 %4505
      %vm4539 = vcmask 785920
      %4540 = vst.msk [vmem:[#allocation5] sm:$0xff] %vm4539, %v4444
      %4541 = vst.msk [vmem:[#allocation5 + $0x18] sm:$0xff] %vm4539, %v4446
      %4542 = vst.msk [vmem:[#allocation5 + $0x30] sm:$0xff] %vm4539, %v4448
      %4543 = vst.msk [vmem:[#allocation5 + $0x48] sm:$0xff] %vm4539, %v4450
      %4544 = vst.msk [vmem:[#allocation5 + $0x60] sm:$0xff] %vm4539, %v4452
      %4545 = vst.msk [vmem:[#allocation5 + $0x78] sm:$0xff] %vm4539, %v4454
      %4546 = vst.msk [vmem:[#allocation5 + $0x90] sm:$0xff] %vm4539, %v4456
      %4547 = vst.msk [vmem:[#allocation5 + $0xa8] sm:$0xff] %vm4539, %v4458
      %4548 = vst.msk [vmem:[#allocation5 + $0xc0] sm:$0xff] %vm4539, %v4460
      %4549 = vst.msk [vmem:[#allocation5 + $0xd8] sm:$0xff] %vm4539, %v4462
      %4550 = vst.msk [vmem:[#allocation5 + $0xf0] sm:$0xff] %vm4539, %v4464
      %4551 = vst.msk [vmem:[#allocation5 + $0x108] sm:$0xff] %vm4539, %v4466
      %4552 = vst.msk [vmem:[#allocation5 + $0x120] sm:$0xff] %vm4539, %v4468
      %4553 = vst.msk [vmem:[#allocation5 + $0x138] sm:$0xff] %vm4539, %v4470
      %4554 = vst.msk [vmem:[#allocation5 + $0x150] sm:$0xff] %vm4539, %v4472
      %4555 = vst.msk [vmem:[#allocation5 + $0x168] sm:$0xff] %vm4539, %v4474
      %4556 = vst.msk [vmem:[#allocation5 + $0x180] sm:$0xff] %vm4539, %v4476
      %4557 = vst.msk [vmem:[#allocation5 + $0x198] sm:$0xff] %vm4539, %v4478
      %4558 = vst.msk [vmem:[#allocation5 + $0x1b0] sm:$0xff] %vm4539, %v4480
      %4559 = vst.msk [vmem:[#allocation5 + $0x1c8] sm:$0xff] %vm4539, %v4482
      %4560 = vst.msk [vmem:[#allocation5 + $0x1e0] sm:$0xff] %vm4539, %v4484
      %4561 = vst.msk [vmem:[#allocation5 + $0x1f8] sm:$0xff] %vm4539, %v4486
      %4562 = vst.msk [vmem:[#allocation5 + $0x210] sm:$0xff] %vm4539, %v4488
      %4563 = vst.msk [vmem:[#allocation5 + $0x228] sm:$0xff] %vm4539, %v4490
      %4564 = vst.msk [vmem:[#allocation5 + $0x240] sm:$0xff] %vm4539, %v4492
      %4565 = vst.msk [vmem:[#allocation5 + $0x258] sm:$0xff] %vm4539, %v4494
      %4566 = vst.msk [vmem:[#allocation5 + $0x270] sm:$0xff] %vm4539, %v4496
      %4567 = vst.msk [vmem:[#allocation5 + $0x288] sm:$0xff] %vm4539, %v4498
      %4568 = vst.msk [vmem:[#allocation5 + $0x2a0] sm:$0xff] %vm4539, %v4500
      %4569 = vst.msk [vmem:[#allocation5 + $0x2b8] sm:$0xff] %vm4539, %v4502
      %4570 = vst.msk [vmem:[#allocation5 + $0x2d0] sm:$0xff] %vm4539, %v4504
      %4571 = vst.msk [vmem:[#allocation5 + $0x2e8] sm:$0xff] %vm4539, %v4506
      %v4572 = vld [vmem:[%s4011] sm:$0xff]
      %v4573 = vld [vmem:[%s4011 + $0x8] sm:$0xff]
      %v4574 = vld [vmem:[%s4011 + $0x18] sm:$0xff]
      %v4575 = vld [vmem:[%s4011 + $0x20] sm:$0xff]
      %v4576 = vld [vmem:[%s4011 + $0x30] sm:$0xff]
      %v4577 = vld [vmem:[%s4011 + $0x38] sm:$0xff]
      %v4578 = vld [vmem:[%s4011 + $0x48] sm:$0xff]
      %v4579 = vld [vmem:[%s4011 + $0x50] sm:$0xff]
      %v4580 = vld [vmem:[%s4011 + $0x60] sm:$0xff]
      %v4581 = vld [vmem:[%s4011 + $0x68] sm:$0xff]
      %v4582 = vld [vmem:[%s4011 + $0x78] sm:$0xff]
      %v4583 = vld [vmem:[%s4011 + $0x80] sm:$0xff]
      %v4584 = vld [vmem:[%s4011 + $0x90] sm:$0xff]
      %v4585 = vld [vmem:[%s4011 + $0x98] sm:$0xff]
      %v4586 = vld [vmem:[%s4011 + $0xa8] sm:$0xff]
      %v4587 = vld [vmem:[%s4011 + $0xb0] sm:$0xff]
      %v4588 = vld [vmem:[%s4011 + $0xc0] sm:$0xff]
      %v4589 = vld [vmem:[%s4011 + $0xc8] sm:$0xff]
      %v4590 = vld [vmem:[%s4011 + $0xd8] sm:$0xff]
      %v4591 = vld [vmem:[%s4011 + $0xe0] sm:$0xff]
      %v4592 = vld [vmem:[%s4011 + $0xf0] sm:$0xff]
      %v4593 = vld [vmem:[%s4011 + $0xf8] sm:$0xff]
      %v4594 = vld [vmem:[%s4011 + $0x108] sm:$0xff]
      %v4595 = vld [vmem:[%s4011 + $0x110] sm:$0xff]
      %v4596 = vld [vmem:[%s4011 + $0x120] sm:$0xff]
      %v4597 = vld [vmem:[%s4011 + $0x128] sm:$0xff]
      %v4598 = vld [vmem:[%s4011 + $0x138] sm:$0xff]
      %v4599 = vld [vmem:[%s4011 + $0x140] sm:$0xff]
      %v4600 = vld [vmem:[%s4011 + $0x150] sm:$0xff]
      %v4601 = vld [vmem:[%s4011 + $0x158] sm:$0xff]
      %v4602 = vld [vmem:[%s4011 + $0x168] sm:$0xff]
      %v4603 = vld [vmem:[%s4011 + $0x170] sm:$0xff]
      %4636 = vrot.lane.b32.xlu0 %v4572, 96
      %v4637 = vpop.permute.xlu0 %4636
      %4638 = vrot.lane.b32.xlu0 %v4573, 96
      %v4639 = vpop.permute.xlu0 %4638
      %4640 = vrot.lane.b32.xlu0 %v4574, 96
      %v4641 = vpop.permute.xlu0 %4640
      %4642 = vrot.lane.b32.xlu0 %v4575, 96
      %v4643 = vpop.permute.xlu0 %4642
      %4644 = vrot.lane.b32.xlu0 %v4576, 96
      %v4645 = vpop.permute.xlu0 %4644
      %4646 = vrot.lane.b32.xlu0 %v4577, 96
      %v4647 = vpop.permute.xlu0 %4646
      %4648 = vrot.lane.b32.xlu0 %v4578, 96
      %v4649 = vpop.permute.xlu0 %4648
      %4650 = vrot.lane.b32.xlu0 %v4579, 96
      %v4651 = vpop.permute.xlu0 %4650
      %4652 = vrot.lane.b32.xlu0 %v4580, 96
      %v4653 = vpop.permute.xlu0 %4652
      %4654 = vrot.lane.b32.xlu0 %v4581, 96
      %v4655 = vpop.permute.xlu0 %4654
      %4656 = vrot.lane.b32.xlu0 %v4582, 96
      %v4657 = vpop.permute.xlu0 %4656
      %4658 = vrot.lane.b32.xlu0 %v4583, 96
      %v4659 = vpop.permute.xlu0 %4658
      %4660 = vrot.lane.b32.xlu0 %v4584, 96
      %v4661 = vpop.permute.xlu0 %4660
      %4662 = vrot.lane.b32.xlu0 %v4585, 96
      %v4663 = vpop.permute.xlu0 %4662
      %4664 = vrot.lane.b32.xlu0 %v4586, 96
      %v4665 = vpop.permute.xlu0 %4664
      %4666 = vrot.lane.b32.xlu0 %v4587, 96
      %v4667 = vpop.permute.xlu0 %4666
      %4668 = vrot.lane.b32.xlu0 %v4588, 96
      %v4669 = vpop.permute.xlu0 %4668
      %4670 = vrot.lane.b32.xlu0 %v4589, 96
      %v4671 = vpop.permute.xlu0 %4670
      %4672 = vrot.lane.b32.xlu0 %v4590, 96
      %v4673 = vpop.permute.xlu0 %4672
      %4674 = vrot.lane.b32.xlu0 %v4591, 96
      %v4675 = vpop.permute.xlu0 %4674
      %4676 = vrot.lane.b32.xlu0 %v4592, 96
      %v4677 = vpop.permute.xlu0 %4676
      %4678 = vrot.lane.b32.xlu0 %v4593, 96
      %v4679 = vpop.permute.xlu0 %4678
      %4680 = vrot.lane.b32.xlu0 %v4594, 96
      %v4681 = vpop.permute.xlu0 %4680
      %4682 = vrot.lane.b32.xlu0 %v4595, 96
      %v4683 = vpop.permute.xlu0 %4682
      %4684 = vrot.lane.b32.xlu0 %v4596, 96
      %v4685 = vpop.permute.xlu0 %4684
      %4686 = vrot.lane.b32.xlu0 %v4597, 96
      %v4687 = vpop.permute.xlu0 %4686
      %4688 = vrot.lane.b32.xlu0 %v4598, 96
      %v4689 = vpop.permute.xlu0 %4688
      %4690 = vrot.lane.b32.xlu0 %v4599, 96
      %v4691 = vpop.permute.xlu0 %4690
      %4692 = vrot.lane.b32.xlu0 %v4600, 96
      %v4693 = vpop.permute.xlu0 %4692
      %4694 = vrot.lane.b32.xlu0 %v4601, 96
      %v4695 = vpop.permute.xlu0 %4694
      %4696 = vrot.lane.b32.xlu0 %v4602, 96
      %v4697 = vpop.permute.xlu0 %4696
      %4698 = vrot.lane.b32.xlu0 %v4603, 96
      %v4699 = vpop.permute.xlu0 %4698
      %vm4732 = vcmask 1048320
      %4733 = vst.msk [vmem:[#allocation5] sm:$0xff] %vm4732, %v4637
      %4734 = vst.msk [vmem:[#allocation5 + $0x18] sm:$0xff] %vm4732, %v4639
      %4735 = vst.msk [vmem:[#allocation5 + $0x30] sm:$0xff] %vm4732, %v4641
      %4736 = vst.msk [vmem:[#allocation5 + $0x48] sm:$0xff] %vm4732, %v4643
      %4737 = vst.msk [vmem:[#allocation5 + $0x60] sm:$0xff] %vm4732, %v4645
      %4738 = vst.msk [vmem:[#allocation5 + $0x78] sm:$0xff] %vm4732, %v4647
      %4739 = vst.msk [vmem:[#allocation5 + $0x90] sm:$0xff] %vm4732, %v4649
      %4740 = vst.msk [vmem:[#allocation5 + $0xa8] sm:$0xff] %vm4732, %v4651
      %4741 = vst.msk [vmem:[#allocation5 + $0xc0] sm:$0xff] %vm4732, %v4653
      %4742 = vst.msk [vmem:[#allocation5 + $0xd8] sm:$0xff] %vm4732, %v4655
      %4743 = vst.msk [vmem:[#allocation5 + $0xf0] sm:$0xff] %vm4732, %v4657
      %4744 = vst.msk [vmem:[#allocation5 + $0x108] sm:$0xff] %vm4732, %v4659
      %4745 = vst.msk [vmem:[#allocation5 + $0x120] sm:$0xff] %vm4732, %v4661
      %4746 = vst.msk [vmem:[#allocation5 + $0x138] sm:$0xff] %vm4732, %v4663
      %4747 = vst.msk [vmem:[#allocation5 + $0x150] sm:$0xff] %vm4732, %v4665
      %4748 = vst.msk [vmem:[#allocation5 + $0x168] sm:$0xff] %vm4732, %v4667
      %4749 = vst.msk [vmem:[#allocation5 + $0x180] sm:$0xff] %vm4732, %v4669
      %4750 = vst.msk [vmem:[#allocation5 + $0x198] sm:$0xff] %vm4732, %v4671
      %4751 = vst.msk [vmem:[#allocation5 + $0x1b0] sm:$0xff] %vm4732, %v4673
      %4752 = vst.msk [vmem:[#allocation5 + $0x1c8] sm:$0xff] %vm4732, %v4675
      %4753 = vst.msk [vmem:[#allocation5 + $0x1e0] sm:$0xff] %vm4732, %v4677
      %4754 = vst.msk [vmem:[#allocation5 + $0x1f8] sm:$0xff] %vm4732, %v4679
      %4755 = vst.msk [vmem:[#allocation5 + $0x210] sm:$0xff] %vm4732, %v4681
      %4756 = vst.msk [vmem:[#allocation5 + $0x228] sm:$0xff] %vm4732, %v4683
      %4757 = vst.msk [vmem:[#allocation5 + $0x240] sm:$0xff] %vm4732, %v4685
      %4758 = vst.msk [vmem:[#allocation5 + $0x258] sm:$0xff] %vm4732, %v4687
      %4759 = vst.msk [vmem:[#allocation5 + $0x270] sm:$0xff] %vm4732, %v4689
      %4760 = vst.msk [vmem:[#allocation5 + $0x288] sm:$0xff] %vm4732, %v4691
      %4761 = vst.msk [vmem:[#allocation5 + $0x2a0] sm:$0xff] %vm4732, %v4693
      %4762 = vst.msk [vmem:[#allocation5 + $0x2b8] sm:$0xff] %vm4732, %v4695
      %4763 = vst.msk [vmem:[#allocation5 + $0x2d0] sm:$0xff] %vm4732, %v4697
      %4764 = vst.msk [vmem:[#allocation5 + $0x2e8] sm:$0xff] %vm4732, %v4699
      %v4765 = vld [vmem:[%s4011 + $0x1] sm:$0xff]
      %v4766 = vld [vmem:[%s4011 + $0x9] sm:$0xff]
      %v4767 = vld [vmem:[%s4011 + $0x19] sm:$0xff]
      %v4768 = vld [vmem:[%s4011 + $0x21] sm:$0xff]
      %v4769 = vld [vmem:[%s4011 + $0x31] sm:$0xff]
      %v4770 = vld [vmem:[%s4011 + $0x39] sm:$0xff]
      %v4771 = vld [vmem:[%s4011 + $0x49] sm:$0xff]
      %v4772 = vld [vmem:[%s4011 + $0x51] sm:$0xff]
      %v4773 = vld [vmem:[%s4011 + $0x61] sm:$0xff]
      %v4774 = vld [vmem:[%s4011 + $0x69] sm:$0xff]
      %v4775 = vld [vmem:[%s4011 + $0x79] sm:$0xff]
      %v4776 = vld [vmem:[%s4011 + $0x81] sm:$0xff]
      %v4777 = vld [vmem:[%s4011 + $0x91] sm:$0xff]
      %v4778 = vld [vmem:[%s4011 + $0x99] sm:$0xff]
      %v4779 = vld [vmem:[%s4011 + $0xa9] sm:$0xff]
      %v4780 = vld [vmem:[%s4011 + $0xb1] sm:$0xff]
      %v4781 = vld [vmem:[%s4011 + $0xc1] sm:$0xff]
      %v4782 = vld [vmem:[%s4011 + $0xc9] sm:$0xff]
      %v4783 = vld [vmem:[%s4011 + $0xd9] sm:$0xff]
      %v4784 = vld [vmem:[%s4011 + $0xe1] sm:$0xff]
      %v4785 = vld [vmem:[%s4011 + $0xf1] sm:$0xff]
      %v4786 = vld [vmem:[%s4011 + $0xf9] sm:$0xff]
      %v4787 = vld [vmem:[%s4011 + $0x109] sm:$0xff]
      %v4788 = vld [vmem:[%s4011 + $0x111] sm:$0xff]
      %v4789 = vld [vmem:[%s4011 + $0x121] sm:$0xff]
      %v4790 = vld [vmem:[%s4011 + $0x129] sm:$0xff]
      %v4791 = vld [vmem:[%s4011 + $0x139] sm:$0xff]
      %v4792 = vld [vmem:[%s4011 + $0x141] sm:$0xff]
      %v4793 = vld [vmem:[%s4011 + $0x151] sm:$0xff]
      %v4794 = vld [vmem:[%s4011 + $0x159] sm:$0xff]
      %v4795 = vld [vmem:[%s4011 + $0x169] sm:$0xff]
      %v4796 = vld [vmem:[%s4011 + $0x171] sm:$0xff]
      %4797 = vst.msk [vmem:[#allocation5 + $0x8] sm:$0xff] %vm2285, %v4765
      %4798 = vst.msk [vmem:[#allocation5 + $0x20] sm:$0xff] %vm2285, %v4766
      %4799 = vst.msk [vmem:[#allocation5 + $0x38] sm:$0xff] %vm2285, %v4767
      %4800 = vst.msk [vmem:[#allocation5 + $0x50] sm:$0xff] %vm2285, %v4768
      %4801 = vst.msk [vmem:[#allocation5 + $0x68] sm:$0xff] %vm2285, %v4769
      %4802 = vst.msk [vmem:[#allocation5 + $0x80] sm:$0xff] %vm2285, %v4770
      %4803 = vst.msk [vmem:[#allocation5 + $0x98] sm:$0xff] %vm2285, %v4771
      %4804 = vst.msk [vmem:[#allocation5 + $0xb0] sm:$0xff] %vm2285, %v4772
      %4805 = vst.msk [vmem:[#allocation5 + $0xc8] sm:$0xff] %vm2285, %v4773
      %4806 = vst.msk [vmem:[#allocation5 + $0xe0] sm:$0xff] %vm2285, %v4774
      %4807 = vst.msk [vmem:[#allocation5 + $0xf8] sm:$0xff] %vm2285, %v4775
      %4808 = vst.msk [vmem:[#allocation5 + $0x110] sm:$0xff] %vm2285, %v4776
      %4809 = vst.msk [vmem:[#allocation5 + $0x128] sm:$0xff] %vm2285, %v4777
      %4810 = vst.msk [vmem:[#allocation5 + $0x140] sm:$0xff] %vm2285, %v4778
      %4811 = vst.msk [vmem:[#allocation5 + $0x158] sm:$0xff] %vm2285, %v4779
      %4812 = vst.msk [vmem:[#allocation5 + $0x170] sm:$0xff] %vm2285, %v4780
      %4813 = vst.msk [vmem:[#allocation5 + $0x188] sm:$0xff] %vm2285, %v4781
      %4814 = vst.msk [vmem:[#allocation5 + $0x1a0] sm:$0xff] %vm2285, %v4782
      %4815 = vst.msk [vmem:[#allocation5 + $0x1b8] sm:$0xff] %vm2285, %v4783
      %4816 = vst.msk [vmem:[#allocation5 + $0x1d0] sm:$0xff] %vm2285, %v4784
      %4817 = vst.msk [vmem:[#allocation5 + $0x1e8] sm:$0xff] %vm2285, %v4785
      %4818 = vst.msk [vmem:[#allocation5 + $0x200] sm:$0xff] %vm2285, %v4786
      %4819 = vst.msk [vmem:[#allocation5 + $0x218] sm:$0xff] %vm2285, %v4787
      %4820 = vst.msk [vmem:[#allocation5 + $0x230] sm:$0xff] %vm2285, %v4788
      %4821 = vst.msk [vmem:[#allocation5 + $0x248] sm:$0xff] %vm2285, %v4789
      %4822 = vst.msk [vmem:[#allocation5 + $0x260] sm:$0xff] %vm2285, %v4790
      %4823 = vst.msk [vmem:[#allocation5 + $0x278] sm:$0xff] %vm2285, %v4791
      %4824 = vst.msk [vmem:[#allocation5 + $0x290] sm:$0xff] %vm2285, %v4792
      %4825 = vst.msk [vmem:[#allocation5 + $0x2a8] sm:$0xff] %vm2285, %v4793
      %4826 = vst.msk [vmem:[#allocation5 + $0x2c0] sm:$0xff] %vm2285, %v4794
      %4827 = vst.msk [vmem:[#allocation5 + $0x2d8] sm:$0xff] %vm2285, %v4795
      %4828 = vst.msk [vmem:[#allocation5 + $0x2f0] sm:$0xff] %vm2285, %v4796
      %v4829 = vld [vmem:[%s4011 + $0x2] sm:$0xff]
      %v4830 = vld [vmem:[%s4011 + $0xa] sm:$0xff]
      %v4831 = vld [vmem:[%s4011 + $0x1a] sm:$0xff]
      %v4832 = vld [vmem:[%s4011 + $0x22] sm:$0xff]
      %v4833 = vld [vmem:[%s4011 + $0x32] sm:$0xff]
      %v4834 = vld [vmem:[%s4011 + $0x3a] sm:$0xff]
      %v4835 = vld [vmem:[%s4011 + $0x4a] sm:$0xff]
      %v4836 = vld [vmem:[%s4011 + $0x52] sm:$0xff]
      %v4837 = vld [vmem:[%s4011 + $0x62] sm:$0xff]
      %v4838 = vld [vmem:[%s4011 + $0x6a] sm:$0xff]
      %v4839 = vld [vmem:[%s4011 + $0x7a] sm:$0xff]
      %v4840 = vld [vmem:[%s4011 + $0x82] sm:$0xff]
      %v4841 = vld [vmem:[%s4011 + $0x92] sm:$0xff]
      %v4842 = vld [vmem:[%s4011 + $0x9a] sm:$0xff]
      %v4843 = vld [vmem:[%s4011 + $0xaa] sm:$0xff]
      %v4844 = vld [vmem:[%s4011 + $0xb2] sm:$0xff]
      %v4845 = vld [vmem:[%s4011 + $0xc2] sm:$0xff]
      %v4846 = vld [vmem:[%s4011 + $0xca] sm:$0xff]
      %v4847 = vld [vmem:[%s4011 + $0xda] sm:$0xff]
      %v4848 = vld [vmem:[%s4011 + $0xe2] sm:$0xff]
      %v4849 = vld [vmem:[%s4011 + $0xf2] sm:$0xff]
      %v4850 = vld [vmem:[%s4011 + $0xfa] sm:$0xff]
      %v4851 = vld [vmem:[%s4011 + $0x10a] sm:$0xff]
      %v4852 = vld [vmem:[%s4011 + $0x112] sm:$0xff]
      %v4853 = vld [vmem:[%s4011 + $0x122] sm:$0xff]
      %v4854 = vld [vmem:[%s4011 + $0x12a] sm:$0xff]
      %v4855 = vld [vmem:[%s4011 + $0x13a] sm:$0xff]
      %v4856 = vld [vmem:[%s4011 + $0x142] sm:$0xff]
      %v4857 = vld [vmem:[%s4011 + $0x152] sm:$0xff]
      %v4858 = vld [vmem:[%s4011 + $0x15a] sm:$0xff]
      %v4859 = vld [vmem:[%s4011 + $0x16a] sm:$0xff]
      %v4860 = vld [vmem:[%s4011 + $0x172] sm:$0xff]
      %4893 = vrot.lane.b32.xlu0 %v4829, 32
      %v4894 = vpop.permute.xlu0 %4893
      %4895 = vrot.lane.b32.xlu0 %v4830, 32
      %v4896 = vpop.permute.xlu0 %4895
      %4897 = vrot.lane.b32.xlu0 %v4831, 32
      %v4898 = vpop.permute.xlu0 %4897
      %4899 = vrot.lane.b32.xlu0 %v4832, 32
      %v4900 = vpop.permute.xlu0 %4899
      %4901 = vrot.lane.b32.xlu0 %v4833, 32
      %v4902 = vpop.permute.xlu0 %4901
      %4903 = vrot.lane.b32.xlu0 %v4834, 32
      %v4904 = vpop.permute.xlu0 %4903
      %4905 = vrot.lane.b32.xlu0 %v4835, 32
      %v4906 = vpop.permute.xlu0 %4905
      %4907 = vrot.lane.b32.xlu0 %v4836, 32
      %v4908 = vpop.permute.xlu0 %4907
      %4909 = vrot.lane.b32.xlu0 %v4837, 32
      %v4910 = vpop.permute.xlu0 %4909
      %4911 = vrot.lane.b32.xlu0 %v4838, 32
      %v4912 = vpop.permute.xlu0 %4911
      %4913 = vrot.lane.b32.xlu0 %v4839, 32
      %v4914 = vpop.permute.xlu0 %4913
      %4915 = vrot.lane.b32.xlu0 %v4840, 32
      %v4916 = vpop.permute.xlu0 %4915
      %4917 = vrot.lane.b32.xlu0 %v4841, 32
      %v4918 = vpop.permute.xlu0 %4917
      %4919 = vrot.lane.b32.xlu0 %v4842, 32
      %v4920 = vpop.permute.xlu0 %4919
      %4921 = vrot.lane.b32.xlu0 %v4843, 32
      %v4922 = vpop.permute.xlu0 %4921
      %4923 = vrot.lane.b32.xlu0 %v4844, 32
      %v4924 = vpop.permute.xlu0 %4923
      %4925 = vrot.lane.b32.xlu0 %v4845, 32
      %v4926 = vpop.permute.xlu0 %4925
      %4927 = vrot.lane.b32.xlu0 %v4846, 32
      %v4928 = vpop.permute.xlu0 %4927
      %4929 = vrot.lane.b32.xlu0 %v4847, 32
      %v4930 = vpop.permute.xlu0 %4929
      %4931 = vrot.lane.b32.xlu0 %v4848, 32
      %v4932 = vpop.permute.xlu0 %4931
      %4933 = vrot.lane.b32.xlu0 %v4849, 32
      %v4934 = vpop.permute.xlu0 %4933
      %4935 = vrot.lane.b32.xlu0 %v4850, 32
      %v4936 = vpop.permute.xlu0 %4935
      %4937 = vrot.lane.b32.xlu0 %v4851, 32
      %v4938 = vpop.permute.xlu0 %4937
      %4939 = vrot.lane.b32.xlu0 %v4852, 32
      %v4940 = vpop.permute.xlu0 %4939
      %4941 = vrot.lane.b32.xlu0 %v4853, 32
      %v4942 = vpop.permute.xlu0 %4941
      %4943 = vrot.lane.b32.xlu0 %v4854, 32
      %v4944 = vpop.permute.xlu0 %4943
      %4945 = vrot.lane.b32.xlu0 %v4855, 32
      %v4946 = vpop.permute.xlu0 %4945
      %4947 = vrot.lane.b32.xlu0 %v4856, 32
      %v4948 = vpop.permute.xlu0 %4947
      %4949 = vrot.lane.b32.xlu0 %v4857, 32
      %v4950 = vpop.permute.xlu0 %4949
      %4951 = vrot.lane.b32.xlu0 %v4858, 32
      %v4952 = vpop.permute.xlu0 %4951
      %4953 = vrot.lane.b32.xlu0 %v4859, 32
      %v4954 = vpop.permute.xlu0 %4953
      %4955 = vrot.lane.b32.xlu0 %v4860, 32
      %v4956 = vpop.permute.xlu0 %4955
      %4989 = vst.msk [vmem:[#allocation5 + $0x8] sm:$0xff] %vm4346, %v4894
      %4990 = vst.msk [vmem:[#allocation5 + $0x20] sm:$0xff] %vm4346, %v4896
      %4991 = vst.msk [vmem:[#allocation5 + $0x38] sm:$0xff] %vm4346, %v4898
      %4992 = vst.msk [vmem:[#allocation5 + $0x50] sm:$0xff] %vm4346, %v4900
      %4993 = vst.msk [vmem:[#allocation5 + $0x68] sm:$0xff] %vm4346, %v4902
      %4994 = vst.msk [vmem:[#allocation5 + $0x80] sm:$0xff] %vm4346, %v4904
      %4995 = vst.msk [vmem:[#allocation5 + $0x98] sm:$0xff] %vm4346, %v4906
      %4996 = vst.msk [vmem:[#allocation5 + $0xb0] sm:$0xff] %vm4346, %v4908
      %4997 = vst.msk [vmem:[#allocation5 + $0xc8] sm:$0xff] %vm4346, %v4910
      %4998 = vst.msk [vmem:[#allocation5 + $0xe0] sm:$0xff] %vm4346, %v4912
      %4999 = vst.msk [vmem:[#allocation5 + $0xf8] sm:$0xff] %vm4346, %v4914
      %5000 = vst.msk [vmem:[#allocation5 + $0x110] sm:$0xff] %vm4346, %v4916
      %5001 = vst.msk [vmem:[#allocation5 + $0x128] sm:$0xff] %vm4346, %v4918
      %5002 = vst.msk [vmem:[#allocation5 + $0x140] sm:$0xff] %vm4346, %v4920
      %5003 = vst.msk [vmem:[#allocation5 + $0x158] sm:$0xff] %vm4346, %v4922
      %5004 = vst.msk [vmem:[#allocation5 + $0x170] sm:$0xff] %vm4346, %v4924
      %5005 = vst.msk [vmem:[#allocation5 + $0x188] sm:$0xff] %vm4346, %v4926
      %5006 = vst.msk [vmem:[#allocation5 + $0x1a0] sm:$0xff] %vm4346, %v4928
      %5007 = vst.msk [vmem:[#allocation5 + $0x1b8] sm:$0xff] %vm4346, %v4930
      %5008 = vst.msk [vmem:[#allocation5 + $0x1d0] sm:$0xff] %vm4346, %v4932
      %5009 = vst.msk [vmem:[#allocation5 + $0x1e8] sm:$0xff] %vm4346, %v4934
      %5010 = vst.msk [vmem:[#allocation5 + $0x200] sm:$0xff] %vm4346, %v4936
      %5011 = vst.msk [vmem:[#allocation5 + $0x218] sm:$0xff] %vm4346, %v4938
      %5012 = vst.msk [vmem:[#allocation5 + $0x230] sm:$0xff] %vm4346, %v4940
      %5013 = vst.msk [vmem:[#allocation5 + $0x248] sm:$0xff] %vm4346, %v4942
      %5014 = vst.msk [vmem:[#allocation5 + $0x260] sm:$0xff] %vm4346, %v4944
      %5015 = vst.msk [vmem:[#allocation5 + $0x278] sm:$0xff] %vm4346, %v4946
      %5016 = vst.msk [vmem:[#allocation5 + $0x290] sm:$0xff] %vm4346, %v4948
      %5017 = vst.msk [vmem:[#allocation5 + $0x2a8] sm:$0xff] %vm4346, %v4950
      %5018 = vst.msk [vmem:[#allocation5 + $0x2c0] sm:$0xff] %vm4346, %v4952
      %5019 = vst.msk [vmem:[#allocation5 + $0x2d8] sm:$0xff] %vm4346, %v4954
      %5020 = vst.msk [vmem:[#allocation5 + $0x2f0] sm:$0xff] %vm4346, %v4956
      %s5021 = scalar_lea.vmem [#allocation4], 48
      %v5022 = vld [vmem:[%s5021] sm:$0xff]
      %v5023 = vld [vmem:[%s5021 + $0x8] sm:$0xff]
      %v5024 = vld [vmem:[%s5021 + $0x18] sm:$0xff]
      %v5025 = vld [vmem:[%s5021 + $0x20] sm:$0xff]
      %v5026 = vld [vmem:[%s5021 + $0x30] sm:$0xff]
      %v5027 = vld [vmem:[%s5021 + $0x38] sm:$0xff]
      %v5028 = vld [vmem:[%s5021 + $0x48] sm:$0xff]
      %v5029 = vld [vmem:[%s5021 + $0x50] sm:$0xff]
      %v5030 = vld [vmem:[%s5021 + $0x60] sm:$0xff]
      %v5031 = vld [vmem:[%s5021 + $0x68] sm:$0xff]
      %v5032 = vld [vmem:[%s5021 + $0x78] sm:$0xff]
      %v5033 = vld [vmem:[%s5021 + $0x80] sm:$0xff]
      %v5034 = vld [vmem:[%s5021 + $0x90] sm:$0xff]
      %v5035 = vld [vmem:[%s5021 + $0x98] sm:$0xff]
      %v5036 = vld [vmem:[%s5021 + $0xa8] sm:$0xff]
      %v5037 = vld [vmem:[%s5021 + $0xb0] sm:$0xff]
      %v5038 = vld [vmem:[%s5021 + $0xc0] sm:$0xff]
      %v5039 = vld [vmem:[%s5021 + $0xc8] sm:$0xff]
      %v5040 = vld [vmem:[%s5021 + $0xd8] sm:$0xff]
      %v5041 = vld [vmem:[%s5021 + $0xe0] sm:$0xff]
      %v5042 = vld [vmem:[%s5021 + $0xf0] sm:$0xff]
      %v5043 = vld [vmem:[%s5021 + $0xf8] sm:$0xff]
      %v5044 = vld [vmem:[%s5021 + $0x108] sm:$0xff]
      %v5045 = vld [vmem:[%s5021 + $0x110] sm:$0xff]
      %v5046 = vld [vmem:[%s5021 + $0x120] sm:$0xff]
      %v5047 = vld [vmem:[%s5021 + $0x128] sm:$0xff]
      %v5048 = vld [vmem:[%s5021 + $0x138] sm:$0xff]
      %v5049 = vld [vmem:[%s5021 + $0x140] sm:$0xff]
      %v5050 = vld [vmem:[%s5021 + $0x150] sm:$0xff]
      %v5051 = vld [vmem:[%s5021 + $0x158] sm:$0xff]
      %v5052 = vld [vmem:[%s5021 + $0x168] sm:$0xff]
      %v5053 = vld [vmem:[%s5021 + $0x170] sm:$0xff]
      %5086 = vrot.lane.b32.xlu0 %v5022, 64
      %v5087 = vpop.permute.xlu0 %5086
      %5088 = vrot.lane.b32.xlu0 %v5023, 64
      %v5089 = vpop.permute.xlu0 %5088
      %5090 = vrot.lane.b32.xlu0 %v5024, 64
      %v5091 = vpop.permute.xlu0 %5090
      %5092 = vrot.lane.b32.xlu0 %v5025, 64
      %v5093 = vpop.permute.xlu0 %5092
      %5094 = vrot.lane.b32.xlu0 %v5026, 64
      %v5095 = vpop.permute.xlu0 %5094
      %5096 = vrot.lane.b32.xlu0 %v5027, 64
      %v5097 = vpop.permute.xlu0 %5096
      %5098 = vrot.lane.b32.xlu0 %v5028, 64
      %v5099 = vpop.permute.xlu0 %5098
      %5100 = vrot.lane.b32.xlu0 %v5029, 64
      %v5101 = vpop.permute.xlu0 %5100
      %5102 = vrot.lane.b32.xlu0 %v5030, 64
      %v5103 = vpop.permute.xlu0 %5102
      %5104 = vrot.lane.b32.xlu0 %v5031, 64
      %v5105 = vpop.permute.xlu0 %5104
      %5106 = vrot.lane.b32.xlu0 %v5032, 64
      %v5107 = vpop.permute.xlu0 %5106
      %5108 = vrot.lane.b32.xlu0 %v5033, 64
      %v5109 = vpop.permute.xlu0 %5108
      %5110 = vrot.lane.b32.xlu0 %v5034, 64
      %v5111 = vpop.permute.xlu0 %5110
      %5112 = vrot.lane.b32.xlu0 %v5035, 64
      %v5113 = vpop.permute.xlu0 %5112
      %5114 = vrot.lane.b32.xlu0 %v5036, 64
      %v5115 = vpop.permute.xlu0 %5114
      %5116 = vrot.lane.b32.xlu0 %v5037, 64
      %v5117 = vpop.permute.xlu0 %5116
      %5118 = vrot.lane.b32.xlu0 %v5038, 64
      %v5119 = vpop.permute.xlu0 %5118
      %5120 = vrot.lane.b32.xlu0 %v5039, 64
      %v5121 = vpop.permute.xlu0 %5120
      %5122 = vrot.lane.b32.xlu0 %v5040, 64
      %v5123 = vpop.permute.xlu0 %5122
      %5124 = vrot.lane.b32.xlu0 %v5041, 64
      %v5125 = vpop.permute.xlu0 %5124
      %5126 = vrot.lane.b32.xlu0 %v5042, 64
      %v5127 = vpop.permute.xlu0 %5126
      %5128 = vrot.lane.b32.xlu0 %v5043, 64
      %v5129 = vpop.permute.xlu0 %5128
      %5130 = vrot.lane.b32.xlu0 %v5044, 64
      %v5131 = vpop.permute.xlu0 %5130
      %5132 = vrot.lane.b32.xlu0 %v5045, 64
      %v5133 = vpop.permute.xlu0 %5132
      %5134 = vrot.lane.b32.xlu0 %v5046, 64
      %v5135 = vpop.permute.xlu0 %5134
      %5136 = vrot.lane.b32.xlu0 %v5047, 64
      %v5137 = vpop.permute.xlu0 %5136
      %5138 = vrot.lane.b32.xlu0 %v5048, 64
      %v5139 = vpop.permute.xlu0 %5138
      %5140 = vrot.lane.b32.xlu0 %v5049, 64
      %v5141 = vpop.permute.xlu0 %5140
      %5142 = vrot.lane.b32.xlu0 %v5050, 64
      %v5143 = vpop.permute.xlu0 %5142
      %5144 = vrot.lane.b32.xlu0 %v5051, 64
      %v5145 = vpop.permute.xlu0 %5144
      %5146 = vrot.lane.b32.xlu0 %v5052, 64
      %v5147 = vpop.permute.xlu0 %5146
      %5148 = vrot.lane.b32.xlu0 %v5053, 64
      %v5149 = vpop.permute.xlu0 %5148
      %5182 = vst.msk [vmem:[#allocation5 + $0x8] sm:$0xff] %vm4539, %v5087
      %5183 = vst.msk [vmem:[#allocation5 + $0x20] sm:$0xff] %vm4539, %v5089
      %5184 = vst.msk [vmem:[#allocation5 + $0x38] sm:$0xff] %vm4539, %v5091
      %5185 = vst.msk [vmem:[#allocation5 + $0x50] sm:$0xff] %vm4539, %v5093
      %5186 = vst.msk [vmem:[#allocation5 + $0x68] sm:$0xff] %vm4539, %v5095
      %5187 = vst.msk [vmem:[#allocation5 + $0x80] sm:$0xff] %vm4539, %v5097
      %5188 = vst.msk [vmem:[#allocation5 + $0x98] sm:$0xff] %vm4539, %v5099
      %5189 = vst.msk [vmem:[#allocation5 + $0xb0] sm:$0xff] %vm4539, %v5101
      %5190 = vst.msk [vmem:[#allocation5 + $0xc8] sm:$0xff] %vm4539, %v5103
      %5191 = vst.msk [vmem:[#allocation5 + $0xe0] sm:$0xff] %vm4539, %v5105
      %5192 = vst.msk [vmem:[#allocation5 + $0xf8] sm:$0xff] %vm4539, %v5107
      %5193 = vst.msk [vmem:[#allocation5 + $0x110] sm:$0xff] %vm4539, %v5109
      %5194 = vst.msk [vmem:[#allocation5 + $0x128] sm:$0xff] %vm4539, %v5111
      %5195 = vst.msk [vmem:[#allocation5 + $0x140] sm:$0xff] %vm4539, %v5113
      %5196 = vst.msk [vmem:[#allocation5 + $0x158] sm:$0xff] %vm4539, %v5115
      %5197 = vst.msk [vmem:[#allocation5 + $0x170] sm:$0xff] %vm4539, %v5117
      %5198 = vst.msk [vmem:[#allocation5 + $0x188] sm:$0xff] %vm4539, %v5119
      %5199 = vst.msk [vmem:[#allocation5 + $0x1a0] sm:$0xff] %vm4539, %v5121
      %5200 = vst.msk [vmem:[#allocation5 + $0x1b8] sm:$0xff] %vm4539, %v5123
      %5201 = vst.msk [vmem:[#allocation5 + $0x1d0] sm:$0xff] %vm4539, %v5125
      %5202 = vst.msk [vmem:[#allocation5 + $0x1e8] sm:$0xff] %vm4539, %v5127
      %5203 = vst.msk [vmem:[#allocation5 + $0x200] sm:$0xff] %vm4539, %v5129
      %5204 = vst.msk [vmem:[#allocation5 + $0x218] sm:$0xff] %vm4539, %v5131
      %5205 = vst.msk [vmem:[#allocation5 + $0x230] sm:$0xff] %vm4539, %v5133
      %5206 = vst.msk [vmem:[#allocation5 + $0x248] sm:$0xff] %vm4539, %v5135
      %5207 = vst.msk [vmem:[#allocation5 + $0x260] sm:$0xff] %vm4539, %v5137
      %5208 = vst.msk [vmem:[#allocation5 + $0x278] sm:$0xff] %vm4539, %v5139
      %5209 = vst.msk [vmem:[#allocation5 + $0x290] sm:$0xff] %vm4539, %v5141
      %5210 = vst.msk [vmem:[#allocation5 + $0x2a8] sm:$0xff] %vm4539, %v5143
      %5211 = vst.msk [vmem:[#allocation5 + $0x2c0] sm:$0xff] %vm4539, %v5145
      %5212 = vst.msk [vmem:[#allocation5 + $0x2d8] sm:$0xff] %vm4539, %v5147
      %5213 = vst.msk [vmem:[#allocation5 + $0x2f0] sm:$0xff] %vm4539, %v5149
      %v5214 = vld [vmem:[%s5021 + $0x1] sm:$0xff]
      %v5215 = vld [vmem:[%s5021 + $0x9] sm:$0xff]
      %v5216 = vld [vmem:[%s5021 + $0x19] sm:$0xff]
      %v5217 = vld [vmem:[%s5021 + $0x21] sm:$0xff]
      %v5218 = vld [vmem:[%s5021 + $0x31] sm:$0xff]
      %v5219 = vld [vmem:[%s5021 + $0x39] sm:$0xff]
      %v5220 = vld [vmem:[%s5021 + $0x49] sm:$0xff]
      %v5221 = vld [vmem:[%s5021 + $0x51] sm:$0xff]
      %v5222 = vld [vmem:[%s5021 + $0x61] sm:$0xff]
      %v5223 = vld [vmem:[%s5021 + $0x69] sm:$0xff]
      %v5224 = vld [vmem:[%s5021 + $0x79] sm:$0xff]
      %v5225 = vld [vmem:[%s5021 + $0x81] sm:$0xff]
      %v5226 = vld [vmem:[%s5021 + $0x91] sm:$0xff]
      %v5227 = vld [vmem:[%s5021 + $0x99] sm:$0xff]
      %v5228 = vld [vmem:[%s5021 + $0xa9] sm:$0xff]
      %v5229 = vld [vmem:[%s5021 + $0xb1] sm:$0xff]
      %v5230 = vld [vmem:[%s5021 + $0xc1] sm:$0xff]
      %v5231 = vld [vmem:[%s5021 + $0xc9] sm:$0xff]
      %v5232 = vld [vmem:[%s5021 + $0xd9] sm:$0xff]
      %v5233 = vld [vmem:[%s5021 + $0xe1] sm:$0xff]
      %v5234 = vld [vmem:[%s5021 + $0xf1] sm:$0xff]
      %v5235 = vld [vmem:[%s5021 + $0xf9] sm:$0xff]
      %v5236 = vld [vmem:[%s5021 + $0x109] sm:$0xff]
      %v5237 = vld [vmem:[%s5021 + $0x111] sm:$0xff]
      %v5238 = vld [vmem:[%s5021 + $0x121] sm:$0xff]
      %v5239 = vld [vmem:[%s5021 + $0x129] sm:$0xff]
      %v5240 = vld [vmem:[%s5021 + $0x139] sm:$0xff]
      %v5241 = vld [vmem:[%s5021 + $0x141] sm:$0xff]
      %v5242 = vld [vmem:[%s5021 + $0x151] sm:$0xff]
      %v5243 = vld [vmem:[%s5021 + $0x159] sm:$0xff]
      %v5244 = vld [vmem:[%s5021 + $0x169] sm:$0xff]
      %v5245 = vld [vmem:[%s5021 + $0x171] sm:$0xff]
      %5278 = vrot.lane.b32.xlu0 %v5214, 96
      %v5279 = vpop.permute.xlu0 %5278
      %5280 = vrot.lane.b32.xlu0 %v5215, 96
      %v5281 = vpop.permute.xlu0 %5280
      %5282 = vrot.lane.b32.xlu0 %v5216, 96
      %v5283 = vpop.permute.xlu0 %5282
      %5284 = vrot.lane.b32.xlu0 %v5217, 96
      %v5285 = vpop.permute.xlu0 %5284
      %5286 = vrot.lane.b32.xlu0 %v5218, 96
      %v5287 = vpop.permute.xlu0 %5286
      %5288 = vrot.lane.b32.xlu0 %v5219, 96
      %v5289 = vpop.permute.xlu0 %5288
      %5290 = vrot.lane.b32.xlu0 %v5220, 96
      %v5291 = vpop.permute.xlu0 %5290
      %5292 = vrot.lane.b32.xlu0 %v5221, 96
      %v5293 = vpop.permute.xlu0 %5292
      %5294 = vrot.lane.b32.xlu0 %v5222, 96
      %v5295 = vpop.permute.xlu0 %5294
      %5296 = vrot.lane.b32.xlu0 %v5223, 96
      %v5297 = vpop.permute.xlu0 %5296
      %5298 = vrot.lane.b32.xlu0 %v5224, 96
      %v5299 = vpop.permute.xlu0 %5298
      %5300 = vrot.lane.b32.xlu0 %v5225, 96
      %v5301 = vpop.permute.xlu0 %5300
      %5302 = vrot.lane.b32.xlu0 %v5226, 96
      %v5303 = vpop.permute.xlu0 %5302
      %5304 = vrot.lane.b32.xlu0 %v5227, 96
      %v5305 = vpop.permute.xlu0 %5304
      %5306 = vrot.lane.b32.xlu0 %v5228, 96
      %v5307 = vpop.permute.xlu0 %5306
      %5308 = vrot.lane.b32.xlu0 %v5229, 96
      %v5309 = vpop.permute.xlu0 %5308
      %5310 = vrot.lane.b32.xlu0 %v5230, 96
      %v5311 = vpop.permute.xlu0 %5310
      %5312 = vrot.lane.b32.xlu0 %v5231, 96
      %v5313 = vpop.permute.xlu0 %5312
      %5314 = vrot.lane.b32.xlu0 %v5232, 96
      %v5315 = vpop.permute.xlu0 %5314
      %5316 = vrot.lane.b32.xlu0 %v5233, 96
      %v5317 = vpop.permute.xlu0 %5316
      %5318 = vrot.lane.b32.xlu0 %v5234, 96
      %v5319 = vpop.permute.xlu0 %5318
      %5320 = vrot.lane.b32.xlu0 %v5235, 96
      %v5321 = vpop.permute.xlu0 %5320
      %5322 = vrot.lane.b32.xlu0 %v5236, 96
      %v5323 = vpop.permute.xlu0 %5322
      %5324 = vrot.lane.b32.xlu0 %v5237, 96
      %v5325 = vpop.permute.xlu0 %5324
      %5326 = vrot.lane.b32.xlu0 %v5238, 96
      %v5327 = vpop.permute.xlu0 %5326
      %5328 = vrot.lane.b32.xlu0 %v5239, 96
      %v5329 = vpop.permute.xlu0 %5328
      %5330 = vrot.lane.b32.xlu0 %v5240, 96
      %v5331 = vpop.permute.xlu0 %5330
      %5332 = vrot.lane.b32.xlu0 %v5241, 96
      %v5333 = vpop.permute.xlu0 %5332
      %5334 = vrot.lane.b32.xlu0 %v5242, 96
      %v5335 = vpop.permute.xlu0 %5334
      %5336 = vrot.lane.b32.xlu0 %v5243, 96
      %v5337 = vpop.permute.xlu0 %5336
      %5338 = vrot.lane.b32.xlu0 %v5244, 96
      %v5339 = vpop.permute.xlu0 %5338
      %5340 = vrot.lane.b32.xlu0 %v5245, 96
      %v5341 = vpop.permute.xlu0 %5340
      %5374 = vst.msk [vmem:[#allocation5 + $0x8] sm:$0xff] %vm4732, %v5279
      %5375 = vst.msk [vmem:[#allocation5 + $0x20] sm:$0xff] %vm4732, %v5281
      %5376 = vst.msk [vmem:[#allocation5 + $0x38] sm:$0xff] %vm4732, %v5283
      %5377 = vst.msk [vmem:[#allocation5 + $0x50] sm:$0xff] %vm4732, %v5285
      %5378 = vst.msk [vmem:[#allocation5 + $0x68] sm:$0xff] %vm4732, %v5287
      %5379 = vst.msk [vmem:[#allocation5 + $0x80] sm:$0xff] %vm4732, %v5289
      %5380 = vst.msk [vmem:[#allocation5 + $0x98] sm:$0xff] %vm4732, %v5291
      %5381 = vst.msk [vmem:[#allocation5 + $0xb0] sm:$0xff] %vm4732, %v5293
      %5382 = vst.msk [vmem:[#allocation5 + $0xc8] sm:$0xff] %vm4732, %v5295
      %5383 = vst.msk [vmem:[#allocation5 + $0xe0] sm:$0xff] %vm4732, %v5297
      %5384 = vst.msk [vmem:[#allocation5 + $0xf8] sm:$0xff] %vm4732, %v5299
      %5385 = vst.msk [vmem:[#allocation5 + $0x110] sm:$0xff] %vm4732, %v5301
      %5386 = vst.msk [vmem:[#allocation5 + $0x128] sm:$0xff] %vm4732, %v5303
      %5387 = vst.msk [vmem:[#allocation5 + $0x140] sm:$0xff] %vm4732, %v5305
      %5388 = vst.msk [vmem:[#allocation5 + $0x158] sm:$0xff] %vm4732, %v5307
      %5389 = vst.msk [vmem:[#allocation5 + $0x170] sm:$0xff] %vm4732, %v5309
      %5390 = vst.msk [vmem:[#allocation5 + $0x188] sm:$0xff] %vm4732, %v5311
      %5391 = vst.msk [vmem:[#allocation5 + $0x1a0] sm:$0xff] %vm4732, %v5313
      %5392 = vst.msk [vmem:[#allocation5 + $0x1b8] sm:$0xff] %vm4732, %v5315
      %5393 = vst.msk [vmem:[#allocation5 + $0x1d0] sm:$0xff] %vm4732, %v5317
      %5394 = vst.msk [vmem:[#allocation5 + $0x1e8] sm:$0xff] %vm4732, %v5319
      %5395 = vst.msk [vmem:[#allocation5 + $0x200] sm:$0xff] %vm4732, %v5321
      %5396 = vst.msk [vmem:[#allocation5 + $0x218] sm:$0xff] %vm4732, %v5323
      %5397 = vst.msk [vmem:[#allocation5 + $0x230] sm:$0xff] %vm4732, %v5325
      %5398 = vst.msk [vmem:[#allocation5 + $0x248] sm:$0xff] %vm4732, %v5327
      %5399 = vst.msk [vmem:[#allocation5 + $0x260] sm:$0xff] %vm4732, %v5329
      %5400 = vst.msk [vmem:[#allocation5 + $0x278] sm:$0xff] %vm4732, %v5331
      %5401 = vst.msk [vmem:[#allocation5 + $0x290] sm:$0xff] %vm4732, %v5333
      %5402 = vst.msk [vmem:[#allocation5 + $0x2a8] sm:$0xff] %vm4732, %v5335
      %5403 = vst.msk [vmem:[#allocation5 + $0x2c0] sm:$0xff] %vm4732, %v5337
      %5404 = vst.msk [vmem:[#allocation5 + $0x2d8] sm:$0xff] %vm4732, %v5339
      %5405 = vst.msk [vmem:[#allocation5 + $0x2f0] sm:$0xff] %vm4732, %v5341
      %v5406 = vld [vmem:[%s5021 + $0x2] sm:$0xff]
      %v5407 = vld [vmem:[%s5021 + $0xa] sm:$0xff]
      %v5408 = vld [vmem:[%s5021 + $0x1a] sm:$0xff]
      %v5409 = vld [vmem:[%s5021 + $0x22] sm:$0xff]
      %v5410 = vld [vmem:[%s5021 + $0x32] sm:$0xff]
      %v5411 = vld [vmem:[%s5021 + $0x3a] sm:$0xff]
      %v5412 = vld [vmem:[%s5021 + $0x4a] sm:$0xff]
      %v5413 = vld [vmem:[%s5021 + $0x52] sm:$0xff]
      %v5414 = vld [vmem:[%s5021 + $0x62] sm:$0xff]
      %v5415 = vld [vmem:[%s5021 + $0x6a] sm:$0xff]
      %v5416 = vld [vmem:[%s5021 + $0x7a] sm:$0xff]
      %v5417 = vld [vmem:[%s5021 + $0x82] sm:$0xff]
      %v5418 = vld [vmem:[%s5021 + $0x92] sm:$0xff]
      %v5419 = vld [vmem:[%s5021 + $0x9a] sm:$0xff]
      %v5420 = vld [vmem:[%s5021 + $0xaa] sm:$0xff]
      %v5421 = vld [vmem:[%s5021 + $0xb2] sm:$0xff]
      %v5422 = vld [vmem:[%s5021 + $0xc2] sm:$0xff]
      %v5423 = vld [vmem:[%s5021 + $0xca] sm:$0xff]
      %v5424 = vld [vmem:[%s5021 + $0xda] sm:$0xff]
      %v5425 = vld [vmem:[%s5021 + $0xe2] sm:$0xff]
      %v5426 = vld [vmem:[%s5021 + $0xf2] sm:$0xff]
      %v5427 = vld [vmem:[%s5021 + $0xfa] sm:$0xff]
      %v5428 = vld [vmem:[%s5021 + $0x10a] sm:$0xff]
      %v5429 = vld [vmem:[%s5021 + $0x112] sm:$0xff]
      %v5430 = vld [vmem:[%s5021 + $0x122] sm:$0xff]
      %v5431 = vld [vmem:[%s5021 + $0x12a] sm:$0xff]
      %v5432 = vld [vmem:[%s5021 + $0x13a] sm:$0xff]
      %v5433 = vld [vmem:[%s5021 + $0x142] sm:$0xff]
      %v5434 = vld [vmem:[%s5021 + $0x152] sm:$0xff]
      %v5435 = vld [vmem:[%s5021 + $0x15a] sm:$0xff]
      %v5436 = vld [vmem:[%s5021 + $0x16a] sm:$0xff]
      %v5437 = vld [vmem:[%s5021 + $0x172] sm:$0xff]
      %5438 = vst.msk [vmem:[#allocation5 + $0x10] sm:$0xff] %vm2285, %v5406
      %5439 = vst.msk [vmem:[#allocation5 + $0x28] sm:$0xff] %vm2285, %v5407
      %5440 = vst.msk [vmem:[#allocation5 + $0x40] sm:$0xff] %vm2285, %v5408
      %5441 = vst.msk [vmem:[#allocation5 + $0x58] sm:$0xff] %vm2285, %v5409
      %5442 = vst.msk [vmem:[#allocation5 + $0x70] sm:$0xff] %vm2285, %v5410
      %5443 = vst.msk [vmem:[#allocation5 + $0x88] sm:$0xff] %vm2285, %v5411
      %5444 = vst.msk [vmem:[#allocation5 + $0xa0] sm:$0xff] %vm2285, %v5412
      %5445 = vst.msk [vmem:[#allocation5 + $0xb8] sm:$0xff] %vm2285, %v5413
      %5446 = vst.msk [vmem:[#allocation5 + $0xd0] sm:$0xff] %vm2285, %v5414
      %5447 = vst.msk [vmem:[#allocation5 + $0xe8] sm:$0xff] %vm2285, %v5415
      %5448 = vst.msk [vmem:[#allocation5 + $0x100] sm:$0xff] %vm2285, %v5416
      %5449 = vst.msk [vmem:[#allocation5 + $0x118] sm:$0xff] %vm2285, %v5417
      %5450 = vst.msk [vmem:[#allocation5 + $0x130] sm:$0xff] %vm2285, %v5418
      %5451 = vst.msk [vmem:[#allocation5 + $0x148] sm:$0xff] %vm2285, %v5419
      %5452 = vst.msk [vmem:[#allocation5 + $0x160] sm:$0xff] %vm2285, %v5420
      %5453 = vst.msk [vmem:[#allocation5 + $0x178] sm:$0xff] %vm2285, %v5421
      %5454 = vst.msk [vmem:[#allocation5 + $0x190] sm:$0xff] %vm2285, %v5422
      %5455 = vst.msk [vmem:[#allocation5 + $0x1a8] sm:$0xff] %vm2285, %v5423
      %5456 = vst.msk [vmem:[#allocation5 + $0x1c0] sm:$0xff] %vm2285, %v5424
      %5457 = vst.msk [vmem:[#allocation5 + $0x1d8] sm:$0xff] %vm2285, %v5425
      %5458 = vst.msk [vmem:[#allocation5 + $0x1f0] sm:$0xff] %vm2285, %v5426
      %5459 = vst.msk [vmem:[#allocation5 + $0x208] sm:$0xff] %vm2285, %v5427
      %5460 = vst.msk [vmem:[#allocation5 + $0x220] sm:$0xff] %vm2285, %v5428
      %5461 = vst.msk [vmem:[#allocation5 + $0x238] sm:$0xff] %vm2285, %v5429
      %5462 = vst.msk [vmem:[#allocation5 + $0x250] sm:$0xff] %vm2285, %v5430
      %5463 = vst.msk [vmem:[#allocation5 + $0x268] sm:$0xff] %vm2285, %v5431
      %5464 = vst.msk [vmem:[#allocation5 + $0x280] sm:$0xff] %vm2285, %v5432
      %5465 = vst.msk [vmem:[#allocation5 + $0x298] sm:$0xff] %vm2285, %v5433
      %5466 = vst.msk [vmem:[#allocation5 + $0x2b0] sm:$0xff] %vm2285, %v5434
      %5467 = vst.msk [vmem:[#allocation5 + $0x2c8] sm:$0xff] %vm2285, %v5435
      %5468 = vst.msk [vmem:[#allocation5 + $0x2e0] sm:$0xff] %vm2285, %v5436
      %5469 = vst.msk [vmem:[#allocation5 + $0x2f8] sm:$0xff] %vm2285, %v5437
      %v5470 = vld [vmem:[%s2] sm:$0xff]
      %v5471 = vld [vmem:[%s2 + $0x8] sm:$0xff]
      %v5472 = vld [vmem:[%s2 + $0x10] sm:$0xff]
      %v5473 = vld [vmem:[%s2 + $0x18] sm:$0xff]
      %v5474 = vld [vmem:[%s2 + $0x20] sm:$0xff]
      %v5475 = vld [vmem:[%s2 + $0x28] sm:$0xff]
      %v5476 = vld [vmem:[%s2 + $0x30] sm:$0xff]
      %v5477 = vld [vmem:[%s2 + $0x38] sm:$0xff]
      %v5478 = vld [vmem:[%s2 + $0x40] sm:$0xff]
      %v5479 = vld [vmem:[%s2 + $0x48] sm:$0xff]
      %v5480 = vld [vmem:[%s2 + $0x50] sm:$0xff]
      %v5481 = vld [vmem:[%s2 + $0x58] sm:$0xff]
      %v5482 = vld [vmem:[#allocation5] sm:$0xff]
      %v5483 = vld [vmem:[#allocation5 + $0x8] sm:$0xff]
      %v5484 = vld [vmem:[#allocation5 + $0x10] sm:$0xff]
      %v5485 = vld [vmem:[#allocation5 + $0x18] sm:$0xff]
      %v5486 = vld [vmem:[#allocation5 + $0x20] sm:$0xff]
      %v5487 = vld [vmem:[#allocation5 + $0x28] sm:$0xff]
      %v5488 = vld [vmem:[#allocation5 + $0x30] sm:$0xff]
      %v5489 = vld [vmem:[#allocation5 + $0x38] sm:$0xff]
      %v5490 = vld [vmem:[#allocation5 + $0x40] sm:$0xff]
      %v5491 = vld [vmem:[#allocation5 + $0x48] sm:$0xff]
      %v5492 = vld [vmem:[#allocation5 + $0x50] sm:$0xff]
      %v5493 = vld [vmem:[#allocation5 + $0x58] sm:$0xff]
      %v5494 = vld [vmem:[#allocation5 + $0x60] sm:$0xff]
      %v5495 = vld [vmem:[#allocation5 + $0x68] sm:$0xff]
      %v5496 = vld [vmem:[#allocation5 + $0x70] sm:$0xff]
      %v5497 = vld [vmem:[#allocation5 + $0x78] sm:$0xff]
      %v5498 = vld [vmem:[#allocation5 + $0x80] sm:$0xff]
      %v5499 = vld [vmem:[#allocation5 + $0x88] sm:$0xff]
      %v5500 = vld [vmem:[#allocation5 + $0x90] sm:$0xff]
      %v5501 = vld [vmem:[#allocation5 + $0x98] sm:$0xff]
      %v5502 = vld [vmem:[#allocation5 + $0xa0] sm:$0xff]
      %v5503 = vld [vmem:[#allocation5 + $0xa8] sm:$0xff]
      %v5504 = vld [vmem:[#allocation5 + $0xb0] sm:$0xff]
      %v5505 = vld [vmem:[#allocation5 + $0xb8] sm:$0xff]
      %v5506 = vld [vmem:[#allocation5 + $0xc0] sm:$0xff]
      %v5507 = vld [vmem:[#allocation5 + $0xc8] sm:$0xff]
      %v5508 = vld [vmem:[#allocation5 + $0xd0] sm:$0xff]
      %v5509 = vld [vmem:[#allocation5 + $0xd8] sm:$0xff]
      %v5510 = vld [vmem:[#allocation5 + $0xe0] sm:$0xff]
      %v5511 = vld [vmem:[#allocation5 + $0xe8] sm:$0xff]
      %v5512 = vld [vmem:[#allocation5 + $0xf0] sm:$0xff]
      %v5513 = vld [vmem:[#allocation5 + $0xf8] sm:$0xff]
      %v5514 = vld [vmem:[#allocation5 + $0x100] sm:$0xff]
      %v5515 = vld [vmem:[#allocation5 + $0x108] sm:$0xff]
      %v5516 = vld [vmem:[#allocation5 + $0x110] sm:$0xff]
      %v5517 = vld [vmem:[#allocation5 + $0x118] sm:$0xff]
      %v5518 = vld [vmem:[#allocation5 + $0x120] sm:$0xff]
      %v5519 = vld [vmem:[#allocation5 + $0x128] sm:$0xff]
      %v5520 = vld [vmem:[#allocation5 + $0x130] sm:$0xff]
      %v5521 = vld [vmem:[#allocation5 + $0x138] sm:$0xff]
      %v5522 = vld [vmem:[#allocation5 + $0x140] sm:$0xff]
      %v5523 = vld [vmem:[#allocation5 + $0x148] sm:$0xff]
      %v5524 = vld [vmem:[#allocation5 + $0x150] sm:$0xff]
      %v5525 = vld [vmem:[#allocation5 + $0x158] sm:$0xff]
      %v5526 = vld [vmem:[#allocation5 + $0x160] sm:$0xff]
      %v5527 = vld [vmem:[#allocation5 + $0x168] sm:$0xff]
      %v5528 = vld [vmem:[#allocation5 + $0x170] sm:$0xff]
      %v5529 = vld [vmem:[#allocation5 + $0x178] sm:$0xff]
      %v5530 = vld [vmem:[#allocation5 + $0x180] sm:$0xff]
      %v5531 = vld [vmem:[#allocation5 + $0x188] sm:$0xff]
      %v5532 = vld [vmem:[#allocation5 + $0x190] sm:$0xff]
      %v5533 = vld [vmem:[#allocation5 + $0x198] sm:$0xff]
      %v5534 = vld [vmem:[#allocation5 + $0x1a0] sm:$0xff]
      %v5535 = vld [vmem:[#allocation5 + $0x1a8] sm:$0xff]
      %v5536 = vld [vmem:[#allocation5 + $0x1b0] sm:$0xff]
      %v5537 = vld [vmem:[#allocation5 + $0x1b8] sm:$0xff]
      %v5538 = vld [vmem:[#allocation5 + $0x1c0] sm:$0xff]
      %v5539 = vld [vmem:[#allocation5 + $0x1c8] sm:$0xff]
      %v5540 = vld [vmem:[#allocation5 + $0x1d0] sm:$0xff]
      %v5541 = vld [vmem:[#allocation5 + $0x1d8] sm:$0xff]
      %v5542 = vld [vmem:[#allocation5 + $0x1e0] sm:$0xff]
      %v5543 = vld [vmem:[#allocation5 + $0x1e8] sm:$0xff]
      %v5544 = vld [vmem:[#allocation5 + $0x1f0] sm:$0xff]
      %v5545 = vld [vmem:[#allocation5 + $0x1f8] sm:$0xff]
      %v5546 = vld [vmem:[#allocation5 + $0x200] sm:$0xff]
      %v5547 = vld [vmem:[#allocation5 + $0x208] sm:$0xff]
      %v5548 = vld [vmem:[#allocation5 + $0x210] sm:$0xff]
      %v5549 = vld [vmem:[#allocation5 + $0x218] sm:$0xff]
      %v5550 = vld [vmem:[#allocation5 + $0x220] sm:$0xff]
      %v5551 = vld [vmem:[#allocation5 + $0x228] sm:$0xff]
      %v5552 = vld [vmem:[#allocation5 + $0x230] sm:$0xff]
      %v5553 = vld [vmem:[#allocation5 + $0x238] sm:$0xff]
      %v5554 = vld [vmem:[#allocation5 + $0x240] sm:$0xff]
      %v5555 = vld [vmem:[#allocation5 + $0x248] sm:$0xff]
      %v5556 = vld [vmem:[#allocation5 + $0x250] sm:$0xff]
      %v5557 = vld [vmem:[#allocation5 + $0x258] sm:$0xff]
      %v5558 = vld [vmem:[#allocation5 + $0x260] sm:$0xff]
      %v5559 = vld [vmem:[#allocation5 + $0x268] sm:$0xff]
      %v5560 = vld [vmem:[#allocation5 + $0x270] sm:$0xff]
      %v5561 = vld [vmem:[#allocation5 + $0x278] sm:$0xff]
      %v5562 = vld [vmem:[#allocation5 + $0x280] sm:$0xff]
      %v5563 = vld [vmem:[#allocation5 + $0x288] sm:$0xff]
      %v5564 = vld [vmem:[#allocation5 + $0x290] sm:$0xff]
      %v5565 = vld [vmem:[#allocation5 + $0x298] sm:$0xff]
      %v5566 = vld [vmem:[#allocation5 + $0x2a0] sm:$0xff]
      %v5567 = vld [vmem:[#allocation5 + $0x2a8] sm:$0xff]
      %v5568 = vld [vmem:[#allocation5 + $0x2b0] sm:$0xff]
      %v5569 = vld [vmem:[#allocation5 + $0x2b8] sm:$0xff]
      %v5570 = vld [vmem:[#allocation5 + $0x2c0] sm:$0xff]
      %v5571 = vld [vmem:[#allocation5 + $0x2c8] sm:$0xff]
      %v5572 = vld [vmem:[#allocation5 + $0x2d0] sm:$0xff]
      %v5573 = vld [vmem:[#allocation5 + $0x2d8] sm:$0xff]
      %v5574 = vld [vmem:[#allocation5 + $0x2e0] sm:$0xff]
      %v5575 = vld [vmem:[#allocation5 + $0x2e8] sm:$0xff]
      %v5576 = vld [vmem:[#allocation5 + $0x2f0] sm:$0xff]
      %v5577 = vld [vmem:[#allocation5 + $0x2f8] sm:$0xff]
      %v5579 = vsel %vm2285, %v5472, 0
      %v5582 = vsel %vm2285, %v5475, 0
      %v5585 = vsel %vm2285, %v5478, 0
      %v5588 = vsel %vm2285, %v5481, 0
      %v5591 = vsel %vm2285, %v5484, 0
      %v5594 = vsel %vm2285, %v5487, 0
      %v5597 = vsel %vm2285, %v5490, 0
      %v5600 = vsel %vm2285, %v5493, 0
      %v5603 = vsel %vm2285, %v5496, 0
      %v5606 = vsel %vm2285, %v5499, 0
      %v5609 = vsel %vm2285, %v5502, 0
      %v5612 = vsel %vm2285, %v5505, 0
      %v5615 = vsel %vm2285, %v5508, 0
      %v5618 = vsel %vm2285, %v5511, 0
      %v5621 = vsel %vm2285, %v5514, 0
      %v5624 = vsel %vm2285, %v5517, 0
      %v5627 = vsel %vm2285, %v5520, 0
      %v5630 = vsel %vm2285, %v5523, 0
      %v5633 = vsel %vm2285, %v5526, 0
      %v5636 = vsel %vm2285, %v5529, 0
      %v5639 = vsel %vm2285, %v5532, 0
      %v5642 = vsel %vm2285, %v5535, 0
      %v5645 = vsel %vm2285, %v5538, 0
      %v5648 = vsel %vm2285, %v5541, 0
      %v5651 = vsel %vm2285, %v5544, 0
      %v5654 = vsel %vm2285, %v5547, 0
      %v5657 = vsel %vm2285, %v5550, 0
      %v5660 = vsel %vm2285, %v5553, 0
      %v5663 = vsel %vm2285, %v5556, 0
      %v5666 = vsel %vm2285, %v5559, 0
      %v5669 = vsel %vm2285, %v5562, 0
      %v5672 = vsel %vm2285, %v5565, 0
      %v5675 = vsel %vm2285, %v5568, 0
      %v5678 = vsel %vm2285, %v5571, 0
      %v5681 = vsel %vm2285, %v5574, 0
      %v5684 = vsel %vm2285, %v5577, 0
      %5686 = vmatpush.xpose.msra.mxu0 %v5527
      %5687 = vmatpush.xpose.msra.mxu0 %v5524
      %5688 = vmatpush.xpose.msra.mxu0 %v5521
      %5689 = vmatpush.xpose.msra.mxu0 %v5518
      %5690 = vmatpush.xpose.msra.mxu0 %v5515
      %5691 = vmatpush.xpose.msra.mxu0 %v5512
      %5692 = vmatpush.xpose.msra.mxu0 %v5509
      %5693 = vmatpush.xpose.msra.mxu0 %v5506
      %5694 = vmatpush.xpose.msra.mxu0 %v5503
      %5695 = vmatpush.xpose.msra.mxu0 %v5500
      %5696 = vmatpush.xpose.msra.mxu0 %v5497
      %5697 = vmatpush.xpose.msra.mxu0 %v5494
      %5698 = vmatpush.xpose.msra.mxu0 %v5491
      %5699 = vmatpush.xpose.msra.mxu0 %v5488
      %5700 = vmatpush.xpose.msra.mxu0 %v5485
      %5701 = vmatpush.xpose.msra.mxu0 %v5482
      %5702 = vmatmul.f32.gmra.mxu0 %v5470
      %v5703 = vpop.f32.mrf.mxu0
      %v5704 = vadd.f32 0.0, %v5703
      %5705 = vmatmul.f32.gmra.mxu0 %v5473
      %v5706 = vpop.f32.mrf.mxu0
      %v5707 = vadd.f32 0.0, %v5706
      %5708 = vmatmul.f32.gmra.mxu0 %v5476
      %v5709 = vpop.f32.mrf.mxu0
      %v5710 = vadd.f32 0.0, %v5709
      %5711 = vmatmul.f32.gmra.mxu0 %v5479
      %v5712 = vpop.f32.mrf.mxu0
      %v5713 = vadd.f32 0.0, %v5712
      %5714 = vdwg.mxu0
      %5715 = vmatpush.xpose.msra.mxu0 %v5528
      %5716 = vmatpush.xpose.msra.mxu0 %v5525
      %5717 = vmatpush.xpose.msra.mxu0 %v5522
      %5718 = vmatpush.xpose.msra.mxu0 %v5519
      %5719 = vmatpush.xpose.msra.mxu0 %v5516
      %5720 = vmatpush.xpose.msra.mxu0 %v5513
      %5721 = vmatpush.xpose.msra.mxu0 %v5510
      %5722 = vmatpush.xpose.msra.mxu0 %v5507
      %5723 = vmatpush.xpose.msra.mxu0 %v5504
      %5724 = vmatpush.xpose.msra.mxu0 %v5501
      %5725 = vmatpush.xpose.msra.mxu0 %v5498
      %5726 = vmatpush.xpose.msra.mxu0 %v5495
      %5727 = vmatpush.xpose.msra.mxu0 %v5492
      %5728 = vmatpush.xpose.msra.mxu0 %v5489
      %5729 = vmatpush.xpose.msra.mxu0 %v5486
      %5730 = vmatpush.xpose.msra.mxu0 %v5483
      %5731 = vmatmul.f32.gmra.mxu0 %v5471
      %v5732 = vpop.f32.mrf.mxu0
      %v5733 = vadd.f32 %v5704, %v5732
      %5734 = vmatmul.f32.gmra.mxu0 %v5474
      %v5735 = vpop.f32.mrf.mxu0
      %v5736 = vadd.f32 %v5707, %v5735
      %5737 = vmatmul.f32.gmra.mxu0 %v5477
      %v5738 = vpop.f32.mrf.mxu0
      %v5739 = vadd.f32 %v5710, %v5738
      %5740 = vmatmul.f32.gmra.mxu0 %v5480
      %v5741 = vpop.f32.mrf.mxu0
      %v5742 = vadd.f32 %v5713, %v5741
      %5743 = vdwg.mxu0
      %5744 = vmatpush.xpose.msra.mxu0 %v5636
      %5745 = vmatpush.xpose.msra.mxu0 %v5633
      %5746 = vmatpush.xpose.msra.mxu0 %v5630
      %5747 = vmatpush.xpose.msra.mxu0 %v5627
      %5748 = vmatpush.xpose.msra.mxu0 %v5624
      %5749 = vmatpush.xpose.msra.mxu0 %v5621
      %5750 = vmatpush.xpose.msra.mxu0 %v5618
      %5751 = vmatpush.xpose.msra.mxu0 %v5615
      %5752 = vmatpush.xpose.msra.mxu0 %v5612
      %5753 = vmatpush.xpose.msra.mxu0 %v5609
      %5754 = vmatpush.xpose.msra.mxu0 %v5606
      %5755 = vmatpush.xpose.msra.mxu0 %v5603
      %5756 = vmatpush.xpose.msra.mxu0 %v5600
      %5757 = vmatpush.xpose.msra.mxu0 %v5597
      %5758 = vmatpush.xpose.msra.mxu0 %v5594
      %5759 = vmatpush.xpose.msra.mxu0 %v5591
      %5760 = vmatmul.f32.gmra.mxu0 %v5579
      %v5761 = vpop.f32.mrf.mxu0
      %v5762 = vadd.f32 %v5733, %v5761
      %5763 = vmatmul.f32.gmra.mxu0 %v5582
      %v5764 = vpop.f32.mrf.mxu0
      %v5765 = vadd.f32 %v5736, %v5764
      %5766 = vmatmul.f32.gmra.mxu0 %v5585
      %v5767 = vpop.f32.mrf.mxu0
      %v5768 = vadd.f32 %v5739, %v5767
      %5769 = vmatmul.f32.gmra.mxu0 %v5588
      %v5770 = vpop.f32.mrf.mxu0
      %v5771 = vadd.f32 %v5742, %v5770
      %5772 = vdwg.mxu0
      %5773 = vmatpush.xpose.msra.mxu0 %v5575
      %5774 = vmatpush.xpose.msra.mxu0 %v5572
      %5775 = vmatpush.xpose.msra.mxu0 %v5569
      %5776 = vmatpush.xpose.msra.mxu0 %v5566
      %5777 = vmatpush.xpose.msra.mxu0 %v5563
      %5778 = vmatpush.xpose.msra.mxu0 %v5560
      %5779 = vmatpush.xpose.msra.mxu0 %v5557
      %5780 = vmatpush.xpose.msra.mxu0 %v5554
      %5781 = vmatpush.xpose.msra.mxu0 %v5551
      %5782 = vmatpush.xpose.msra.mxu0 %v5548
      %5783 = vmatpush.xpose.msra.mxu0 %v5545
      %5784 = vmatpush.xpose.msra.mxu0 %v5542
      %5785 = vmatpush.xpose.msra.mxu0 %v5539
      %5786 = vmatpush.xpose.msra.mxu0 %v5536
      %5787 = vmatpush.xpose.msra.mxu0 %v5533
      %5788 = vmatpush.xpose.msra.mxu0 %v5530
      %5789 = vmatmul.f32.gmra.mxu0 %v5470
      %v5790 = vpop.f32.mrf.mxu0
      %v5791 = vadd.f32 0.0, %v5790
      %5792 = vmatmul.f32.gmra.mxu0 %v5473
      %v5793 = vpop.f32.mrf.mxu0
      %v5794 = vadd.f32 0.0, %v5793
      %5795 = vmatmul.f32.gmra.mxu0 %v5476
      %v5796 = vpop.f32.mrf.mxu0
      %v5797 = vadd.f32 0.0, %v5796
      %5798 = vmatmul.f32.gmra.mxu0 %v5479
      %v5799 = vpop.f32.mrf.mxu0
      %v5800 = vadd.f32 0.0, %v5799
      %5801 = vdwg.mxu0
      %5802 = vmatpush.xpose.msra.mxu0 %v5576
      %5803 = vmatpush.xpose.msra.mxu0 %v5573
      %5804 = vmatpush.xpose.msra.mxu0 %v5570
      %5805 = vmatpush.xpose.msra.mxu0 %v5567
      %5806 = vmatpush.xpose.msra.mxu0 %v5564
      %5807 = vmatpush.xpose.msra.mxu0 %v5561
      %5808 = vmatpush.xpose.msra.mxu0 %v5558
      %5809 = vmatpush.xpose.msra.mxu0 %v5555
      %5810 = vmatpush.xpose.msra.mxu0 %v5552
      %5811 = vmatpush.xpose.msra.mxu0 %v5549
      %5812 = vmatpush.xpose.msra.mxu0 %v5546
      %5813 = vmatpush.xpose.msra.mxu0 %v5543
      %5814 = vmatpush.xpose.msra.mxu0 %v5540
      %5815 = vmatpush.xpose.msra.mxu0 %v5537
      %5816 = vmatpush.xpose.msra.mxu0 %v5534
      %5817 = vmatpush.xpose.msra.mxu0 %v5531
      %5818 = vmatmul.f32.gmra.mxu0 %v5471
      %v5819 = vpop.f32.mrf.mxu0
      %v5820 = vadd.f32 %v5791, %v5819
      %5821 = vmatmul.f32.gmra.mxu0 %v5474
      %v5822 = vpop.f32.mrf.mxu0
      %v5823 = vadd.f32 %v5794, %v5822
      %5824 = vmatmul.f32.gmra.mxu0 %v5477
      %v5825 = vpop.f32.mrf.mxu0
      %v5826 = vadd.f32 %v5797, %v5825
      %5827 = vmatmul.f32.gmra.mxu0 %v5480
      %v5828 = vpop.f32.mrf.mxu0
      %v5829 = vadd.f32 %v5800, %v5828
      %5830 = vdwg.mxu0
      %5831 = vmatpush.xpose.msra.mxu0 %v5684
      %5832 = vmatpush.xpose.msra.mxu0 %v5681
      %5833 = vmatpush.xpose.msra.mxu0 %v5678
      %5834 = vmatpush.xpose.msra.mxu0 %v5675
      %5835 = vmatpush.xpose.msra.mxu0 %v5672
      %5836 = vmatpush.xpose.msra.mxu0 %v5669
      %5837 = vmatpush.xpose.msra.mxu0 %v5666
      %5838 = vmatpush.xpose.msra.mxu0 %v5663
      %5839 = vmatpush.xpose.msra.mxu0 %v5660
      %5840 = vmatpush.xpose.msra.mxu0 %v5657
      %5841 = vmatpush.xpose.msra.mxu0 %v5654
      %5842 = vmatpush.xpose.msra.mxu0 %v5651
      %5843 = vmatpush.xpose.msra.mxu0 %v5648
      %5844 = vmatpush.xpose.msra.mxu0 %v5645
      %5845 = vmatpush.xpose.msra.mxu0 %v5642
      %5846 = vmatpush.xpose.msra.mxu0 %v5639
      %5847 = vmatmul.f32.gmra.mxu0 %v5579
      %v5848 = vpop.f32.mrf.mxu0
      %v5849 = vadd.f32 %v5820, %v5848
      %5850 = vmatmul.f32.gmra.mxu0 %v5582
      %v5851 = vpop.f32.mrf.mxu0
      %v5852 = vadd.f32 %v5823, %v5851
      %5853 = vmatmul.f32.gmra.mxu0 %v5585
      %v5854 = vpop.f32.mrf.mxu0
      %v5855 = vadd.f32 %v5826, %v5854
      %5856 = vmatmul.f32.gmra.mxu0 %v5588
      %v5857 = vpop.f32.mrf.mxu0
      %v5858 = vadd.f32 %v5829, %v5857
      %5859 = vdwg.mxu0
      %v5860 = vld [vmem:[%s5] sm:$0xff]
      %v5861 = vld [vmem:[%s5 + $0x8] sm:$0xff]
      %v5862 = vld [vmem:[%s5 + $0x10] sm:$0xff]
      %v5863 = vld [vmem:[%s5 + $0x18] sm:$0xff]
      %v5864 = vld [vmem:[%s6] sm:$0xff]
      %v5865 = vld [vmem:[%s6 + $0x8] sm:$0xff]
      %v5866 = vld [vmem:[%s6 + $0x10] sm:$0xff]
      %v5867 = vld [vmem:[%s6 + $0x18] sm:$0xff]
      %v5868 = vadd.f32 %v5762, %v5849
      %5869 = vadd.xlane.f32.xlu0 %v5868
      %v5870 = vpop.xlane.xlu0 %5869
      %v5871 = vadd.f32 %v5765, %v5852
      %5872 = vadd.xlane.f32.xlu0 %v5871
      %v5873 = vpop.xlane.xlu0 %5872
      %v5874 = vadd.f32 %v5768, %v5855
      %5875 = vadd.xlane.f32.xlu0 %v5874
      %v5876 = vpop.xlane.xlu0 %5875
      %v5877 = vadd.f32 %v5771, %v5858
      %5878 = vadd.xlane.f32.xlu0 %v5877
      %v5879 = vpop.xlane.xlu0 %5878
      %v5880 = vmul.f32 %v5870, 0.00390625
      %v5881 = vmul.f32 %v5873, 0.00390625
      %v5882 = vmul.f32 %v5876, 0.00390625
      %v5883 = vmul.f32 %v5879, 0.00390625
      %v5884 = vsub.f32 %v5762, %v5880
      %v5885 = vsub.f32 %v5849, %v5880
      %v5886 = vsub.f32 %v5765, %v5881
      %v5887 = vsub.f32 %v5852, %v5881
      %v5888 = vsub.f32 %v5768, %v5882
      %v5889 = vsub.f32 %v5855, %v5882
      %v5890 = vsub.f32 %v5771, %v5883
      %v5891 = vsub.f32 %v5858, %v5883
      %v5892 = vmul.f32 %v5884, %v5884
      %v5893 = vmul.f32 %v5885, %v5885
      %v5894 = vmul.f32 %v5886, %v5886
      %v5895 = vmul.f32 %v5887, %v5887
      %v5896 = vmul.f32 %v5888, %v5888
      %v5897 = vmul.f32 %v5889, %v5889
      %v5898 = vmul.f32 %v5890, %v5890
      %v5899 = vmul.f32 %v5891, %v5891
      %v5900 = vadd.f32 %v5892, %v5893
      %5901 = vadd.xlane.f32.xlu0 %v5900
      %v5902 = vpop.xlane.xlu0 %5901
      %v5903 = vadd.f32 %v5894, %v5895
      %5904 = vadd.xlane.f32.xlu0 %v5903
      %v5905 = vpop.xlane.xlu0 %5904
      %v5906 = vadd.f32 %v5896, %v5897
      %5907 = vadd.xlane.f32.xlu0 %v5906
      %v5908 = vpop.xlane.xlu0 %5907
      %v5909 = vadd.f32 %v5898, %v5899
      %5910 = vadd.xlane.f32.xlu0 %v5909
      %v5911 = vpop.xlane.xlu0 %5910
      %v5912 = vmul.f32 %v5902, 0.00390625
      %v5913 = vmul.f32 %v5905, 0.00390625
      %v5914 = vmul.f32 %v5908, 0.00390625
      %v5915 = vmul.f32 %v5911, 0.00390625
      %v5916 = vadd.f32 %v5912, 1e-05
      %v5917 = vadd.f32 %v5913, 1e-05
      %v5918 = vadd.f32 %v5914, 1e-05
      %v5919 = vadd.f32 %v5915, 1e-05
      %v5920 = vrsqrt.pop %v5916
      %v5921 = vmul.f32 %v5920, %v5916
      %v5922 = vmul.f32 %v5921, %v5920
      %v5923 = vmul.f32 0.5, %v5922
      %v5924 = vsub.f32 1.5, %v5923
      %v5925 = vmul.f32 %v5920, %v5924
      %vm5926 = vweird.f32 %v5916
      %vm5927 = vweird.f32 %v5920
      %vm5928 = vmor %vm5926, %vm5927
      %v5929 = vsel %vm5928, %v5920, %v5925
      %v5930 = vrsqrt.pop %v5917
      %v5931 = vmul.f32 %v5930, %v5917
      %v5932 = vmul.f32 %v5931, %v5930
      %v5933 = vmul.f32 0.5, %v5932
      %v5934 = vsub.f32 1.5, %v5933
      %v5935 = vmul.f32 %v5930, %v5934
      %vm5936 = vweird.f32 %v5917
      %vm5937 = vweird.f32 %v5930
      %vm5938 = vmor %vm5936, %vm5937
      %v5939 = vsel %vm5938, %v5930, %v5935
      %v5940 = vrsqrt.pop %v5918
      %v5941 = vmul.f32 %v5940, %v5918
      %v5942 = vmul.f32 %v5941, %v5940
      %v5943 = vmul.f32 0.5, %v5942
      %v5944 = vsub.f32 1.5, %v5943
      %v5945 = vmul.f32 %v5940, %v5944
      %vm5946 = vweird.f32 %v5918
      %vm5947 = vweird.f32 %v5940
      %vm5948 = vmor %vm5946, %vm5947
      %v5949 = vsel %vm5948, %v5940, %v5945
      %v5950 = vrsqrt.pop %v5919
      %v5951 = vmul.f32 %v5950, %v5919
      %v5952 = vmul.f32 %v5951, %v5950
      %v5953 = vmul.f32 0.5, %v5952
      %v5954 = vsub.f32 1.5, %v5953
      %v5955 = vmul.f32 %v5950, %v5954
      %vm5956 = vweird.f32 %v5919
      %vm5957 = vweird.f32 %v5950
      %vm5958 = vmor %vm5956, %vm5957
      %v5959 = vsel %vm5958, %v5950, %v5955
      %v5960 = vmul.f32 %v5884, %v5929
      %v5961 = vmul.f32 %v5885, %v5929
      %v5962 = vmul.f32 %v5886, %v5939
      %v5963 = vmul.f32 %v5887, %v5939
      %v5964 = vmul.f32 %v5888, %v5949
      %v5965 = vmul.f32 %v5889, %v5949
      %v5966 = vmul.f32 %v5890, %v5959
      %v5967 = vmul.f32 %v5891, %v5959
      %5969 = vset.pattern.permute.xlu0 0
      %5970 = vperm.xlu0 %5969, %v5860
      %v5971 = vpop.permute.xlu0 %5970
      %5974 = vset.pattern.permute.xlu0 0
      %5975 = vperm.xlu0 %5974, %v5861
      %v5976 = vpop.permute.xlu0 %5975
      %5979 = vset.pattern.permute.xlu0 0
      %5980 = vperm.xlu0 %5979, %v5862
      %v5981 = vpop.permute.xlu0 %5980
      %5984 = vset.pattern.permute.xlu0 0
      %5985 = vperm.xlu0 %5984, %v5863
      %v5986 = vpop.permute.xlu0 %5985
      %v5988 = vmul.f32 %v5960, %v5971
      %v5989 = vmul.f32 %v5961, %v5971
      %v5990 = vmul.f32 %v5962, %v5976
      %v5991 = vmul.f32 %v5963, %v5976
      %v5992 = vmul.f32 %v5964, %v5981
      %v5993 = vmul.f32 %v5965, %v5981
      %v5994 = vmul.f32 %v5966, %v5986
      %v5995 = vmul.f32 %v5967, %v5986
      %5997 = vset.pattern.permute.xlu0 0
      %5998 = vperm.xlu0 %5997, %v5864
      %v5999 = vpop.permute.xlu0 %5998
      %6002 = vset.pattern.permute.xlu0 0
      %6003 = vperm.xlu0 %6002, %v5865
      %v6004 = vpop.permute.xlu0 %6003
      %6007 = vset.pattern.permute.xlu0 0
      %6008 = vperm.xlu0 %6007, %v5866
      %v6009 = vpop.permute.xlu0 %6008
      %6012 = vset.pattern.permute.xlu0 0
      %6013 = vperm.xlu0 %6012, %v5867
      %v6014 = vpop.permute.xlu0 %6013
      %v6016 = vadd.f32 %v5988, %v5999
      %v6017 = vadd.f32 %v5989, %v5999
      %v6018 = vadd.f32 %v5990, %v6004
      %v6019 = vadd.f32 %v5991, %v6004
      %v6020 = vadd.f32 %v5992, %v6009
      %v6021 = vadd.f32 %v5993, %v6009
      %v6022 = vadd.f32 %v5994, %v6014
      %v6023 = vadd.f32 %v5995, %v6014
      %v6024 = vmul.f32 %v6016, 0.5
      %v6025 = vmul.f32 %v6017, 0.5
      %v6026 = vmul.f32 %v6018, 0.5
      %v6027 = vmul.f32 %v6019, 0.5
      %v6028 = vmul.f32 %v6020, 0.5
      %v6029 = vmul.f32 %v6021, 0.5
      %v6030 = vmul.f32 %v6022, 0.5
      %v6031 = vmul.f32 %v6023, 0.5
      %v6032 = vmul.f32 %v6016, 0.70710677
      %v6033 = vmul.f32 %v6017, 0.70710677
      %v6034 = vmul.f32 %v6018, 0.70710677
      %v6035 = vmul.f32 %v6019, 0.70710677
      %v6036 = vmul.f32 %v6020, 0.70710677
      %v6037 = vmul.f32 %v6021, 0.70710677
      %v6038 = vmul.f32 %v6022, 0.70710677
      %v6039 = vmul.f32 %v6023, 0.70710677
      %v6040 = vmul.f32 %v6032, %v6032
      %v6041 = vmin.f32 16.0, %v6040
      %v6042 = vmul.f32 %v6041, 2.1237322e-06
      %v6043 = vadd.f32 %v6042, 0.00028619796
      %v6044 = vmul.f32 %v6041, %v6043
      %v6045 = vadd.f32 %v6044, 0.0036580483
      %v6046 = vmul.f32 %v6041, %v6045
      %v6047 = vadd.f32 %v6046, 0.05243302
      %v6048 = vmul.f32 %v6041, %v6047
      %v6049 = vadd.f32 %v6048, 0.18741608
      %v6050 = vmul.f32 %v6041, %v6049
      %v6051 = vadd.f32 %v6050, 1.1283791
      %v6052 = vmul.f32 %v6032, %v6051
      %v6053 = vmul.f32 %v6041, 3.8918573e-05
      %v6054 = vadd.f32 %v6053, 0.001143296
      %v6055 = vmul.f32 %v6041, %v6054
      %v6056 = vadd.f32 %v6055, 0.014752088
      %v6057 = vmul.f32 %v6041, %v6056
      %v6058 = vadd.f32 %v6057, 0.112945676
      %v6059 = vmul.f32 %v6041, %v6058
      %v6060 = vadd.f32 %v6059, 0.4994258
      %v6061 = vmul.f32 %v6041, %v6060
      %v6062 = vadd.f32 %v6061, 1.0
      %v6063 = vrcp.pop %v6062
      %v6064 = vmul.f32 %v6062, %v6063
      %v6065 = vsub.f32 1.0, %v6064
      %v6066 = vmul.f32 %v6063, %v6065
      %v6067 = vadd.f32 %v6063, %v6066
      %vm6068 = vweird.f32 %v6062
      %vm6069 = vweird.f32 %v6063
      %vm6070 = vmor %vm6068, %vm6069
      %v6071 = vsel %vm6070, %v6063, %v6067
      %v6072 = vand.u32 2147483647, %v6062
      %vm6073 = vcmp.eq.f32.partialorder %v6072, 8.507059e+37
      %v6074 = vand.u32 %v6062, 2147483648
      %v6075 = vor.u32 1.1754944e-38, %v6074
      %v6076 = vsel %vm6073, %v6075, %v6071
      %v6077 = vmul.f32 %v6052, %v6076
      %v6078 = vmin.f32 %v6077, 1.0
      %v6079 = vmax.f32 %v6078, -1.0
      %v6080 = vmul.f32 %v6033, %v6033
      %v6081 = vmin.f32 16.0, %v6080
      %v6082 = vmul.f32 %v6081, 2.1237322e-06
      %v6083 = vadd.f32 %v6082, 0.00028619796
      %v6084 = vmul.f32 %v6081, %v6083
      %v6085 = vadd.f32 %v6084, 0.0036580483
      %v6086 = vmul.f32 %v6081, %v6085
      %v6087 = vadd.f32 %v6086, 0.05243302
      %v6088 = vmul.f32 %v6081, %v6087
      %v6089 = vadd.f32 %v6088, 0.18741608
      %v6090 = vmul.f32 %v6081, %v6089
      %v6091 = vadd.f32 %v6090, 1.1283791
      %v6092 = vmul.f32 %v6033, %v6091
      %v6093 = vmul.f32 %v6081, 3.8918573e-05
      %v6094 = vadd.f32 %v6093, 0.001143296
      %v6095 = vmul.f32 %v6081, %v6094
      %v6096 = vadd.f32 %v6095, 0.014752088
      %v6097 = vmul.f32 %v6081, %v6096
      %v6098 = vadd.f32 %v6097, 0.112945676
      %v6099 = vmul.f32 %v6081, %v6098
      %v6100 = vadd.f32 %v6099, 0.4994258
      %v6101 = vmul.f32 %v6081, %v6100
      %v6102 = vadd.f32 %v6101, 1.0
      %v6103 = vrcp.pop %v6102
      %v6104 = vmul.f32 %v6102, %v6103
      %v6105 = vsub.f32 1.0, %v6104
      %v6106 = vmul.f32 %v6103, %v6105
      %v6107 = vadd.f32 %v6103, %v6106
      %vm6108 = vweird.f32 %v6102
      %vm6109 = vweird.f32 %v6103
      %vm6110 = vmor %vm6108, %vm6109
      %v6111 = vsel %vm6110, %v6103, %v6107
      %v6112 = vand.u32 2147483647, %v6102
      %vm6113 = vcmp.eq.f32.partialorder %v6112, 8.507059e+37
      %v6114 = vand.u32 %v6102, 2147483648
      %v6115 = vor.u32 1.1754944e-38, %v6114
      %v6116 = vsel %vm6113, %v6115, %v6111
      %v6117 = vmul.f32 %v6092, %v6116
      %v6118 = vmin.f32 %v6117, 1.0
      %v6119 = vmax.f32 %v6118, -1.0
      %v6120 = vmul.f32 %v6034, %v6034
      %v6121 = vmin.f32 16.0, %v6120
      %v6122 = vmul.f32 %v6121, 2.1237322e-06
      %v6123 = vadd.f32 %v6122, 0.00028619796
      %v6124 = vmul.f32 %v6121, %v6123
      %v6125 = vadd.f32 %v6124, 0.0036580483
      %v6126 = vmul.f32 %v6121, %v6125
      %v6127 = vadd.f32 %v6126, 0.05243302
      %v6128 = vmul.f32 %v6121, %v6127
      %v6129 = vadd.f32 %v6128, 0.18741608
      %v6130 = vmul.f32 %v6121, %v6129
      %v6131 = vadd.f32 %v6130, 1.1283791
      %v6132 = vmul.f32 %v6034, %v6131
      %v6133 = vmul.f32 %v6121, 3.8918573e-05
      %v6134 = vadd.f32 %v6133, 0.001143296
      %v6135 = vmul.f32 %v6121, %v6134
      %v6136 = vadd.f32 %v6135, 0.014752088
      %v6137 = vmul.f32 %v6121, %v6136
      %v6138 = vadd.f32 %v6137, 0.112945676
      %v6139 = vmul.f32 %v6121, %v6138
      %v6140 = vadd.f32 %v6139, 0.4994258
      %v6141 = vmul.f32 %v6121, %v6140
      %v6142 = vadd.f32 %v6141, 1.0
      %v6143 = vrcp.pop %v6142
      %v6144 = vmul.f32 %v6142, %v6143
      %v6145 = vsub.f32 1.0, %v6144
      %v6146 = vmul.f32 %v6143, %v6145
      %v6147 = vadd.f32 %v6143, %v6146
      %vm6148 = vweird.f32 %v6142
      %vm6149 = vweird.f32 %v6143
      %vm6150 = vmor %vm6148, %vm6149
      %v6151 = vsel %vm6150, %v6143, %v6147
      %v6152 = vand.u32 2147483647, %v6142
      %vm6153 = vcmp.eq.f32.partialorder %v6152, 8.507059e+37
      %v6154 = vand.u32 %v6142, 2147483648
      %v6155 = vor.u32 1.1754944e-38, %v6154
      %v6156 = vsel %vm6153, %v6155, %v6151
      %v6157 = vmul.f32 %v6132, %v6156
      %v6158 = vmin.f32 %v6157, 1.0
      %v6159 = vmax.f32 %v6158, -1.0
      %v6160 = vmul.f32 %v6035, %v6035
      %v6161 = vmin.f32 16.0, %v6160
      %v6162 = vmul.f32 %v6161, 2.1237322e-06
      %v6163 = vadd.f32 %v6162, 0.00028619796
      %v6164 = vmul.f32 %v6161, %v6163
      %v6165 = vadd.f32 %v6164, 0.0036580483
      %v6166 = vmul.f32 %v6161, %v6165
      %v6167 = vadd.f32 %v6166, 0.05243302
      %v6168 = vmul.f32 %v6161, %v6167
      %v6169 = vadd.f32 %v6168, 0.18741608
      %v6170 = vmul.f32 %v6161, %v6169
      %v6171 = vadd.f32 %v6170, 1.1283791
      %v6172 = vmul.f32 %v6035, %v6171
      %v6173 = vmul.f32 %v6161, 3.8918573e-05
      %v6174 = vadd.f32 %v6173, 0.001143296
      %v6175 = vmul.f32 %v6161, %v6174
      %v6176 = vadd.f32 %v6175, 0.014752088
      %v6177 = vmul.f32 %v6161, %v6176
      %v6178 = vadd.f32 %v6177, 0.112945676
      %v6179 = vmul.f32 %v6161, %v6178
      %v6180 = vadd.f32 %v6179, 0.4994258
      %v6181 = vmul.f32 %v6161, %v6180
      %v6182 = vadd.f32 %v6181, 1.0
      %v6183 = vrcp.pop %v6182
      %v6184 = vmul.f32 %v6182, %v6183
      %v6185 = vsub.f32 1.0, %v6184
      %v6186 = vmul.f32 %v6183, %v6185
      %v6187 = vadd.f32 %v6183, %v6186
      %vm6188 = vweird.f32 %v6182
      %vm6189 = vweird.f32 %v6183
      %vm6190 = vmor %vm6188, %vm6189
      %v6191 = vsel %vm6190, %v6183, %v6187
      %v6192 = vand.u32 2147483647, %v6182
      %vm6193 = vcmp.eq.f32.partialorder %v6192, 8.507059e+37
      %v6194 = vand.u32 %v6182, 2147483648
      %v6195 = vor.u32 1.1754944e-38, %v6194
      %v6196 = vsel %vm6193, %v6195, %v6191
      %v6197 = vmul.f32 %v6172, %v6196
      %v6198 = vmin.f32 %v6197, 1.0
      %v6199 = vmax.f32 %v6198, -1.0
      %v6200 = vmul.f32 %v6036, %v6036
      %v6201 = vmin.f32 16.0, %v6200
      %v6202 = vmul.f32 %v6201, 2.1237322e-06
      %v6203 = vadd.f32 %v6202, 0.00028619796
      %v6204 = vmul.f32 %v6201, %v6203
      %v6205 = vadd.f32 %v6204, 0.0036580483
      %v6206 = vmul.f32 %v6201, %v6205
      %v6207 = vadd.f32 %v6206, 0.05243302
      %v6208 = vmul.f32 %v6201, %v6207
      %v6209 = vadd.f32 %v6208, 0.18741608
      %v6210 = vmul.f32 %v6201, %v6209
      %v6211 = vadd.f32 %v6210, 1.1283791
      %v6212 = vmul.f32 %v6036, %v6211
      %v6213 = vmul.f32 %v6201, 3.8918573e-05
      %v6214 = vadd.f32 %v6213, 0.001143296
      %v6215 = vmul.f32 %v6201, %v6214
      %v6216 = vadd.f32 %v6215, 0.014752088
      %v6217 = vmul.f32 %v6201, %v6216
      %v6218 = vadd.f32 %v6217, 0.112945676
      %v6219 = vmul.f32 %v6201, %v6218
      %v6220 = vadd.f32 %v6219, 0.4994258
      %v6221 = vmul.f32 %v6201, %v6220
      %v6222 = vadd.f32 %v6221, 1.0
      %v6223 = vrcp.pop %v6222
      %v6224 = vmul.f32 %v6222, %v6223
      %v6225 = vsub.f32 1.0, %v6224
      %v6226 = vmul.f32 %v6223, %v6225
      %v6227 = vadd.f32 %v6223, %v6226
      %vm6228 = vweird.f32 %v6222
      %vm6229 = vweird.f32 %v6223
      %vm6230 = vmor %vm6228, %vm6229
      %v6231 = vsel %vm6230, %v6223, %v6227
      %v6232 = vand.u32 2147483647, %v6222
      %vm6233 = vcmp.eq.f32.partialorder %v6232, 8.507059e+37
      %v6234 = vand.u32 %v6222, 2147483648
      %v6235 = vor.u32 1.1754944e-38, %v6234
      %v6236 = vsel %vm6233, %v6235, %v6231
      %v6237 = vmul.f32 %v6212, %v6236
      %v6238 = vmin.f32 %v6237, 1.0
      %v6239 = vmax.f32 %v6238, -1.0
      %v6240 = vmul.f32 %v6037, %v6037
      %v6241 = vmin.f32 16.0, %v6240
      %v6242 = vmul.f32 %v6241, 2.1237322e-06
      %v6243 = vadd.f32 %v6242, 0.00028619796
      %v6244 = vmul.f32 %v6241, %v6243
      %v6245 = vadd.f32 %v6244, 0.0036580483
      %v6246 = vmul.f32 %v6241, %v6245
      %v6247 = vadd.f32 %v6246, 0.05243302
      %v6248 = vmul.f32 %v6241, %v6247
      %v6249 = vadd.f32 %v6248, 0.18741608
      %v6250 = vmul.f32 %v6241, %v6249
      %v6251 = vadd.f32 %v6250, 1.1283791
      %v6252 = vmul.f32 %v6037, %v6251
      %v6253 = vmul.f32 %v6241, 3.8918573e-05
      %v6254 = vadd.f32 %v6253, 0.001143296
      %v6255 = vmul.f32 %v6241, %v6254
      %v6256 = vadd.f32 %v6255, 0.014752088
      %v6257 = vmul.f32 %v6241, %v6256
      %v6258 = vadd.f32 %v6257, 0.112945676
      %v6259 = vmul.f32 %v6241, %v6258
      %v6260 = vadd.f32 %v6259, 0.4994258
      %v6261 = vmul.f32 %v6241, %v6260
      %v6262 = vadd.f32 %v6261, 1.0
      %v6263 = vrcp.pop %v6262
      %v6264 = vmul.f32 %v6262, %v6263
      %v6265 = vsub.f32 1.0, %v6264
      %v6266 = vmul.f32 %v6263, %v6265
      %v6267 = vadd.f32 %v6263, %v6266
      %vm6268 = vweird.f32 %v6262
      %vm6269 = vweird.f32 %v6263
      %vm6270 = vmor %vm6268, %vm6269
      %v6271 = vsel %vm6270, %v6263, %v6267
      %v6272 = vand.u32 2147483647, %v6262
      %vm6273 = vcmp.eq.f32.partialorder %v6272, 8.507059e+37
      %v6274 = vand.u32 %v6262, 2147483648
      %v6275 = vor.u32 1.1754944e-38, %v6274
      %v6276 = vsel %vm6273, %v6275, %v6271
      %v6277 = vmul.f32 %v6252, %v6276
      %v6278 = vmin.f32 %v6277, 1.0
      %v6279 = vmax.f32 %v6278, -1.0
      %v6280 = vmul.f32 %v6038, %v6038
      %v6281 = vmin.f32 16.0, %v6280
      %v6282 = vmul.f32 %v6281, 2.1237322e-06
      %v6283 = vadd.f32 %v6282, 0.00028619796
      %v6284 = vmul.f32 %v6281, %v6283
      %v6285 = vadd.f32 %v6284, 0.0036580483
      %v6286 = vmul.f32 %v6281, %v6285
      %v6287 = vadd.f32 %v6286, 0.05243302
      %v6288 = vmul.f32 %v6281, %v6287
      %v6289 = vadd.f32 %v6288, 0.18741608
      %v6290 = vmul.f32 %v6281, %v6289
      %v6291 = vadd.f32 %v6290, 1.1283791
      %v6292 = vmul.f32 %v6038, %v6291
      %v6293 = vmul.f32 %v6281, 3.8918573e-05
      %v6294 = vadd.f32 %v6293, 0.001143296
      %v6295 = vmul.f32 %v6281, %v6294
      %v6296 = vadd.f32 %v6295, 0.014752088
      %v6297 = vmul.f32 %v6281, %v6296
      %v6298 = vadd.f32 %v6297, 0.112945676
      %v6299 = vmul.f32 %v6281, %v6298
      %v6300 = vadd.f32 %v6299, 0.4994258
      %v6301 = vmul.f32 %v6281, %v6300
      %v6302 = vadd.f32 %v6301, 1.0
      %v6303 = vrcp.pop %v6302
      %v6304 = vmul.f32 %v6302, %v6303
      %v6305 = vsub.f32 1.0, %v6304
      %v6306 = vmul.f32 %v6303, %v6305
      %v6307 = vadd.f32 %v6303, %v6306
      %vm6308 = vweird.f32 %v6302
      %vm6309 = vweird.f32 %v6303
      %vm6310 = vmor %vm6308, %vm6309
      %v6311 = vsel %vm6310, %v6303, %v6307
      %v6312 = vand.u32 2147483647, %v6302
      %vm6313 = vcmp.eq.f32.partialorder %v6312, 8.507059e+37
      %v6314 = vand.u32 %v6302, 2147483648
      %v6315 = vor.u32 1.1754944e-38, %v6314
      %v6316 = vsel %vm6313, %v6315, %v6311
      %v6317 = vmul.f32 %v6292, %v6316
      %v6318 = vmin.f32 %v6317, 1.0
      %v6319 = vmax.f32 %v6318, -1.0
      %v6320 = vmul.f32 %v6039, %v6039
      %v6321 = vmin.f32 16.0, %v6320
      %v6322 = vmul.f32 %v6321, 2.1237322e-06
      %v6323 = vadd.f32 %v6322, 0.00028619796
      %v6324 = vmul.f32 %v6321, %v6323
      %v6325 = vadd.f32 %v6324, 0.0036580483
      %v6326 = vmul.f32 %v6321, %v6325
      %v6327 = vadd.f32 %v6326, 0.05243302
      %v6328 = vmul.f32 %v6321, %v6327
      %v6329 = vadd.f32 %v6328, 0.18741608
      %v6330 = vmul.f32 %v6321, %v6329
      %v6331 = vadd.f32 %v6330, 1.1283791
      %v6332 = vmul.f32 %v6039, %v6331
      %v6333 = vmul.f32 %v6321, 3.8918573e-05
      %v6334 = vadd.f32 %v6333, 0.001143296
      %v6335 = vmul.f32 %v6321, %v6334
      %v6336 = vadd.f32 %v6335, 0.014752088
      %v6337 = vmul.f32 %v6321, %v6336
      %v6338 = vadd.f32 %v6337, 0.112945676
      %v6339 = vmul.f32 %v6321, %v6338
      %v6340 = vadd.f32 %v6339, 0.4994258
      %v6341 = vmul.f32 %v6321, %v6340
      %v6342 = vadd.f32 %v6341, 1.0
      %v6343 = vrcp.pop %v6342
      %v6344 = vmul.f32 %v6342, %v6343
      %v6345 = vsub.f32 1.0, %v6344
      %v6346 = vmul.f32 %v6343, %v6345
      %v6347 = vadd.f32 %v6343, %v6346
      %vm6348 = vweird.f32 %v6342
      %vm6349 = vweird.f32 %v6343
      %vm6350 = vmor %vm6348, %vm6349
      %v6351 = vsel %vm6350, %v6343, %v6347
      %v6352 = vand.u32 2147483647, %v6342
      %vm6353 = vcmp.eq.f32.partialorder %v6352, 8.507059e+37
      %v6354 = vand.u32 %v6342, 2147483648
      %v6355 = vor.u32 1.1754944e-38, %v6354
      %v6356 = vsel %vm6353, %v6355, %v6351
      %v6357 = vmul.f32 %v6332, %v6356
      %v6358 = vmin.f32 %v6357, 1.0
      %v6359 = vmax.f32 %v6358, -1.0
      %v6360 = vadd.f32 %v6079, 1.0
      %v6361 = vadd.f32 %v6119, 1.0
      %v6362 = vadd.f32 %v6159, 1.0
      %v6363 = vadd.f32 %v6199, 1.0
      %v6364 = vadd.f32 %v6239, 1.0
      %v6365 = vadd.f32 %v6279, 1.0
      %v6366 = vadd.f32 %v6319, 1.0
      %v6367 = vadd.f32 %v6359, 1.0
      %v6368 = vmul.f32 %v6024, %v6360
      %v6369 = vmul.f32 %v6025, %v6361
      %v6370 = vmul.f32 %v6026, %v6362
      %v6371 = vmul.f32 %v6027, %v6363
      %v6372 = vmul.f32 %v6028, %v6364
      %v6373 = vmul.f32 %v6029, %v6365
      %v6374 = vmul.f32 %v6030, %v6366
      %v6375 = vmul.f32 %v6031, %v6367
      %6376 = vst [vmem:[%s278] sm:$0xff] %v6368
      %6377 = vst [vmem:[%s278 + $0x8] sm:$0xff] %v6369
      %6378 = vst [vmem:[%s278 + $0x10] sm:$0xff] %v6370
      %6379 = vst [vmem:[%s278 + $0x18] sm:$0xff] %v6371
      %6380 = vst [vmem:[%s278 + $0x20] sm:$0xff] %v6372
      %6381 = vst [vmem:[%s278 + $0x28] sm:$0xff] %v6373
      %6382 = vst [vmem:[%s278 + $0x30] sm:$0xff] %v6374
      %6383 = vst [vmem:[%s278 + $0x38] sm:$0xff] %v6375
      %p6384 = scmp.lt.s32.totalorder %s18, 1
      %s6385 = scalar_select %p6384, %s18, 1
      %s6386 = smul.addr %s6385, 8
      %s6387 = smul.addr %s6386, 8
      %s6388 = scalar_lea.vmem %s7, %s6387
      // Predicated region
      $region49: #{decoder_block_forward.1} parent=47 // pred_check
        %p6389 = pneg %p188
      $region50: #{decoder_block_forward.1} parent=47 // pred_check_branch
        %6391 = sbr.rel (%p6389) target = $region52
      $region51: #{decoder_block_forward.1} parent=47 // pred_region
        _
      $region52: #{decoder_block_forward.1} parent=47 // pred_fallthru
        _
    $region48: #{decoder_block_forward.1} parent=5 // pred_fallthru
      _
    %p6392 = scmp.le.s32.totalorder 2, %s13
    // Predicated region
    $region53: #{decoder_block_forward.1} parent=5 // pred_check
      %p6393 = pneg %p6392
    $region54: #{decoder_block_forward.1} parent=5 // pred_check_branch
      %6395 = sbr.rel (%p6393) target = $region56
    $region55: #{decoder_block_forward.1} parent=5 // pred_region
      %s6396 = ssub.s32 %s13, 2
      // Predicated region
      $region57: #{decoder_block_forward.1} parent=55 // pred_check
        %p6397 = pneg %p194
      $region58: #{decoder_block_forward.1} parent=55 // pred_check_branch
        %6399 = sbr.rel (%p6397) target = $region60
      $region59: #{decoder_block_forward.1} parent=55 // pred_region
        %p6400 = scmp.lt.s32.totalorder %s19, 1
        %s6401 = scalar_select %p6400, %s19, 1
        %s6402 = smul.addr %s6401, 8
        %s6403 = smul.addr %s6402, 8
        %s6404 = scalar_lea.vmem %s7, %s6403
      $region60: #{decoder_block_forward.1} parent=55 // pred_fallthru
        _
    $region56: #{decoder_block_forward.1} parent=5 // pred_fallthru
      _
  $region6: #{decoder_block_forward.1} parent=0 // loop_footer
    %s17 = sadd.s32 1, %s13
  $region7: #{decoder_block_forward.1} parent=0 // loop_footer_branch
    %12 = sbr.rel target = $region3
  $region8: #{decoder_block_forward.1} parent=0 // loop_exit
    _

</llo_original>
